<compile_context>
chip_gen: v7x
topology: tpu7x:2x2x1
jax: 0.10.0
libtpu: 0.0.40
codegen_flags: <defaults>
</compile_context>

<pallas_src>
import jax
import jax.numpy as jnp
from jax.experimental import pallas as pl
from jax.experimental.pallas import tpu as pltpu


_EPS = 1e-5


# ----------------------------------------------------------------------------
# Helpers
# ----------------------------------------------------------------------------
def _nbytes(shape, dtype):
    n = 1
    for s in shape:
        n *= int(s)
    return n * jnp.dtype(dtype).itemsize


def _compiler_params(semantics, block_bytes, work_bytes):
    # Pipeline blocks are double-buffered; add in-kernel working set + headroom.
    limit = 2 * block_bytes + work_bytes + (8 << 20)
    limit = int(min(max(limit, 16 << 20), 120 << 20))
    return pltpu.CompilerParams(dimension_semantics=semantics,
                                vmem_limit_bytes=limit)


# ----------------------------------------------------------------------------
# Layer 1: (XLA-side im2col) matmul + InstanceNorm + ReLU, lane-dense output
# ----------------------------------------------------------------------------
def _make_l1_kernel(P_total):
    inv_p = 1.0 / float(P_total)

    def kernel(p_ref, w_ref, b_ref, o_ref):
        # p_ref: [1, 2, P/2, K] bf16 (even / odd spatial rows of im2col matrix)
        # w_ref: [K, 64] bf16; b_ref: [1, 64] f32; o_ref: [1, P/2, 128] bf16.
        w = w_ref[...]
        b = b_ref[...]
        y_e = jnp.dot(p_ref[0, 0], w, preferred_element_type=jnp.float32) + b
        y_o = jnp.dot(p_ref[0, 1], w, preferred_element_type=jnp.float32) + b
        # InstanceNorm2d(affine=False): two-pass per-channel stats over all P.
        mean = (jnp.sum(y_e, axis=0, keepdims=True)
                + jnp.sum(y_o, axis=0, keepdims=True)) * inv_p
        ce = y_e - mean
        co = y_o - mean
        var = (jnp.sum(ce * ce, axis=0, keepdims=True)
               + jnp.sum(co * co, axis=0, keepdims=True)) * inv_p
        s = jax.lax.rsqrt(var + _EPS)
        # Lane-dense pack: row r = [spatial 2r | spatial 2r+1] (64+64 = 128 lanes).
        out = jnp.concatenate(
            [jnp.maximum(ce * s, 0.0), jnp.maximum(co * s, 0.0)], axis=-1)
        o_ref[0] = out.astype(o_ref.dtype)

    return kernel


def _l1_conv_in_relu(patches_eo, w_mat, bias, P_total):
    """patches_eo: [N, 2, P/2, K] bf16; w_mat: [K, 64] bf16; bias: [1, 64] f32
    -> [N, P/2, 128] bf16 (channel-packed pairs of spatial positions)."""
    N, _, Ph, K = patches_eo.shape
    cout = w_mat.shape[1]
    block_bytes = (_nbytes((2, Ph, K), jnp.bfloat16)
                   + _nbytes((K, cout), jnp.bfloat16)
                   + _nbytes((1, cout), jnp.float32)
                   + _nbytes((Ph, 2 * cout), jnp.bfloat16))
    work_bytes = 6 * Ph * 2 * cout * 4
    return pl.pallas_call(
        _make_l1_kernel(P_total),
        out_shape=jax.ShapeDtypeStruct((N, Ph, 2 * cout), jnp.bfloat16),
        grid=(N,),
        in_specs=[
            pl.BlockSpec((1, 2, Ph, K), lambda n: (n, 0, 0, 0)),
            pl.BlockSpec((K, cout), lambda n: (0, 0)),
            pl.BlockSpec((1, cout), lambda n: (0, 0)),
        ],
        out_specs=pl.BlockSpec((1, Ph, 2 * cout), lambda n: (n, 0, 0)),
        compiler_params=_compiler_params(("parallel",), block_bytes, work_bytes),
    )(patches_eo, w_mat, bias)


# ----------------------------------------------------------------------------
# Layers 2/3: stride-2 3x3 conv (accumulated per-tap-group matmuls) + IN + ReLU
# ----------------------------------------------------------------------------
def _make_s2_kernel(Ho, Wo, cin):
    P = Ho * Wo
    inv_p = 1.0 / float(P)

    def kernel(x_ref, w_ref, b_ref, o_ref):
        # x_ref: [1, 2, Hh, Wh, 2*cin] bf16 parity-packed zero-padded activation
        #        (plane a = h%2; channel block b = w%2).
        # w_ref: [9*cin, ct] bf16; b_ref: [1, ct] f32; o_ref: [1, Ho, Wo, ct].
        ct = o_ref.shape[-1]
        x = x_ref[0]
        acc = jnp.zeros((P, ct), jnp.float32)
        for i in range(3):
            xi = x[i % 2]                      # [Hh, Wh, 2*cin] bf16
            r0 = i // 2
            # Taps (i,0) and (i,1): one contiguous 2*cin-wide slab at column 0;
            # their weight rows are contiguous as well (tap order (i, j, c)).
            slab = xi[r0:r0 + Ho, 0:Wo, :].reshape(P, 2 * cin)
            acc = acc + jnp.dot(slab, w_ref[3 * i * cin:(3 * i + 2) * cin, :],
                                preferred_element_type=jnp.float32)
            # Tap (i,2): cin-wide slab (w-even channel block) at column offset 1.
            slab = xi[r0:r0 + Ho, 1:1 + Wo, 0:cin].reshape(P, cin)
            acc = acc + jnp.dot(slab, w_ref[(3 * i + 2) * cin:(3 * i + 3) * cin, :],
                                preferred_element_type=jnp.float32)
        y = acc + b_ref[...]
        # InstanceNorm2d(affine=False), two-pass stats, then ReLU.
        mean = jnp.sum(y, axis=0, keepdims=True) * inv_p
        yc = y - mean
        var = jnp.sum(yc * yc, axis=0, keepdims=True) * inv_p
        y = jnp.maximum(yc * jax.lax.rsqrt(var + _EPS), 0.0)
        o_ref[0] = y.reshape(Ho, Wo, ct).astype(o_ref.dtype)

    return kernel


def _s2_conv_in_relu(x4, w_mat, bias, *, Ho, Wo, cin, out_dtype, cout_tile=128):
    """x4: [N, 2, Hh, Wh, 2*cin] bf16; w_mat: [9*cin, Cout] bf16; bias: [1, Cout]
    f32 -> [N, Ho, Wo, Cout].  Grid: (batch, Cout tiles), both parallel."""
    N, _, Hh, Wh, _ = x4.shape
    K, cout = w_mat.shape
    ct = min(cout_tile, cout)
    assert cout % ct == 0
    P = Ho * Wo
    block_bytes = (_nbytes((2, Hh, Wh, 2 * cin), jnp.bfloat16)
                   + _nbytes((K, ct), jnp.bfloat16)
                   + _nbytes((1, ct), jnp.float32)
                   + _nbytes((Ho, Wo, ct), out_dtype))
    work_bytes = 4 * P * ct * 4 + 2 * P * 2 * cin * 2
    return pl.pallas_call(
        _make_s2_kernel(Ho, Wo, cin),
        out_shape=jax.ShapeDtypeStruct((N, Ho, Wo, cout), out_dtype),
        grid=(N, cout // ct),
        in_specs=[
            pl.BlockSpec((1, 2, Hh, Wh, 2 * cin), lambda n, c: (n, 0, 0, 0, 0)),
            pl.BlockSpec((K, ct), lambda n, c: (0, c)),
            pl.BlockSpec((1, ct), lambda n, c: (0, c)),
        ],
        out_specs=pl.BlockSpec((1, Ho, Wo, ct), lambda n, c: (n, 0, 0, c)),
        compiler_params=_compiler_params(("parallel", "parallel"),
                                         block_bytes, work_bytes),
    )(x4, w_mat, bias)


# ----------------------------------------------------------------------------
# XLA-side glue (activation-sized, bf16)
# ----------------------------------------------------------------------------
def _im2col_stride1(xp, kh, kw, Ho, Wo):
    """xp: [N, Hp, Wp, C] -> [N, Ho*Wo, kh*kw*C] with (i, j, c) tap order."""
    N = xp.shape[0]
    C = xp.shape[-1]
    cols = jnp.concatenate([xp[:, :, j:j + Wo, :] for j in range(kw)], axis=-1)
    pats = jnp.concatenate([cols[:, i:i + Ho, :, :] for i in range(kh)], axis=-1)
    return pats.reshape(N, Ho * Wo, kh * kw * C)


def _parity_pack(xp):
    """[N, Hp, Wp, C] (Hp, Wp even) -> [N, 2, Hp//2, Wp//2, 2*C] with
    out[n, h%2, h//2, w//2, (w%2)*C + c] = xp[n, h, w, c]."""
    def pack_w(t):
        return jnp.concatenate([t[:, :, 0::2, :], t[:, :, 1::2, :]], axis=-1)
    return jnp.stack([pack_w(xp[:, 0::2]), pack_w(xp[:, 1::2])], axis=1)


def _weight_to_mat(w_oihw):
    """PyTorch conv weight [Cout, Cin, kh, kw] -> [kh*kw*Cin, Cout], (i, j, c) rows."""
    cout, cin, kh, kw = w_oihw.shape
    return jnp.transpose(w_oihw, (2, 3, 1, 0)).reshape(kh * kw * cin, cout)


def prepare_params(params):
    """One-time conversion (outside jit): bf16 [K, Cout] matrices, f32 [1, Cout] biases."""
    out = {}
    for i in (1, 2, 3):
        out[f"w{i}"] = _weight_to_mat(params[f"w{i}"]).astype(jnp.bfloat16)
        out[f"b{i}"] = params[f"b{i}"].reshape(1, -1).astype(jnp.float32)
    return out


def init_encoder_params(key):
    """Deterministic init matching the PyTorch module's parameter shapes."""
    ks = jax.random.split(key, 6)

    def conv_init(kw_key, kb_key, cout, cin, k):
        fan_in = cin * k * k
        bound = 1.0 / (fan_in ** 0.5)
        w = jax.random.uniform(kw_key, (cout, cin, k, k),
                               minval=-bound, maxval=bound, dtype=jnp.float32)
        b = jax.random.uniform(kb_key, (cout,),
                               minval=-bound, maxval=bound, dtype=jnp.float32)
        return w, b

    w1, b1 = conv_init(ks[0], ks[1], 64, 3, 7)
    w2, b2 = conv_init(ks[2], ks[3], 128, 64, 3)
    w3, b3 = conv_init(ks[4], ks[5], 256, 128, 3)
    return {"w1": w1, "b1": b1, "w2": w2, "b2": b2, "w3": w3, "b3": b3}


def encoder_forward(kparams, x_nchw):
    """Encoder forward pass. NCHW in / NCHW out. Requires H, W divisible by 4."""
    x = jnp.transpose(x_nchw, (0, 2, 3, 1)).astype(jnp.float32)     # NHWC
    N, H, W, _ = x.shape
    assert H % 4 == 0 and W % 4 == 0, "spatial dims must be divisible by 4"

    # Layer 1: ReflectionPad2d(3) + Conv2d(3, 64, 7, s=1) + IN + ReLU.
    xp = jnp.pad(x, ((0, 0), (3, 3), (3, 3), (0, 0)),
                 mode="reflect").astype(jnp.bfloat16)
    patches = _im2col_stride1(xp, 7, 7, H, W)                       # [N, H*W, 147]
    patches_eo = jnp.stack([patches[:, 0::2, :], patches[:, 1::2, :]], axis=1)
    y = _l1_conv_in_relu(patches_eo, kparams["w1"], kparams["b1"], H * W)
    y = y.reshape(N, H, W, 64)                                      # bf16, lane-dense slab

    # Layer 2: Conv2d(64, 128, 3, s=2, p=1) + IN + ReLU.
    x4 = _parity_pack(jnp.pad(y, ((0, 0), (1, 1), (1, 1), (0, 0))))
    y = _s2_conv_in_relu(x4, kparams["w2"], kparams["b2"],
                         Ho=H // 2, Wo=W // 2, cin=64, out_dtype=jnp.bfloat16)

    # Layer 3: Conv2d(128, 256, 3, s=2, p=1) + IN + ReLU.
    x4 = _parity_pack(jnp.pad(y, ((0, 0), (1, 1), (1, 1), (0, 0))))
    y = _s2_conv_in_relu(x4, kparams["w3"], kparams["b3"],
                         Ho=H // 4, Wo=W // 4, cin=128, out_dtype=jnp.float32)

    return jnp.transpose(y, (0, 3, 1, 2))                           # NCHW


# ----------------------------------------------------------------------------
# Pure-XLA f32 reference (for a tolerance check)
# ----------------------------------------------------------------------------
def reference_forward(params, x_nchw):
    x = jnp.transpose(x_nchw, (0, 2, 3, 1)).astype(jnp.float32)

    def conv(x, w, b, stride, padding):
        w_hwio = jnp.transpose(w, (2, 3, 1, 0))
        y = jax.lax.conv_general_dilated(
            x, w_hwio, (stride, stride), padding,
            dimension_numbers=("NHWC", "HWIO", "NHWC"))
        return y + b.reshape(1, 1, 1, -1)

    def in_relu(y):
        m = jnp.mean(y, axis=(1, 2), keepdims=True)
        v = jnp.mean((y - m) ** 2, axis=(1, 2), keepdims=True)
        return jnp.maximum((y - m) * jax.lax.rsqrt(v + _EPS), 0.0)

    xp = jnp.pad(x, ((0, 0), (3, 3), (3, 3), (0, 0)), mode="reflect")
    y = in_relu(conv(xp, params["w1"], params["b1"], 1, "VALID"))
    y = in_relu(conv(y, params["w2"], params["b2"], 2, [(1, 1), (1, 1)]))
    y = in_relu(conv(y, params["w3"], params["b3"], 2, [(1, 1), (1, 1)]))
    return jnp.transpose(y, (0, 3, 1, 2))


if __name__ == "__main__":
    key = jax.random.PRNGKey(0)
    pkey, xkey = jax.random.split(key)

    params = init_encoder_params(pkey)
    kparams = prepare_params(params)          # weight reshaping done once, outside jit

    # NCHW input, 3 channels as required by the module.
    x = jax.random.normal(xkey, (2, 3, 32, 32), dtype=jnp.float32)

    out = jax.jit(encoder_forward)(kparams, x)
    out = jax.block_until_ready(out)

    assert out.shape == (2, 256, 8, 8), out.shape
    assert bool(jnp.all(jnp.isfinite(out)))
    assert bool(jnp.all(out >= 0.0))          # final ReLU

    ref = jax.block_until_ready(reference_forward(params, x))
    rel = float(jnp.linalg.norm(out - ref) / (jnp.linalg.norm(ref) + 1e-8))
    assert rel < 0.1, f"relative L2 error vs f32 reference too large: {rel}"

    print("KERNEL_OK")
</pallas_src>

<mosaic_0001>
module attributes {stable_mosaic.version = 11 : i64} {
  func.func @kernel(%arg0: i32, %arg1: memref<1x2x512x147xbf16, #tpu.memory_space<vmem>>, %arg2: memref<147x64xbf16, #tpu.memory_space<vmem>>, %arg3: memref<1x64xf32, #tpu.memory_space<vmem>>, %arg4: memref<1x512x128xbf16, #tpu.memory_space<vmem>>) attributes {dimension_semantics = [#tpu.dimension_semantics<parallel>], iteration_bounds = array<i64: 2>, scalar_prefetch = 0 : i64, scratch_operands = 0 : i64, tpu.core_type = #tpu.core_type<tc>, window_params = [{transform_indices = @transform_0, window_bounds = array<i64: 1, 2, 512, 147>}, {pipeline_mode = #tpu.pipeline_mode<synchronous>, transform_indices = @transform_1, window_bounds = array<i64: 147, 64>}, {pipeline_mode = #tpu.pipeline_mode<synchronous>, transform_indices = @transform_2, window_bounds = array<i64: 1, 64>}, {transform_indices = @transform_3, window_bounds = array<i64: 1, 512, 128>}]} {
    %c0 = arith.constant 0 : index
    %c0_0 = arith.constant 0 : index
    %0 = vector.load %arg2[%c0, %c0_0] : memref<147x64xbf16, #tpu.memory_space<vmem>>, vector<147x64xbf16>
    %c0_1 = arith.constant 0 : index
    %c0_2 = arith.constant 0 : index
    %1 = vector.load %arg3[%c0_1, %c0_2] : memref<1x64xf32, #tpu.memory_space<vmem>>, vector<1x64xf32>
    %c0_3 = arith.constant 0 : index
    %c0_4 = arith.constant 0 : index
    %c0_5 = arith.constant 0 : index
    %c0_6 = arith.constant 0 : index
    %2 = vector.load %arg1[%c0_3, %c0_4, %c0_5, %c0_6] : memref<1x2x512x147xbf16, #tpu.memory_space<vmem>>, vector<1x1x512x147xbf16>
    %3 = vector.shape_cast %2 : vector<1x1x512x147xbf16> to vector<512x147xbf16>
    %cst = arith.constant dense<0.000000e+00> : vector<512x64xf32>
    %4 = tpu.matmul %3, %0, %cst {dimension_numbers = #tpu.dot_dimension_numbers<[1], [0], [0], [1], [0, 0, 1, 1], [], []>} : vector<512x147xbf16>, vector<147x64xbf16>, vector<512x64xf32> -> vector<512x64xf32>
    %5 = vector.broadcast %1 : vector<1x64xf32> to vector<512x64xf32>
    %6 = arith.addf %4, %5 : vector<512x64xf32>
    %c0_7 = arith.constant 0 : index
    %c1 = arith.constant 1 : index
    %c0_8 = arith.constant 0 : index
    %c0_9 = arith.constant 0 : index
    %7 = vector.load %arg1[%c0_7, %c1, %c0_8, %c0_9] : memref<1x2x512x147xbf16, #tpu.memory_space<vmem>>, vector<1x1x512x147xbf16>
    %8 = vector.shape_cast %7 : vector<1x1x512x147xbf16> to vector<512x147xbf16>
    %cst_10 = arith.constant dense<0.000000e+00> : vector<512x64xf32>
    %9 = tpu.matmul %8, %0, %cst_10 {dimension_numbers = #tpu.dot_dimension_numbers<[1], [0], [0], [1], [0, 0, 1, 1], [], []>} : vector<512x147xbf16>, vector<147x64xbf16>, vector<512x64xf32> -> vector<512x64xf32>
    %10 = vector.broadcast %1 : vector<1x64xf32> to vector<512x64xf32>
    %11 = arith.addf %9, %10 : vector<512x64xf32>
    %cst_11 = arith.constant dense<0.000000e+00> : vector<64xf32>
    %12 = vector.multi_reduction <add>, %6, %cst_11 [0] : vector<512x64xf32> to vector<64xf32>
    %13 = vector.shape_cast %12 : vector<64xf32> to vector<1x64xf32>
    %cst_12 = arith.constant dense<0.000000e+00> : vector<64xf32>
    %14 = vector.multi_reduction <add>, %11, %cst_12 [0] : vector<512x64xf32> to vector<64xf32>
    %15 = vector.shape_cast %14 : vector<64xf32> to vector<1x64xf32>
    %16 = arith.addf %13, %15 : vector<1x64xf32>
    %cst_13 = arith.constant 9.765625E-4 : f32
    %17 = vector.broadcast %cst_13 : f32 to vector<1x64xf32>
    %18 = arith.mulf %16, %17 : vector<1x64xf32>
    %19 = vector.broadcast %18 : vector<1x64xf32> to vector<512x64xf32>
    %20 = arith.subf %6, %19 : vector<512x64xf32>
    %21 = vector.broadcast %18 : vector<1x64xf32> to vector<512x64xf32>
    %22 = arith.subf %11, %21 : vector<512x64xf32>
    %23 = arith.mulf %20, %20 : vector<512x64xf32>
    %cst_14 = arith.constant dense<0.000000e+00> : vector<64xf32>
    %24 = vector.multi_reduction <add>, %23, %cst_14 [0] : vector<512x64xf32> to vector<64xf32>
    %25 = vector.shape_cast %24 : vector<64xf32> to vector<1x64xf32>
    %26 = arith.mulf %22, %22 : vector<512x64xf32>
    %cst_15 = arith.constant dense<0.000000e+00> : vector<64xf32>
    %27 = vector.multi_reduction <add>, %26, %cst_15 [0] : vector<512x64xf32> to vector<64xf32>
    %28 = vector.shape_cast %27 : vector<64xf32> to vector<1x64xf32>
    %29 = arith.addf %25, %28 : vector<1x64xf32>
    %cst_16 = arith.constant 9.765625E-4 : f32
    %30 = vector.broadcast %cst_16 : f32 to vector<1x64xf32>
    %31 = arith.mulf %29, %30 : vector<1x64xf32>
    %cst_17 = arith.constant 9.99999974E-6 : f32
    %32 = vector.broadcast %cst_17 : f32 to vector<1x64xf32>
    %33 = arith.addf %31, %32 : vector<1x64xf32>
    %34 = math.rsqrt %33 : vector<1x64xf32>
    %35 = vector.broadcast %34 : vector<1x64xf32> to vector<512x64xf32>
    %36 = arith.mulf %20, %35 : vector<512x64xf32>
    %cst_18 = arith.constant 0.000000e+00 : f32
    %37 = vector.broadcast %cst_18 : f32 to vector<512x64xf32>
    %38 = arith.maximumf %36, %37 : vector<512x64xf32>
    %39 = vector.broadcast %34 : vector<1x64xf32> to vector<512x64xf32>
    %40 = arith.mulf %22, %39 : vector<512x64xf32>
    %cst_19 = arith.constant 0.000000e+00 : f32
    %41 = vector.broadcast %cst_19 : f32 to vector<512x64xf32>
    %42 = arith.maximumf %40, %41 : vector<512x64xf32>
    %43 = tpu.concatenate %38, %42 in 1 : vector<512x64xf32>, vector<512x64xf32> -> vector<512x128xf32>
    %44 = arith.truncf %43 : vector<512x128xf32> to vector<512x128xbf16>
    %c0_20 = arith.constant 0 : index
    %c0_21 = arith.constant 0 : index
    %c0_22 = arith.constant 0 : index
    %45 = vector.load %arg4[%c0_20, %c0_21, %c0_22] : memref<1x512x128xbf16, #tpu.memory_space<vmem>>, vector<1x512x128xbf16>
    %46 = vector.shape_cast %45 : vector<1x512x128xbf16> to vector<512x128xbf16>
    %47 = vector.shape_cast %44 : vector<512x128xbf16> to vector<1x512x128xbf16>
    tpu.vector_store %arg4[%c0_20, %c0_21, %c0_22], %47 {strides = array<i32>} : memref<1x512x128xbf16, #tpu.memory_space<vmem>>, vector<1x512x128xbf16>,
    return
  }
  func.func @transform_0(%arg0: i32) -> (i32, i32, i32, i32) {
    %c0_i32 = arith.constant 0 : i32
    %c0_i32_0 = arith.constant 0 : i32
    %c0_i32_1 = arith.constant 0 : i32
    %c0_i32_2 = arith.constant 0 : i32
    return %arg0, %c0_i32, %c0_i32_0, %c0_i32_1 : i32, i32, i32, i32
  }
  func.func @transform_1(%arg0: i32) -> (i32, i32) {
    %c0_i32 = arith.constant 0 : i32
    %c0_i32_0 = arith.constant 0 : i32
    %c0_i32_1 = arith.constant 0 : i32
    return %c0_i32, %c0_i32_0 : i32, i32
  }
  func.func @transform_2(%arg0: i32) -> (i32, i32) {
    %c0_i32 = arith.constant 0 : i32
    %c0_i32_0 = arith.constant 0 : i32
    %c0_i32_1 = arith.constant 0 : i32
    return %c0_i32, %c0_i32_0 : i32, i32
  }
  func.func @transform_3(%arg0: i32) -> (i32, i32, i32) {
    %c0_i32 = arith.constant 0 : i32
    %c0_i32_0 = arith.constant 0 : i32
    %c0_i32_1 = arith.constant 0 : i32
    return %arg0, %c0_i32, %c0_i32_0 : i32, i32, i32
  }
}

module attributes {stable_mosaic.version = 11 : i64} {
  func.func @kernel(%arg0: i32, %arg1: i32, %arg2: memref<1x2x17x17x128xbf16, #tpu.memory_space<vmem>>, %arg3: memref<576x128xbf16, #tpu.memory_space<vmem>>, %arg4: memref<1x128xf32, #tpu.memory_space<vmem>>, %arg5: memref<1x16x16x128xbf16, #tpu.memory_space<vmem>>) attributes {dimension_semantics = [#tpu.dimension_semantics<parallel>, #tpu.dimension_semantics<parallel>], iteration_bounds = array<i64: 2, 1>, scalar_prefetch = 0 : i64, scratch_operands = 0 : i64, tpu.core_type = #tpu.core_type<tc>, window_params = [{transform_indices = @transform_0, window_bounds = array<i64: 1, 2, 17, 17, 128>}, {transform_indices = @transform_1, window_bounds = array<i64: 576, 128>}, {transform_indices = @transform_2, window_bounds = array<i64: 1, 128>}, {transform_indices = @transform_3, window_bounds = array<i64: 1, 16, 16, 128>}]} {
    %c0 = arith.constant 0 : index
    %c0_0 = arith.constant 0 : index
    %c0_1 = arith.constant 0 : index
    %c0_2 = arith.constant 0 : index
    %c0_3 = arith.constant 0 : index
    %0 = vector.load %arg2[%c0, %c0_0, %c0_1, %c0_2, %c0_3] : memref<1x2x17x17x128xbf16, #tpu.memory_space<vmem>>, vector<1x2x17x17x128xbf16>
    %1 = vector.shape_cast %0 : vector<1x2x17x17x128xbf16> to vector<2x17x17x128xbf16>
    %cst = arith.constant 0.000000e+00 : f32
    %2 = vector.broadcast %cst : f32 to vector<256x128xf32>
    %3 = vector.extract_strided_slice %1 {offsets = [0, 0, 0, 0], sizes = [1, 17, 17, 128], strides = [1, 1, 1, 1]} : vector<2x17x17x128xbf16> to vector<1x17x17x128xbf16>
    %4 = vector.shape_cast %3 : vector<1x17x17x128xbf16> to vector<17x17x128xbf16>
    %5 = vector.extract_strided_slice %4 {offsets = [0, 0, 0], sizes = [16, 16, 128], strides = [1, 1, 1]} : vector<17x17x128xbf16> to vector<16x16x128xbf16>
    %6 = vector.shape_cast %5 : vector<16x16x128xbf16> to vector<256x128xbf16>
    %c0_4 = arith.constant 0 : index
    %c0_5 = arith.constant 0 : index
    %7 = vector.load %arg3[%c0_4, %c0_5] : memref<576x128xbf16, #tpu.memory_space<vmem>>, vector<128x128xbf16>
    %cst_6 = arith.constant dense<0.000000e+00> : vector<256x128xf32>
    %8 = tpu.matmul %6, %7, %cst_6 {dimension_numbers = #tpu.dot_dimension_numbers<[1], [0], [0], [1], [0, 0, 1, 1], [], []>} : vector<256x128xbf16>, vector<128x128xbf16>, vector<256x128xf32> -> vector<256x128xf32>
    %9 = arith.addf %2, %8 : vector<256x128xf32>
    %10 = vector.extract_strided_slice %4 {offsets = [0, 1, 0], sizes = [16, 16, 64], strides = [1, 1, 1]} : vector<17x17x128xbf16> to vector<16x16x64xbf16>
    %11 = vector.shape_cast %10 : vector<16x16x64xbf16> to vector<256x64xbf16>
    %c128 = arith.constant 128 : index
    %c0_7 = arith.constant 0 : index
    %12 = vector.load %arg3[%c128, %c0_7] : memref<576x128xbf16, #tpu.memory_space<vmem>>, vector<64x128xbf16>
    %cst_8 = arith.constant dense<0.000000e+00> : vector<256x128xf32>
    %13 = tpu.matmul %11, %12, %cst_8 {dimension_numbers = #tpu.dot_dimension_numbers<[1], [0], [0], [1], [0, 0, 1, 1], [], []>} : vector<256x64xbf16>, vector<64x128xbf16>, vector<256x128xf32> -> vector<256x128xf32>
    %14 = arith.addf %9, %13 : vector<256x128xf32>
    %15 = vector.extract_strided_slice %1 {offsets = [1, 0, 0, 0], sizes = [1, 17, 17, 128], strides = [1, 1, 1, 1]} : vector<2x17x17x128xbf16> to vector<1x17x17x128xbf16>
    %16 = vector.shape_cast %15 : vector<1x17x17x128xbf16> to vector<17x17x128xbf16>
    %17 = vector.extract_strided_slice %16 {offsets = [0, 0, 0], sizes = [16, 16, 128], strides = [1, 1, 1]} : vector<17x17x128xbf16> to vector<16x16x128xbf16>
    %18 = vector.shape_cast %17 : vector<16x16x128xbf16> to vector<256x128xbf16>
    %c192 = arith.constant 192 : index
    %c0_9 = arith.constant 0 : index
    %19 = vector.load %arg3[%c192, %c0_9] : memref<576x128xbf16, #tpu.memory_space<vmem>>, vector<128x128xbf16>
    %cst_10 = arith.constant dense<0.000000e+00> : vector<256x128xf32>
    %20 = tpu.matmul %18, %19, %cst_10 {dimension_numbers = #tpu.dot_dimension_numbers<[1], [0], [0], [1], [0, 0, 1, 1], [], []>} : vector<256x128xbf16>, vector<128x128xbf16>, vector<256x128xf32> -> vector<256x128xf32>
    %21 = arith.addf %14, %20 : vector<256x128xf32>
    %22 = vector.extract_strided_slice %16 {offsets = [0, 1, 0], sizes = [16, 16, 64], strides = [1, 1, 1]} : vector<17x17x128xbf16> to vector<16x16x64xbf16>
    %23 = vector.shape_cast %22 : vector<16x16x64xbf16> to vector<256x64xbf16>
    %c320 = arith.constant 320 : index
    %c0_11 = arith.constant 0 : index
    %24 = vector.load %arg3[%c320, %c0_11] : memref<576x128xbf16, #tpu.memory_space<vmem>>, vector<64x128xbf16>
    %cst_12 = arith.constant dense<0.000000e+00> : vector<256x128xf32>
    %25 = tpu.matmul %23, %24, %cst_12 {dimension_numbers = #tpu.dot_dimension_numbers<[1], [0], [0], [1], [0, 0, 1, 1], [], []>} : vector<256x64xbf16>, vector<64x128xbf16>, vector<256x128xf32> -> vector<256x128xf32>
    %26 = arith.addf %21, %25 : vector<256x128xf32>
    %27 = vector.extract_strided_slice %1 {offsets = [0, 0, 0, 0], sizes = [1, 17, 17, 128], strides = [1, 1, 1, 1]} : vector<2x17x17x128xbf16> to vector<1x17x17x128xbf16>
    %28 = vector.shape_cast %27 : vector<1x17x17x128xbf16> to vector<17x17x128xbf16>
    %29 = vector.extract_strided_slice %28 {offsets = [1, 0, 0], sizes = [16, 16, 128], strides = [1, 1, 1]} : vector<17x17x128xbf16> to vector<16x16x128xbf16>
    %30 = vector.shape_cast %29 : vector<16x16x128xbf16> to vector<256x128xbf16>
    %c384 = arith.constant 384 : index
    %c0_13 = arith.constant 0 : index
    %31 = vector.load %arg3[%c384, %c0_13] : memref<576x128xbf16, #tpu.memory_space<vmem>>, vector<128x128xbf16>
    %cst_14 = arith.constant dense<0.000000e+00> : vector<256x128xf32>
    %32 = tpu.matmul %30, %31, %cst_14 {dimension_numbers = #tpu.dot_dimension_numbers<[1], [0], [0], [1], [0, 0, 1, 1], [], []>} : vector<256x128xbf16>, vector<128x128xbf16>, vector<256x128xf32> -> vector<256x128xf32>
    %33 = arith.addf %26, %32 : vector<256x128xf32>
    %34 = vector.extract_strided_slice %28 {offsets = [1, 1, 0], sizes = [16, 16, 64], strides = [1, 1, 1]} : vector<17x17x128xbf16> to vector<16x16x64xbf16>
    %35 = vector.shape_cast %34 : vector<16x16x64xbf16> to vector<256x64xbf16>
    %c512 = arith.constant 512 : index
    %c0_15 = arith.constant 0 : index
    %36 = vector.load %arg3[%c512, %c0_15] : memref<576x128xbf16, #tpu.memory_space<vmem>>, vector<64x128xbf16>
    %cst_16 = arith.constant dense<0.000000e+00> : vector<256x128xf32>
    %37 = tpu.matmul %35, %36, %cst_16 {dimension_numbers = #tpu.dot_dimension_numbers<[1], [0], [0], [1], [0, 0, 1, 1], [], []>} : vector<256x64xbf16>, vector<64x128xbf16>, vector<256x128xf32> -> vector<256x128xf32>
    %38 = arith.addf %33, %37 : vector<256x128xf32>
    %c0_17 = arith.constant 0 : index
    %c0_18 = arith.constant 0 : index
    %39 = vector.load %arg4[%c0_17, %c0_18] : memref<1x128xf32, #tpu.memory_space<vmem>>, vector<1x128xf32>
    %40 = vector.broadcast %39 : vector<1x128xf32> to vector<256x128xf32>
    %41 = arith.addf %38, %40 : vector<256x128xf32>
    %cst_19 = arith.constant dense<0.000000e+00> : vector<128xf32>
    %42 = vector.multi_reduction <add>, %41, %cst_19 [0] : vector<256x128xf32> to vector<128xf32>
    %43 = vector.shape_cast %42 : vector<128xf32> to vector<1x128xf32>
    %cst_20 = arith.constant 3.906250e-03 : f32
    %44 = vector.broadcast %cst_20 : f32 to vector<1x128xf32>
    %45 = arith.mulf %43, %44 : vector<1x128xf32>
    %46 = vector.broadcast %45 : vector<1x128xf32> to vector<256x128xf32>
    %47 = arith.subf %41, %46 : vector<256x128xf32>
    %48 = arith.mulf %47, %47 : vector<256x128xf32>
    %cst_21 = arith.constant dense<0.000000e+00> : vector<128xf32>
    %49 = vector.multi_reduction <add>, %48, %cst_21 [0] : vector<256x128xf32> to vector<128xf32>
    %50 = vector.shape_cast %49 : vector<128xf32> to vector<1x128xf32>
    %cst_22 = arith.constant 3.906250e-03 : f32
    %51 = vector.broadcast %cst_22 : f32 to vector<1x128xf32>
    %52 = arith.mulf %50, %51 : vector<1x128xf32>
    %cst_23 = arith.constant 9.99999974E-6 : f32
    %53 = vector.broadcast %cst_23 : f32 to vector<1x128xf32>
    %54 = arith.addf %52, %53 : vector<1x128xf32>
    %55 = math.rsqrt %54 : vector<1x128xf32>
    %56 = vector.broadcast %55 : vector<1x128xf32> to vector<256x128xf32>
    %57 = arith.mulf %47, %56 : vector<256x128xf32>
    %cst_24 = arith.constant 0.000000e+00 : f32
    %58 = vector.broadcast %cst_24 : f32 to vector<256x128xf32>
    %59 = arith.maximumf %57, %58 : vector<256x128xf32>
    %60 = vector.shape_cast %59 : vector<256x128xf32> to vector<16x16x128xf32>
    %61 = arith.truncf %60 : vector<16x16x128xf32> to vector<16x16x128xbf16>
    %c0_25 = arith.constant 0 : index
    %c0_26 = arith.constant 0 : index
    %c0_27 = arith.constant 0 : index
    %c0_28 = arith.constant 0 : index
    %62 = vector.load %arg5[%c0_25, %c0_26, %c0_27, %c0_28] : memref<1x16x16x128xbf16, #tpu.memory_space<vmem>>, vector<1x16x16x128xbf16>
    %63 = vector.shape_cast %62 : vector<1x16x16x128xbf16> to vector<16x16x128xbf16>
    %64 = vector.shape_cast %61 : vector<16x16x128xbf16> to vector<1x16x16x128xbf16>
    tpu.vector_store %arg5[%c0_25, %c0_26, %c0_27, %c0_28], %64 {strides = array<i32>} : memref<1x16x16x128xbf16, #tpu.memory_space<vmem>>, vector<1x16x16x128xbf16>,
    return
  }
  func.func @transform_0(%arg0: i32, %arg1: i32) -> (i32, i32, i32, i32, i32) {
    %c0_i32 = arith.constant 0 : i32
    %c0_i32_0 = arith.constant 0 : i32
    %c0_i32_1 = arith.constant 0 : i32
    %c0_i32_2 = arith.constant 0 : i32
    %c0_i32_3 = arith.constant 0 : i32
    return %arg0, %c0_i32, %c0_i32_0, %c0_i32_1, %c0_i32_2 : i32, i32, i32, i32, i32
  }
  func.func @transform_1(%arg0: i32, %arg1: i32) -> (i32, i32) {
    %c0_i32 = arith.constant 0 : i32
    %c0_i32_0 = arith.constant 0 : i32
    return %c0_i32, %arg1 : i32, i32
  }
  func.func @transform_2(%arg0: i32, %arg1: i32) -> (i32, i32) {
    %c0_i32 = arith.constant 0 : i32
    %c0_i32_0 = arith.constant 0 : i32
    return %c0_i32, %arg1 : i32, i32
  }
  func.func @transform_3(%arg0: i32, %arg1: i32) -> (i32, i32, i32, i32) {
    %c0_i32 = arith.constant 0 : i32
    %c0_i32_0 = arith.constant 0 : i32
    %c0_i32_1 = arith.constant 0 : i32
    return %arg0, %c0_i32, %c0_i32_0, %arg1 : i32, i32, i32, i32
  }
}

module attributes {stable_mosaic.version = 11 : i64} {
  func.func @kernel(%arg0: i32, %arg1: i32, %arg2: memref<1x2x9x9x256xbf16, #tpu.memory_space<vmem>>, %arg3: memref<1152x128xbf16, #tpu.memory_space<vmem>>, %arg4: memref<1x128xf32, #tpu.memory_space<vmem>>, %arg5: memref<1x8x8x128xf32, #tpu.memory_space<vmem>>) attributes {dimension_semantics = [#tpu.dimension_semantics<parallel>, #tpu.dimension_semantics<parallel>], iteration_bounds = array<i64: 2, 2>, scalar_prefetch = 0 : i64, scratch_operands = 0 : i64, tpu.core_type = #tpu.core_type<tc>, window_params = [{transform_indices = @transform_0, window_bounds = array<i64: 1, 2, 9, 9, 256>}, {transform_indices = @transform_1, window_bounds = array<i64: 1152, 128>}, {transform_indices = @transform_2, window_bounds = array<i64: 1, 128>}, {transform_indices = @transform_3, window_bounds = array<i64: 1, 8, 8, 128>}]} {
    %c0 = arith.constant 0 : index
    %c0_0 = arith.constant 0 : index
    %c0_1 = arith.constant 0 : index
    %c0_2 = arith.constant 0 : index
    %c0_3 = arith.constant 0 : index
    %0 = vector.load %arg2[%c0, %c0_0, %c0_1, %c0_2, %c0_3] : memref<1x2x9x9x256xbf16, #tpu.memory_space<vmem>>, vector<1x2x9x9x256xbf16>
    %1 = vector.shape_cast %0 : vector<1x2x9x9x256xbf16> to vector<2x9x9x256xbf16>
    %cst = arith.constant 0.000000e+00 : f32
    %2 = vector.broadcast %cst : f32 to vector<64x128xf32>
    %3 = vector.extract_strided_slice %1 {offsets = [0, 0, 0, 0], sizes = [1, 9, 9, 256], strides = [1, 1, 1, 1]} : vector<2x9x9x256xbf16> to vector<1x9x9x256xbf16>
    %4 = vector.shape_cast %3 : vector<1x9x9x256xbf16> to vector<9x9x256xbf16>
    %5 = vector.extract_strided_slice %4 {offsets = [0, 0, 0], sizes = [8, 8, 256], strides = [1, 1, 1]} : vector<9x9x256xbf16> to vector<8x8x256xbf16>
    %6 = vector.shape_cast %5 : vector<8x8x256xbf16> to vector<64x256xbf16>
    %c0_4 = arith.constant 0 : index
    %c0_5 = arith.constant 0 : index
    %7 = vector.load %arg3[%c0_4, %c0_5] : memref<1152x128xbf16, #tpu.memory_space<vmem>>, vector<256x128xbf16>
    %cst_6 = arith.constant dense<0.000000e+00> : vector<64x128xf32>
    %8 = tpu.matmul %6, %7, %cst_6 {dimension_numbers = #tpu.dot_dimension_numbers<[1], [0], [0], [1], [0, 0, 1, 1], [], []>} : vector<64x256xbf16>, vector<256x128xbf16>, vector<64x128xf32> -> vector<64x128xf32>
    %9 = arith.addf %2, %8 : vector<64x128xf32>
    %10 = vector.extract_strided_slice %4 {offsets = [0, 1, 0], sizes = [8, 8, 128], strides = [1, 1, 1]} : vector<9x9x256xbf16> to vector<8x8x128xbf16>
    %11 = vector.shape_cast %10 : vector<8x8x128xbf16> to vector<64x128xbf16>
    %c256 = arith.constant 256 : index
    %c0_7 = arith.constant 0 : index
    %12 = vector.load %arg3[%c256, %c0_7] : memref<1152x128xbf16, #tpu.memory_space<vmem>>, vector<128x128xbf16>
    %cst_8 = arith.constant dense<0.000000e+00> : vector<64x128xf32>
    %13 = tpu.matmul %11, %12, %cst_8 {dimension_numbers = #tpu.dot_dimension_numbers<[1], [0], [0], [1], [0, 0, 1, 1], [], []>} : vector<64x128xbf16>, vector<128x128xbf16>, vector<64x128xf32> -> vector<64x128xf32>
    %14 = arith.addf %9, %13 : vector<64x128xf32>
    %15 = vector.extract_strided_slice %1 {offsets = [1, 0, 0, 0], sizes = [1, 9, 9, 256], strides = [1, 1, 1, 1]} : vector<2x9x9x256xbf16> to vector<1x9x9x256xbf16>
    %16 = vector.shape_cast %15 : vector<1x9x9x256xbf16> to vector<9x9x256xbf16>
    %17 = vector.extract_strided_slice %16 {offsets = [0, 0, 0], sizes = [8, 8, 256], strides = [1, 1, 1]} : vector<9x9x256xbf16> to vector<8x8x256xbf16>
    %18 = vector.shape_cast %17 : vector<8x8x256xbf16> to vector<64x256xbf16>
    %c384 = arith.constant 384 : index
    %c0_9 = arith.constant 0 : index
    %19 = vector.load %arg3[%c384, %c0_9] : memref<1152x128xbf16, #tpu.memory_space<vmem>>, vector<256x128xbf16>
    %cst_10 = arith.constant dense<0.000000e+00> : vector<64x128xf32>
    %20 = tpu.matmul %18, %19, %cst_10 {dimension_numbers = #tpu.dot_dimension_numbers<[1], [0], [0], [1], [0, 0, 1, 1], [], []>} : vector<64x256xbf16>, vector<256x128xbf16>, vector<64x128xf32> -> vector<64x128xf32>
    %21 = arith.addf %14, %20 : vector<64x128xf32>
    %22 = vector.extract_strided_slice %16 {offsets = [0, 1, 0], sizes = [8, 8, 128], strides = [1, 1, 1]} : vector<9x9x256xbf16> to vector<8x8x128xbf16>
    %23 = vector.shape_cast %22 : vector<8x8x128xbf16> to vector<64x128xbf16>
    %c640 = arith.constant 640 : index
    %c0_11 = arith.constant 0 : index
    %24 = vector.load %arg3[%c640, %c0_11] : memref<1152x128xbf16, #tpu.memory_space<vmem>>, vector<128x128xbf16>
    %cst_12 = arith.constant dense<0.000000e+00> : vector<64x128xf32>
    %25 = tpu.matmul %23, %24, %cst_12 {dimension_numbers = #tpu.dot_dimension_numbers<[1], [0], [0], [1], [0, 0, 1, 1], [], []>} : vector<64x128xbf16>, vector<128x128xbf16>, vector<64x128xf32> -> vector<64x128xf32>
    %26 = arith.addf %21, %25 : vector<64x128xf32>
    %27 = vector.extract_strided_slice %1 {offsets = [0, 0, 0, 0], sizes = [1, 9, 9, 256], strides = [1, 1, 1, 1]} : vector<2x9x9x256xbf16> to vector<1x9x9x256xbf16>
    %28 = vector.shape_cast %27 : vector<1x9x9x256xbf16> to vector<9x9x256xbf16>
    %29 = vector.extract_strided_slice %28 {offsets = [1, 0, 0], sizes = [8, 8, 256], strides = [1, 1, 1]} : vector<9x9x256xbf16> to vector<8x8x256xbf16>
    %30 = vector.shape_cast %29 : vector<8x8x256xbf16> to vector<64x256xbf16>
    %c768 = arith.constant 768 : index
    %c0_13 = arith.constant 0 : index
    %31 = vector.load %arg3[%c768, %c0_13] : memref<1152x128xbf16, #tpu.memory_space<vmem>>, vector<256x128xbf16>
    %cst_14 = arith.constant dense<0.000000e+00> : vector<64x128xf32>
    %32 = tpu.matmul %30, %31, %cst_14 {dimension_numbers = #tpu.dot_dimension_numbers<[1], [0], [0], [1], [0, 0, 1, 1], [], []>} : vector<64x256xbf16>, vector<256x128xbf16>, vector<64x128xf32> -> vector<64x128xf32>
    %33 = arith.addf %26, %32 : vector<64x128xf32>
    %34 = vector.extract_strided_slice %28 {offsets = [1, 1, 0], sizes = [8, 8, 128], strides = [1, 1, 1]} : vector<9x9x256xbf16> to vector<8x8x128xbf16>
    %35 = vector.shape_cast %34 : vector<8x8x128xbf16> to vector<64x128xbf16>
    %c1024 = arith.constant 1024 : index
    %c0_15 = arith.constant 0 : index
    %36 = vector.load %arg3[%c1024, %c0_15] : memref<1152x128xbf16, #tpu.memory_space<vmem>>, vector<128x128xbf16>
    %cst_16 = arith.constant dense<0.000000e+00> : vector<64x128xf32>
    %37 = tpu.matmul %35, %36, %cst_16 {dimension_numbers = #tpu.dot_dimension_numbers<[1], [0], [0], [1], [0, 0, 1, 1], [], []>} : vector<64x128xbf16>, vector<128x128xbf16>, vector<64x128xf32> -> vector<64x128xf32>
    %38 = arith.addf %33, %37 : vector<64x128xf32>
    %c0_17 = arith.constant 0 : index
    %c0_18 = arith.constant 0 : index
    %39 = vector.load %arg4[%c0_17, %c0_18] : memref<1x128xf32, #tpu.memory_space<vmem>>, vector<1x128xf32>
    %40 = vector.broadcast %39 : vector<1x128xf32> to vector<64x128xf32>
    %41 = arith.addf %38, %40 : vector<64x128xf32>
    %cst_19 = arith.constant dense<0.000000e+00> : vector<128xf32>
    %42 = vector.multi_reduction <add>, %41, %cst_19 [0] : vector<64x128xf32> to vector<128xf32>
    %43 = vector.shape_cast %42 : vector<128xf32> to vector<1x128xf32>
    %cst_20 = arith.constant 1.562500e-02 : f32
    %44 = vector.broadcast %cst_20 : f32 to vector<1x128xf32>
    %45 = arith.mulf %43, %44 : vector<1x128xf32>
    %46 = vector.broadcast %45 : vector<1x128xf32> to vector<64x128xf32>
    %47 = arith.subf %41, %46 : vector<64x128xf32>
    %48 = arith.mulf %47, %47 : vector<64x128xf32>
    %cst_21 = arith.constant dense<0.000000e+00> : vector<128xf32>
    %49 = vector.multi_reduction <add>, %48, %cst_21 [0] : vector<64x128xf32> to vector<128xf32>
    %50 = vector.shape_cast %49 : vector<128xf32> to vector<1x128xf32>
    %cst_22 = arith.constant 1.562500e-02 : f32
    %51 = vector.broadcast %cst_22 : f32 to vector<1x128xf32>
    %52 = arith.mulf %50, %51 : vector<1x128xf32>
    %cst_23 = arith.constant 9.99999974E-6 : f32
    %53 = vector.broadcast %cst_23 : f32 to vector<1x128xf32>
    %54 = arith.addf %52, %53 : vector<1x128xf32>
    %55 = math.rsqrt %54 : vector<1x128xf32>
    %56 = vector.broadcast %55 : vector<1x128xf32> to vector<64x128xf32>
    %57 = arith.mulf %47, %56 : vector<64x128xf32>
    %cst_24 = arith.constant 0.000000e+00 : f32
    %58 = vector.broadcast %cst_24 : f32 to vector<64x128xf32>
    %59 = arith.maximumf %57, %58 : vector<64x128xf32>
    %60 = vector.shape_cast %59 : vector<64x128xf32> to vector<8x8x128xf32>
    %c0_25 = arith.constant 0 : index
    %c0_26 = arith.constant 0 : index
    %c0_27 = arith.constant 0 : index
    %c0_28 = arith.constant 0 : index
    %61 = vector.load %arg5[%c0_25, %c0_26, %c0_27, %c0_28] : memref<1x8x8x128xf32, #tpu.memory_space<vmem>>, vector<1x8x8x128xf32>
    %62 = vector.shape_cast %61 : vector<1x8x8x128xf32> to vector<8x8x128xf32>
    %63 = vector.shape_cast %60 : vector<8x8x128xf32> to vector<1x8x8x128xf32>
    tpu.vector_store %arg5[%c0_25, %c0_26, %c0_27, %c0_28], %63 {strides = array<i32>} : memref<1x8x8x128xf32, #tpu.memory_space<vmem>>, vector<1x8x8x128xf32>,
    return
  }
  func.func @transform_0(%arg0: i32, %arg1: i32) -> (i32, i32, i32, i32, i32) {
    %c0_i32 = arith.constant 0 : i32
    %c0_i32_0 = arith.constant 0 : i32
    %c0_i32_1 = arith.constant 0 : i32
    %c0_i32_2 = arith.constant 0 : i32
    %c0_i32_3 = arith.constant 0 : i32
    return %arg0, %c0_i32, %c0_i32_0, %c0_i32_1, %c0_i32_2 : i32, i32, i32, i32, i32
  }
  func.func @transform_1(%arg0: i32, %arg1: i32) -> (i32, i32) {
    %c0_i32 = arith.constant 0 : i32
    %c0_i32_0 = arith.constant 0 : i32
    return %c0_i32, %arg1 : i32, i32
  }
  func.func @transform_2(%arg0: i32, %arg1: i32) -> (i32, i32) {
    %c0_i32 = arith.constant 0 : i32
    %c0_i32_0 = arith.constant 0 : i32
    return %c0_i32, %arg1 : i32, i32
  }
  func.func @transform_3(%arg0: i32, %arg1: i32) -> (i32, i32, i32, i32) {
    %c0_i32 = arith.constant 0 : i32
    %c0_i32_0 = arith.constant 0 : i32
    %c0_i32_1 = arith.constant 0 : i32
    return %arg0, %c0_i32, %c0_i32_0, %arg1 : i32, i32, i32, i32
  }
}

</mosaic_0001>

<llo_original>
// kernel: encoder_forward.3
$region0: #{encoder_forward.3}
  #allocation0 [shape = 'u32[]', space=smem, size = 0x4, offset = 0x4, fixed_abs, tag = 'smem constant byte address 0x4 - core index']
  #allocation1 [shape = 'u32[144,128]{1,0:T(1,128)}', space=vmem, size = 0x12000, scoped, tag = 'internal scratch']
  %s0 = inlined_call_operand.vmem [shape: bf16[2,2,512,147], index: 0, kind: input, shape index: {}]
  %s1 = inlined_call_operand.vmem [shape: bf16[147,64], index: 1, kind: input, shape index: {}]
  %s2 = inlined_call_operand.vmem [shape: f32[1,64], index: 2, kind: input, shape index: {}]
  %s3 = inlined_call_operand.vmem [shape: bf16[2,512,128], index: 3, kind: output, shape index: {}]
  %s4 = sld [smem:[#allocation0]]
  $region45: #{encoder_forward.3} parent=0
    _
  %s6 = ssub.s32 1, %s4
  %s7 = scalar_select 0, %s6, %s4
  loop: start=0, step=1, limit=4
  $region2: #{encoder_forward.3} parent=0 // loop_pre_header
    _
  $region3: #{encoder_forward.3} parent=0 // loop_header
    %s9 = sphi 0, %s13
    %p10 = scmp.ge.s32.totalorder %s9, 4
    %s19 = sphi 0, %s21
    %s22 = sphi 0, %s19
    %s23 = sphi 0, %s22
    %s39 = sphi 0, %s23
    %s43 = sphi 0, %s43
    %s45 = sphi 0, %s43
    %s46 = sphi 0, %s45
    %s60 = sphi 0, %s46
    %s64 = sphi 0, %s64
    %s66 = sphi 0, %s64
    %s67 = sphi 0, %s66
    %s81 = sphi 0, %s67
    %s87 = sphi 0, %s89
    %s90 = sphi 0, %s87
    %s91 = sphi 0, %s90
    %s107 = sphi 0, %s91
  $region4: #{encoder_forward.3} parent=0 // loop_header_branch
    %12 = sbr.rel (%p10) target = $region8
  $region5: #{encoder_forward.3} parent=0 // loop_body
    %s14 = ssub.s32 %s9, 1
    %s15 = ssub.s32 %s9, 2
    %s16 = sadd.s32 %s9, 1
    %s17 = ssub.s32 %s9, %s16
    %p18 = scmp.eq.s32.totalorder %s17, 0
    %s20 = sadd.s32 %s19, 1
    %s21 = scalar_select %p18, %s19, %s20
    %p24 = pneg %p18
    %p25 = scmp.eq.s32.totalorder %s9, 1
    %p26 = por %p24, %p25
    %p27 = scmp.ne.s32.totalorder %s19, %s22
    %p28 = scmp.eq.s32.totalorder %s9, 0
    %p29 = por %p27, %p28
    %p30 = scmp.ne.s32.totalorder %s19, %s22
    %p31 = scmp.eq.s32.totalorder %s14, 1
    %p32 = por %p30, %p31
    %p33 = scmp.ne.s32.totalorder %s22, %s23
    %p34 = scmp.eq.s32.totalorder %s14, 0
    %p35 = por %p33, %p34
    %p36 = scmp.ne.s32.totalorder %s22, %s23
    %p37 = scmp.eq.s32.totalorder %s15, 1
    %p38 = por %p36, %p37
    %p40 = scmp.ne.s32.totalorder %s23, %s39
    %p41 = scmp.eq.s32.totalorder %s15, 0
    %p42 = por %p40, %p41
    %s44 = sadd.s32 %s43, 1
    %p47 = scmp.eq.s32.totalorder %s9, 1
    %p48 = scmp.ne.s32.totalorder %s43, %s45
    %p49 = scmp.eq.s32.totalorder %s9, 0
    %p50 = por %p48, %p49
    %p51 = scmp.ne.s32.totalorder %s43, %s45
    %p52 = scmp.eq.s32.totalorder %s14, 1
    %p53 = por %p51, %p52
    %p54 = scmp.ne.s32.totalorder %s45, %s46
    %p55 = scmp.eq.s32.totalorder %s14, 0
    %p56 = por %p54, %p55
    %p57 = scmp.ne.s32.totalorder %s45, %s46
    %p58 = scmp.eq.s32.totalorder %s15, 1
    %p59 = por %p57, %p58
    %p61 = scmp.ne.s32.totalorder %s46, %s60
    %p62 = scmp.eq.s32.totalorder %s15, 0
    %p63 = por %p61, %p62
    %s65 = sadd.s32 %s64, 1
    %p68 = scmp.eq.s32.totalorder %s9, 1
    %p69 = scmp.ne.s32.totalorder %s64, %s66
    %p70 = scmp.eq.s32.totalorder %s9, 0
    %p71 = por %p69, %p70
    %p72 = scmp.ne.s32.totalorder %s64, %s66
    %p73 = scmp.eq.s32.totalorder %s14, 1
    %p74 = por %p72, %p73
    %p75 = scmp.ne.s32.totalorder %s66, %s67
    %p76 = scmp.eq.s32.totalorder %s14, 0
    %p77 = por %p75, %p76
    %p78 = scmp.ne.s32.totalorder %s66, %s67
    %p79 = scmp.eq.s32.totalorder %s15, 1
    %p80 = por %p78, %p79
    %p82 = scmp.ne.s32.totalorder %s67, %s81
    %p83 = scmp.eq.s32.totalorder %s15, 0
    %p84 = por %p82, %p83
    %s85 = ssub.s32 %s9, %s16
    %p86 = scmp.eq.s32.totalorder %s85, 0
    %s88 = sadd.s32 %s87, 1
    %s89 = scalar_select %p86, %s87, %s88
    %p92 = pneg %p86
    %p93 = scmp.eq.s32.totalorder %s9, 1
    %p94 = por %p92, %p93
    %p95 = scmp.ne.s32.totalorder %s87, %s90
    %p96 = scmp.eq.s32.totalorder %s9, 0
    %p97 = por %p95, %p96
    %p98 = scmp.ne.s32.totalorder %s87, %s90
    %p99 = scmp.eq.s32.totalorder %s14, 1
    %p100 = por %p98, %p99
    %p101 = scmp.ne.s32.totalorder %s90, %s91
    %p102 = scmp.eq.s32.totalorder %s14, 0
    %p103 = por %p101, %p102
    %p104 = scmp.ne.s32.totalorder %s90, %s91
    %p105 = scmp.eq.s32.totalorder %s15, 1
    %p106 = por %p104, %p105
    %p108 = scmp.ne.s32.totalorder %s91, %s107
    %p109 = scmp.eq.s32.totalorder %s15, 0
    %p110 = por %p108, %p109
    %p111 = scmp.le.s32.totalorder 1, %s9
    %p112 = scmp.lt.s32.totalorder %s9, 3
    %p113 = pnand %p111, %p112
    %p114 = pneg %p113
    // Predicated region
    $region9: #{encoder_forward.3} parent=5 // pred_check
      _
    $region10: #{encoder_forward.3} parent=5 // pred_check_branch
      %116 = sbr.rel (%p113) target = $region12
    $region11: #{encoder_forward.3} parent=5 // pred_region
      %s117 = ssub.s32 %s9, 1
      // Predicated region
      $region13: #{encoder_forward.3} parent=11 // pred_check
        %p118 = pneg %p56
      $region14: #{encoder_forward.3} parent=11 // pred_check_branch
        %120 = sbr.rel (%p118) target = $region16
      $region15: #{encoder_forward.3} parent=11 // pred_region
        _
      $region16: #{encoder_forward.3} parent=11 // pred_fallthru
        _
      // Predicated region
      $region17: #{encoder_forward.3} parent=11 // pred_check
        %p121 = pneg %p77
      $region18: #{encoder_forward.3} parent=11 // pred_check_branch
        %123 = sbr.rel (%p121) target = $region20
      $region19: #{encoder_forward.3} parent=11 // pred_region
        _
      $region20: #{encoder_forward.3} parent=11 // pred_fallthru
        _
    $region12: #{encoder_forward.3} parent=5 // pred_fallthru
      _
    %p124 = scmp.lt.s32.totalorder %s9, 2
    // Predicated region
    $region21: #{encoder_forward.3} parent=5 // pred_check
      %p125 = pneg %p124
    $region22: #{encoder_forward.3} parent=5 // pred_check_branch
      %127 = sbr.rel (%p125) target = $region24
    $region23: #{encoder_forward.3} parent=5 // pred_region
      // Predicated region
      $region25: #{encoder_forward.3} parent=23 // pred_check
        %p128 = pneg %p29
      $region26: #{encoder_forward.3} parent=23 // pred_check_branch
        %130 = sbr.rel (%p128) target = $region28
      $region27: #{encoder_forward.3} parent=23 // pred_region
        %p131 = scmp.lt.s32.totalorder %s9, 1
        %s132 = scalar_select %p131, %s9, 1
        %s133 = smul.addr %s132, 256
        %s134 = smul.addr %s133, 4
        %s135 = scalar_lea.vmem %s0, %s134
      $region28: #{encoder_forward.3} parent=23 // pred_fallthru
        _
    $region24: #{encoder_forward.3} parent=5 // pred_fallthru
      _
    %p136 = scmp.le.s32.totalorder 1, %s9
    %p137 = scmp.lt.s32.totalorder %s9, 3
    %p138 = pnand %p136, %p137
    %p139 = pneg %p138
    // Predicated region
    $region29: #{encoder_forward.3} parent=5 // pred_check
      _
    $region30: #{encoder_forward.3} parent=5 // pred_check_branch
      %141 = sbr.rel (%p138) target = $region32
    $region31: #{encoder_forward.3} parent=5 // pred_region
      %s142 = ssub.s32 %s9, 1
      %p143 = scmp.lt.s32.totalorder %s14, 1
      %s144 = scalar_select %p143, %s14, 1
      %s145 = smul.addr %s144, 256
      %s146 = smul.addr %s145, 4
      %s147 = scalar_lea.vmem %s0, %s146
      %p148 = pneg %p35
      %p149 = pneg %p32
      %p150 = pneg %p56
      %p151 = pneg %p53
      %p152 = pneg %p77
      %p153 = pneg %p74
      %p154 = pneg %p103
      %p155 = pneg %p100
      %p156 = scmp.lt.s32.totalorder %s14, 1
      %s157 = scalar_select %p156, %s14, 1
      %s158 = smul.addr %s157, 64
      %s159 = smul.addr %s158, 4
      %s160 = scalar_lea.vmem %s3, %s159
      %p161 = scmp.lt.s32.totalorder %s14, 1
      %s162 = scalar_select %p161, %s14, 1
      %s163 = smul.addr %s162, 256
      %s164 = smul.addr %s163, 4
      %s165 = scalar_lea.vmem %s0, %s164
      %p166 = scmp.lt.s32.totalorder %s14, 1
      %s167 = scalar_select %p166, %s14, 1
      %s168 = smul.addr %s167, 64
      %s169 = smul.addr %s168, 4
      %s170 = scalar_lea.vmem %s3, %s169
      %v172 = vld [vmem:[%s1] sm:$0xf]
      %v173 = vld [vmem:[%s1 + $0x4] sm:$0xf]
      %v174 = vld [vmem:[%s1 + $0x8] sm:$0xf]
      %v175 = vld [vmem:[%s1 + $0xc] sm:$0xf]
      %v176 = vld [vmem:[%s1 + $0x10] sm:$0xf]
      %v177 = vld [vmem:[%s1 + $0x14] sm:$0xf]
      %v178 = vld [vmem:[%s1 + $0x18] sm:$0xf]
      %v179 = vld [vmem:[%s1 + $0x1c] sm:$0xf]
      %v180 = vld [vmem:[%s1 + $0x20] sm:$0xf]
      %v181 = vld [vmem:[%s1 + $0x24] sm:$0xf]
      %v182 = vld [vmem:[%s1 + $0x28] sm:$0xf]
      %v183 = vld [vmem:[%s1 + $0x2c] sm:$0xf]
      %v184 = vld [vmem:[%s1 + $0x30] sm:$0xf]
      %v185 = vld [vmem:[%s1 + $0x34] sm:$0xf]
      %v186 = vld [vmem:[%s1 + $0x38] sm:$0xf]
      %v187 = vld [vmem:[%s1 + $0x3c] sm:$0xf]
      %v188 = vld [vmem:[%s1 + $0x40] sm:$0xf]
      %v189 = vld [vmem:[%s1 + $0x44] sm:$0xf]
      %v190 = vld [vmem:[%s1 + $0x48] sm:$0x3]
      %v191 = vld [vmem:[%s2] sm:$0x1]
      %v192 = vld [vmem:[%s165] sm:$0xff]
      %v193 = vld [vmem:[%s165 + $0x8] sm:$0xff]
      %v194 = vld [vmem:[%s165 + $0x10] sm:$0xff]
      %v195 = vld [vmem:[%s165 + $0x18] sm:$0xff]
      %v196 = vld [vmem:[%s165 + $0x20] sm:$0xff]
      %v197 = vld [vmem:[%s165 + $0x28] sm:$0xff]
      %v198 = vld [vmem:[%s165 + $0x30] sm:$0xff]
      %v199 = vld [vmem:[%s165 + $0x38] sm:$0xff]
      %v200 = vld [vmem:[%s165 + $0x40] sm:$0xff]
      %v201 = vld [vmem:[%s165 + $0x48] sm:$0xff]
      %v202 = vld [vmem:[%s165 + $0x50] sm:$0xff]
      %v203 = vld [vmem:[%s165 + $0x58] sm:$0xff]
      %v204 = vld [vmem:[%s165 + $0x60] sm:$0xff]
      %v205 = vld [vmem:[%s165 + $0x68] sm:$0xff]
      %v206 = vld [vmem:[%s165 + $0x70] sm:$0xff]
      %v207 = vld [vmem:[%s165 + $0x78] sm:$0xff]
      %v208 = vld [vmem:[%s165 + $0x80] sm:$0xff]
      %v209 = vld [vmem:[%s165 + $0x88] sm:$0xff]
      %v210 = vld [vmem:[%s165 + $0x90] sm:$0xff]
      %v211 = vld [vmem:[%s165 + $0x98] sm:$0xff]
      %v212 = vld [vmem:[%s165 + $0xa0] sm:$0xff]
      %v213 = vld [vmem:[%s165 + $0xa8] sm:$0xff]
      %v214 = vld [vmem:[%s165 + $0xb0] sm:$0xff]
      %v215 = vld [vmem:[%s165 + $0xb8] sm:$0xff]
      %v216 = vld [vmem:[%s165 + $0xc0] sm:$0xff]
      %v217 = vld [vmem:[%s165 + $0xc8] sm:$0xff]
      %v218 = vld [vmem:[%s165 + $0xd0] sm:$0xff]
      %v219 = vld [vmem:[%s165 + $0xd8] sm:$0xff]
      %v220 = vld [vmem:[%s165 + $0xe0] sm:$0xff]
      %v221 = vld [vmem:[%s165 + $0xe8] sm:$0xff]
      %v222 = vld [vmem:[%s165 + $0xf0] sm:$0xff]
      %v223 = vld [vmem:[%s165 + $0xf8] sm:$0xff]
      %v224 = vld [vmem:[%s165 + $0x100] sm:$0xff]
      %v225 = vld [vmem:[%s165 + $0x108] sm:$0xff]
      %v226 = vld [vmem:[%s165 + $0x110] sm:$0xff]
      %v227 = vld [vmem:[%s165 + $0x118] sm:$0xff]
      %v228 = vld [vmem:[%s165 + $0x120] sm:$0xff]
      %v229 = vld [vmem:[%s165 + $0x128] sm:$0xff]
      %v230 = vld [vmem:[%s165 + $0x130] sm:$0xff]
      %v231 = vld [vmem:[%s165 + $0x138] sm:$0xff]
      %v232 = vld [vmem:[%s165 + $0x140] sm:$0xff]
      %v233 = vld [vmem:[%s165 + $0x148] sm:$0xff]
      %v234 = vld [vmem:[%s165 + $0x150] sm:$0xff]
      %v235 = vld [vmem:[%s165 + $0x158] sm:$0xff]
      %v236 = vld [vmem:[%s165 + $0x160] sm:$0xff]
      %v237 = vld [vmem:[%s165 + $0x168] sm:$0xff]
      %v238 = vld [vmem:[%s165 + $0x170] sm:$0xff]
      %v239 = vld [vmem:[%s165 + $0x178] sm:$0xff]
      %v240 = vld [vmem:[%s165 + $0x180] sm:$0xff]
      %v241 = vld [vmem:[%s165 + $0x188] sm:$0xff]
      %v242 = vld [vmem:[%s165 + $0x190] sm:$0xff]
      %v243 = vld [vmem:[%s165 + $0x198] sm:$0xff]
      %v244 = vld [vmem:[%s165 + $0x1a0] sm:$0xff]
      %v245 = vld [vmem:[%s165 + $0x1a8] sm:$0xff]
      %v246 = vld [vmem:[%s165 + $0x1b0] sm:$0xff]
      %v247 = vld [vmem:[%s165 + $0x1b8] sm:$0xff]
      %v248 = vld [vmem:[%s165 + $0x1c0] sm:$0xff]
      %v249 = vld [vmem:[%s165 + $0x1c8] sm:$0xff]
      %v250 = vld [vmem:[%s165 + $0x1d0] sm:$0xff]
      %v251 = vld [vmem:[%s165 + $0x1d8] sm:$0xff]
      %v252 = vld [vmem:[%s165 + $0x1e0] sm:$0xff]
      %v253 = vld [vmem:[%s165 + $0x1e8] sm:$0xff]
      %v254 = vld [vmem:[%s165 + $0x1f0] sm:$0xff]
      %v255 = vld [vmem:[%s165 + $0x1f8] sm:$0xff]
      %v257 = vlaneseq
      %v258 = vshrl.u32 %v257, 7
      %v259 = vsub.s32 0, %v258
      %v260 = vrot.slane %v191, %v259
      %v326 = vunpack.c.l.b16 %v192
      %v327 = vunpack.c.h.b16 %v192
      %v328 = vunpack.c.l.b16 %v193
      %v329 = vunpack.c.h.b16 %v193
      %v330 = vunpack.c.l.b16 %v194
      %v331 = vunpack.c.h.b16 %v194
      %v332 = vunpack.c.l.b16 %v195
      %v333 = vunpack.c.h.b16 %v195
      %v334 = vunpack.c.l.b16 %v196
      %v335 = vunpack.c.h.b16 %v196
      %v336 = vunpack.c.l.b16 %v197
      %v337 = vunpack.c.h.b16 %v197
      %v338 = vunpack.c.l.b16 %v198
      %v339 = vunpack.c.h.b16 %v198
      %v340 = vunpack.c.l.b16 %v199
      %v341 = vunpack.c.h.b16 %v199
      %v342 = vunpack.c.l.b16 %v200
      %v343 = vunpack.c.h.b16 %v200
      %v344 = vunpack.c.l.b16 %v201
      %v345 = vunpack.c.h.b16 %v201
      %v346 = vunpack.c.l.b16 %v202
      %v347 = vunpack.c.h.b16 %v202
      %v348 = vunpack.c.l.b16 %v203
      %v349 = vunpack.c.h.b16 %v203
      %v350 = vunpack.c.l.b16 %v204
      %v351 = vunpack.c.h.b16 %v204
      %v352 = vunpack.c.l.b16 %v205
      %v353 = vunpack.c.h.b16 %v205
      %v354 = vunpack.c.l.b16 %v206
      %v355 = vunpack.c.h.b16 %v206
      %v356 = vunpack.c.l.b16 %v207
      %v357 = vunpack.c.h.b16 %v207
      %v358 = vunpack.c.l.b16 %v208
      %v359 = vunpack.c.h.b16 %v208
      %v360 = vunpack.c.l.b16 %v209
      %v361 = vunpack.c.h.b16 %v209
      %v362 = vunpack.c.l.b16 %v210
      %v363 = vunpack.c.h.b16 %v210
      %v364 = vunpack.c.l.b16 %v211
      %v365 = vunpack.c.h.b16 %v211
      %v366 = vunpack.c.l.b16 %v212
      %v367 = vunpack.c.h.b16 %v212
      %v368 = vunpack.c.l.b16 %v213
      %v369 = vunpack.c.h.b16 %v213
      %v370 = vunpack.c.l.b16 %v214
      %v371 = vunpack.c.h.b16 %v214
      %v372 = vunpack.c.l.b16 %v215
      %v373 = vunpack.c.h.b16 %v215
      %v374 = vunpack.c.l.b16 %v216
      %v375 = vunpack.c.h.b16 %v216
      %v376 = vunpack.c.l.b16 %v217
      %v377 = vunpack.c.h.b16 %v217
      %v378 = vunpack.c.l.b16 %v218
      %v379 = vunpack.c.h.b16 %v218
      %v380 = vunpack.c.l.b16 %v219
      %v381 = vunpack.c.h.b16 %v219
      %v382 = vunpack.c.l.b16 %v220
      %v383 = vunpack.c.h.b16 %v220
      %v384 = vunpack.c.l.b16 %v221
      %v385 = vunpack.c.h.b16 %v221
      %v386 = vunpack.c.l.b16 %v222
      %v387 = vunpack.c.h.b16 %v222
      %v388 = vunpack.c.l.b16 %v223
      %v389 = vunpack.c.h.b16 %v223
      %v390 = vunpack.c.l.b16 %v224
      %v391 = vunpack.c.h.b16 %v224
      %v392 = vunpack.c.l.b16 %v225
      %v393 = vunpack.c.h.b16 %v225
      %v394 = vunpack.c.l.b16 %v226
      %v395 = vunpack.c.h.b16 %v226
      %v396 = vunpack.c.l.b16 %v227
      %v397 = vunpack.c.h.b16 %v227
      %v398 = vunpack.c.l.b16 %v228
      %v399 = vunpack.c.h.b16 %v228
      %v400 = vunpack.c.l.b16 %v229
      %v401 = vunpack.c.h.b16 %v229
      %v402 = vunpack.c.l.b16 %v230
      %v403 = vunpack.c.h.b16 %v230
      %v404 = vunpack.c.l.b16 %v231
      %v405 = vunpack.c.h.b16 %v231
      %v406 = vunpack.c.l.b16 %v232
      %v407 = vunpack.c.h.b16 %v232
      %v408 = vunpack.c.l.b16 %v233
      %v409 = vunpack.c.h.b16 %v233
      %v410 = vunpack.c.l.b16 %v234
      %v411 = vunpack.c.h.b16 %v234
      %v412 = vunpack.c.l.b16 %v235
      %v413 = vunpack.c.h.b16 %v235
      %v414 = vunpack.c.l.b16 %v236
      %v415 = vunpack.c.h.b16 %v236
      %v416 = vunpack.c.l.b16 %v237
      %v417 = vunpack.c.h.b16 %v237
      %v418 = vunpack.c.l.b16 %v238
      %v419 = vunpack.c.h.b16 %v238
      %v420 = vunpack.c.l.b16 %v239
      %v421 = vunpack.c.h.b16 %v239
      %v422 = vunpack.c.l.b16 %v240
      %v423 = vunpack.c.h.b16 %v240
      %v424 = vunpack.c.l.b16 %v241
      %v425 = vunpack.c.h.b16 %v241
      %v426 = vunpack.c.l.b16 %v242
      %v427 = vunpack.c.h.b16 %v242
      %v428 = vunpack.c.l.b16 %v243
      %v429 = vunpack.c.h.b16 %v243
      %v430 = vunpack.c.l.b16 %v244
      %v431 = vunpack.c.h.b16 %v244
      %v432 = vunpack.c.l.b16 %v245
      %v433 = vunpack.c.h.b16 %v245
      %v434 = vunpack.c.l.b16 %v246
      %v435 = vunpack.c.h.b16 %v246
      %v436 = vunpack.c.l.b16 %v247
      %v437 = vunpack.c.h.b16 %v247
      %v438 = vunpack.c.l.b16 %v248
      %v439 = vunpack.c.h.b16 %v248
      %v440 = vunpack.c.l.b16 %v249
      %v441 = vunpack.c.h.b16 %v249
      %v442 = vunpack.c.l.b16 %v250
      %v443 = vunpack.c.h.b16 %v250
      %v444 = vunpack.c.l.b16 %v251
      %v445 = vunpack.c.h.b16 %v251
      %v446 = vunpack.c.l.b16 %v252
      %v447 = vunpack.c.h.b16 %v252
      %v448 = vunpack.c.l.b16 %v253
      %v449 = vunpack.c.h.b16 %v253
      %v450 = vunpack.c.l.b16 %v254
      %v451 = vunpack.c.h.b16 %v254
      %v452 = vunpack.c.l.b16 %v255
      %v453 = vunpack.c.h.b16 %v255
      %v454 = vpack.c.b16 %v328, %v326
      %v455 = vpack.c.b16 %v329, %v327
      %v456 = vpack.c.b16 %v332, %v330
      %v457 = vpack.c.b16 %v333, %v331
      %v458 = vpack.c.b16 %v336, %v334
      %v459 = vpack.c.b16 %v337, %v335
      %v460 = vpack.c.b16 %v340, %v338
      %v461 = vpack.c.b16 %v341, %v339
      %v462 = vpack.c.b16 %v344, %v342
      %v463 = vpack.c.b16 %v345, %v343
      %v464 = vpack.c.b16 %v348, %v346
      %v465 = vpack.c.b16 %v349, %v347
      %v466 = vpack.c.b16 %v352, %v350
      %v467 = vpack.c.b16 %v353, %v351
      %v468 = vpack.c.b16 %v356, %v354
      %v469 = vpack.c.b16 %v357, %v355
      %v470 = vpack.c.b16 %v360, %v358
      %v471 = vpack.c.b16 %v361, %v359
      %v472 = vpack.c.b16 %v364, %v362
      %v473 = vpack.c.b16 %v365, %v363
      %v474 = vpack.c.b16 %v368, %v366
      %v475 = vpack.c.b16 %v369, %v367
      %v476 = vpack.c.b16 %v372, %v370
      %v477 = vpack.c.b16 %v373, %v371
      %v478 = vpack.c.b16 %v376, %v374
      %v479 = vpack.c.b16 %v377, %v375
      %v480 = vpack.c.b16 %v380, %v378
      %v481 = vpack.c.b16 %v381, %v379
      %v482 = vpack.c.b16 %v384, %v382
      %v483 = vpack.c.b16 %v385, %v383
      %v484 = vpack.c.b16 %v388, %v386
      %v485 = vpack.c.b16 %v389, %v387
      %v486 = vpack.c.b16 %v392, %v390
      %v487 = vpack.c.b16 %v393, %v391
      %v488 = vpack.c.b16 %v396, %v394
      %v489 = vpack.c.b16 %v397, %v395
      %v490 = vpack.c.b16 %v400, %v398
      %v491 = vpack.c.b16 %v401, %v399
      %v492 = vpack.c.b16 %v404, %v402
      %v493 = vpack.c.b16 %v405, %v403
      %v494 = vpack.c.b16 %v408, %v406
      %v495 = vpack.c.b16 %v409, %v407
      %v496 = vpack.c.b16 %v412, %v410
      %v497 = vpack.c.b16 %v413, %v411
      %v498 = vpack.c.b16 %v416, %v414
      %v499 = vpack.c.b16 %v417, %v415
      %v500 = vpack.c.b16 %v420, %v418
      %v501 = vpack.c.b16 %v421, %v419
      %v502 = vpack.c.b16 %v424, %v422
      %v503 = vpack.c.b16 %v425, %v423
      %v504 = vpack.c.b16 %v428, %v426
      %v505 = vpack.c.b16 %v429, %v427
      %v506 = vpack.c.b16 %v432, %v430
      %v507 = vpack.c.b16 %v433, %v431
      %v508 = vpack.c.b16 %v436, %v434
      %v509 = vpack.c.b16 %v437, %v435
      %v510 = vpack.c.b16 %v440, %v438
      %v511 = vpack.c.b16 %v441, %v439
      %v512 = vpack.c.b16 %v444, %v442
      %v513 = vpack.c.b16 %v445, %v443
      %v514 = vpack.c.b16 %v448, %v446
      %v515 = vpack.c.b16 %v449, %v447
      %v516 = vpack.c.b16 %v452, %v450
      %v517 = vpack.c.b16 %v453, %v451
      %v569 = vunpack.c.l.b16 %v172
      %v570 = vunpack.c.l.b16 %v173
      %v571 = vunpack.c.l.b16 %v174
      %v572 = vunpack.c.l.b16 %v175
      %v573 = vunpack.c.l.b16 %v176
      %v574 = vunpack.c.l.b16 %v177
      %v575 = vunpack.c.l.b16 %v178
      %v576 = vunpack.c.l.b16 %v179
      %v577 = vunpack.c.l.b16 %v180
      %v578 = vunpack.c.l.b16 %v181
      %v579 = vunpack.c.l.b16 %v182
      %v580 = vunpack.c.l.b16 %v183
      %v581 = vunpack.c.l.b16 %v184
      %v582 = vunpack.c.l.b16 %v185
      %v583 = vunpack.c.l.b16 %v186
      %v584 = vunpack.c.l.b16 %v187
      %v585 = vunpack.c.l.b16 %v188
      %v586 = vunpack.c.l.b16 %v189
      %v587 = vunpack.c.l.b16 %v190
      %v588 = vpack.c.b16 %v570, %v569
      %v589 = vpack.c.b16 %v572, %v571
      %v590 = vpack.c.b16 %v574, %v573
      %v591 = vpack.c.b16 %v576, %v575
      %v592 = vpack.c.b16 %v578, %v577
      %v593 = vpack.c.b16 %v580, %v579
      %v594 = vpack.c.b16 %v582, %v581
      %v595 = vpack.c.b16 %v584, %v583
      %v596 = vpack.c.b16 %v586, %v585
      %v597 = vpack.c.b16 %v587, %v587
      %vm607 = vcmask 154624
      %v609 = vsel %vm607, %v455, 0
      %v612 = vsel %vm607, %v457, 0
      %v615 = vsel %vm607, %v459, 0
      %v618 = vsel %vm607, %v461, 0
      %v621 = vsel %vm607, %v463, 0
      %v624 = vsel %vm607, %v465, 0
      %v627 = vsel %vm607, %v467, 0
      %v630 = vsel %vm607, %v469, 0
      %v633 = vsel %vm607, %v471, 0
      %v636 = vsel %vm607, %v473, 0
      %v639 = vsel %vm607, %v475, 0
      %v642 = vsel %vm607, %v477, 0
      %v645 = vsel %vm607, %v479, 0
      %v648 = vsel %vm607, %v481, 0
      %v651 = vsel %vm607, %v483, 0
      %v654 = vsel %vm607, %v485, 0
      %v657 = vsel %vm607, %v487, 0
      %v660 = vsel %vm607, %v489, 0
      %v663 = vsel %vm607, %v491, 0
      %v666 = vsel %vm607, %v493, 0
      %v669 = vsel %vm607, %v495, 0
      %v672 = vsel %vm607, %v497, 0
      %v675 = vsel %vm607, %v499, 0
      %v678 = vsel %vm607, %v501, 0
      %v681 = vsel %vm607, %v503, 0
      %v684 = vsel %vm607, %v505, 0
      %v687 = vsel %vm607, %v507, 0
      %v690 = vsel %vm607, %v509, 0
      %v693 = vsel %vm607, %v511, 0
      %v696 = vsel %vm607, %v513, 0
      %v699 = vsel %vm607, %v515, 0
      %v702 = vsel %vm607, %v517, 0
      %vm704 = vcmask 1040384
      %vm705 = vcmask 1041408
      %v706 = vsel %vm704, 4294967295, 65535
      %v707 = vsel %vm705, %v706, 0
      %v709 = vand.u32 %v597, %v707
      %711 = vmatprep.subr.bf16.mxu0 0
      %712 = vmatpush1.bf16.msra.mxu0 %v588
      %713 = vmatprep.subr.bf16.mxu0 0
      %714 = vmatpush1.bf16.msra.mxu0 %v589
      %715 = vmatprep.subr.bf16.mxu0 0
      %716 = vmatpush1.bf16.msra.mxu0 %v590
      %717 = vmatprep.subr.bf16.mxu0 0
      %718 = vmatpush1.bf16.msra.mxu0 %v591
      %719 = vmatprep.subr.bf16.mxu0 0
      %720 = vmatpush1.bf16.msra.mxu0 %v592
      %721 = vmatprep.subr.bf16.mxu0 0
      %722 = vmatpush1.bf16.msra.mxu0 %v593
      %723 = vmatprep.subr.bf16.mxu0 0
      %724 = vmatpush1.bf16.msra.mxu0 %v594
      %725 = vmatprep.subr.bf16.mxu0 0
      %726 = vmatpush1.bf16.msra.mxu0 %v595
      %727 = vmatprep.subr.bf16.mxu0 0
      %728 = vmatpush1.bf16.msra.mxu0 %v596
      %729 = vmatprep.subr.bf16.mxu0 0
      %730 = vmatpush1.bf16.msra.mxu0 %v709
      %731 = vmatprep.subr.bf16.mxu0 0
      %732 = vmatpush1.bf16.msra.mxu0 0
      %733 = vmatprep.subr.bf16.mxu0 0
      %734 = vmatpush1.bf16.msra.mxu0 0
      %735 = vmatprep.subr.bf16.mxu0 0
      %736 = vmatpush1.bf16.msra.mxu0 0
      %737 = vmatprep.subr.bf16.mxu0 0
      %738 = vmatpush1.bf16.msra.mxu0 0
      %739 = vmatprep.subr.bf16.mxu0 0
      %740 = vmatpush1.bf16.msra.mxu0 0
      %741 = vmatprep.subr.bf16.mxu0 0
      %742 = vmatpush1.bf16.msra.mxu0 0
      %743 = vmatprep.mubr.bf16.mxu0 %v609
      %744 = vmatmul.mubr.bf16.gmra.mrb[0].mxu0 %v454
      %v745 = vpop.f32.mrb[0].mxu0
      %v746 = vadd.f32 %v260, %v745
      %v747 = vpop.f32.mrb[0].mxu0
      %v748 = vpop.f32.mrb[0].mxu0
      %v749 = vadd.f32 %v260, %v748
      %v750 = vpop.f32.mrb[0].mxu0
      %751 = vmatprep.mubr.bf16.mxu0 %v612
      %752 = vmatmul.mubr.bf16.gmra.mrb[0].mxu0 %v456
      %v753 = vpop.f32.mrb[0].mxu0
      %v754 = vadd.f32 %v260, %v753
      %v755 = vpop.f32.mrb[0].mxu0
      %v756 = vpop.f32.mrb[0].mxu0
      %v757 = vadd.f32 %v260, %v756
      %v758 = vpop.f32.mrb[0].mxu0
      %759 = vmatprep.mubr.bf16.mxu0 %v615
      %760 = vmatmul.mubr.bf16.gmra.mrb[0].mxu0 %v458
      %v761 = vpop.f32.mrb[0].mxu0
      %v762 = vadd.f32 %v260, %v761
      %v763 = vpop.f32.mrb[0].mxu0
      %v764 = vpop.f32.mrb[0].mxu0
      %v765 = vadd.f32 %v260, %v764
      %v766 = vpop.f32.mrb[0].mxu0
      %767 = vmatprep.mubr.bf16.mxu0 %v618
      %768 = vmatmul.mubr.bf16.gmra.mrb[0].mxu0 %v460
      %v769 = vpop.f32.mrb[0].mxu0
      %v770 = vadd.f32 %v260, %v769
      %v771 = vpop.f32.mrb[0].mxu0
      %v772 = vpop.f32.mrb[0].mxu0
      %v773 = vadd.f32 %v260, %v772
      %v774 = vpop.f32.mrb[0].mxu0
      %775 = vmatprep.mubr.bf16.mxu0 %v621
      %776 = vmatmul.mubr.bf16.gmra.mrb[0].mxu0 %v462
      %v777 = vpop.f32.mrb[0].mxu0
      %v778 = vadd.f32 %v260, %v777
      %v779 = vpop.f32.mrb[0].mxu0
      %v780 = vpop.f32.mrb[0].mxu0
      %v781 = vadd.f32 %v260, %v780
      %v782 = vpop.f32.mrb[0].mxu0
      %783 = vmatprep.mubr.bf16.mxu0 %v624
      %784 = vmatmul.mubr.bf16.gmra.mrb[0].mxu0 %v464
      %v785 = vpop.f32.mrb[0].mxu0
      %v786 = vadd.f32 %v260, %v785
      %v787 = vpop.f32.mrb[0].mxu0
      %v788 = vpop.f32.mrb[0].mxu0
      %v789 = vadd.f32 %v260, %v788
      %v790 = vpop.f32.mrb[0].mxu0
      %791 = vmatprep.mubr.bf16.mxu0 %v627
      %792 = vmatmul.mubr.bf16.gmra.mrb[0].mxu0 %v466
      %v793 = vpop.f32.mrb[0].mxu0
      %v794 = vadd.f32 %v260, %v793
      %v795 = vpop.f32.mrb[0].mxu0
      %v796 = vpop.f32.mrb[0].mxu0
      %v797 = vadd.f32 %v260, %v796
      %v798 = vpop.f32.mrb[0].mxu0
      %799 = vmatprep.mubr.bf16.mxu0 %v630
      %800 = vmatmul.mubr.bf16.gmra.mrb[0].mxu0 %v468
      %v801 = vpop.f32.mrb[0].mxu0
      %v802 = vadd.f32 %v260, %v801
      %v803 = vpop.f32.mrb[0].mxu0
      %v804 = vpop.f32.mrb[0].mxu0
      %v805 = vadd.f32 %v260, %v804
      %v806 = vpop.f32.mrb[0].mxu0
      %807 = vmatprep.mubr.bf16.mxu0 %v633
      %808 = vmatmul.mubr.bf16.gmra.mrb[0].mxu0 %v470
      %v809 = vpop.f32.mrb[0].mxu0
      %v810 = vadd.f32 %v260, %v809
      %v811 = vpop.f32.mrb[0].mxu0
      %v812 = vpop.f32.mrb[0].mxu0
      %v813 = vadd.f32 %v260, %v812
      %v814 = vpop.f32.mrb[0].mxu0
      %815 = vmatprep.mubr.bf16.mxu0 %v636
      %816 = vmatmul.mubr.bf16.gmra.mrb[0].mxu0 %v472
      %v817 = vpop.f32.mrb[0].mxu0
      %v818 = vadd.f32 %v260, %v817
      %v819 = vpop.f32.mrb[0].mxu0
      %v820 = vpop.f32.mrb[0].mxu0
      %v821 = vadd.f32 %v260, %v820
      %v822 = vpop.f32.mrb[0].mxu0
      %823 = vmatprep.mubr.bf16.mxu0 %v639
      %824 = vmatmul.mubr.bf16.gmra.mrb[0].mxu0 %v474
      %v825 = vpop.f32.mrb[0].mxu0
      %v826 = vadd.f32 %v260, %v825
      %v827 = vpop.f32.mrb[0].mxu0
      %v828 = vpop.f32.mrb[0].mxu0
      %v829 = vadd.f32 %v260, %v828
      %v830 = vpop.f32.mrb[0].mxu0
      %831 = vmatprep.mubr.bf16.mxu0 %v642
      %832 = vmatmul.mubr.bf16.gmra.mrb[0].mxu0 %v476
      %v833 = vpop.f32.mrb[0].mxu0
      %v834 = vadd.f32 %v260, %v833
      %v835 = vpop.f32.mrb[0].mxu0
      %v836 = vpop.f32.mrb[0].mxu0
      %v837 = vadd.f32 %v260, %v836
      %v838 = vpop.f32.mrb[0].mxu0
      %839 = vmatprep.mubr.bf16.mxu0 %v645
      %840 = vmatmul.mubr.bf16.gmra.mrb[0].mxu0 %v478
      %v841 = vpop.f32.mrb[0].mxu0
      %v842 = vadd.f32 %v260, %v841
      %v843 = vpop.f32.mrb[0].mxu0
      %v844 = vpop.f32.mrb[0].mxu0
      %v845 = vadd.f32 %v260, %v844
      %v846 = vpop.f32.mrb[0].mxu0
      %847 = vmatprep.mubr.bf16.mxu0 %v648
      %848 = vmatmul.mubr.bf16.gmra.mrb[0].mxu0 %v480
      %v849 = vpop.f32.mrb[0].mxu0
      %v850 = vadd.f32 %v260, %v849
      %v851 = vpop.f32.mrb[0].mxu0
      %v852 = vpop.f32.mrb[0].mxu0
      %v853 = vadd.f32 %v260, %v852
      %v854 = vpop.f32.mrb[0].mxu0
      %855 = vmatprep.mubr.bf16.mxu0 %v651
      %856 = vmatmul.mubr.bf16.gmra.mrb[0].mxu0 %v482
      %v857 = vpop.f32.mrb[0].mxu0
      %v858 = vadd.f32 %v260, %v857
      %v859 = vpop.f32.mrb[0].mxu0
      %v860 = vpop.f32.mrb[0].mxu0
      %v861 = vadd.f32 %v260, %v860
      %v862 = vpop.f32.mrb[0].mxu0
      %863 = vmatprep.mubr.bf16.mxu0 %v654
      %864 = vmatmul.mubr.bf16.gmra.mrb[0].mxu0 %v484
      %v865 = vpop.f32.mrb[0].mxu0
      %v866 = vadd.f32 %v260, %v865
      %v867 = vpop.f32.mrb[0].mxu0
      %v868 = vpop.f32.mrb[0].mxu0
      %v869 = vadd.f32 %v260, %v868
      %v870 = vpop.f32.mrb[0].mxu0
      %871 = vmatprep.mubr.bf16.mxu0 %v657
      %872 = vmatmul.mubr.bf16.gmra.mrb[0].mxu0 %v486
      %v873 = vpop.f32.mrb[0].mxu0
      %v874 = vadd.f32 %v260, %v873
      %v875 = vpop.f32.mrb[0].mxu0
      %v876 = vpop.f32.mrb[0].mxu0
      %v877 = vadd.f32 %v260, %v876
      %v878 = vpop.f32.mrb[0].mxu0
      %879 = vmatprep.mubr.bf16.mxu0 %v660
      %880 = vmatmul.mubr.bf16.gmra.mrb[0].mxu0 %v488
      %v881 = vpop.f32.mrb[0].mxu0
      %v882 = vadd.f32 %v260, %v881
      %v883 = vpop.f32.mrb[0].mxu0
      %v884 = vpop.f32.mrb[0].mxu0
      %v885 = vadd.f32 %v260, %v884
      %v886 = vpop.f32.mrb[0].mxu0
      %887 = vmatprep.mubr.bf16.mxu0 %v663
      %888 = vmatmul.mubr.bf16.gmra.mrb[0].mxu0 %v490
      %v889 = vpop.f32.mrb[0].mxu0
      %v890 = vadd.f32 %v260, %v889
      %v891 = vpop.f32.mrb[0].mxu0
      %v892 = vpop.f32.mrb[0].mxu0
      %v893 = vadd.f32 %v260, %v892
      %v894 = vpop.f32.mrb[0].mxu0
      %895 = vmatprep.mubr.bf16.mxu0 %v666
      %896 = vmatmul.mubr.bf16.gmra.mrb[0].mxu0 %v492
      %v897 = vpop.f32.mrb[0].mxu0
      %v898 = vadd.f32 %v260, %v897
      %v899 = vpop.f32.mrb[0].mxu0
      %v900 = vpop.f32.mrb[0].mxu0
      %v901 = vadd.f32 %v260, %v900
      %v902 = vpop.f32.mrb[0].mxu0
      %903 = vmatprep.mubr.bf16.mxu0 %v669
      %904 = vmatmul.mubr.bf16.gmra.mrb[0].mxu0 %v494
      %v905 = vpop.f32.mrb[0].mxu0
      %v906 = vadd.f32 %v260, %v905
      %v907 = vpop.f32.mrb[0].mxu0
      %v908 = vpop.f32.mrb[0].mxu0
      %v909 = vadd.f32 %v260, %v908
      %v910 = vpop.f32.mrb[0].mxu0
      %911 = vmatprep.mubr.bf16.mxu0 %v672
      %912 = vmatmul.mubr.bf16.gmra.mrb[0].mxu0 %v496
      %v913 = vpop.f32.mrb[0].mxu0
      %v914 = vadd.f32 %v260, %v913
      %v915 = vpop.f32.mrb[0].mxu0
      %v916 = vpop.f32.mrb[0].mxu0
      %v917 = vadd.f32 %v260, %v916
      %v918 = vpop.f32.mrb[0].mxu0
      %919 = vmatprep.mubr.bf16.mxu0 %v675
      %920 = vmatmul.mubr.bf16.gmra.mrb[0].mxu0 %v498
      %v921 = vpop.f32.mrb[0].mxu0
      %v922 = vadd.f32 %v260, %v921
      %v923 = vpop.f32.mrb[0].mxu0
      %v924 = vpop.f32.mrb[0].mxu0
      %v925 = vadd.f32 %v260, %v924
      %v926 = vpop.f32.mrb[0].mxu0
      %927 = vmatprep.mubr.bf16.mxu0 %v678
      %928 = vmatmul.mubr.bf16.gmra.mrb[0].mxu0 %v500
      %v929 = vpop.f32.mrb[0].mxu0
      %v930 = vadd.f32 %v260, %v929
      %v931 = vpop.f32.mrb[0].mxu0
      %v932 = vpop.f32.mrb[0].mxu0
      %v933 = vadd.f32 %v260, %v932
      %v934 = vpop.f32.mrb[0].mxu0
      %935 = vmatprep.mubr.bf16.mxu0 %v681
      %936 = vmatmul.mubr.bf16.gmra.mrb[0].mxu0 %v502
      %v937 = vpop.f32.mrb[0].mxu0
      %v938 = vadd.f32 %v260, %v937
      %v939 = vpop.f32.mrb[0].mxu0
      %v940 = vpop.f32.mrb[0].mxu0
      %v941 = vadd.f32 %v260, %v940
      %v942 = vpop.f32.mrb[0].mxu0
      %943 = vmatprep.mubr.bf16.mxu0 %v684
      %944 = vmatmul.mubr.bf16.gmra.mrb[0].mxu0 %v504
      %v945 = vpop.f32.mrb[0].mxu0
      %v946 = vadd.f32 %v260, %v945
      %v947 = vpop.f32.mrb[0].mxu0
      %v948 = vpop.f32.mrb[0].mxu0
      %v949 = vadd.f32 %v260, %v948
      %v950 = vpop.f32.mrb[0].mxu0
      %951 = vmatprep.mubr.bf16.mxu0 %v687
      %952 = vmatmul.mubr.bf16.gmra.mrb[0].mxu0 %v506
      %v953 = vpop.f32.mrb[0].mxu0
      %v954 = vadd.f32 %v260, %v953
      %v955 = vpop.f32.mrb[0].mxu0
      %v956 = vpop.f32.mrb[0].mxu0
      %v957 = vadd.f32 %v260, %v956
      %v958 = vpop.f32.mrb[0].mxu0
      %959 = vmatprep.mubr.bf16.mxu0 %v690
      %960 = vmatmul.mubr.bf16.gmra.mrb[0].mxu0 %v508
      %v961 = vpop.f32.mrb[0].mxu0
      %v962 = vadd.f32 %v260, %v961
      %v963 = vpop.f32.mrb[0].mxu0
      %v964 = vpop.f32.mrb[0].mxu0
      %v965 = vadd.f32 %v260, %v964
      %v966 = vpop.f32.mrb[0].mxu0
      %967 = vmatprep.mubr.bf16.mxu0 %v693
      %968 = vmatmul.mubr.bf16.gmra.mrb[0].mxu0 %v510
      %v969 = vpop.f32.mrb[0].mxu0
      %v970 = vadd.f32 %v260, %v969
      %v971 = vpop.f32.mrb[0].mxu0
      %v972 = vpop.f32.mrb[0].mxu0
      %v973 = vadd.f32 %v260, %v972
      %v974 = vpop.f32.mrb[0].mxu0
      %975 = vmatprep.mubr.bf16.mxu0 %v696
      %976 = vmatmul.mubr.bf16.gmra.mrb[0].mxu0 %v512
      %v977 = vpop.f32.mrb[0].mxu0
      %v978 = vadd.f32 %v260, %v977
      %v979 = vpop.f32.mrb[0].mxu0
      %v980 = vpop.f32.mrb[0].mxu0
      %v981 = vadd.f32 %v260, %v980
      %v982 = vpop.f32.mrb[0].mxu0
      %983 = vmatprep.mubr.bf16.mxu0 %v699
      %984 = vmatmul.mubr.bf16.gmra.mrb[0].mxu0 %v514
      %v985 = vpop.f32.mrb[0].mxu0
      %v986 = vadd.f32 %v260, %v985
      %v987 = vpop.f32.mrb[0].mxu0
      %v988 = vpop.f32.mrb[0].mxu0
      %v989 = vadd.f32 %v260, %v988
      %v990 = vpop.f32.mrb[0].mxu0
      %991 = vmatprep.mubr.bf16.mxu0 %v702
      %992 = vmatmul.mubr.bf16.gmra.mrb[0].mxu0 %v516
      %v993 = vpop.f32.mrb[0].mxu0
      %v994 = vadd.f32 %v260, %v993
      %v995 = vpop.f32.mrb[0].mxu0
      %v996 = vpop.f32.mrb[0].mxu0
      %v997 = vadd.f32 %v260, %v996
      %v998 = vpop.f32.mrb[0].mxu0
      %999 = vdwg.mxu0
      %s1000 = scalar_lea.vmem %s165, 512
      %v1001 = vld [vmem:[%s1000] sm:$0xff]
      %v1002 = vld [vmem:[%s1000 + $0x8] sm:$0xff]
      %v1003 = vld [vmem:[%s1000 + $0x10] sm:$0xff]
      %v1004 = vld [vmem:[%s1000 + $0x18] sm:$0xff]
      %v1005 = vld [vmem:[%s1000 + $0x20] sm:$0xff]
      %v1006 = vld [vmem:[%s1000 + $0x28] sm:$0xff]
      %v1007 = vld [vmem:[%s1000 + $0x30] sm:$0xff]
      %v1008 = vld [vmem:[%s1000 + $0x38] sm:$0xff]
      %v1009 = vld [vmem:[%s1000 + $0x40] sm:$0xff]
      %v1010 = vld [vmem:[%s1000 + $0x48] sm:$0xff]
      %v1011 = vld [vmem:[%s1000 + $0x50] sm:$0xff]
      %v1012 = vld [vmem:[%s1000 + $0x58] sm:$0xff]
      %v1013 = vld [vmem:[%s1000 + $0x60] sm:$0xff]
      %v1014 = vld [vmem:[%s1000 + $0x68] sm:$0xff]
      %v1015 = vld [vmem:[%s1000 + $0x70] sm:$0xff]
      %v1016 = vld [vmem:[%s1000 + $0x78] sm:$0xff]
      %v1017 = vld [vmem:[%s1000 + $0x80] sm:$0xff]
      %v1018 = vld [vmem:[%s1000 + $0x88] sm:$0xff]
      %v1019 = vld [vmem:[%s1000 + $0x90] sm:$0xff]
      %v1020 = vld [vmem:[%s1000 + $0x98] sm:$0xff]
      %v1021 = vld [vmem:[%s1000 + $0xa0] sm:$0xff]
      %v1022 = vld [vmem:[%s1000 + $0xa8] sm:$0xff]
      %v1023 = vld [vmem:[%s1000 + $0xb0] sm:$0xff]
      %v1024 = vld [vmem:[%s1000 + $0xb8] sm:$0xff]
      %v1025 = vld [vmem:[%s1000 + $0xc0] sm:$0xff]
      %v1026 = vld [vmem:[%s1000 + $0xc8] sm:$0xff]
      %v1027 = vld [vmem:[%s1000 + $0xd0] sm:$0xff]
      %v1028 = vld [vmem:[%s1000 + $0xd8] sm:$0xff]
      %v1029 = vld [vmem:[%s1000 + $0xe0] sm:$0xff]
      %v1030 = vld [vmem:[%s1000 + $0xe8] sm:$0xff]
      %v1031 = vld [vmem:[%s1000 + $0xf0] sm:$0xff]
      %v1032 = vld [vmem:[%s1000 + $0xf8] sm:$0xff]
      %v1033 = vld [vmem:[%s1000 + $0x100] sm:$0xff]
      %v1034 = vld [vmem:[%s1000 + $0x108] sm:$0xff]
      %v1035 = vld [vmem:[%s1000 + $0x110] sm:$0xff]
      %v1036 = vld [vmem:[%s1000 + $0x118] sm:$0xff]
      %v1037 = vld [vmem:[%s1000 + $0x120] sm:$0xff]
      %v1038 = vld [vmem:[%s1000 + $0x128] sm:$0xff]
      %v1039 = vld [vmem:[%s1000 + $0x130] sm:$0xff]
      %v1040 = vld [vmem:[%s1000 + $0x138] sm:$0xff]
      %v1041 = vld [vmem:[%s1000 + $0x140] sm:$0xff]
      %v1042 = vld [vmem:[%s1000 + $0x148] sm:$0xff]
      %v1043 = vld [vmem:[%s1000 + $0x150] sm:$0xff]
      %v1044 = vld [vmem:[%s1000 + $0x158] sm:$0xff]
      %v1045 = vld [vmem:[%s1000 + $0x160] sm:$0xff]
      %v1046 = vld [vmem:[%s1000 + $0x168] sm:$0xff]
      %v1047 = vld [vmem:[%s1000 + $0x170] sm:$0xff]
      %v1048 = vld [vmem:[%s1000 + $0x178] sm:$0xff]
      %v1049 = vld [vmem:[%s1000 + $0x180] sm:$0xff]
      %v1050 = vld [vmem:[%s1000 + $0x188] sm:$0xff]
      %v1051 = vld [vmem:[%s1000 + $0x190] sm:$0xff]
      %v1052 = vld [vmem:[%s1000 + $0x198] sm:$0xff]
      %v1053 = vld [vmem:[%s1000 + $0x1a0] sm:$0xff]
      %v1054 = vld [vmem:[%s1000 + $0x1a8] sm:$0xff]
      %v1055 = vld [vmem:[%s1000 + $0x1b0] sm:$0xff]
      %v1056 = vld [vmem:[%s1000 + $0x1b8] sm:$0xff]
      %v1057 = vld [vmem:[%s1000 + $0x1c0] sm:$0xff]
      %v1058 = vld [vmem:[%s1000 + $0x1c8] sm:$0xff]
      %v1059 = vld [vmem:[%s1000 + $0x1d0] sm:$0xff]
      %v1060 = vld [vmem:[%s1000 + $0x1d8] sm:$0xff]
      %v1061 = vld [vmem:[%s1000 + $0x1e0] sm:$0xff]
      %v1062 = vld [vmem:[%s1000 + $0x1e8] sm:$0xff]
      %v1063 = vld [vmem:[%s1000 + $0x1f0] sm:$0xff]
      %v1064 = vld [vmem:[%s1000 + $0x1f8] sm:$0xff]
      %v1129 = vunpack.c.l.b16 %v1001
      %v1130 = vunpack.c.h.b16 %v1001
      %v1131 = vunpack.c.l.b16 %v1002
      %v1132 = vunpack.c.h.b16 %v1002
      %v1133 = vunpack.c.l.b16 %v1003
      %v1134 = vunpack.c.h.b16 %v1003
      %v1135 = vunpack.c.l.b16 %v1004
      %v1136 = vunpack.c.h.b16 %v1004
      %v1137 = vunpack.c.l.b16 %v1005
      %v1138 = vunpack.c.h.b16 %v1005
      %v1139 = vunpack.c.l.b16 %v1006
      %v1140 = vunpack.c.h.b16 %v1006
      %v1141 = vunpack.c.l.b16 %v1007
      %v1142 = vunpack.c.h.b16 %v1007
      %v1143 = vunpack.c.l.b16 %v1008
      %v1144 = vunpack.c.h.b16 %v1008
      %v1145 = vunpack.c.l.b16 %v1009
      %v1146 = vunpack.c.h.b16 %v1009
      %v1147 = vunpack.c.l.b16 %v1010
      %v1148 = vunpack.c.h.b16 %v1010
      %v1149 = vunpack.c.l.b16 %v1011
      %v1150 = vunpack.c.h.b16 %v1011
      %v1151 = vunpack.c.l.b16 %v1012
      %v1152 = vunpack.c.h.b16 %v1012
      %v1153 = vunpack.c.l.b16 %v1013
      %v1154 = vunpack.c.h.b16 %v1013
      %v1155 = vunpack.c.l.b16 %v1014
      %v1156 = vunpack.c.h.b16 %v1014
      %v1157 = vunpack.c.l.b16 %v1015
      %v1158 = vunpack.c.h.b16 %v1015
      %v1159 = vunpack.c.l.b16 %v1016
      %v1160 = vunpack.c.h.b16 %v1016
      %v1161 = vunpack.c.l.b16 %v1017
      %v1162 = vunpack.c.h.b16 %v1017
      %v1163 = vunpack.c.l.b16 %v1018
      %v1164 = vunpack.c.h.b16 %v1018
      %v1165 = vunpack.c.l.b16 %v1019
      %v1166 = vunpack.c.h.b16 %v1019
      %v1167 = vunpack.c.l.b16 %v1020
      %v1168 = vunpack.c.h.b16 %v1020
      %v1169 = vunpack.c.l.b16 %v1021
      %v1170 = vunpack.c.h.b16 %v1021
      %v1171 = vunpack.c.l.b16 %v1022
      %v1172 = vunpack.c.h.b16 %v1022
      %v1173 = vunpack.c.l.b16 %v1023
      %v1174 = vunpack.c.h.b16 %v1023
      %v1175 = vunpack.c.l.b16 %v1024
      %v1176 = vunpack.c.h.b16 %v1024
      %v1177 = vunpack.c.l.b16 %v1025
      %v1178 = vunpack.c.h.b16 %v1025
      %v1179 = vunpack.c.l.b16 %v1026
      %v1180 = vunpack.c.h.b16 %v1026
      %v1181 = vunpack.c.l.b16 %v1027
      %v1182 = vunpack.c.h.b16 %v1027
      %v1183 = vunpack.c.l.b16 %v1028
      %v1184 = vunpack.c.h.b16 %v1028
      %v1185 = vunpack.c.l.b16 %v1029
      %v1186 = vunpack.c.h.b16 %v1029
      %v1187 = vunpack.c.l.b16 %v1030
      %v1188 = vunpack.c.h.b16 %v1030
      %v1189 = vunpack.c.l.b16 %v1031
      %v1190 = vunpack.c.h.b16 %v1031
      %v1191 = vunpack.c.l.b16 %v1032
      %v1192 = vunpack.c.h.b16 %v1032
      %v1193 = vunpack.c.l.b16 %v1033
      %v1194 = vunpack.c.h.b16 %v1033
      %v1195 = vunpack.c.l.b16 %v1034
      %v1196 = vunpack.c.h.b16 %v1034
      %v1197 = vunpack.c.l.b16 %v1035
      %v1198 = vunpack.c.h.b16 %v1035
      %v1199 = vunpack.c.l.b16 %v1036
      %v1200 = vunpack.c.h.b16 %v1036
      %v1201 = vunpack.c.l.b16 %v1037
      %v1202 = vunpack.c.h.b16 %v1037
      %v1203 = vunpack.c.l.b16 %v1038
      %v1204 = vunpack.c.h.b16 %v1038
      %v1205 = vunpack.c.l.b16 %v1039
      %v1206 = vunpack.c.h.b16 %v1039
      %v1207 = vunpack.c.l.b16 %v1040
      %v1208 = vunpack.c.h.b16 %v1040
      %v1209 = vunpack.c.l.b16 %v1041
      %v1210 = vunpack.c.h.b16 %v1041
      %v1211 = vunpack.c.l.b16 %v1042
      %v1212 = vunpack.c.h.b16 %v1042
      %v1213 = vunpack.c.l.b16 %v1043
      %v1214 = vunpack.c.h.b16 %v1043
      %v1215 = vunpack.c.l.b16 %v1044
      %v1216 = vunpack.c.h.b16 %v1044
      %v1217 = vunpack.c.l.b16 %v1045
      %v1218 = vunpack.c.h.b16 %v1045
      %v1219 = vunpack.c.l.b16 %v1046
      %v1220 = vunpack.c.h.b16 %v1046
      %v1221 = vunpack.c.l.b16 %v1047
      %v1222 = vunpack.c.h.b16 %v1047
      %v1223 = vunpack.c.l.b16 %v1048
      %v1224 = vunpack.c.h.b16 %v1048
      %v1225 = vunpack.c.l.b16 %v1049
      %v1226 = vunpack.c.h.b16 %v1049
      %v1227 = vunpack.c.l.b16 %v1050
      %v1228 = vunpack.c.h.b16 %v1050
      %v1229 = vunpack.c.l.b16 %v1051
      %v1230 = vunpack.c.h.b16 %v1051
      %v1231 = vunpack.c.l.b16 %v1052
      %v1232 = vunpack.c.h.b16 %v1052
      %v1233 = vunpack.c.l.b16 %v1053
      %v1234 = vunpack.c.h.b16 %v1053
      %v1235 = vunpack.c.l.b16 %v1054
      %v1236 = vunpack.c.h.b16 %v1054
      %v1237 = vunpack.c.l.b16 %v1055
      %v1238 = vunpack.c.h.b16 %v1055
      %v1239 = vunpack.c.l.b16 %v1056
      %v1240 = vunpack.c.h.b16 %v1056
      %v1241 = vunpack.c.l.b16 %v1057
      %v1242 = vunpack.c.h.b16 %v1057
      %v1243 = vunpack.c.l.b16 %v1058
      %v1244 = vunpack.c.h.b16 %v1058
      %v1245 = vunpack.c.l.b16 %v1059
      %v1246 = vunpack.c.h.b16 %v1059
      %v1247 = vunpack.c.l.b16 %v1060
      %v1248 = vunpack.c.h.b16 %v1060
      %v1249 = vunpack.c.l.b16 %v1061
      %v1250 = vunpack.c.h.b16 %v1061
      %v1251 = vunpack.c.l.b16 %v1062
      %v1252 = vunpack.c.h.b16 %v1062
      %v1253 = vunpack.c.l.b16 %v1063
      %v1254 = vunpack.c.h.b16 %v1063
      %v1255 = vunpack.c.l.b16 %v1064
      %v1256 = vunpack.c.h.b16 %v1064
      %v1257 = vpack.c.b16 %v1131, %v1129
      %v1258 = vpack.c.b16 %v1132, %v1130
      %v1259 = vpack.c.b16 %v1135, %v1133
      %v1260 = vpack.c.b16 %v1136, %v1134
      %v1261 = vpack.c.b16 %v1139, %v1137
      %v1262 = vpack.c.b16 %v1140, %v1138
      %v1263 = vpack.c.b16 %v1143, %v1141
      %v1264 = vpack.c.b16 %v1144, %v1142
      %v1265 = vpack.c.b16 %v1147, %v1145
      %v1266 = vpack.c.b16 %v1148, %v1146
      %v1267 = vpack.c.b16 %v1151, %v1149
      %v1268 = vpack.c.b16 %v1152, %v1150
      %v1269 = vpack.c.b16 %v1155, %v1153
      %v1270 = vpack.c.b16 %v1156, %v1154
      %v1271 = vpack.c.b16 %v1159, %v1157
      %v1272 = vpack.c.b16 %v1160, %v1158
      %v1273 = vpack.c.b16 %v1163, %v1161
      %v1274 = vpack.c.b16 %v1164, %v1162
      %v1275 = vpack.c.b16 %v1167, %v1165
      %v1276 = vpack.c.b16 %v1168, %v1166
      %v1277 = vpack.c.b16 %v1171, %v1169
      %v1278 = vpack.c.b16 %v1172, %v1170
      %v1279 = vpack.c.b16 %v1175, %v1173
      %v1280 = vpack.c.b16 %v1176, %v1174
      %v1281 = vpack.c.b16 %v1179, %v1177
      %v1282 = vpack.c.b16 %v1180, %v1178
      %v1283 = vpack.c.b16 %v1183, %v1181
      %v1284 = vpack.c.b16 %v1184, %v1182
      %v1285 = vpack.c.b16 %v1187, %v1185
      %v1286 = vpack.c.b16 %v1188, %v1186
      %v1287 = vpack.c.b16 %v1191, %v1189
      %v1288 = vpack.c.b16 %v1192, %v1190
      %v1289 = vpack.c.b16 %v1195, %v1193
      %v1290 = vpack.c.b16 %v1196, %v1194
      %v1291 = vpack.c.b16 %v1199, %v1197
      %v1292 = vpack.c.b16 %v1200, %v1198
      %v1293 = vpack.c.b16 %v1203, %v1201
      %v1294 = vpack.c.b16 %v1204, %v1202
      %v1295 = vpack.c.b16 %v1207, %v1205
      %v1296 = vpack.c.b16 %v1208, %v1206
      %v1297 = vpack.c.b16 %v1211, %v1209
      %v1298 = vpack.c.b16 %v1212, %v1210
      %v1299 = vpack.c.b16 %v1215, %v1213
      %v1300 = vpack.c.b16 %v1216, %v1214
      %v1301 = vpack.c.b16 %v1219, %v1217
      %v1302 = vpack.c.b16 %v1220, %v1218
      %v1303 = vpack.c.b16 %v1223, %v1221
      %v1304 = vpack.c.b16 %v1224, %v1222
      %v1305 = vpack.c.b16 %v1227, %v1225
      %v1306 = vpack.c.b16 %v1228, %v1226
      %v1307 = vpack.c.b16 %v1231, %v1229
      %v1308 = vpack.c.b16 %v1232, %v1230
      %v1309 = vpack.c.b16 %v1235, %v1233
      %v1310 = vpack.c.b16 %v1236, %v1234
      %v1311 = vpack.c.b16 %v1239, %v1237
      %v1312 = vpack.c.b16 %v1240, %v1238
      %v1313 = vpack.c.b16 %v1243, %v1241
      %v1314 = vpack.c.b16 %v1244, %v1242
      %v1315 = vpack.c.b16 %v1247, %v1245
      %v1316 = vpack.c.b16 %v1248, %v1246
      %v1317 = vpack.c.b16 %v1251, %v1249
      %v1318 = vpack.c.b16 %v1252, %v1250
      %v1319 = vpack.c.b16 %v1255, %v1253
      %v1320 = vpack.c.b16 %v1256, %v1254
      %v1354 = vsel %vm607, %v1258, 0
      %v1357 = vsel %vm607, %v1260, 0
      %v1360 = vsel %vm607, %v1262, 0
      %v1363 = vsel %vm607, %v1264, 0
      %v1366 = vsel %vm607, %v1266, 0
      %v1369 = vsel %vm607, %v1268, 0
      %v1372 = vsel %vm607, %v1270, 0
      %v1375 = vsel %vm607, %v1272, 0
      %v1378 = vsel %vm607, %v1274, 0
      %v1381 = vsel %vm607, %v1276, 0
      %v1384 = vsel %vm607, %v1278, 0
      %v1387 = vsel %vm607, %v1280, 0
      %v1390 = vsel %vm607, %v1282, 0
      %v1393 = vsel %vm607, %v1284, 0
      %v1396 = vsel %vm607, %v1286, 0
      %v1399 = vsel %vm607, %v1288, 0
      %v1402 = vsel %vm607, %v1290, 0
      %v1405 = vsel %vm607, %v1292, 0
      %v1408 = vsel %vm607, %v1294, 0
      %v1411 = vsel %vm607, %v1296, 0
      %v1414 = vsel %vm607, %v1298, 0
      %v1417 = vsel %vm607, %v1300, 0
      %v1420 = vsel %vm607, %v1302, 0
      %v1423 = vsel %vm607, %v1304, 0
      %v1426 = vsel %vm607, %v1306, 0
      %v1429 = vsel %vm607, %v1308, 0
      %v1432 = vsel %vm607, %v1310, 0
      %v1435 = vsel %vm607, %v1312, 0
      %v1438 = vsel %vm607, %v1314, 0
      %v1441 = vsel %vm607, %v1316, 0
      %v1444 = vsel %vm607, %v1318, 0
      %v1447 = vsel %vm607, %v1320, 0
      %1449 = vmatprep.subr.bf16.mxu0 0
      %1450 = vmatpush1.bf16.msra.mxu0 %v588
      %1451 = vmatprep.subr.bf16.mxu0 0
      %1452 = vmatpush1.bf16.msra.mxu0 %v589
      %1453 = vmatprep.subr.bf16.mxu0 0
      %1454 = vmatpush1.bf16.msra.mxu0 %v590
      %1455 = vmatprep.subr.bf16.mxu0 0
      %1456 = vmatpush1.bf16.msra.mxu0 %v591
      %1457 = vmatprep.subr.bf16.mxu0 0
      %1458 = vmatpush1.bf16.msra.mxu0 %v592
      %1459 = vmatprep.subr.bf16.mxu0 0
      %1460 = vmatpush1.bf16.msra.mxu0 %v593
      %1461 = vmatprep.subr.bf16.mxu0 0
      %1462 = vmatpush1.bf16.msra.mxu0 %v594
      %1463 = vmatprep.subr.bf16.mxu0 0
      %1464 = vmatpush1.bf16.msra.mxu0 %v595
      %1465 = vmatprep.subr.bf16.mxu0 0
      %1466 = vmatpush1.bf16.msra.mxu0 %v596
      %1467 = vmatprep.subr.bf16.mxu0 0
      %1468 = vmatpush1.bf16.msra.mxu0 %v709
      %1469 = vmatprep.subr.bf16.mxu0 0
      %1470 = vmatpush1.bf16.msra.mxu0 0
      %1471 = vmatprep.subr.bf16.mxu0 0
      %1472 = vmatpush1.bf16.msra.mxu0 0
      %1473 = vmatprep.subr.bf16.mxu0 0
      %1474 = vmatpush1.bf16.msra.mxu0 0
      %1475 = vmatprep.subr.bf16.mxu0 0
      %1476 = vmatpush1.bf16.msra.mxu0 0
      %1477 = vmatprep.subr.bf16.mxu0 0
      %1478 = vmatpush1.bf16.msra.mxu0 0
      %1479 = vmatprep.subr.bf16.mxu0 0
      %1480 = vmatpush1.bf16.msra.mxu0 0
      %1481 = vmatprep.mubr.bf16.mxu0 %v1354
      %1482 = vmatmul.mubr.bf16.gmra.mrb[0].mxu0 %v1257
      %v1483 = vpop.f32.mrb[0].mxu0
      %v1484 = vadd.f32 %v260, %v1483
      %v1485 = vpop.f32.mrb[0].mxu0
      %v1486 = vpop.f32.mrb[0].mxu0
      %v1487 = vadd.f32 %v260, %v1486
      %v1488 = vpop.f32.mrb[0].mxu0
      %1489 = vmatprep.mubr.bf16.mxu0 %v1357
      %1490 = vmatmul.mubr.bf16.gmra.mrb[0].mxu0 %v1259
      %v1491 = vpop.f32.mrb[0].mxu0
      %v1492 = vadd.f32 %v260, %v1491
      %v1493 = vpop.f32.mrb[0].mxu0
      %v1494 = vpop.f32.mrb[0].mxu0
      %v1495 = vadd.f32 %v260, %v1494
      %v1496 = vpop.f32.mrb[0].mxu0
      %1497 = vmatprep.mubr.bf16.mxu0 %v1360
      %1498 = vmatmul.mubr.bf16.gmra.mrb[0].mxu0 %v1261
      %v1499 = vpop.f32.mrb[0].mxu0
      %v1500 = vadd.f32 %v260, %v1499
      %v1501 = vpop.f32.mrb[0].mxu0
      %v1502 = vpop.f32.mrb[0].mxu0
      %v1503 = vadd.f32 %v260, %v1502
      %v1504 = vpop.f32.mrb[0].mxu0
      %1505 = vmatprep.mubr.bf16.mxu0 %v1363
      %1506 = vmatmul.mubr.bf16.gmra.mrb[0].mxu0 %v1263
      %v1507 = vpop.f32.mrb[0].mxu0
      %v1508 = vadd.f32 %v260, %v1507
      %v1509 = vpop.f32.mrb[0].mxu0
      %v1510 = vpop.f32.mrb[0].mxu0
      %v1511 = vadd.f32 %v260, %v1510
      %v1512 = vpop.f32.mrb[0].mxu0
      %1513 = vmatprep.mubr.bf16.mxu0 %v1366
      %1514 = vmatmul.mubr.bf16.gmra.mrb[0].mxu0 %v1265
      %v1515 = vpop.f32.mrb[0].mxu0
      %v1516 = vadd.f32 %v260, %v1515
      %v1517 = vpop.f32.mrb[0].mxu0
      %v1518 = vpop.f32.mrb[0].mxu0
      %v1519 = vadd.f32 %v260, %v1518
      %v1520 = vpop.f32.mrb[0].mxu0
      %1521 = vmatprep.mubr.bf16.mxu0 %v1369
      %1522 = vmatmul.mubr.bf16.gmra.mrb[0].mxu0 %v1267
      %v1523 = vpop.f32.mrb[0].mxu0
      %v1524 = vadd.f32 %v260, %v1523
      %v1525 = vpop.f32.mrb[0].mxu0
      %v1526 = vpop.f32.mrb[0].mxu0
      %v1527 = vadd.f32 %v260, %v1526
      %v1528 = vpop.f32.mrb[0].mxu0
      %1529 = vmatprep.mubr.bf16.mxu0 %v1372
      %1530 = vmatmul.mubr.bf16.gmra.mrb[0].mxu0 %v1269
      %v1531 = vpop.f32.mrb[0].mxu0
      %v1532 = vadd.f32 %v260, %v1531
      %v1533 = vpop.f32.mrb[0].mxu0
      %v1534 = vpop.f32.mrb[0].mxu0
      %v1535 = vadd.f32 %v260, %v1534
      %v1536 = vpop.f32.mrb[0].mxu0
      %1537 = vmatprep.mubr.bf16.mxu0 %v1375
      %1538 = vmatmul.mubr.bf16.gmra.mrb[0].mxu0 %v1271
      %v1539 = vpop.f32.mrb[0].mxu0
      %v1540 = vadd.f32 %v260, %v1539
      %v1541 = vpop.f32.mrb[0].mxu0
      %v1542 = vpop.f32.mrb[0].mxu0
      %v1543 = vadd.f32 %v260, %v1542
      %v1544 = vpop.f32.mrb[0].mxu0
      %1545 = vmatprep.mubr.bf16.mxu0 %v1378
      %1546 = vmatmul.mubr.bf16.gmra.mrb[0].mxu0 %v1273
      %v1547 = vpop.f32.mrb[0].mxu0
      %v1548 = vadd.f32 %v260, %v1547
      %v1549 = vpop.f32.mrb[0].mxu0
      %v1550 = vpop.f32.mrb[0].mxu0
      %v1551 = vadd.f32 %v260, %v1550
      %v1552 = vpop.f32.mrb[0].mxu0
      %1553 = vmatprep.mubr.bf16.mxu0 %v1381
      %1554 = vmatmul.mubr.bf16.gmra.mrb[0].mxu0 %v1275
      %v1555 = vpop.f32.mrb[0].mxu0
      %v1556 = vadd.f32 %v260, %v1555
      %v1557 = vpop.f32.mrb[0].mxu0
      %v1558 = vpop.f32.mrb[0].mxu0
      %v1559 = vadd.f32 %v260, %v1558
      %v1560 = vpop.f32.mrb[0].mxu0
      %1561 = vmatprep.mubr.bf16.mxu0 %v1384
      %1562 = vmatmul.mubr.bf16.gmra.mrb[0].mxu0 %v1277
      %v1563 = vpop.f32.mrb[0].mxu0
      %v1564 = vadd.f32 %v260, %v1563
      %v1565 = vpop.f32.mrb[0].mxu0
      %v1566 = vpop.f32.mrb[0].mxu0
      %v1567 = vadd.f32 %v260, %v1566
      %v1568 = vpop.f32.mrb[0].mxu0
      %1569 = vmatprep.mubr.bf16.mxu0 %v1387
      %1570 = vmatmul.mubr.bf16.gmra.mrb[0].mxu0 %v1279
      %v1571 = vpop.f32.mrb[0].mxu0
      %v1572 = vadd.f32 %v260, %v1571
      %v1573 = vpop.f32.mrb[0].mxu0
      %v1574 = vpop.f32.mrb[0].mxu0
      %v1575 = vadd.f32 %v260, %v1574
      %v1576 = vpop.f32.mrb[0].mxu0
      %1577 = vmatprep.mubr.bf16.mxu0 %v1390
      %1578 = vmatmul.mubr.bf16.gmra.mrb[0].mxu0 %v1281
      %v1579 = vpop.f32.mrb[0].mxu0
      %v1580 = vadd.f32 %v260, %v1579
      %v1581 = vpop.f32.mrb[0].mxu0
      %v1582 = vpop.f32.mrb[0].mxu0
      %v1583 = vadd.f32 %v260, %v1582
      %v1584 = vpop.f32.mrb[0].mxu0
      %1585 = vmatprep.mubr.bf16.mxu0 %v1393
      %1586 = vmatmul.mubr.bf16.gmra.mrb[0].mxu0 %v1283
      %v1587 = vpop.f32.mrb[0].mxu0
      %v1588 = vadd.f32 %v260, %v1587
      %v1589 = vpop.f32.mrb[0].mxu0
      %v1590 = vpop.f32.mrb[0].mxu0
      %v1591 = vadd.f32 %v260, %v1590
      %v1592 = vpop.f32.mrb[0].mxu0
      %1593 = vmatprep.mubr.bf16.mxu0 %v1396
      %1594 = vmatmul.mubr.bf16.gmra.mrb[0].mxu0 %v1285
      %v1595 = vpop.f32.mrb[0].mxu0
      %v1596 = vadd.f32 %v260, %v1595
      %v1597 = vpop.f32.mrb[0].mxu0
      %v1598 = vpop.f32.mrb[0].mxu0
      %v1599 = vadd.f32 %v260, %v1598
      %v1600 = vpop.f32.mrb[0].mxu0
      %1601 = vmatprep.mubr.bf16.mxu0 %v1399
      %1602 = vmatmul.mubr.bf16.gmra.mrb[0].mxu0 %v1287
      %v1603 = vpop.f32.mrb[0].mxu0
      %v1604 = vadd.f32 %v260, %v1603
      %v1605 = vpop.f32.mrb[0].mxu0
      %v1606 = vpop.f32.mrb[0].mxu0
      %v1607 = vadd.f32 %v260, %v1606
      %v1608 = vpop.f32.mrb[0].mxu0
      %1609 = vmatprep.mubr.bf16.mxu0 %v1402
      %1610 = vmatmul.mubr.bf16.gmra.mrb[0].mxu0 %v1289
      %v1611 = vpop.f32.mrb[0].mxu0
      %v1612 = vadd.f32 %v260, %v1611
      %v1613 = vpop.f32.mrb[0].mxu0
      %v1614 = vpop.f32.mrb[0].mxu0
      %v1615 = vadd.f32 %v260, %v1614
      %v1616 = vpop.f32.mrb[0].mxu0
      %1617 = vmatprep.mubr.bf16.mxu0 %v1405
      %1618 = vmatmul.mubr.bf16.gmra.mrb[0].mxu0 %v1291
      %v1619 = vpop.f32.mrb[0].mxu0
      %v1620 = vadd.f32 %v260, %v1619
      %v1621 = vpop.f32.mrb[0].mxu0
      %v1622 = vpop.f32.mrb[0].mxu0
      %v1623 = vadd.f32 %v260, %v1622
      %v1624 = vpop.f32.mrb[0].mxu0
      %1625 = vmatprep.mubr.bf16.mxu0 %v1408
      %1626 = vmatmul.mubr.bf16.gmra.mrb[0].mxu0 %v1293
      %v1627 = vpop.f32.mrb[0].mxu0
      %v1628 = vadd.f32 %v260, %v1627
      %v1629 = vpop.f32.mrb[0].mxu0
      %v1630 = vpop.f32.mrb[0].mxu0
      %v1631 = vadd.f32 %v260, %v1630
      %v1632 = vpop.f32.mrb[0].mxu0
      %1633 = vmatprep.mubr.bf16.mxu0 %v1411
      %1634 = vmatmul.mubr.bf16.gmra.mrb[0].mxu0 %v1295
      %v1635 = vpop.f32.mrb[0].mxu0
      %v1636 = vadd.f32 %v260, %v1635
      %v1637 = vpop.f32.mrb[0].mxu0
      %v1638 = vpop.f32.mrb[0].mxu0
      %v1639 = vadd.f32 %v260, %v1638
      %v1640 = vpop.f32.mrb[0].mxu0
      %1641 = vmatprep.mubr.bf16.mxu0 %v1414
      %1642 = vmatmul.mubr.bf16.gmra.mrb[0].mxu0 %v1297
      %v1643 = vpop.f32.mrb[0].mxu0
      %v1644 = vadd.f32 %v260, %v1643
      %v1645 = vpop.f32.mrb[0].mxu0
      %v1646 = vpop.f32.mrb[0].mxu0
      %v1647 = vadd.f32 %v260, %v1646
      %v1648 = vpop.f32.mrb[0].mxu0
      %1649 = vmatprep.mubr.bf16.mxu0 %v1417
      %1650 = vmatmul.mubr.bf16.gmra.mrb[0].mxu0 %v1299
      %v1651 = vpop.f32.mrb[0].mxu0
      %v1652 = vadd.f32 %v260, %v1651
      %v1653 = vpop.f32.mrb[0].mxu0
      %v1654 = vpop.f32.mrb[0].mxu0
      %v1655 = vadd.f32 %v260, %v1654
      %v1656 = vpop.f32.mrb[0].mxu0
      %1657 = vmatprep.mubr.bf16.mxu0 %v1420
      %1658 = vmatmul.mubr.bf16.gmra.mrb[0].mxu0 %v1301
      %v1659 = vpop.f32.mrb[0].mxu0
      %v1660 = vadd.f32 %v260, %v1659
      %v1661 = vpop.f32.mrb[0].mxu0
      %v1662 = vpop.f32.mrb[0].mxu0
      %v1663 = vadd.f32 %v260, %v1662
      %v1664 = vpop.f32.mrb[0].mxu0
      %1665 = vmatprep.mubr.bf16.mxu0 %v1423
      %1666 = vmatmul.mubr.bf16.gmra.mrb[0].mxu0 %v1303
      %v1667 = vpop.f32.mrb[0].mxu0
      %v1668 = vadd.f32 %v260, %v1667
      %v1669 = vpop.f32.mrb[0].mxu0
      %v1670 = vpop.f32.mrb[0].mxu0
      %v1671 = vadd.f32 %v260, %v1670
      %v1672 = vpop.f32.mrb[0].mxu0
      %1673 = vmatprep.mubr.bf16.mxu0 %v1426
      %1674 = vmatmul.mubr.bf16.gmra.mrb[0].mxu0 %v1305
      %v1675 = vpop.f32.mrb[0].mxu0
      %v1676 = vadd.f32 %v260, %v1675
      %v1677 = vpop.f32.mrb[0].mxu0
      %v1678 = vpop.f32.mrb[0].mxu0
      %v1679 = vadd.f32 %v260, %v1678
      %v1680 = vpop.f32.mrb[0].mxu0
      %1681 = vmatprep.mubr.bf16.mxu0 %v1429
      %1682 = vmatmul.mubr.bf16.gmra.mrb[0].mxu0 %v1307
      %v1683 = vpop.f32.mrb[0].mxu0
      %v1684 = vadd.f32 %v260, %v1683
      %v1685 = vpop.f32.mrb[0].mxu0
      %v1686 = vpop.f32.mrb[0].mxu0
      %v1687 = vadd.f32 %v260, %v1686
      %v1688 = vpop.f32.mrb[0].mxu0
      %1689 = vmatprep.mubr.bf16.mxu0 %v1432
      %1690 = vmatmul.mubr.bf16.gmra.mrb[0].mxu0 %v1309
      %v1691 = vpop.f32.mrb[0].mxu0
      %v1692 = vadd.f32 %v260, %v1691
      %v1693 = vpop.f32.mrb[0].mxu0
      %v1694 = vpop.f32.mrb[0].mxu0
      %v1695 = vadd.f32 %v260, %v1694
      %v1696 = vpop.f32.mrb[0].mxu0
      %1697 = vmatprep.mubr.bf16.mxu0 %v1435
      %1698 = vmatmul.mubr.bf16.gmra.mrb[0].mxu0 %v1311
      %v1699 = vpop.f32.mrb[0].mxu0
      %v1700 = vadd.f32 %v260, %v1699
      %v1701 = vpop.f32.mrb[0].mxu0
      %v1702 = vpop.f32.mrb[0].mxu0
      %v1703 = vadd.f32 %v260, %v1702
      %v1704 = vpop.f32.mrb[0].mxu0
      %1705 = vmatprep.mubr.bf16.mxu0 %v1438
      %1706 = vmatmul.mubr.bf16.gmra.mrb[0].mxu0 %v1313
      %v1707 = vpop.f32.mrb[0].mxu0
      %v1708 = vadd.f32 %v260, %v1707
      %v1709 = vpop.f32.mrb[0].mxu0
      %v1710 = vpop.f32.mrb[0].mxu0
      %v1711 = vadd.f32 %v260, %v1710
      %v1712 = vpop.f32.mrb[0].mxu0
      %1713 = vmatprep.mubr.bf16.mxu0 %v1441
      %1714 = vmatmul.mubr.bf16.gmra.mrb[0].mxu0 %v1315
      %v1715 = vpop.f32.mrb[0].mxu0
      %v1716 = vadd.f32 %v260, %v1715
      %v1717 = vpop.f32.mrb[0].mxu0
      %v1718 = vpop.f32.mrb[0].mxu0
      %v1719 = vadd.f32 %v260, %v1718
      %v1720 = vpop.f32.mrb[0].mxu0
      %1721 = vmatprep.mubr.bf16.mxu0 %v1444
      %1722 = vmatmul.mubr.bf16.gmra.mrb[0].mxu0 %v1317
      %v1723 = vpop.f32.mrb[0].mxu0
      %v1724 = vadd.f32 %v260, %v1723
      %v1725 = vpop.f32.mrb[0].mxu0
      %v1726 = vpop.f32.mrb[0].mxu0
      %v1727 = vadd.f32 %v260, %v1726
      %v1728 = vpop.f32.mrb[0].mxu0
      %1729 = vmatprep.mubr.bf16.mxu0 %v1447
      %1730 = vmatmul.mubr.bf16.gmra.mrb[0].mxu0 %v1319
      %v1731 = vpop.f32.mrb[0].mxu0
      %v1732 = vadd.f32 %v260, %v1731
      %v1733 = vpop.f32.mrb[0].mxu0
      %v1734 = vpop.f32.mrb[0].mxu0
      %v1735 = vadd.f32 %v260, %v1734
      %v1736 = vpop.f32.mrb[0].mxu0
      %1737 = vdwg.mxu0
      %vm1738 = vcmask 523264
      %v1739 = vsel %vm1738, %v746, 0.0
      %v1740 = vsel %vm1738, %v749, 0.0
      %v1741 = vadd.f32 %v1739, %v1740
      %v1742 = vsel %vm1738, %v754, 0.0
      %v1743 = vadd.f32 %v1741, %v1742
      %v1744 = vsel %vm1738, %v757, 0.0
      %v1745 = vadd.f32 %v1743, %v1744
      %v1746 = vsel %vm1738, %v762, 0.0
      %v1747 = vadd.f32 %v1745, %v1746
      %v1748 = vsel %vm1738, %v765, 0.0
      %v1749 = vadd.f32 %v1747, %v1748
      %v1750 = vsel %vm1738, %v770, 0.0
      %v1751 = vadd.f32 %v1749, %v1750
      %v1752 = vsel %vm1738, %v773, 0.0
      %v1753 = vadd.f32 %v1751, %v1752
      %v1754 = vsel %vm1738, %v778, 0.0
      %v1755 = vadd.f32 %v1753, %v1754
      %v1756 = vsel %vm1738, %v781, 0.0
      %v1757 = vadd.f32 %v1755, %v1756
      %v1758 = vsel %vm1738, %v786, 0.0
      %v1759 = vadd.f32 %v1757, %v1758
      %v1760 = vsel %vm1738, %v789, 0.0
      %v1761 = vadd.f32 %v1759, %v1760
      %v1762 = vsel %vm1738, %v794, 0.0
      %v1763 = vadd.f32 %v1761, %v1762
      %v1764 = vsel %vm1738, %v797, 0.0
      %v1765 = vadd.f32 %v1763, %v1764
      %v1766 = vsel %vm1738, %v802, 0.0
      %v1767 = vadd.f32 %v1765, %v1766
      %v1768 = vsel %vm1738, %v805, 0.0
      %v1769 = vadd.f32 %v1767, %v1768
      %v1770 = vsel %vm1738, %v810, 0.0
      %v1771 = vadd.f32 %v1769, %v1770
      %v1772 = vsel %vm1738, %v813, 0.0
      %v1773 = vadd.f32 %v1771, %v1772
      %v1774 = vsel %vm1738, %v818, 0.0
      %v1775 = vadd.f32 %v1773, %v1774
      %v1776 = vsel %vm1738, %v821, 0.0
      %v1777 = vadd.f32 %v1775, %v1776
      %v1778 = vsel %vm1738, %v826, 0.0
      %v1779 = vadd.f32 %v1777, %v1778
      %v1780 = vsel %vm1738, %v829, 0.0
      %v1781 = vadd.f32 %v1779, %v1780
      %v1782 = vsel %vm1738, %v834, 0.0
      %v1783 = vadd.f32 %v1781, %v1782
      %v1784 = vsel %vm1738, %v837, 0.0
      %v1785 = vadd.f32 %v1783, %v1784
      %v1786 = vsel %vm1738, %v842, 0.0
      %v1787 = vadd.f32 %v1785, %v1786
      %v1788 = vsel %vm1738, %v845, 0.0
      %v1789 = vadd.f32 %v1787, %v1788
      %v1790 = vsel %vm1738, %v850, 0.0
      %v1791 = vadd.f32 %v1789, %v1790
      %v1792 = vsel %vm1738, %v853, 0.0
      %v1793 = vadd.f32 %v1791, %v1792
      %v1794 = vsel %vm1738, %v858, 0.0
      %v1795 = vadd.f32 %v1793, %v1794
      %v1796 = vsel %vm1738, %v861, 0.0
      %v1797 = vadd.f32 %v1795, %v1796
      %v1798 = vsel %vm1738, %v866, 0.0
      %v1799 = vadd.f32 %v1797, %v1798
      %v1800 = vsel %vm1738, %v869, 0.0
      %v1801 = vadd.f32 %v1799, %v1800
      %v1802 = vsel %vm1738, %v874, 0.0
      %v1803 = vadd.f32 %v1801, %v1802
      %v1804 = vsel %vm1738, %v877, 0.0
      %v1805 = vadd.f32 %v1803, %v1804
      %v1806 = vsel %vm1738, %v882, 0.0
      %v1807 = vadd.f32 %v1805, %v1806
      %v1808 = vsel %vm1738, %v885, 0.0
      %v1809 = vadd.f32 %v1807, %v1808
      %v1810 = vsel %vm1738, %v890, 0.0
      %v1811 = vadd.f32 %v1809, %v1810
      %v1812 = vsel %vm1738, %v893, 0.0
      %v1813 = vadd.f32 %v1811, %v1812
      %v1814 = vsel %vm1738, %v898, 0.0
      %v1815 = vadd.f32 %v1813, %v1814
      %v1816 = vsel %vm1738, %v901, 0.0
      %v1817 = vadd.f32 %v1815, %v1816
      %v1818 = vsel %vm1738, %v906, 0.0
      %v1819 = vadd.f32 %v1817, %v1818
      %v1820 = vsel %vm1738, %v909, 0.0
      %v1821 = vadd.f32 %v1819, %v1820
      %v1822 = vsel %vm1738, %v914, 0.0
      %v1823 = vadd.f32 %v1821, %v1822
      %v1824 = vsel %vm1738, %v917, 0.0
      %v1825 = vadd.f32 %v1823, %v1824
      %v1826 = vsel %vm1738, %v922, 0.0
      %v1827 = vadd.f32 %v1825, %v1826
      %v1828 = vsel %vm1738, %v925, 0.0
      %v1829 = vadd.f32 %v1827, %v1828
      %v1830 = vsel %vm1738, %v930, 0.0
      %v1831 = vadd.f32 %v1829, %v1830
      %v1832 = vsel %vm1738, %v933, 0.0
      %v1833 = vadd.f32 %v1831, %v1832
      %v1834 = vsel %vm1738, %v938, 0.0
      %v1835 = vadd.f32 %v1833, %v1834
      %v1836 = vsel %vm1738, %v941, 0.0
      %v1837 = vadd.f32 %v1835, %v1836
      %v1838 = vsel %vm1738, %v946, 0.0
      %v1839 = vadd.f32 %v1837, %v1838
      %v1840 = vsel %vm1738, %v949, 0.0
      %v1841 = vadd.f32 %v1839, %v1840
      %v1842 = vsel %vm1738, %v954, 0.0
      %v1843 = vadd.f32 %v1841, %v1842
      %v1844 = vsel %vm1738, %v957, 0.0
      %v1845 = vadd.f32 %v1843, %v1844
      %v1846 = vsel %vm1738, %v962, 0.0
      %v1847 = vadd.f32 %v1845, %v1846
      %v1848 = vsel %vm1738, %v965, 0.0
      %v1849 = vadd.f32 %v1847, %v1848
      %v1850 = vsel %vm1738, %v970, 0.0
      %v1851 = vadd.f32 %v1849, %v1850
      %v1852 = vsel %vm1738, %v973, 0.0
      %v1853 = vadd.f32 %v1851, %v1852
      %v1854 = vsel %vm1738, %v978, 0.0
      %v1855 = vadd.f32 %v1853, %v1854
      %v1856 = vsel %vm1738, %v981, 0.0
      %v1857 = vadd.f32 %v1855, %v1856
      %v1858 = vsel %vm1738, %v986, 0.0
      %v1859 = vadd.f32 %v1857, %v1858
      %v1860 = vsel %vm1738, %v989, 0.0
      %v1861 = vadd.f32 %v1859, %v1860
      %v1862 = vsel %vm1738, %v994, 0.0
      %v1863 = vadd.f32 %v1861, %v1862
      %v1864 = vsel %vm1738, %v997, 0.0
      %v1865 = vadd.f32 %v1863, %v1864
      %v1866 = vrot.slane %v1865, 4
      %v1867 = vadd.f32 %v1865, %v1866
      %v1868 = vrot.slane %v1867, 2
      %v1869 = vadd.f32 %v1867, %v1868
      %v1870 = vrot.slane %v1869, 1
      %v1871 = vadd.f32 %v1869, %v1870
      %v1872 = vsel %vm1738, %v1484, 0.0
      %v1873 = vsel %vm1738, %v1487, 0.0
      %v1874 = vadd.f32 %v1872, %v1873
      %v1875 = vsel %vm1738, %v1492, 0.0
      %v1876 = vadd.f32 %v1874, %v1875
      %v1877 = vsel %vm1738, %v1495, 0.0
      %v1878 = vadd.f32 %v1876, %v1877
      %v1879 = vsel %vm1738, %v1500, 0.0
      %v1880 = vadd.f32 %v1878, %v1879
      %v1881 = vsel %vm1738, %v1503, 0.0
      %v1882 = vadd.f32 %v1880, %v1881
      %v1883 = vsel %vm1738, %v1508, 0.0
      %v1884 = vadd.f32 %v1882, %v1883
      %v1885 = vsel %vm1738, %v1511, 0.0
      %v1886 = vadd.f32 %v1884, %v1885
      %v1887 = vsel %vm1738, %v1516, 0.0
      %v1888 = vadd.f32 %v1886, %v1887
      %v1889 = vsel %vm1738, %v1519, 0.0
      %v1890 = vadd.f32 %v1888, %v1889
      %v1891 = vsel %vm1738, %v1524, 0.0
      %v1892 = vadd.f32 %v1890, %v1891
      %v1893 = vsel %vm1738, %v1527, 0.0
      %v1894 = vadd.f32 %v1892, %v1893
      %v1895 = vsel %vm1738, %v1532, 0.0
      %v1896 = vadd.f32 %v1894, %v1895
      %v1897 = vsel %vm1738, %v1535, 0.0
      %v1898 = vadd.f32 %v1896, %v1897
      %v1899 = vsel %vm1738, %v1540, 0.0
      %v1900 = vadd.f32 %v1898, %v1899
      %v1901 = vsel %vm1738, %v1543, 0.0
      %v1902 = vadd.f32 %v1900, %v1901
      %v1903 = vsel %vm1738, %v1548, 0.0
      %v1904 = vadd.f32 %v1902, %v1903
      %v1905 = vsel %vm1738, %v1551, 0.0
      %v1906 = vadd.f32 %v1904, %v1905
      %v1907 = vsel %vm1738, %v1556, 0.0
      %v1908 = vadd.f32 %v1906, %v1907
      %v1909 = vsel %vm1738, %v1559, 0.0
      %v1910 = vadd.f32 %v1908, %v1909
      %v1911 = vsel %vm1738, %v1564, 0.0
      %v1912 = vadd.f32 %v1910, %v1911
      %v1913 = vsel %vm1738, %v1567, 0.0
      %v1914 = vadd.f32 %v1912, %v1913
      %v1915 = vsel %vm1738, %v1572, 0.0
      %v1916 = vadd.f32 %v1914, %v1915
      %v1917 = vsel %vm1738, %v1575, 0.0
      %v1918 = vadd.f32 %v1916, %v1917
      %v1919 = vsel %vm1738, %v1580, 0.0
      %v1920 = vadd.f32 %v1918, %v1919
      %v1921 = vsel %vm1738, %v1583, 0.0
      %v1922 = vadd.f32 %v1920, %v1921
      %v1923 = vsel %vm1738, %v1588, 0.0
      %v1924 = vadd.f32 %v1922, %v1923
      %v1925 = vsel %vm1738, %v1591, 0.0
      %v1926 = vadd.f32 %v1924, %v1925
      %v1927 = vsel %vm1738, %v1596, 0.0
      %v1928 = vadd.f32 %v1926, %v1927
      %v1929 = vsel %vm1738, %v1599, 0.0
      %v1930 = vadd.f32 %v1928, %v1929
      %v1931 = vsel %vm1738, %v1604, 0.0
      %v1932 = vadd.f32 %v1930, %v1931
      %v1933 = vsel %vm1738, %v1607, 0.0
      %v1934 = vadd.f32 %v1932, %v1933
      %v1935 = vsel %vm1738, %v1612, 0.0
      %v1936 = vadd.f32 %v1934, %v1935
      %v1937 = vsel %vm1738, %v1615, 0.0
      %v1938 = vadd.f32 %v1936, %v1937
      %v1939 = vsel %vm1738, %v1620, 0.0
      %v1940 = vadd.f32 %v1938, %v1939
      %v1941 = vsel %vm1738, %v1623, 0.0
      %v1942 = vadd.f32 %v1940, %v1941
      %v1943 = vsel %vm1738, %v1628, 0.0
      %v1944 = vadd.f32 %v1942, %v1943
      %v1945 = vsel %vm1738, %v1631, 0.0
      %v1946 = vadd.f32 %v1944, %v1945
      %v1947 = vsel %vm1738, %v1636, 0.0
      %v1948 = vadd.f32 %v1946, %v1947
      %v1949 = vsel %vm1738, %v1639, 0.0
      %v1950 = vadd.f32 %v1948, %v1949
      %v1951 = vsel %vm1738, %v1644, 0.0
      %v1952 = vadd.f32 %v1950, %v1951
      %v1953 = vsel %vm1738, %v1647, 0.0
      %v1954 = vadd.f32 %v1952, %v1953
      %v1955 = vsel %vm1738, %v1652, 0.0
      %v1956 = vadd.f32 %v1954, %v1955
      %v1957 = vsel %vm1738, %v1655, 0.0
      %v1958 = vadd.f32 %v1956, %v1957
      %v1959 = vsel %vm1738, %v1660, 0.0
      %v1960 = vadd.f32 %v1958, %v1959
      %v1961 = vsel %vm1738, %v1663, 0.0
      %v1962 = vadd.f32 %v1960, %v1961
      %v1963 = vsel %vm1738, %v1668, 0.0
      %v1964 = vadd.f32 %v1962, %v1963
      %v1965 = vsel %vm1738, %v1671, 0.0
      %v1966 = vadd.f32 %v1964, %v1965
      %v1967 = vsel %vm1738, %v1676, 0.0
      %v1968 = vadd.f32 %v1966, %v1967
      %v1969 = vsel %vm1738, %v1679, 0.0
      %v1970 = vadd.f32 %v1968, %v1969
      %v1971 = vsel %vm1738, %v1684, 0.0
      %v1972 = vadd.f32 %v1970, %v1971
      %v1973 = vsel %vm1738, %v1687, 0.0
      %v1974 = vadd.f32 %v1972, %v1973
      %v1975 = vsel %vm1738, %v1692, 0.0
      %v1976 = vadd.f32 %v1974, %v1975
      %v1977 = vsel %vm1738, %v1695, 0.0
      %v1978 = vadd.f32 %v1976, %v1977
      %v1979 = vsel %vm1738, %v1700, 0.0
      %v1980 = vadd.f32 %v1978, %v1979
      %v1981 = vsel %vm1738, %v1703, 0.0
      %v1982 = vadd.f32 %v1980, %v1981
      %v1983 = vsel %vm1738, %v1708, 0.0
      %v1984 = vadd.f32 %v1982, %v1983
      %v1985 = vsel %vm1738, %v1711, 0.0
      %v1986 = vadd.f32 %v1984, %v1985
      %v1987 = vsel %vm1738, %v1716, 0.0
      %v1988 = vadd.f32 %v1986, %v1987
      %v1989 = vsel %vm1738, %v1719, 0.0
      %v1990 = vadd.f32 %v1988, %v1989
      %v1991 = vsel %vm1738, %v1724, 0.0
      %v1992 = vadd.f32 %v1990, %v1991
      %v1993 = vsel %vm1738, %v1727, 0.0
      %v1994 = vadd.f32 %v1992, %v1993
      %v1995 = vsel %vm1738, %v1732, 0.0
      %v1996 = vadd.f32 %v1994, %v1995
      %v1997 = vsel %vm1738, %v1735, 0.0
      %v1998 = vadd.f32 %v1996, %v1997
      %v1999 = vrot.slane %v1998, 4
      %v2000 = vadd.f32 %v1998, %v1999
      %v2001 = vrot.slane %v2000, 2
      %v2002 = vadd.f32 %v2000, %v2001
      %v2003 = vrot.slane %v2002, 1
      %v2004 = vadd.f32 %v2002, %v2003
      %v2005 = vadd.f32 %v1871, %v2004
      %v2006 = vmul.f32 %v2005, 0.0009765625
      %v2007 = vsub.f32 %v746, %v2006
      %v2008 = vsub.f32 %v749, %v2006
      %v2009 = vsub.f32 %v754, %v2006
      %v2010 = vsub.f32 %v757, %v2006
      %v2011 = vsub.f32 %v762, %v2006
      %v2012 = vsub.f32 %v765, %v2006
      %v2013 = vsub.f32 %v770, %v2006
      %v2014 = vsub.f32 %v773, %v2006
      %v2015 = vsub.f32 %v778, %v2006
      %v2016 = vsub.f32 %v781, %v2006
      %v2017 = vsub.f32 %v786, %v2006
      %v2018 = vsub.f32 %v789, %v2006
      %v2019 = vsub.f32 %v794, %v2006
      %v2020 = vsub.f32 %v797, %v2006
      %v2021 = vsub.f32 %v802, %v2006
      %v2022 = vsub.f32 %v805, %v2006
      %v2023 = vsub.f32 %v810, %v2006
      %v2024 = vsub.f32 %v813, %v2006
      %v2025 = vsub.f32 %v818, %v2006
      %v2026 = vsub.f32 %v821, %v2006
      %v2027 = vsub.f32 %v826, %v2006
      %v2028 = vsub.f32 %v829, %v2006
      %v2029 = vsub.f32 %v834, %v2006
      %v2030 = vsub.f32 %v837, %v2006
      %v2031 = vsub.f32 %v842, %v2006
      %v2032 = vsub.f32 %v845, %v2006
      %v2033 = vsub.f32 %v850, %v2006
      %v2034 = vsub.f32 %v853, %v2006
      %v2035 = vsub.f32 %v858, %v2006
      %v2036 = vsub.f32 %v861, %v2006
      %v2037 = vsub.f32 %v866, %v2006
      %v2038 = vsub.f32 %v869, %v2006
      %v2039 = vsub.f32 %v874, %v2006
      %v2040 = vsub.f32 %v877, %v2006
      %v2041 = vsub.f32 %v882, %v2006
      %v2042 = vsub.f32 %v885, %v2006
      %v2043 = vsub.f32 %v890, %v2006
      %v2044 = vsub.f32 %v893, %v2006
      %v2045 = vsub.f32 %v898, %v2006
      %v2046 = vsub.f32 %v901, %v2006
      %v2047 = vsub.f32 %v906, %v2006
      %v2048 = vsub.f32 %v909, %v2006
      %v2049 = vsub.f32 %v914, %v2006
      %v2050 = vsub.f32 %v917, %v2006
      %v2051 = vsub.f32 %v922, %v2006
      %v2052 = vsub.f32 %v925, %v2006
      %v2053 = vsub.f32 %v930, %v2006
      %v2054 = vsub.f32 %v933, %v2006
      %v2055 = vsub.f32 %v938, %v2006
      %v2056 = vsub.f32 %v941, %v2006
      %v2057 = vsub.f32 %v946, %v2006
      %v2058 = vsub.f32 %v949, %v2006
      %v2059 = vsub.f32 %v954, %v2006
      %v2060 = vsub.f32 %v957, %v2006
      %v2061 = vsub.f32 %v962, %v2006
      %v2062 = vsub.f32 %v965, %v2006
      %v2063 = vsub.f32 %v970, %v2006
      %v2064 = vsub.f32 %v973, %v2006
      %v2065 = vsub.f32 %v978, %v2006
      %v2066 = vsub.f32 %v981, %v2006
      %v2067 = vsub.f32 %v986, %v2006
      %v2068 = vsub.f32 %v989, %v2006
      %v2069 = vsub.f32 %v994, %v2006
      %v2070 = vsub.f32 %v997, %v2006
      %v2071 = vsub.f32 %v1484, %v2006
      %v2072 = vsub.f32 %v1487, %v2006
      %v2073 = vsub.f32 %v1492, %v2006
      %v2074 = vsub.f32 %v1495, %v2006
      %v2075 = vsub.f32 %v1500, %v2006
      %v2076 = vsub.f32 %v1503, %v2006
      %v2077 = vsub.f32 %v1508, %v2006
      %v2078 = vsub.f32 %v1511, %v2006
      %v2079 = vsub.f32 %v1516, %v2006
      %v2080 = vsub.f32 %v1519, %v2006
      %v2081 = vsub.f32 %v1524, %v2006
      %v2082 = vsub.f32 %v1527, %v2006
      %v2083 = vsub.f32 %v1532, %v2006
      %v2084 = vsub.f32 %v1535, %v2006
      %v2085 = vsub.f32 %v1540, %v2006
      %v2086 = vsub.f32 %v1543, %v2006
      %v2087 = vsub.f32 %v1548, %v2006
      %v2088 = vsub.f32 %v1551, %v2006
      %v2089 = vsub.f32 %v1556, %v2006
      %v2090 = vsub.f32 %v1559, %v2006
      %v2091 = vsub.f32 %v1564, %v2006
      %v2092 = vsub.f32 %v1567, %v2006
      %v2093 = vsub.f32 %v1572, %v2006
      %v2094 = vsub.f32 %v1575, %v2006
      %v2095 = vsub.f32 %v1580, %v2006
      %v2096 = vsub.f32 %v1583, %v2006
      %v2097 = vsub.f32 %v1588, %v2006
      %v2098 = vsub.f32 %v1591, %v2006
      %v2099 = vsub.f32 %v1596, %v2006
      %v2100 = vsub.f32 %v1599, %v2006
      %v2101 = vsub.f32 %v1604, %v2006
      %v2102 = vsub.f32 %v1607, %v2006
      %v2103 = vsub.f32 %v1612, %v2006
      %v2104 = vsub.f32 %v1615, %v2006
      %v2105 = vsub.f32 %v1620, %v2006
      %v2106 = vsub.f32 %v1623, %v2006
      %v2107 = vsub.f32 %v1628, %v2006
      %v2108 = vsub.f32 %v1631, %v2006
      %v2109 = vsub.f32 %v1636, %v2006
      %v2110 = vsub.f32 %v1639, %v2006
      %v2111 = vsub.f32 %v1644, %v2006
      %v2112 = vsub.f32 %v1647, %v2006
      %v2113 = vsub.f32 %v1652, %v2006
      %v2114 = vsub.f32 %v1655, %v2006
      %v2115 = vsub.f32 %v1660, %v2006
      %v2116 = vsub.f32 %v1663, %v2006
      %v2117 = vsub.f32 %v1668, %v2006
      %v2118 = vsub.f32 %v1671, %v2006
      %v2119 = vsub.f32 %v1676, %v2006
      %v2120 = vsub.f32 %v1679, %v2006
      %v2121 = vsub.f32 %v1684, %v2006
      %v2122 = vsub.f32 %v1687, %v2006
      %v2123 = vsub.f32 %v1692, %v2006
      %v2124 = vsub.f32 %v1695, %v2006
      %v2125 = vsub.f32 %v1700, %v2006
      %v2126 = vsub.f32 %v1703, %v2006
      %v2127 = vsub.f32 %v1708, %v2006
      %v2128 = vsub.f32 %v1711, %v2006
      %v2129 = vsub.f32 %v1716, %v2006
      %v2130 = vsub.f32 %v1719, %v2006
      %v2131 = vsub.f32 %v1724, %v2006
      %v2132 = vsub.f32 %v1727, %v2006
      %v2133 = vsub.f32 %v1732, %v2006
      %v2134 = vsub.f32 %v1735, %v2006
      %v2135 = vmul.f32 %v2007, %v2007
      %v2136 = vmul.f32 %v2008, %v2008
      %v2137 = vmul.f32 %v2009, %v2009
      %v2138 = vmul.f32 %v2010, %v2010
      %v2139 = vmul.f32 %v2011, %v2011
      %v2140 = vmul.f32 %v2012, %v2012
      %v2141 = vmul.f32 %v2013, %v2013
      %v2142 = vmul.f32 %v2014, %v2014
      %v2143 = vmul.f32 %v2015, %v2015
      %v2144 = vmul.f32 %v2016, %v2016
      %v2145 = vmul.f32 %v2017, %v2017
      %v2146 = vmul.f32 %v2018, %v2018
      %v2147 = vmul.f32 %v2019, %v2019
      %v2148 = vmul.f32 %v2020, %v2020
      %v2149 = vmul.f32 %v2021, %v2021
      %v2150 = vmul.f32 %v2022, %v2022
      %v2151 = vmul.f32 %v2023, %v2023
      %v2152 = vmul.f32 %v2024, %v2024
      %v2153 = vmul.f32 %v2025, %v2025
      %v2154 = vmul.f32 %v2026, %v2026
      %v2155 = vmul.f32 %v2027, %v2027
      %v2156 = vmul.f32 %v2028, %v2028
      %v2157 = vmul.f32 %v2029, %v2029
      %v2158 = vmul.f32 %v2030, %v2030
      %v2159 = vmul.f32 %v2031, %v2031
      %v2160 = vmul.f32 %v2032, %v2032
      %v2161 = vmul.f32 %v2033, %v2033
      %v2162 = vmul.f32 %v2034, %v2034
      %v2163 = vmul.f32 %v2035, %v2035
      %v2164 = vmul.f32 %v2036, %v2036
      %v2165 = vmul.f32 %v2037, %v2037
      %v2166 = vmul.f32 %v2038, %v2038
      %v2167 = vmul.f32 %v2039, %v2039
      %v2168 = vmul.f32 %v2040, %v2040
      %v2169 = vmul.f32 %v2041, %v2041
      %v2170 = vmul.f32 %v2042, %v2042
      %v2171 = vmul.f32 %v2043, %v2043
      %v2172 = vmul.f32 %v2044, %v2044
      %v2173 = vmul.f32 %v2045, %v2045
      %v2174 = vmul.f32 %v2046, %v2046
      %v2175 = vmul.f32 %v2047, %v2047
      %v2176 = vmul.f32 %v2048, %v2048
      %v2177 = vmul.f32 %v2049, %v2049
      %v2178 = vmul.f32 %v2050, %v2050
      %v2179 = vmul.f32 %v2051, %v2051
      %v2180 = vmul.f32 %v2052, %v2052
      %v2181 = vmul.f32 %v2053, %v2053
      %v2182 = vmul.f32 %v2054, %v2054
      %v2183 = vmul.f32 %v2055, %v2055
      %v2184 = vmul.f32 %v2056, %v2056
      %v2185 = vmul.f32 %v2057, %v2057
      %v2186 = vmul.f32 %v2058, %v2058
      %v2187 = vmul.f32 %v2059, %v2059
      %v2188 = vmul.f32 %v2060, %v2060
      %v2189 = vmul.f32 %v2061, %v2061
      %v2190 = vmul.f32 %v2062, %v2062
      %v2191 = vmul.f32 %v2063, %v2063
      %v2192 = vmul.f32 %v2064, %v2064
      %v2193 = vmul.f32 %v2065, %v2065
      %v2194 = vmul.f32 %v2066, %v2066
      %v2195 = vmul.f32 %v2067, %v2067
      %v2196 = vmul.f32 %v2068, %v2068
      %v2197 = vmul.f32 %v2069, %v2069
      %v2198 = vmul.f32 %v2070, %v2070
      %v2199 = vsel %vm1738, %v2135, 0.0
      %v2200 = vsel %vm1738, %v2136, 0.0
      %v2201 = vadd.f32 %v2199, %v2200
      %v2202 = vsel %vm1738, %v2137, 0.0
      %v2203 = vadd.f32 %v2201, %v2202
      %v2204 = vsel %vm1738, %v2138, 0.0
      %v2205 = vadd.f32 %v2203, %v2204
      %v2206 = vsel %vm1738, %v2139, 0.0
      %v2207 = vadd.f32 %v2205, %v2206
      %v2208 = vsel %vm1738, %v2140, 0.0
      %v2209 = vadd.f32 %v2207, %v2208
      %v2210 = vsel %vm1738, %v2141, 0.0
      %v2211 = vadd.f32 %v2209, %v2210
      %v2212 = vsel %vm1738, %v2142, 0.0
      %v2213 = vadd.f32 %v2211, %v2212
      %v2214 = vsel %vm1738, %v2143, 0.0
      %v2215 = vadd.f32 %v2213, %v2214
      %v2216 = vsel %vm1738, %v2144, 0.0
      %v2217 = vadd.f32 %v2215, %v2216
      %v2218 = vsel %vm1738, %v2145, 0.0
      %v2219 = vadd.f32 %v2217, %v2218
      %v2220 = vsel %vm1738, %v2146, 0.0
      %v2221 = vadd.f32 %v2219, %v2220
      %v2222 = vsel %vm1738, %v2147, 0.0
      %v2223 = vadd.f32 %v2221, %v2222
      %v2224 = vsel %vm1738, %v2148, 0.0
      %v2225 = vadd.f32 %v2223, %v2224
      %v2226 = vsel %vm1738, %v2149, 0.0
      %v2227 = vadd.f32 %v2225, %v2226
      %v2228 = vsel %vm1738, %v2150, 0.0
      %v2229 = vadd.f32 %v2227, %v2228
      %v2230 = vsel %vm1738, %v2151, 0.0
      %v2231 = vadd.f32 %v2229, %v2230
      %v2232 = vsel %vm1738, %v2152, 0.0
      %v2233 = vadd.f32 %v2231, %v2232
      %v2234 = vsel %vm1738, %v2153, 0.0
      %v2235 = vadd.f32 %v2233, %v2234
      %v2236 = vsel %vm1738, %v2154, 0.0
      %v2237 = vadd.f32 %v2235, %v2236
      %v2238 = vsel %vm1738, %v2155, 0.0
      %v2239 = vadd.f32 %v2237, %v2238
      %v2240 = vsel %vm1738, %v2156, 0.0
      %v2241 = vadd.f32 %v2239, %v2240
      %v2242 = vsel %vm1738, %v2157, 0.0
      %v2243 = vadd.f32 %v2241, %v2242
      %v2244 = vsel %vm1738, %v2158, 0.0
      %v2245 = vadd.f32 %v2243, %v2244
      %v2246 = vsel %vm1738, %v2159, 0.0
      %v2247 = vadd.f32 %v2245, %v2246
      %v2248 = vsel %vm1738, %v2160, 0.0
      %v2249 = vadd.f32 %v2247, %v2248
      %v2250 = vsel %vm1738, %v2161, 0.0
      %v2251 = vadd.f32 %v2249, %v2250
      %v2252 = vsel %vm1738, %v2162, 0.0
      %v2253 = vadd.f32 %v2251, %v2252
      %v2254 = vsel %vm1738, %v2163, 0.0
      %v2255 = vadd.f32 %v2253, %v2254
      %v2256 = vsel %vm1738, %v2164, 0.0
      %v2257 = vadd.f32 %v2255, %v2256
      %v2258 = vsel %vm1738, %v2165, 0.0
      %v2259 = vadd.f32 %v2257, %v2258
      %v2260 = vsel %vm1738, %v2166, 0.0
      %v2261 = vadd.f32 %v2259, %v2260
      %v2262 = vsel %vm1738, %v2167, 0.0
      %v2263 = vadd.f32 %v2261, %v2262
      %v2264 = vsel %vm1738, %v2168, 0.0
      %v2265 = vadd.f32 %v2263, %v2264
      %v2266 = vsel %vm1738, %v2169, 0.0
      %v2267 = vadd.f32 %v2265, %v2266
      %v2268 = vsel %vm1738, %v2170, 0.0
      %v2269 = vadd.f32 %v2267, %v2268
      %v2270 = vsel %vm1738, %v2171, 0.0
      %v2271 = vadd.f32 %v2269, %v2270
      %v2272 = vsel %vm1738, %v2172, 0.0
      %v2273 = vadd.f32 %v2271, %v2272
      %v2274 = vsel %vm1738, %v2173, 0.0
      %v2275 = vadd.f32 %v2273, %v2274
      %v2276 = vsel %vm1738, %v2174, 0.0
      %v2277 = vadd.f32 %v2275, %v2276
      %v2278 = vsel %vm1738, %v2175, 0.0
      %v2279 = vadd.f32 %v2277, %v2278
      %v2280 = vsel %vm1738, %v2176, 0.0
      %v2281 = vadd.f32 %v2279, %v2280
      %v2282 = vsel %vm1738, %v2177, 0.0
      %v2283 = vadd.f32 %v2281, %v2282
      %v2284 = vsel %vm1738, %v2178, 0.0
      %v2285 = vadd.f32 %v2283, %v2284
      %v2286 = vsel %vm1738, %v2179, 0.0
      %v2287 = vadd.f32 %v2285, %v2286
      %v2288 = vsel %vm1738, %v2180, 0.0
      %v2289 = vadd.f32 %v2287, %v2288
      %v2290 = vsel %vm1738, %v2181, 0.0
      %v2291 = vadd.f32 %v2289, %v2290
      %v2292 = vsel %vm1738, %v2182, 0.0
      %v2293 = vadd.f32 %v2291, %v2292
      %v2294 = vsel %vm1738, %v2183, 0.0
      %v2295 = vadd.f32 %v2293, %v2294
      %v2296 = vsel %vm1738, %v2184, 0.0
      %v2297 = vadd.f32 %v2295, %v2296
      %v2298 = vsel %vm1738, %v2185, 0.0
      %v2299 = vadd.f32 %v2297, %v2298
      %v2300 = vsel %vm1738, %v2186, 0.0
      %v2301 = vadd.f32 %v2299, %v2300
      %v2302 = vsel %vm1738, %v2187, 0.0
      %v2303 = vadd.f32 %v2301, %v2302
      %v2304 = vsel %vm1738, %v2188, 0.0
      %v2305 = vadd.f32 %v2303, %v2304
      %v2306 = vsel %vm1738, %v2189, 0.0
      %v2307 = vadd.f32 %v2305, %v2306
      %v2308 = vsel %vm1738, %v2190, 0.0
      %v2309 = vadd.f32 %v2307, %v2308
      %v2310 = vsel %vm1738, %v2191, 0.0
      %v2311 = vadd.f32 %v2309, %v2310
      %v2312 = vsel %vm1738, %v2192, 0.0
      %v2313 = vadd.f32 %v2311, %v2312
      %v2314 = vsel %vm1738, %v2193, 0.0
      %v2315 = vadd.f32 %v2313, %v2314
      %v2316 = vsel %vm1738, %v2194, 0.0
      %v2317 = vadd.f32 %v2315, %v2316
      %v2318 = vsel %vm1738, %v2195, 0.0
      %v2319 = vadd.f32 %v2317, %v2318
      %v2320 = vsel %vm1738, %v2196, 0.0
      %v2321 = vadd.f32 %v2319, %v2320
      %v2322 = vsel %vm1738, %v2197, 0.0
      %v2323 = vadd.f32 %v2321, %v2322
      %v2324 = vsel %vm1738, %v2198, 0.0
      %v2325 = vadd.f32 %v2323, %v2324
      %v2326 = vrot.slane %v2325, 4
      %v2327 = vadd.f32 %v2325, %v2326
      %v2328 = vrot.slane %v2327, 2
      %v2329 = vadd.f32 %v2327, %v2328
      %v2330 = vrot.slane %v2329, 1
      %v2331 = vadd.f32 %v2329, %v2330
      %v2332 = vmul.f32 %v2071, %v2071
      %v2333 = vmul.f32 %v2072, %v2072
      %v2334 = vmul.f32 %v2073, %v2073
      %v2335 = vmul.f32 %v2074, %v2074
      %v2336 = vmul.f32 %v2075, %v2075
      %v2337 = vmul.f32 %v2076, %v2076
      %v2338 = vmul.f32 %v2077, %v2077
      %v2339 = vmul.f32 %v2078, %v2078
      %v2340 = vmul.f32 %v2079, %v2079
      %v2341 = vmul.f32 %v2080, %v2080
      %v2342 = vmul.f32 %v2081, %v2081
      %v2343 = vmul.f32 %v2082, %v2082
      %v2344 = vmul.f32 %v2083, %v2083
      %v2345 = vmul.f32 %v2084, %v2084
      %v2346 = vmul.f32 %v2085, %v2085
      %v2347 = vmul.f32 %v2086, %v2086
      %v2348 = vmul.f32 %v2087, %v2087
      %v2349 = vmul.f32 %v2088, %v2088
      %v2350 = vmul.f32 %v2089, %v2089
      %v2351 = vmul.f32 %v2090, %v2090
      %v2352 = vmul.f32 %v2091, %v2091
      %v2353 = vmul.f32 %v2092, %v2092
      %v2354 = vmul.f32 %v2093, %v2093
      %v2355 = vmul.f32 %v2094, %v2094
      %v2356 = vmul.f32 %v2095, %v2095
      %v2357 = vmul.f32 %v2096, %v2096
      %v2358 = vmul.f32 %v2097, %v2097
      %v2359 = vmul.f32 %v2098, %v2098
      %v2360 = vmul.f32 %v2099, %v2099
      %v2361 = vmul.f32 %v2100, %v2100
      %v2362 = vmul.f32 %v2101, %v2101
      %v2363 = vmul.f32 %v2102, %v2102
      %v2364 = vmul.f32 %v2103, %v2103
      %v2365 = vmul.f32 %v2104, %v2104
      %v2366 = vmul.f32 %v2105, %v2105
      %v2367 = vmul.f32 %v2106, %v2106
      %v2368 = vmul.f32 %v2107, %v2107
      %v2369 = vmul.f32 %v2108, %v2108
      %v2370 = vmul.f32 %v2109, %v2109
      %v2371 = vmul.f32 %v2110, %v2110
      %v2372 = vmul.f32 %v2111, %v2111
      %v2373 = vmul.f32 %v2112, %v2112
      %v2374 = vmul.f32 %v2113, %v2113
      %v2375 = vmul.f32 %v2114, %v2114
      %v2376 = vmul.f32 %v2115, %v2115
      %v2377 = vmul.f32 %v2116, %v2116
      %v2378 = vmul.f32 %v2117, %v2117
      %v2379 = vmul.f32 %v2118, %v2118
      %v2380 = vmul.f32 %v2119, %v2119
      %v2381 = vmul.f32 %v2120, %v2120
      %v2382 = vmul.f32 %v2121, %v2121
      %v2383 = vmul.f32 %v2122, %v2122
      %v2384 = vmul.f32 %v2123, %v2123
      %v2385 = vmul.f32 %v2124, %v2124
      %v2386 = vmul.f32 %v2125, %v2125
      %v2387 = vmul.f32 %v2126, %v2126
      %v2388 = vmul.f32 %v2127, %v2127
      %v2389 = vmul.f32 %v2128, %v2128
      %v2390 = vmul.f32 %v2129, %v2129
      %v2391 = vmul.f32 %v2130, %v2130
      %v2392 = vmul.f32 %v2131, %v2131
      %v2393 = vmul.f32 %v2132, %v2132
      %v2394 = vmul.f32 %v2133, %v2133
      %v2395 = vmul.f32 %v2134, %v2134
      %v2396 = vsel %vm1738, %v2332, 0.0
      %v2397 = vsel %vm1738, %v2333, 0.0
      %v2398 = vadd.f32 %v2396, %v2397
      %v2399 = vsel %vm1738, %v2334, 0.0
      %v2400 = vadd.f32 %v2398, %v2399
      %v2401 = vsel %vm1738, %v2335, 0.0
      %v2402 = vadd.f32 %v2400, %v2401
      %v2403 = vsel %vm1738, %v2336, 0.0
      %v2404 = vadd.f32 %v2402, %v2403
      %v2405 = vsel %vm1738, %v2337, 0.0
      %v2406 = vadd.f32 %v2404, %v2405
      %v2407 = vsel %vm1738, %v2338, 0.0
      %v2408 = vadd.f32 %v2406, %v2407
      %v2409 = vsel %vm1738, %v2339, 0.0
      %v2410 = vadd.f32 %v2408, %v2409
      %v2411 = vsel %vm1738, %v2340, 0.0
      %v2412 = vadd.f32 %v2410, %v2411
      %v2413 = vsel %vm1738, %v2341, 0.0
      %v2414 = vadd.f32 %v2412, %v2413
      %v2415 = vsel %vm1738, %v2342, 0.0
      %v2416 = vadd.f32 %v2414, %v2415
      %v2417 = vsel %vm1738, %v2343, 0.0
      %v2418 = vadd.f32 %v2416, %v2417
      %v2419 = vsel %vm1738, %v2344, 0.0
      %v2420 = vadd.f32 %v2418, %v2419
      %v2421 = vsel %vm1738, %v2345, 0.0
      %v2422 = vadd.f32 %v2420, %v2421
      %v2423 = vsel %vm1738, %v2346, 0.0
      %v2424 = vadd.f32 %v2422, %v2423
      %v2425 = vsel %vm1738, %v2347, 0.0
      %v2426 = vadd.f32 %v2424, %v2425
      %v2427 = vsel %vm1738, %v2348, 0.0
      %v2428 = vadd.f32 %v2426, %v2427
      %v2429 = vsel %vm1738, %v2349, 0.0
      %v2430 = vadd.f32 %v2428, %v2429
      %v2431 = vsel %vm1738, %v2350, 0.0
      %v2432 = vadd.f32 %v2430, %v2431
      %v2433 = vsel %vm1738, %v2351, 0.0
      %v2434 = vadd.f32 %v2432, %v2433
      %v2435 = vsel %vm1738, %v2352, 0.0
      %v2436 = vadd.f32 %v2434, %v2435
      %v2437 = vsel %vm1738, %v2353, 0.0
      %v2438 = vadd.f32 %v2436, %v2437
      %v2439 = vsel %vm1738, %v2354, 0.0
      %v2440 = vadd.f32 %v2438, %v2439
      %v2441 = vsel %vm1738, %v2355, 0.0
      %v2442 = vadd.f32 %v2440, %v2441
      %v2443 = vsel %vm1738, %v2356, 0.0
      %v2444 = vadd.f32 %v2442, %v2443
      %v2445 = vsel %vm1738, %v2357, 0.0
      %v2446 = vadd.f32 %v2444, %v2445
      %v2447 = vsel %vm1738, %v2358, 0.0
      %v2448 = vadd.f32 %v2446, %v2447
      %v2449 = vsel %vm1738, %v2359, 0.0
      %v2450 = vadd.f32 %v2448, %v2449
      %v2451 = vsel %vm1738, %v2360, 0.0
      %v2452 = vadd.f32 %v2450, %v2451
      %v2453 = vsel %vm1738, %v2361, 0.0
      %v2454 = vadd.f32 %v2452, %v2453
      %v2455 = vsel %vm1738, %v2362, 0.0
      %v2456 = vadd.f32 %v2454, %v2455
      %v2457 = vsel %vm1738, %v2363, 0.0
      %v2458 = vadd.f32 %v2456, %v2457
      %v2459 = vsel %vm1738, %v2364, 0.0
      %v2460 = vadd.f32 %v2458, %v2459
      %v2461 = vsel %vm1738, %v2365, 0.0
      %v2462 = vadd.f32 %v2460, %v2461
      %v2463 = vsel %vm1738, %v2366, 0.0
      %v2464 = vadd.f32 %v2462, %v2463
      %v2465 = vsel %vm1738, %v2367, 0.0
      %v2466 = vadd.f32 %v2464, %v2465
      %v2467 = vsel %vm1738, %v2368, 0.0
      %v2468 = vadd.f32 %v2466, %v2467
      %v2469 = vsel %vm1738, %v2369, 0.0
      %v2470 = vadd.f32 %v2468, %v2469
      %v2471 = vsel %vm1738, %v2370, 0.0
      %v2472 = vadd.f32 %v2470, %v2471
      %v2473 = vsel %vm1738, %v2371, 0.0
      %v2474 = vadd.f32 %v2472, %v2473
      %v2475 = vsel %vm1738, %v2372, 0.0
      %v2476 = vadd.f32 %v2474, %v2475
      %v2477 = vsel %vm1738, %v2373, 0.0
      %v2478 = vadd.f32 %v2476, %v2477
      %v2479 = vsel %vm1738, %v2374, 0.0
      %v2480 = vadd.f32 %v2478, %v2479
      %v2481 = vsel %vm1738, %v2375, 0.0
      %v2482 = vadd.f32 %v2480, %v2481
      %v2483 = vsel %vm1738, %v2376, 0.0
      %v2484 = vadd.f32 %v2482, %v2483
      %v2485 = vsel %vm1738, %v2377, 0.0
      %v2486 = vadd.f32 %v2484, %v2485
      %v2487 = vsel %vm1738, %v2378, 0.0
      %v2488 = vadd.f32 %v2486, %v2487
      %v2489 = vsel %vm1738, %v2379, 0.0
      %v2490 = vadd.f32 %v2488, %v2489
      %v2491 = vsel %vm1738, %v2380, 0.0
      %v2492 = vadd.f32 %v2490, %v2491
      %v2493 = vsel %vm1738, %v2381, 0.0
      %v2494 = vadd.f32 %v2492, %v2493
      %v2495 = vsel %vm1738, %v2382, 0.0
      %v2496 = vadd.f32 %v2494, %v2495
      %v2497 = vsel %vm1738, %v2383, 0.0
      %v2498 = vadd.f32 %v2496, %v2497
      %v2499 = vsel %vm1738, %v2384, 0.0
      %v2500 = vadd.f32 %v2498, %v2499
      %v2501 = vsel %vm1738, %v2385, 0.0
      %v2502 = vadd.f32 %v2500, %v2501
      %v2503 = vsel %vm1738, %v2386, 0.0
      %v2504 = vadd.f32 %v2502, %v2503
      %v2505 = vsel %vm1738, %v2387, 0.0
      %v2506 = vadd.f32 %v2504, %v2505
      %v2507 = vsel %vm1738, %v2388, 0.0
      %v2508 = vadd.f32 %v2506, %v2507
      %v2509 = vsel %vm1738, %v2389, 0.0
      %v2510 = vadd.f32 %v2508, %v2509
      %v2511 = vsel %vm1738, %v2390, 0.0
      %v2512 = vadd.f32 %v2510, %v2511
      %v2513 = vsel %vm1738, %v2391, 0.0
      %v2514 = vadd.f32 %v2512, %v2513
      %v2515 = vsel %vm1738, %v2392, 0.0
      %v2516 = vadd.f32 %v2514, %v2515
      %v2517 = vsel %vm1738, %v2393, 0.0
      %v2518 = vadd.f32 %v2516, %v2517
      %v2519 = vsel %vm1738, %v2394, 0.0
      %v2520 = vadd.f32 %v2518, %v2519
      %v2521 = vsel %vm1738, %v2395, 0.0
      %v2522 = vadd.f32 %v2520, %v2521
      %v2523 = vrot.slane %v2522, 4
      %v2524 = vadd.f32 %v2522, %v2523
      %v2525 = vrot.slane %v2524, 2
      %v2526 = vadd.f32 %v2524, %v2525
      %v2527 = vrot.slane %v2526, 1
      %v2528 = vadd.f32 %v2526, %v2527
      %v2529 = vadd.f32 %v2331, %v2528
      %v2530 = vmul.f32 %v2529, 0.0009765625
      %v2531 = vadd.f32 %v2530, 1e-05
      %v2532 = vrsqrt.pop %v2531
      %v2533 = vmul.f32 %v2007, %v2532
      %v2534 = vmul.f32 %v2008, %v2532
      %v2535 = vmul.f32 %v2009, %v2532
      %v2536 = vmul.f32 %v2010, %v2532
      %v2537 = vmul.f32 %v2011, %v2532
      %v2538 = vmul.f32 %v2012, %v2532
      %v2539 = vmul.f32 %v2013, %v2532
      %v2540 = vmul.f32 %v2014, %v2532
      %v2541 = vmul.f32 %v2015, %v2532
      %v2542 = vmul.f32 %v2016, %v2532
      %v2543 = vmul.f32 %v2017, %v2532
      %v2544 = vmul.f32 %v2018, %v2532
      %v2545 = vmul.f32 %v2019, %v2532
      %v2546 = vmul.f32 %v2020, %v2532
      %v2547 = vmul.f32 %v2021, %v2532
      %v2548 = vmul.f32 %v2022, %v2532
      %v2549 = vmul.f32 %v2023, %v2532
      %v2550 = vmul.f32 %v2024, %v2532
      %v2551 = vmul.f32 %v2025, %v2532
      %v2552 = vmul.f32 %v2026, %v2532
      %v2553 = vmul.f32 %v2027, %v2532
      %v2554 = vmul.f32 %v2028, %v2532
      %v2555 = vmul.f32 %v2029, %v2532
      %v2556 = vmul.f32 %v2030, %v2532
      %v2557 = vmul.f32 %v2031, %v2532
      %v2558 = vmul.f32 %v2032, %v2532
      %v2559 = vmul.f32 %v2033, %v2532
      %v2560 = vmul.f32 %v2034, %v2532
      %v2561 = vmul.f32 %v2035, %v2532
      %v2562 = vmul.f32 %v2036, %v2532
      %v2563 = vmul.f32 %v2037, %v2532
      %v2564 = vmul.f32 %v2038, %v2532
      %v2565 = vmul.f32 %v2039, %v2532
      %v2566 = vmul.f32 %v2040, %v2532
      %v2567 = vmul.f32 %v2041, %v2532
      %v2568 = vmul.f32 %v2042, %v2532
      %v2569 = vmul.f32 %v2043, %v2532
      %v2570 = vmul.f32 %v2044, %v2532
      %v2571 = vmul.f32 %v2045, %v2532
      %v2572 = vmul.f32 %v2046, %v2532
      %v2573 = vmul.f32 %v2047, %v2532
      %v2574 = vmul.f32 %v2048, %v2532
      %v2575 = vmul.f32 %v2049, %v2532
      %v2576 = vmul.f32 %v2050, %v2532
      %v2577 = vmul.f32 %v2051, %v2532
      %v2578 = vmul.f32 %v2052, %v2532
      %v2579 = vmul.f32 %v2053, %v2532
      %v2580 = vmul.f32 %v2054, %v2532
      %v2581 = vmul.f32 %v2055, %v2532
      %v2582 = vmul.f32 %v2056, %v2532
      %v2583 = vmul.f32 %v2057, %v2532
      %v2584 = vmul.f32 %v2058, %v2532
      %v2585 = vmul.f32 %v2059, %v2532
      %v2586 = vmul.f32 %v2060, %v2532
      %v2587 = vmul.f32 %v2061, %v2532
      %v2588 = vmul.f32 %v2062, %v2532
      %v2589 = vmul.f32 %v2063, %v2532
      %v2590 = vmul.f32 %v2064, %v2532
      %v2591 = vmul.f32 %v2065, %v2532
      %v2592 = vmul.f32 %v2066, %v2532
      %v2593 = vmul.f32 %v2067, %v2532
      %v2594 = vmul.f32 %v2068, %v2532
      %v2595 = vmul.f32 %v2069, %v2532
      %v2596 = vmul.f32 %v2070, %v2532
      %v2597 = vmax.f32 %v2533, 0.0
      %v2598 = vmax.f32 %v2534, 0.0
      %v2599 = vmax.f32 %v2535, 0.0
      %v2600 = vmax.f32 %v2536, 0.0
      %v2601 = vmax.f32 %v2537, 0.0
      %v2602 = vmax.f32 %v2538, 0.0
      %v2603 = vmax.f32 %v2539, 0.0
      %v2604 = vmax.f32 %v2540, 0.0
      %v2605 = vmax.f32 %v2541, 0.0
      %v2606 = vmax.f32 %v2542, 0.0
      %v2607 = vmax.f32 %v2543, 0.0
      %v2608 = vmax.f32 %v2544, 0.0
      %v2609 = vmax.f32 %v2545, 0.0
      %v2610 = vmax.f32 %v2546, 0.0
      %v2611 = vmax.f32 %v2547, 0.0
      %v2612 = vmax.f32 %v2548, 0.0
      %v2613 = vmax.f32 %v2549, 0.0
      %v2614 = vmax.f32 %v2550, 0.0
      %v2615 = vmax.f32 %v2551, 0.0
      %v2616 = vmax.f32 %v2552, 0.0
      %v2617 = vmax.f32 %v2553, 0.0
      %v2618 = vmax.f32 %v2554, 0.0
      %v2619 = vmax.f32 %v2555, 0.0
      %v2620 = vmax.f32 %v2556, 0.0
      %v2621 = vmax.f32 %v2557, 0.0
      %v2622 = vmax.f32 %v2558, 0.0
      %v2623 = vmax.f32 %v2559, 0.0
      %v2624 = vmax.f32 %v2560, 0.0
      %v2625 = vmax.f32 %v2561, 0.0
      %v2626 = vmax.f32 %v2562, 0.0
      %v2627 = vmax.f32 %v2563, 0.0
      %v2628 = vmax.f32 %v2564, 0.0
      %v2629 = vmax.f32 %v2565, 0.0
      %v2630 = vmax.f32 %v2566, 0.0
      %v2631 = vmax.f32 %v2567, 0.0
      %v2632 = vmax.f32 %v2568, 0.0
      %v2633 = vmax.f32 %v2569, 0.0
      %v2634 = vmax.f32 %v2570, 0.0
      %v2635 = vmax.f32 %v2571, 0.0
      %v2636 = vmax.f32 %v2572, 0.0
      %v2637 = vmax.f32 %v2573, 0.0
      %v2638 = vmax.f32 %v2574, 0.0
      %v2639 = vmax.f32 %v2575, 0.0
      %v2640 = vmax.f32 %v2576, 0.0
      %v2641 = vmax.f32 %v2577, 0.0
      %v2642 = vmax.f32 %v2578, 0.0
      %v2643 = vmax.f32 %v2579, 0.0
      %v2644 = vmax.f32 %v2580, 0.0
      %v2645 = vmax.f32 %v2581, 0.0
      %v2646 = vmax.f32 %v2582, 0.0
      %v2647 = vmax.f32 %v2583, 0.0
      %v2648 = vmax.f32 %v2584, 0.0
      %v2649 = vmax.f32 %v2585, 0.0
      %v2650 = vmax.f32 %v2586, 0.0
      %v2651 = vmax.f32 %v2587, 0.0
      %v2652 = vmax.f32 %v2588, 0.0
      %v2653 = vmax.f32 %v2589, 0.0
      %v2654 = vmax.f32 %v2590, 0.0
      %v2655 = vmax.f32 %v2591, 0.0
      %v2656 = vmax.f32 %v2592, 0.0
      %v2657 = vmax.f32 %v2593, 0.0
      %v2658 = vmax.f32 %v2594, 0.0
      %v2659 = vmax.f32 %v2595, 0.0
      %v2660 = vmax.f32 %v2596, 0.0
      %v2661 = vmul.f32 %v2071, %v2532
      %v2662 = vmul.f32 %v2072, %v2532
      %v2663 = vmul.f32 %v2073, %v2532
      %v2664 = vmul.f32 %v2074, %v2532
      %v2665 = vmul.f32 %v2075, %v2532
      %v2666 = vmul.f32 %v2076, %v2532
      %v2667 = vmul.f32 %v2077, %v2532
      %v2668 = vmul.f32 %v2078, %v2532
      %v2669 = vmul.f32 %v2079, %v2532
      %v2670 = vmul.f32 %v2080, %v2532
      %v2671 = vmul.f32 %v2081, %v2532
      %v2672 = vmul.f32 %v2082, %v2532
      %v2673 = vmul.f32 %v2083, %v2532
      %v2674 = vmul.f32 %v2084, %v2532
      %v2675 = vmul.f32 %v2085, %v2532
      %v2676 = vmul.f32 %v2086, %v2532
      %v2677 = vmul.f32 %v2087, %v2532
      %v2678 = vmul.f32 %v2088, %v2532
      %v2679 = vmul.f32 %v2089, %v2532
      %v2680 = vmul.f32 %v2090, %v2532
      %v2681 = vmul.f32 %v2091, %v2532
      %v2682 = vmul.f32 %v2092, %v2532
      %v2683 = vmul.f32 %v2093, %v2532
      %v2684 = vmul.f32 %v2094, %v2532
      %v2685 = vmul.f32 %v2095, %v2532
      %v2686 = vmul.f32 %v2096, %v2532
      %v2687 = vmul.f32 %v2097, %v2532
      %v2688 = vmul.f32 %v2098, %v2532
      %v2689 = vmul.f32 %v2099, %v2532
      %v2690 = vmul.f32 %v2100, %v2532
      %v2691 = vmul.f32 %v2101, %v2532
      %v2692 = vmul.f32 %v2102, %v2532
      %v2693 = vmul.f32 %v2103, %v2532
      %v2694 = vmul.f32 %v2104, %v2532
      %v2695 = vmul.f32 %v2105, %v2532
      %v2696 = vmul.f32 %v2106, %v2532
      %v2697 = vmul.f32 %v2107, %v2532
      %v2698 = vmul.f32 %v2108, %v2532
      %v2699 = vmul.f32 %v2109, %v2532
      %v2700 = vmul.f32 %v2110, %v2532
      %v2701 = vmul.f32 %v2111, %v2532
      %v2702 = vmul.f32 %v2112, %v2532
      %v2703 = vmul.f32 %v2113, %v2532
      %v2704 = vmul.f32 %v2114, %v2532
      %v2705 = vmul.f32 %v2115, %v2532
      %v2706 = vmul.f32 %v2116, %v2532
      %v2707 = vmul.f32 %v2117, %v2532
      %v2708 = vmul.f32 %v2118, %v2532
      %v2709 = vmul.f32 %v2119, %v2532
      %v2710 = vmul.f32 %v2120, %v2532
      %v2711 = vmul.f32 %v2121, %v2532
      %v2712 = vmul.f32 %v2122, %v2532
      %v2713 = vmul.f32 %v2123, %v2532
      %v2714 = vmul.f32 %v2124, %v2532
      %v2715 = vmul.f32 %v2125, %v2532
      %v2716 = vmul.f32 %v2126, %v2532
      %v2717 = vmul.f32 %v2127, %v2532
      %v2718 = vmul.f32 %v2128, %v2532
      %v2719 = vmul.f32 %v2129, %v2532
      %v2720 = vmul.f32 %v2130, %v2532
      %v2721 = vmul.f32 %v2131, %v2532
      %v2722 = vmul.f32 %v2132, %v2532
      %v2723 = vmul.f32 %v2133, %v2532
      %v2724 = vmul.f32 %v2134, %v2532
      %v2725 = vmax.f32 %v2661, 0.0
      %v2726 = vmax.f32 %v2662, 0.0
      %v2727 = vmax.f32 %v2663, 0.0
      %v2728 = vmax.f32 %v2664, 0.0
      %v2729 = vmax.f32 %v2665, 0.0
      %v2730 = vmax.f32 %v2666, 0.0
      %v2731 = vmax.f32 %v2667, 0.0
      %v2732 = vmax.f32 %v2668, 0.0
      %v2733 = vmax.f32 %v2669, 0.0
      %v2734 = vmax.f32 %v2670, 0.0
      %v2735 = vmax.f32 %v2671, 0.0
      %v2736 = vmax.f32 %v2672, 0.0
      %v2737 = vmax.f32 %v2673, 0.0
      %v2738 = vmax.f32 %v2674, 0.0
      %v2739 = vmax.f32 %v2675, 0.0
      %v2740 = vmax.f32 %v2676, 0.0
      %v2741 = vmax.f32 %v2677, 0.0
      %v2742 = vmax.f32 %v2678, 0.0
      %v2743 = vmax.f32 %v2679, 0.0
      %v2744 = vmax.f32 %v2680, 0.0
      %v2745 = vmax.f32 %v2681, 0.0
      %v2746 = vmax.f32 %v2682, 0.0
      %v2747 = vmax.f32 %v2683, 0.0
      %v2748 = vmax.f32 %v2684, 0.0
      %v2749 = vmax.f32 %v2685, 0.0
      %v2750 = vmax.f32 %v2686, 0.0
      %v2751 = vmax.f32 %v2687, 0.0
      %v2752 = vmax.f32 %v2688, 0.0
      %v2753 = vmax.f32 %v2689, 0.0
      %v2754 = vmax.f32 %v2690, 0.0
      %v2755 = vmax.f32 %v2691, 0.0
      %v2756 = vmax.f32 %v2692, 0.0
      %v2757 = vmax.f32 %v2693, 0.0
      %v2758 = vmax.f32 %v2694, 0.0
      %v2759 = vmax.f32 %v2695, 0.0
      %v2760 = vmax.f32 %v2696, 0.0
      %v2761 = vmax.f32 %v2697, 0.0
      %v2762 = vmax.f32 %v2698, 0.0
      %v2763 = vmax.f32 %v2699, 0.0
      %v2764 = vmax.f32 %v2700, 0.0
      %v2765 = vmax.f32 %v2701, 0.0
      %v2766 = vmax.f32 %v2702, 0.0
      %v2767 = vmax.f32 %v2703, 0.0
      %v2768 = vmax.f32 %v2704, 0.0
      %v2769 = vmax.f32 %v2705, 0.0
      %v2770 = vmax.f32 %v2706, 0.0
      %v2771 = vmax.f32 %v2707, 0.0
      %v2772 = vmax.f32 %v2708, 0.0
      %v2773 = vmax.f32 %v2709, 0.0
      %v2774 = vmax.f32 %v2710, 0.0
      %v2775 = vmax.f32 %v2711, 0.0
      %v2776 = vmax.f32 %v2712, 0.0
      %v2777 = vmax.f32 %v2713, 0.0
      %v2778 = vmax.f32 %v2714, 0.0
      %v2779 = vmax.f32 %v2715, 0.0
      %v2780 = vmax.f32 %v2716, 0.0
      %v2781 = vmax.f32 %v2717, 0.0
      %v2782 = vmax.f32 %v2718, 0.0
      %v2783 = vmax.f32 %v2719, 0.0
      %v2784 = vmax.f32 %v2720, 0.0
      %v2785 = vmax.f32 %v2721, 0.0
      %v2786 = vmax.f32 %v2722, 0.0
      %v2787 = vmax.f32 %v2723, 0.0
      %v2788 = vmax.f32 %v2724, 0.0
      %2853 = vrot.lane.b32.xlu0 %v2725, 64
      %v2854 = vpop.permute.xlu0 %2853
      %2855 = vrot.lane.b32.xlu0 %v2726, 64
      %v2856 = vpop.permute.xlu0 %2855
      %2857 = vrot.lane.b32.xlu0 %v2727, 64
      %v2858 = vpop.permute.xlu0 %2857
      %2859 = vrot.lane.b32.xlu0 %v2728, 64
      %v2860 = vpop.permute.xlu0 %2859
      %2861 = vrot.lane.b32.xlu0 %v2729, 64
      %v2862 = vpop.permute.xlu0 %2861
      %2863 = vrot.lane.b32.xlu0 %v2730, 64
      %v2864 = vpop.permute.xlu0 %2863
      %2865 = vrot.lane.b32.xlu0 %v2731, 64
      %v2866 = vpop.permute.xlu0 %2865
      %2867 = vrot.lane.b32.xlu0 %v2732, 64
      %v2868 = vpop.permute.xlu0 %2867
      %2869 = vrot.lane.b32.xlu0 %v2733, 64
      %v2870 = vpop.permute.xlu0 %2869
      %2871 = vrot.lane.b32.xlu0 %v2734, 64
      %v2872 = vpop.permute.xlu0 %2871
      %2873 = vrot.lane.b32.xlu0 %v2735, 64
      %v2874 = vpop.permute.xlu0 %2873
      %2875 = vrot.lane.b32.xlu0 %v2736, 64
      %v2876 = vpop.permute.xlu0 %2875
      %2877 = vrot.lane.b32.xlu0 %v2737, 64
      %v2878 = vpop.permute.xlu0 %2877
      %2879 = vrot.lane.b32.xlu0 %v2738, 64
      %v2880 = vpop.permute.xlu0 %2879
      %2881 = vrot.lane.b32.xlu0 %v2739, 64
      %v2882 = vpop.permute.xlu0 %2881
      %2883 = vrot.lane.b32.xlu0 %v2740, 64
      %v2884 = vpop.permute.xlu0 %2883
      %2885 = vrot.lane.b32.xlu0 %v2741, 64
      %v2886 = vpop.permute.xlu0 %2885
      %2887 = vrot.lane.b32.xlu0 %v2742, 64
      %v2888 = vpop.permute.xlu0 %2887
      %2889 = vrot.lane.b32.xlu0 %v2743, 64
      %v2890 = vpop.permute.xlu0 %2889
      %2891 = vrot.lane.b32.xlu0 %v2744, 64
      %v2892 = vpop.permute.xlu0 %2891
      %2893 = vrot.lane.b32.xlu0 %v2745, 64
      %v2894 = vpop.permute.xlu0 %2893
      %2895 = vrot.lane.b32.xlu0 %v2746, 64
      %v2896 = vpop.permute.xlu0 %2895
      %2897 = vrot.lane.b32.xlu0 %v2747, 64
      %v2898 = vpop.permute.xlu0 %2897
      %2899 = vrot.lane.b32.xlu0 %v2748, 64
      %v2900 = vpop.permute.xlu0 %2899
      %2901 = vrot.lane.b32.xlu0 %v2749, 64
      %v2902 = vpop.permute.xlu0 %2901
      %2903 = vrot.lane.b32.xlu0 %v2750, 64
      %v2904 = vpop.permute.xlu0 %2903
      %2905 = vrot.lane.b32.xlu0 %v2751, 64
      %v2906 = vpop.permute.xlu0 %2905
      %2907 = vrot.lane.b32.xlu0 %v2752, 64
      %v2908 = vpop.permute.xlu0 %2907
      %2909 = vrot.lane.b32.xlu0 %v2753, 64
      %v2910 = vpop.permute.xlu0 %2909
      %2911 = vrot.lane.b32.xlu0 %v2754, 64
      %v2912 = vpop.permute.xlu0 %2911
      %2913 = vrot.lane.b32.xlu0 %v2755, 64
      %v2914 = vpop.permute.xlu0 %2913
      %2915 = vrot.lane.b32.xlu0 %v2756, 64
      %v2916 = vpop.permute.xlu0 %2915
      %2917 = vrot.lane.b32.xlu0 %v2757, 64
      %v2918 = vpop.permute.xlu0 %2917
      %2919 = vrot.lane.b32.xlu0 %v2758, 64
      %v2920 = vpop.permute.xlu0 %2919
      %2921 = vrot.lane.b32.xlu0 %v2759, 64
      %v2922 = vpop.permute.xlu0 %2921
      %2923 = vrot.lane.b32.xlu0 %v2760, 64
      %v2924 = vpop.permute.xlu0 %2923
      %2925 = vrot.lane.b32.xlu0 %v2761, 64
      %v2926 = vpop.permute.xlu0 %2925
      %2927 = vrot.lane.b32.xlu0 %v2762, 64
      %v2928 = vpop.permute.xlu0 %2927
      %2929 = vrot.lane.b32.xlu0 %v2763, 64
      %v2930 = vpop.permute.xlu0 %2929
      %2931 = vrot.lane.b32.xlu0 %v2764, 64
      %v2932 = vpop.permute.xlu0 %2931
      %2933 = vrot.lane.b32.xlu0 %v2765, 64
      %v2934 = vpop.permute.xlu0 %2933
      %2935 = vrot.lane.b32.xlu0 %v2766, 64
      %v2936 = vpop.permute.xlu0 %2935
      %2937 = vrot.lane.b32.xlu0 %v2767, 64
      %v2938 = vpop.permute.xlu0 %2937
      %2939 = vrot.lane.b32.xlu0 %v2768, 64
      %v2940 = vpop.permute.xlu0 %2939
      %2941 = vrot.lane.b32.xlu0 %v2769, 64
      %v2942 = vpop.permute.xlu0 %2941
      %2943 = vrot.lane.b32.xlu0 %v2770, 64
      %v2944 = vpop.permute.xlu0 %2943
      %2945 = vrot.lane.b32.xlu0 %v2771, 64
      %v2946 = vpop.permute.xlu0 %2945
      %2947 = vrot.lane.b32.xlu0 %v2772, 64
      %v2948 = vpop.permute.xlu0 %2947
      %2949 = vrot.lane.b32.xlu0 %v2773, 64
      %v2950 = vpop.permute.xlu0 %2949
      %2951 = vrot.lane.b32.xlu0 %v2774, 64
      %v2952 = vpop.permute.xlu0 %2951
      %2953 = vrot.lane.b32.xlu0 %v2775, 64
      %v2954 = vpop.permute.xlu0 %2953
      %2955 = vrot.lane.b32.xlu0 %v2776, 64
      %v2956 = vpop.permute.xlu0 %2955
      %2957 = vrot.lane.b32.xlu0 %v2777, 64
      %v2958 = vpop.permute.xlu0 %2957
      %2959 = vrot.lane.b32.xlu0 %v2778, 64
      %v2960 = vpop.permute.xlu0 %2959
      %2961 = vrot.lane.b32.xlu0 %v2779, 64
      %v2962 = vpop.permute.xlu0 %2961
      %2963 = vrot.lane.b32.xlu0 %v2780, 64
      %v2964 = vpop.permute.xlu0 %2963
      %2965 = vrot.lane.b32.xlu0 %v2781, 64
      %v2966 = vpop.permute.xlu0 %2965
      %2967 = vrot.lane.b32.xlu0 %v2782, 64
      %v2968 = vpop.permute.xlu0 %2967
      %2969 = vrot.lane.b32.xlu0 %v2783, 64
      %v2970 = vpop.permute.xlu0 %2969
      %2971 = vrot.lane.b32.xlu0 %v2784, 64
      %v2972 = vpop.permute.xlu0 %2971
      %2973 = vrot.lane.b32.xlu0 %v2785, 64
      %v2974 = vpop.permute.xlu0 %2973
      %2975 = vrot.lane.b32.xlu0 %v2786, 64
      %v2976 = vpop.permute.xlu0 %2975
      %2977 = vrot.lane.b32.xlu0 %v2787, 64
      %v2978 = vpop.permute.xlu0 %2977
      %2979 = vrot.lane.b32.xlu0 %v2788, 64
      %v2980 = vpop.permute.xlu0 %2979
      %v3045 = vsel %vm1738, %v2597, %v2854
      %v3046 = vsel %vm1738, %v2598, %v2856
      %v3047 = vsel %vm1738, %v2599, %v2858
      %v3048 = vsel %vm1738, %v2600, %v2860
      %v3049 = vsel %vm1738, %v2601, %v2862
      %v3050 = vsel %vm1738, %v2602, %v2864
      %v3051 = vsel %vm1738, %v2603, %v2866
      %v3052 = vsel %vm1738, %v2604, %v2868
      %v3053 = vsel %vm1738, %v2605, %v2870
      %v3054 = vsel %vm1738, %v2606, %v2872
      %v3055 = vsel %vm1738, %v2607, %v2874
      %v3056 = vsel %vm1738, %v2608, %v2876
      %v3057 = vsel %vm1738, %v2609, %v2878
      %v3058 = vsel %vm1738, %v2610, %v2880
      %v3059 = vsel %vm1738, %v2611, %v2882
      %v3060 = vsel %vm1738, %v2612, %v2884
      %v3061 = vsel %vm1738, %v2613, %v2886
      %v3062 = vsel %vm1738, %v2614, %v2888
      %v3063 = vsel %vm1738, %v2615, %v2890
      %v3064 = vsel %vm1738, %v2616, %v2892
      %v3065 = vsel %vm1738, %v2617, %v2894
      %v3066 = vsel %vm1738, %v2618, %v2896
      %v3067 = vsel %vm1738, %v2619, %v2898
      %v3068 = vsel %vm1738, %v2620, %v2900
      %v3069 = vsel %vm1738, %v2621, %v2902
      %v3070 = vsel %vm1738, %v2622, %v2904
      %v3071 = vsel %vm1738, %v2623, %v2906
      %v3072 = vsel %vm1738, %v2624, %v2908
      %v3073 = vsel %vm1738, %v2625, %v2910
      %v3074 = vsel %vm1738, %v2626, %v2912
      %v3075 = vsel %vm1738, %v2627, %v2914
      %v3076 = vsel %vm1738, %v2628, %v2916
      %v3077 = vsel %vm1738, %v2629, %v2918
      %v3078 = vsel %vm1738, %v2630, %v2920
      %v3079 = vsel %vm1738, %v2631, %v2922
      %v3080 = vsel %vm1738, %v2632, %v2924
      %v3081 = vsel %vm1738, %v2633, %v2926
      %v3082 = vsel %vm1738, %v2634, %v2928
      %v3083 = vsel %vm1738, %v2635, %v2930
      %v3084 = vsel %vm1738, %v2636, %v2932
      %v3085 = vsel %vm1738, %v2637, %v2934
      %v3086 = vsel %vm1738, %v2638, %v2936
      %v3087 = vsel %vm1738, %v2639, %v2938
      %v3088 = vsel %vm1738, %v2640, %v2940
      %v3089 = vsel %vm1738, %v2641, %v2942
      %v3090 = vsel %vm1738, %v2642, %v2944
      %v3091 = vsel %vm1738, %v2643, %v2946
      %v3092 = vsel %vm1738, %v2644, %v2948
      %v3093 = vsel %vm1738, %v2645, %v2950
      %v3094 = vsel %vm1738, %v2646, %v2952
      %v3095 = vsel %vm1738, %v2647, %v2954
      %v3096 = vsel %vm1738, %v2648, %v2956
      %v3097 = vsel %vm1738, %v2649, %v2958
      %v3098 = vsel %vm1738, %v2650, %v2960
      %v3099 = vsel %vm1738, %v2651, %v2962
      %v3100 = vsel %vm1738, %v2652, %v2964
      %v3101 = vsel %vm1738, %v2653, %v2966
      %v3102 = vsel %vm1738, %v2654, %v2968
      %v3103 = vsel %vm1738, %v2655, %v2970
      %v3104 = vsel %vm1738, %v2656, %v2972
      %v3105 = vsel %vm1738, %v2657, %v2974
      %v3106 = vsel %vm1738, %v2658, %v2976
      %v3107 = vsel %vm1738, %v2659, %v2978
      %v3108 = vsel %vm1738, %v2660, %v2980
      %v3109 = vpack.c.bf16 %v3046, %v3045
      %v3110 = vpack.c.bf16 %v3048, %v3047
      %v3111 = vpack.c.bf16 %v3050, %v3049
      %v3112 = vpack.c.bf16 %v3052, %v3051
      %v3113 = vpack.c.bf16 %v3054, %v3053
      %v3114 = vpack.c.bf16 %v3056, %v3055
      %v3115 = vpack.c.bf16 %v3058, %v3057
      %v3116 = vpack.c.bf16 %v3060, %v3059
      %v3117 = vpack.c.bf16 %v3062, %v3061
      %v3118 = vpack.c.bf16 %v3064, %v3063
      %v3119 = vpack.c.bf16 %v3066, %v3065
      %v3120 = vpack.c.bf16 %v3068, %v3067
      %v3121 = vpack.c.bf16 %v3070, %v3069
      %v3122 = vpack.c.bf16 %v3072, %v3071
      %v3123 = vpack.c.bf16 %v3074, %v3073
      %v3124 = vpack.c.bf16 %v3076, %v3075
      %v3125 = vpack.c.bf16 %v3078, %v3077
      %v3126 = vpack.c.bf16 %v3080, %v3079
      %v3127 = vpack.c.bf16 %v3082, %v3081
      %v3128 = vpack.c.bf16 %v3084, %v3083
      %v3129 = vpack.c.bf16 %v3086, %v3085
      %v3130 = vpack.c.bf16 %v3088, %v3087
      %v3131 = vpack.c.bf16 %v3090, %v3089
      %v3132 = vpack.c.bf16 %v3092, %v3091
      %v3133 = vpack.c.bf16 %v3094, %v3093
      %v3134 = vpack.c.bf16 %v3096, %v3095
      %v3135 = vpack.c.bf16 %v3098, %v3097
      %v3136 = vpack.c.bf16 %v3100, %v3099
      %v3137 = vpack.c.bf16 %v3102, %v3101
      %v3138 = vpack.c.bf16 %v3104, %v3103
      %v3139 = vpack.c.bf16 %v3106, %v3105
      %v3140 = vpack.c.bf16 %v3108, %v3107
      %v3173 = vunpack.c.l.b16 %v3109
      %v3174 = vunpack.c.h.b16 %v3109
      %v3175 = vunpack.c.l.b16 %v3110
      %v3176 = vunpack.c.h.b16 %v3110
      %v3177 = vunpack.c.l.b16 %v3111
      %v3178 = vunpack.c.h.b16 %v3111
      %v3179 = vunpack.c.l.b16 %v3112
      %v3180 = vunpack.c.h.b16 %v3112
      %v3181 = vunpack.c.l.b16 %v3113
      %v3182 = vunpack.c.h.b16 %v3113
      %v3183 = vunpack.c.l.b16 %v3114
      %v3184 = vunpack.c.h.b16 %v3114
      %v3185 = vunpack.c.l.b16 %v3115
      %v3186 = vunpack.c.h.b16 %v3115
      %v3187 = vunpack.c.l.b16 %v3116
      %v3188 = vunpack.c.h.b16 %v3116
      %v3189 = vunpack.c.l.b16 %v3117
      %v3190 = vunpack.c.h.b16 %v3117
      %v3191 = vunpack.c.l.b16 %v3118
      %v3192 = vunpack.c.h.b16 %v3118
      %v3193 = vunpack.c.l.b16 %v3119
      %v3194 = vunpack.c.h.b16 %v3119
      %v3195 = vunpack.c.l.b16 %v3120
      %v3196 = vunpack.c.h.b16 %v3120
      %v3197 = vunpack.c.l.b16 %v3121
      %v3198 = vunpack.c.h.b16 %v3121
      %v3199 = vunpack.c.l.b16 %v3122
      %v3200 = vunpack.c.h.b16 %v3122
      %v3201 = vunpack.c.l.b16 %v3123
      %v3202 = vunpack.c.h.b16 %v3123
      %v3203 = vunpack.c.l.b16 %v3124
      %v3204 = vunpack.c.h.b16 %v3124
      %v3205 = vunpack.c.l.b16 %v3125
      %v3206 = vunpack.c.h.b16 %v3125
      %v3207 = vunpack.c.l.b16 %v3126
      %v3208 = vunpack.c.h.b16 %v3126
      %v3209 = vunpack.c.l.b16 %v3127
      %v3210 = vunpack.c.h.b16 %v3127
      %v3211 = vunpack.c.l.b16 %v3128
      %v3212 = vunpack.c.h.b16 %v3128
      %v3213 = vunpack.c.l.b16 %v3129
      %v3214 = vunpack.c.h.b16 %v3129
      %v3215 = vunpack.c.l.b16 %v3130
      %v3216 = vunpack.c.h.b16 %v3130
      %v3217 = vunpack.c.l.b16 %v3131
      %v3218 = vunpack.c.h.b16 %v3131
      %v3219 = vunpack.c.l.b16 %v3132
      %v3220 = vunpack.c.h.b16 %v3132
      %v3221 = vunpack.c.l.b16 %v3133
      %v3222 = vunpack.c.h.b16 %v3133
      %v3223 = vunpack.c.l.b16 %v3134
      %v3224 = vunpack.c.h.b16 %v3134
      %v3225 = vunpack.c.l.b16 %v3135
      %v3226 = vunpack.c.h.b16 %v3135
      %v3227 = vunpack.c.l.b16 %v3136
      %v3228 = vunpack.c.h.b16 %v3136
      %v3229 = vunpack.c.l.b16 %v3137
      %v3230 = vunpack.c.h.b16 %v3137
      %v3231 = vunpack.c.l.b16 %v3138
      %v3232 = vunpack.c.h.b16 %v3138
      %v3233 = vunpack.c.l.b16 %v3139
      %v3234 = vunpack.c.h.b16 %v3139
      %v3235 = vunpack.c.l.b16 %v3140
      %v3236 = vunpack.c.h.b16 %v3140
      %v3237 = vpack.c.b16 %v3173, %v3173
      %v3238 = vpack.c.b16 %v3174, %v3174
      %v3239 = vpack.c.b16 %v3175, %v3175
      %v3240 = vpack.c.b16 %v3176, %v3176
      %v3241 = vpack.c.b16 %v3177, %v3177
      %v3242 = vpack.c.b16 %v3178, %v3178
      %v3243 = vpack.c.b16 %v3179, %v3179
      %v3244 = vpack.c.b16 %v3180, %v3180
      %v3245 = vpack.c.b16 %v3181, %v3181
      %v3246 = vpack.c.b16 %v3182, %v3182
      %v3247 = vpack.c.b16 %v3183, %v3183
      %v3248 = vpack.c.b16 %v3184, %v3184
      %v3249 = vpack.c.b16 %v3185, %v3185
      %v3250 = vpack.c.b16 %v3186, %v3186
      %v3251 = vpack.c.b16 %v3187, %v3187
      %v3252 = vpack.c.b16 %v3188, %v3188
      %v3253 = vpack.c.b16 %v3189, %v3189
      %v3254 = vpack.c.b16 %v3190, %v3190
      %v3255 = vpack.c.b16 %v3191, %v3191
      %v3256 = vpack.c.b16 %v3192, %v3192
      %v3257 = vpack.c.b16 %v3193, %v3193
      %v3258 = vpack.c.b16 %v3194, %v3194
      %v3259 = vpack.c.b16 %v3195, %v3195
      %v3260 = vpack.c.b16 %v3196, %v3196
      %v3261 = vpack.c.b16 %v3197, %v3197
      %v3262 = vpack.c.b16 %v3198, %v3198
      %v3263 = vpack.c.b16 %v3199, %v3199
      %v3264 = vpack.c.b16 %v3200, %v3200
      %v3265 = vpack.c.b16 %v3201, %v3201
      %v3266 = vpack.c.b16 %v3202, %v3202
      %v3267 = vpack.c.b16 %v3203, %v3203
      %v3268 = vpack.c.b16 %v3204, %v3204
      %v3269 = vpack.c.b16 %v3205, %v3205
      %v3270 = vpack.c.b16 %v3206, %v3206
      %v3271 = vpack.c.b16 %v3207, %v3207
      %v3272 = vpack.c.b16 %v3208, %v3208
      %v3273 = vpack.c.b16 %v3209, %v3209
      %v3274 = vpack.c.b16 %v3210, %v3210
      %v3275 = vpack.c.b16 %v3211, %v3211
      %v3276 = vpack.c.b16 %v3212, %v3212
      %v3277 = vpack.c.b16 %v3213, %v3213
      %v3278 = vpack.c.b16 %v3214, %v3214
      %v3279 = vpack.c.b16 %v3215, %v3215
      %v3280 = vpack.c.b16 %v3216, %v3216
      %v3281 = vpack.c.b16 %v3217, %v3217
      %v3282 = vpack.c.b16 %v3218, %v3218
      %v3283 = vpack.c.b16 %v3219, %v3219
      %v3284 = vpack.c.b16 %v3220, %v3220
      %v3285 = vpack.c.b16 %v3221, %v3221
      %v3286 = vpack.c.b16 %v3222, %v3222
      %v3287 = vpack.c.b16 %v3223, %v3223
      %v3288 = vpack.c.b16 %v3224, %v3224
      %v3289 = vpack.c.b16 %v3225, %v3225
      %v3290 = vpack.c.b16 %v3226, %v3226
      %v3291 = vpack.c.b16 %v3227, %v3227
      %v3292 = vpack.c.b16 %v3228, %v3228
      %v3293 = vpack.c.b16 %v3229, %v3229
      %v3294 = vpack.c.b16 %v3230, %v3230
      %v3295 = vpack.c.b16 %v3231, %v3231
      %v3296 = vpack.c.b16 %v3232, %v3232
      %v3297 = vpack.c.b16 %v3233, %v3233
      %v3298 = vpack.c.b16 %v3234, %v3234
      %v3299 = vpack.c.b16 %v3235, %v3235
      %v3300 = vpack.c.b16 %v3236, %v3236
      %3365 = vst [vmem:[%s170] sm:$0xf] %v3237
      %3366 = vst [vmem:[%s170 + $0x4] sm:$0xf] %v3238
      %3367 = vst [vmem:[%s170 + $0x8] sm:$0xf] %v3239
      %3368 = vst [vmem:[%s170 + $0xc] sm:$0xf] %v3240
      %3369 = vst [vmem:[%s170 + $0x10] sm:$0xf] %v3241
      %3370 = vst [vmem:[%s170 + $0x14] sm:$0xf] %v3242
      %3371 = vst [vmem:[%s170 + $0x18] sm:$0xf] %v3243
      %3372 = vst [vmem:[%s170 + $0x1c] sm:$0xf] %v3244
      %3373 = vst [vmem:[%s170 + $0x20] sm:$0xf] %v3245
      %3374 = vst [vmem:[%s170 + $0x24] sm:$0xf] %v3246
      %3375 = vst [vmem:[%s170 + $0x28] sm:$0xf] %v3247
      %3376 = vst [vmem:[%s170 + $0x2c] sm:$0xf] %v3248
      %3377 = vst [vmem:[%s170 + $0x30] sm:$0xf] %v3249
      %3378 = vst [vmem:[%s170 + $0x34] sm:$0xf] %v3250
      %3379 = vst [vmem:[%s170 + $0x38] sm:$0xf] %v3251
      %3380 = vst [vmem:[%s170 + $0x3c] sm:$0xf] %v3252
      %3381 = vst [vmem:[%s170 + $0x40] sm:$0xf] %v3253
      %3382 = vst [vmem:[%s170 + $0x44] sm:$0xf] %v3254
      %3383 = vst [vmem:[%s170 + $0x48] sm:$0xf] %v3255
      %3384 = vst [vmem:[%s170 + $0x4c] sm:$0xf] %v3256
      %3385 = vst [vmem:[%s170 + $0x50] sm:$0xf] %v3257
      %3386 = vst [vmem:[%s170 + $0x54] sm:$0xf] %v3258
      %3387 = vst [vmem:[%s170 + $0x58] sm:$0xf] %v3259
      %3388 = vst [vmem:[%s170 + $0x5c] sm:$0xf] %v3260
      %3389 = vst [vmem:[%s170 + $0x60] sm:$0xf] %v3261
      %3390 = vst [vmem:[%s170 + $0x64] sm:$0xf] %v3262
      %3391 = vst [vmem:[%s170 + $0x68] sm:$0xf] %v3263
      %3392 = vst [vmem:[%s170 + $0x6c] sm:$0xf] %v3264
      %3393 = vst [vmem:[%s170 + $0x70] sm:$0xf] %v3265
      %3394 = vst [vmem:[%s170 + $0x74] sm:$0xf] %v3266
      %3395 = vst [vmem:[%s170 + $0x78] sm:$0xf] %v3267
      %3396 = vst [vmem:[%s170 + $0x7c] sm:$0xf] %v3268
      %3397 = vst [vmem:[%s170 + $0x80] sm:$0xf] %v3269
      %3398 = vst [vmem:[%s170 + $0x84] sm:$0xf] %v3270
      %3399 = vst [vmem:[%s170 + $0x88] sm:$0xf] %v3271
      %3400 = vst [vmem:[%s170 + $0x8c] sm:$0xf] %v3272
      %3401 = vst [vmem:[%s170 + $0x90] sm:$0xf] %v3273
      %3402 = vst [vmem:[%s170 + $0x94] sm:$0xf] %v3274
      %3403 = vst [vmem:[%s170 + $0x98] sm:$0xf] %v3275
      %3404 = vst [vmem:[%s170 + $0x9c] sm:$0xf] %v3276
      %3405 = vst [vmem:[%s170 + $0xa0] sm:$0xf] %v3277
      %3406 = vst [vmem:[%s170 + $0xa4] sm:$0xf] %v3278
      %3407 = vst [vmem:[%s170 + $0xa8] sm:$0xf] %v3279
      %3408 = vst [vmem:[%s170 + $0xac] sm:$0xf] %v3280
      %3409 = vst [vmem:[%s170 + $0xb0] sm:$0xf] %v3281
      %3410 = vst [vmem:[%s170 + $0xb4] sm:$0xf] %v3282
      %3411 = vst [vmem:[%s170 + $0xb8] sm:$0xf] %v3283
      %3412 = vst [vmem:[%s170 + $0xbc] sm:$0xf] %v3284
      %3413 = vst [vmem:[%s170 + $0xc0] sm:$0xf] %v3285
      %3414 = vst [vmem:[%s170 + $0xc4] sm:$0xf] %v3286
      %3415 = vst [vmem:[%s170 + $0xc8] sm:$0xf] %v3287
      %3416 = vst [vmem:[%s170 + $0xcc] sm:$0xf] %v3288
      %3417 = vst [vmem:[%s170 + $0xd0] sm:$0xf] %v3289
      %3418 = vst [vmem:[%s170 + $0xd4] sm:$0xf] %v3290
      %3419 = vst [vmem:[%s170 + $0xd8] sm:$0xf] %v3291
      %3420 = vst [vmem:[%s170 + $0xdc] sm:$0xf] %v3292
      %3421 = vst [vmem:[%s170 + $0xe0] sm:$0xf] %v3293
      %3422 = vst [vmem:[%s170 + $0xe4] sm:$0xf] %v3294
      %3423 = vst [vmem:[%s170 + $0xe8] sm:$0xf] %v3295
      %3424 = vst [vmem:[%s170 + $0xec] sm:$0xf] %v3296
      %3425 = vst [vmem:[%s170 + $0xf0] sm:$0xf] %v3297
      %3426 = vst [vmem:[%s170 + $0xf4] sm:$0xf] %v3298
      %3427 = vst [vmem:[%s170 + $0xf8] sm:$0xf] %v3299
      %3428 = vst [vmem:[%s170 + $0xfc] sm:$0xf] %v3300
      %p3429 = scmp.lt.s32.totalorder %s14, 1
      %s3430 = scalar_select %p3429, %s14, 1
      %s3431 = smul.addr %s3430, 64
      %s3432 = smul.addr %s3431, 4
      %s3433 = scalar_lea.vmem %s3, %s3432
      // Predicated region
      $region33: #{encoder_forward.3} parent=31 // pred_check
        %p3434 = pneg %p100
      $region34: #{encoder_forward.3} parent=31 // pred_check_branch
        %3436 = sbr.rel (%p3434) target = $region36
      $region35: #{encoder_forward.3} parent=31 // pred_region
        _
      $region36: #{encoder_forward.3} parent=31 // pred_fallthru
        _
    $region32: #{encoder_forward.3} parent=5 // pred_fallthru
      _
    %p3437 = scmp.le.s32.totalorder 2, %s9
    // Predicated region
    $region37: #{encoder_forward.3} parent=5 // pred_check
      %p3438 = pneg %p3437
    $region38: #{encoder_forward.3} parent=5 // pred_check_branch
      %3440 = sbr.rel (%p3438) target = $region40
    $region39: #{encoder_forward.3} parent=5 // pred_region
      %s3441 = ssub.s32 %s9, 2
      // Predicated region
      $region41: #{encoder_forward.3} parent=39 // pred_check
        %p3442 = pneg %p106
      $region42: #{encoder_forward.3} parent=39 // pred_check_branch
        %3444 = sbr.rel (%p3442) target = $region44
      $region43: #{encoder_forward.3} parent=39 // pred_region
        %p3445 = scmp.lt.s32.totalorder %s15, 1
        %s3446 = scalar_select %p3445, %s15, 1
        %s3447 = smul.addr %s3446, 64
        %s3448 = smul.addr %s3447, 4
        %s3449 = scalar_lea.vmem %s3, %s3448
      $region44: #{encoder_forward.3} parent=39 // pred_fallthru
        _
    $region40: #{encoder_forward.3} parent=5 // pred_fallthru
      _
  $region6: #{encoder_forward.3} parent=0 // loop_footer
    %s13 = sadd.s32 1, %s9
  $region7: #{encoder_forward.3} parent=0 // loop_footer_branch
    %8 = sbr.rel target = $region3
  $region8: #{encoder_forward.3} parent=0 // loop_exit
    _

// kernel: encoder_forward.4
$region0: #{encoder_forward.4}
  #allocation0 [shape = 'u32[]', space=smem, size = 0x4, offset = 0x4, fixed_abs, tag = 'smem constant byte address 0x4 - core index']
  #allocation1 [shape = 'u32[144,128]{1,0:T(1,128)}', space=vmem, size = 0x12000, scoped, tag = 'internal scratch']
  %s0 = inlined_call_operand.vmem [shape: bf16[2,2,17,17,128], index: 0, kind: input, shape index: {}]
  %s1 = inlined_call_operand.vmem [shape: bf16[576,128], index: 1, kind: input, shape index: {}]
  %s2 = inlined_call_operand.vmem [shape: f32[1,128], index: 2, kind: input, shape index: {}]
  %s3 = inlined_call_operand.vmem [shape: bf16[2,16,16,128], index: 3, kind: output, shape index: {}]
  %s4 = sld [smem:[#allocation0]]
  $region45: #{encoder_forward.4} parent=0
    _
  %s6 = ssub.s32 1, %s4
  %s7 = scalar_select 0, %s6, %s4
  loop: start=0, step=1, limit=4
  $region2: #{encoder_forward.4} parent=0 // loop_pre_header
    _
  $region3: #{encoder_forward.4} parent=0 // loop_header
    %s9 = sphi 0, %s13
    %p10 = scmp.ge.s32.totalorder %s9, 4
    %s16 = sphi 0, %s28
    %s17 = sphi 0, %s24
    %s18 = sphi 0, %s16
    %s19 = sphi 0, %s17
    %s20 = sphi 0, %s18
    %s21 = sphi 0, %s19
    %s31 = sphi 0, %s33
    %s34 = sphi 0, %s31
    %s35 = sphi 0, %s34
    %s51 = sphi 0, %s35
    %s57 = sphi 0, %s59
    %s60 = sphi 0, %s57
    %s61 = sphi 0, %s60
    %s77 = sphi 0, %s61
    %s83 = sphi 0, %s85
    %s86 = sphi 0, %s83
    %s87 = sphi 0, %s86
    %s103 = sphi 0, %s87
    %s111 = sphi 0, %s113
    %s114 = sphi 0, %s111
    %s115 = sphi 0, %s114
    %s131 = sphi 0, %s115
  $region4: #{encoder_forward.4} parent=0 // loop_header_branch
    %12 = sbr.rel (%p10) target = $region8
  $region5: #{encoder_forward.4} parent=0 // loop_body
    %s14 = ssub.s32 %s9, 1
    %s15 = ssub.s32 %s9, 2
    %s22 = sadd.s32 1, %s17
    %p23 = scmp.ge.s32.totalorder %s22, 1
    %s24 = scalar_select %p23, 0, %s22
    %s25 = sadd.s32 1, %s16
    %s26 = scalar_select %p23, %s25, %s16
    %p27 = scmp.ge.s32.totalorder %s26, 2
    %s28 = scalar_select %p27, 0, %s26
    %s29 = ssub.s32 %s16, %s28
    %p30 = scmp.eq.s32.totalorder %s29, 0
    %s32 = sadd.s32 %s31, 1
    %s33 = scalar_select %p30, %s31, %s32
    %p36 = pneg %p30
    %p37 = scmp.eq.s32.totalorder %s9, 1
    %p38 = por %p36, %p37
    %p39 = scmp.ne.s32.totalorder %s31, %s34
    %p40 = scmp.eq.s32.totalorder %s9, 0
    %p41 = por %p39, %p40
    %p42 = scmp.ne.s32.totalorder %s31, %s34
    %p43 = scmp.eq.s32.totalorder %s14, 1
    %p44 = por %p42, %p43
    %p45 = scmp.ne.s32.totalorder %s34, %s35
    %p46 = scmp.eq.s32.totalorder %s14, 0
    %p47 = por %p45, %p46
    %p48 = scmp.ne.s32.totalorder %s34, %s35
    %p49 = scmp.eq.s32.totalorder %s15, 1
    %p50 = por %p48, %p49
    %p52 = scmp.ne.s32.totalorder %s35, %s51
    %p53 = scmp.eq.s32.totalorder %s15, 0
    %p54 = por %p52, %p53
    %s55 = ssub.s32 %s17, %s24
    %p56 = scmp.eq.s32.totalorder %s55, 0
    %s58 = sadd.s32 %s57, 1
    %s59 = scalar_select %p56, %s57, %s58
    %p62 = pneg %p56
    %p63 = scmp.eq.s32.totalorder %s9, 1
    %p64 = por %p62, %p63
    %p65 = scmp.ne.s32.totalorder %s57, %s60
    %p66 = scmp.eq.s32.totalorder %s9, 0
    %p67 = por %p65, %p66
    %p68 = scmp.ne.s32.totalorder %s57, %s60
    %p69 = scmp.eq.s32.totalorder %s14, 1
    %p70 = por %p68, %p69
    %p71 = scmp.ne.s32.totalorder %s60, %s61
    %p72 = scmp.eq.s32.totalorder %s14, 0
    %p73 = por %p71, %p72
    %p74 = scmp.ne.s32.totalorder %s60, %s61
    %p75 = scmp.eq.s32.totalorder %s15, 1
    %p76 = por %p74, %p75
    %p78 = scmp.ne.s32.totalorder %s61, %s77
    %p79 = scmp.eq.s32.totalorder %s15, 0
    %p80 = por %p78, %p79
    %s81 = ssub.s32 %s17, %s24
    %p82 = scmp.eq.s32.totalorder %s81, 0
    %s84 = sadd.s32 %s83, 1
    %s85 = scalar_select %p82, %s83, %s84
    %p88 = pneg %p82
    %p89 = scmp.eq.s32.totalorder %s9, 1
    %p90 = por %p88, %p89
    %p91 = scmp.ne.s32.totalorder %s83, %s86
    %p92 = scmp.eq.s32.totalorder %s9, 0
    %p93 = por %p91, %p92
    %p94 = scmp.ne.s32.totalorder %s83, %s86
    %p95 = scmp.eq.s32.totalorder %s14, 1
    %p96 = por %p94, %p95
    %p97 = scmp.ne.s32.totalorder %s86, %s87
    %p98 = scmp.eq.s32.totalorder %s14, 0
    %p99 = por %p97, %p98
    %p100 = scmp.ne.s32.totalorder %s86, %s87
    %p101 = scmp.eq.s32.totalorder %s15, 1
    %p102 = por %p100, %p101
    %p104 = scmp.ne.s32.totalorder %s87, %s103
    %p105 = scmp.eq.s32.totalorder %s15, 0
    %p106 = por %p104, %p105
    %s107 = ssub.s32 %s16, %s28
    %s108 = ssub.s32 %s17, %s24
    %s109 = sor.u32 %s107, %s108
    %p110 = scmp.eq.s32.totalorder %s109, 0
    %s112 = sadd.s32 %s111, 1
    %s113 = scalar_select %p110, %s111, %s112
    %p116 = pneg %p110
    %p117 = scmp.eq.s32.totalorder %s9, 1
    %p118 = por %p116, %p117
    %p119 = scmp.ne.s32.totalorder %s111, %s114
    %p120 = scmp.eq.s32.totalorder %s9, 0
    %p121 = por %p119, %p120
    %p122 = scmp.ne.s32.totalorder %s111, %s114
    %p123 = scmp.eq.s32.totalorder %s14, 1
    %p124 = por %p122, %p123
    %p125 = scmp.ne.s32.totalorder %s114, %s115
    %p126 = scmp.eq.s32.totalorder %s14, 0
    %p127 = por %p125, %p126
    %p128 = scmp.ne.s32.totalorder %s114, %s115
    %p129 = scmp.eq.s32.totalorder %s15, 1
    %p130 = por %p128, %p129
    %p132 = scmp.ne.s32.totalorder %s115, %s131
    %p133 = scmp.eq.s32.totalorder %s15, 0
    %p134 = por %p132, %p133
    %p135 = scmp.le.s32.totalorder 1, %s9
    %p136 = scmp.lt.s32.totalorder %s9, 3
    %p137 = pnand %p135, %p136
    %p138 = pneg %p137
    // Predicated region
    $region9: #{encoder_forward.4} parent=5 // pred_check
      _
    $region10: #{encoder_forward.4} parent=5 // pred_check_branch
      %140 = sbr.rel (%p137) target = $region12
    $region11: #{encoder_forward.4} parent=5 // pred_region
      %s141 = ssub.s32 %s9, 1
      // Predicated region
      $region13: #{encoder_forward.4} parent=11 // pred_check
        %p142 = pneg %p73
      $region14: #{encoder_forward.4} parent=11 // pred_check_branch
        %144 = sbr.rel (%p142) target = $region16
      $region15: #{encoder_forward.4} parent=11 // pred_region
        %p145 = scmp.lt.s32.totalorder %s19, 0
        %s146 = scalar_select %p145, %s19, 0
        %s147 = smul.addr %s146, 4
        %s148 = scalar_lea.vmem %s1, %s147
      $region16: #{encoder_forward.4} parent=11 // pred_fallthru
        _
      // Predicated region
      $region17: #{encoder_forward.4} parent=11 // pred_check
        %p149 = pneg %p99
      $region18: #{encoder_forward.4} parent=11 // pred_check_branch
        %151 = sbr.rel (%p149) target = $region20
      $region19: #{encoder_forward.4} parent=11 // pred_region
        %p152 = scmp.lt.s32.totalorder %s19, 0
        %s153 = scalar_select %p152, %s19, 0
        %s154 = scalar_lea.vmem %s2, %s153
      $region20: #{encoder_forward.4} parent=11 // pred_fallthru
        _
    $region12: #{encoder_forward.4} parent=5 // pred_fallthru
      _
    %p155 = scmp.lt.s32.totalorder %s9, 2
    // Predicated region
    $region21: #{encoder_forward.4} parent=5 // pred_check
      %p156 = pneg %p155
    $region22: #{encoder_forward.4} parent=5 // pred_check_branch
      %158 = sbr.rel (%p156) target = $region24
    $region23: #{encoder_forward.4} parent=5 // pred_region
      // Predicated region
      $region25: #{encoder_forward.4} parent=23 // pred_check
        %p159 = pneg %p41
      $region26: #{encoder_forward.4} parent=23 // pred_check_branch
        %161 = sbr.rel (%p159) target = $region28
      $region27: #{encoder_forward.4} parent=23 // pred_region
        %p162 = scmp.lt.s32.totalorder %s16, 1
        %s163 = scalar_select %p162, %s16, 1
        %s164 = smul.addr %s163, 102
        %s165 = smul.addr %s164, 4
        %s166 = scalar_lea.vmem %s0, %s165
      $region28: #{encoder_forward.4} parent=23 // pred_fallthru
        _
    $region24: #{encoder_forward.4} parent=5 // pred_fallthru
      _
    %p167 = scmp.le.s32.totalorder 1, %s9
    %p168 = scmp.lt.s32.totalorder %s9, 3
    %p169 = pnand %p167, %p168
    %p170 = pneg %p169
    // Predicated region
    $region29: #{encoder_forward.4} parent=5 // pred_check
      _
    $region30: #{encoder_forward.4} parent=5 // pred_check_branch
      %172 = sbr.rel (%p169) target = $region32
    $region31: #{encoder_forward.4} parent=5 // pred_region
      %s173 = ssub.s32 %s9, 1
      %p174 = scmp.lt.s32.totalorder %s18, 1
      %s175 = scalar_select %p174, %s18, 1
      %s176 = smul.addr %s175, 102
      %s177 = smul.addr %s176, 4
      %s178 = scalar_lea.vmem %s0, %s177
      %p179 = pneg %p47
      %p180 = pneg %p44
      %p181 = scmp.lt.s32.totalorder %s19, 0
      %s182 = scalar_select %p181, %s19, 0
      %s183 = smul.addr %s182, 4
      %s184 = scalar_lea.vmem %s1, %s183
      %p185 = pneg %p73
      %p186 = pneg %p70
      %p187 = scmp.lt.s32.totalorder %s19, 0
      %s188 = scalar_select %p187, %s19, 0
      %s189 = scalar_lea.vmem %s2, %s188
      %p190 = pneg %p99
      %p191 = pneg %p96
      %p192 = pneg %p127
      %p193 = pneg %p124
      %p194 = scmp.lt.s32.totalorder %s18, 1
      %s195 = scalar_select %p194, %s18, 1
      %p196 = scmp.lt.s32.totalorder %s19, 0
      %s197 = scalar_select %p196, %s19, 0
      %s198 = smul.addr %s195, 32
      %s199 = sadd.s32 %s197, %s198
      %s200 = smul.addr %s199, 4
      %s201 = scalar_lea.vmem %s3, %s200
      %p202 = scmp.lt.s32.totalorder %s18, 1
      %s203 = scalar_select %p202, %s18, 1
      %s204 = smul.addr %s203, 102
      %s205 = smul.addr %s204, 4
      %s206 = scalar_lea.vmem %s0, %s205
      %p207 = scmp.lt.s32.totalorder %s19, 0
      %s208 = scalar_select %p207, %s19, 0
      %s209 = smul.addr %s208, 4
      %s210 = scalar_lea.vmem %s1, %s209
      %p211 = scmp.lt.s32.totalorder %s19, 0
      %s212 = scalar_select %p211, %s19, 0
      %s213 = scalar_lea.vmem %s2, %s212
      %p214 = scmp.lt.s32.totalorder %s18, 1
      %s215 = scalar_select %p214, %s18, 1
      %p216 = scmp.lt.s32.totalorder %s19, 0
      %s217 = scalar_select %p216, %s19, 0
      %s218 = smul.addr %s215, 32
      %s219 = sadd.s32 %s217, %s218
      %s220 = smul.addr %s219, 4
      %s221 = scalar_lea.vmem %s3, %s220
      %v223 = vld [vmem:[%s206] sm:$0xf]
      %v224 = vld [vmem:[%s206 + $0x4] sm:$0xf]
      %v225 = vld [vmem:[%s206 + $0x8] sm:$0x1]
      %v226 = vld [vmem:[%s206 + $0xc] sm:$0xf]
      %v227 = vld [vmem:[%s206 + $0x10] sm:$0xf]
      %v228 = vld [vmem:[%s206 + $0x14] sm:$0x1]
      %v229 = vld [vmem:[%s206 + $0x18] sm:$0xf]
      %v230 = vld [vmem:[%s206 + $0x1c] sm:$0xf]
      %v231 = vld [vmem:[%s206 + $0x20] sm:$0x1]
      %v232 = vld [vmem:[%s206 + $0x24] sm:$0xf]
      %v233 = vld [vmem:[%s206 + $0x28] sm:$0xf]
      %v234 = vld [vmem:[%s206 + $0x2c] sm:$0x1]
      %v235 = vld [vmem:[%s206 + $0x30] sm:$0xf]
      %v236 = vld [vmem:[%s206 + $0x34] sm:$0xf]
      %v237 = vld [vmem:[%s206 + $0x38] sm:$0x1]
      %v238 = vld [vmem:[%s206 + $0x3c] sm:$0xf]
      %v239 = vld [vmem:[%s206 + $0x40] sm:$0xf]
      %v240 = vld [vmem:[%s206 + $0x44] sm:$0x1]
      %v241 = vld [vmem:[%s206 + $0x48] sm:$0xf]
      %v242 = vld [vmem:[%s206 + $0x4c] sm:$0xf]
      %v243 = vld [vmem:[%s206 + $0x50] sm:$0x1]
      %v244 = vld [vmem:[%s206 + $0x54] sm:$0xf]
      %v245 = vld [vmem:[%s206 + $0x58] sm:$0xf]
      %v246 = vld [vmem:[%s206 + $0x5c] sm:$0x1]
      %v247 = vld [vmem:[%s206 + $0x60] sm:$0xf]
      %v248 = vld [vmem:[%s206 + $0x64] sm:$0xf]
      %v249 = vld [vmem:[%s206 + $0x68] sm:$0x1]
      %v250 = vld [vmem:[%s206 + $0x6c] sm:$0xf]
      %v251 = vld [vmem:[%s206 + $0x70] sm:$0xf]
      %v252 = vld [vmem:[%s206 + $0x74] sm:$0x1]
      %v253 = vld [vmem:[%s206 + $0x78] sm:$0xf]
      %v254 = vld [vmem:[%s206 + $0x7c] sm:$0xf]
      %v255 = vld [vmem:[%s206 + $0x80] sm:$0x1]
      %v256 = vld [vmem:[%s206 + $0x84] sm:$0xf]
      %v257 = vld [vmem:[%s206 + $0x88] sm:$0xf]
      %v258 = vld [vmem:[%s206 + $0x8c] sm:$0x1]
      %v259 = vld [vmem:[%s206 + $0x90] sm:$0xf]
      %v260 = vld [vmem:[%s206 + $0x94] sm:$0xf]
      %v261 = vld [vmem:[%s206 + $0x98] sm:$0x1]
      %v262 = vld [vmem:[%s206 + $0x9c] sm:$0xf]
      %v263 = vld [vmem:[%s206 + $0xa0] sm:$0xf]
      %v264 = vld [vmem:[%s206 + $0xa4] sm:$0x1]
      %v265 = vld [vmem:[%s206 + $0xa8] sm:$0xf]
      %v266 = vld [vmem:[%s206 + $0xac] sm:$0xf]
      %v267 = vld [vmem:[%s206 + $0xb0] sm:$0x1]
      %v268 = vld [vmem:[%s206 + $0xb4] sm:$0xf]
      %v269 = vld [vmem:[%s206 + $0xb8] sm:$0xf]
      %v270 = vld [vmem:[%s206 + $0xbc] sm:$0x1]
      %v271 = vld [vmem:[%s206 + $0xc0] sm:$0xf]
      %v272 = vld [vmem:[%s206 + $0xc4] sm:$0xf]
      %v273 = vld [vmem:[%s206 + $0xc8] sm:$0x1]
      %v274 = vld [vmem:[%s206 + $0xcc] sm:$0xf]
      %v275 = vld [vmem:[%s206 + $0xd0] sm:$0xf]
      %v276 = vld [vmem:[%s206 + $0xd4] sm:$0x1]
      %v277 = vld [vmem:[%s206 + $0xd8] sm:$0xf]
      %v278 = vld [vmem:[%s206 + $0xdc] sm:$0xf]
      %v279 = vld [vmem:[%s206 + $0xe0] sm:$0x1]
      %v280 = vld [vmem:[%s206 + $0xe4] sm:$0xf]
      %v281 = vld [vmem:[%s206 + $0xe8] sm:$0xf]
      %v282 = vld [vmem:[%s206 + $0xec] sm:$0x1]
      %v283 = vld [vmem:[%s206 + $0xf0] sm:$0xf]
      %v284 = vld [vmem:[%s206 + $0xf4] sm:$0xf]
      %v285 = vld [vmem:[%s206 + $0xf8] sm:$0x1]
      %v286 = vld [vmem:[%s206 + $0xfc] sm:$0xf]
      %v287 = vld [vmem:[%s206 + $0x100] sm:$0xf]
      %v288 = vld [vmem:[%s206 + $0x104] sm:$0x1]
      %v289 = vld [vmem:[%s206 + $0x108] sm:$0xf]
      %v290 = vld [vmem:[%s206 + $0x10c] sm:$0xf]
      %v291 = vld [vmem:[%s206 + $0x110] sm:$0x1]
      %v292 = vld [vmem:[%s206 + $0x114] sm:$0xf]
      %v293 = vld [vmem:[%s206 + $0x118] sm:$0xf]
      %v294 = vld [vmem:[%s206 + $0x11c] sm:$0x1]
      %v295 = vld [vmem:[%s206 + $0x120] sm:$0xf]
      %v296 = vld [vmem:[%s206 + $0x124] sm:$0xf]
      %v297 = vld [vmem:[%s206 + $0x128] sm:$0x1]
      %v298 = vld [vmem:[%s206 + $0x12c] sm:$0xf]
      %v299 = vld [vmem:[%s206 + $0x130] sm:$0xf]
      %v300 = vld [vmem:[%s206 + $0x134] sm:$0x1]
      %v301 = vld [vmem:[%s206 + $0x138] sm:$0xf]
      %v302 = vld [vmem:[%s206 + $0x13c] sm:$0xf]
      %v303 = vld [vmem:[%s206 + $0x140] sm:$0x1]
      %v304 = vld [vmem:[%s206 + $0x144] sm:$0xf]
      %v305 = vld [vmem:[%s206 + $0x148] sm:$0xf]
      %v306 = vld [vmem:[%s206 + $0x14c] sm:$0x1]
      %v307 = vld [vmem:[%s206 + $0x150] sm:$0xf]
      %v308 = vld [vmem:[%s206 + $0x154] sm:$0xf]
      %v309 = vld [vmem:[%s206 + $0x158] sm:$0x1]
      %v310 = vld [vmem:[%s206 + $0x15c] sm:$0xf]
      %v311 = vld [vmem:[%s206 + $0x160] sm:$0xf]
      %v312 = vld [vmem:[%s206 + $0x164] sm:$0x1]
      %v313 = vld [vmem:[%s206 + $0x168] sm:$0xf]
      %v314 = vld [vmem:[%s206 + $0x16c] sm:$0xf]
      %v315 = vld [vmem:[%s206 + $0x170] sm:$0x1]
      %v316 = vld [vmem:[%s206 + $0x174] sm:$0xf]
      %v317 = vld [vmem:[%s206 + $0x178] sm:$0xf]
      %v318 = vld [vmem:[%s206 + $0x17c] sm:$0x1]
      %v319 = vld [vmem:[%s206 + $0x180] sm:$0xf]
      %v320 = vld [vmem:[%s206 + $0x184] sm:$0xf]
      %v321 = vld [vmem:[%s206 + $0x188] sm:$0x1]
      %v322 = vld [vmem:[%s210] sm:$0xf]
      %v323 = vld [vmem:[%s210 + $0x4] sm:$0xf]
      %v324 = vld [vmem:[%s210 + $0x8] sm:$0xf]
      %v325 = vld [vmem:[%s210 + $0xc] sm:$0xf]
      %v326 = vld [vmem:[%s210 + $0x10] sm:$0xf]
      %v327 = vld [vmem:[%s210 + $0x14] sm:$0xf]
      %v328 = vld [vmem:[%s210 + $0x18] sm:$0xf]
      %v329 = vld [vmem:[%s210 + $0x1c] sm:$0xf]
      %v330 = vld [vmem:[%s210 + $0x20] sm:$0xf]
      %v331 = vld [vmem:[%s210 + $0x24] sm:$0xf]
      %v332 = vld [vmem:[%s210 + $0x28] sm:$0xf]
      %v333 = vld [vmem:[%s210 + $0x2c] sm:$0xf]
      %v334 = vld [vmem:[%s210 + $0x30] sm:$0xf]
      %v335 = vld [vmem:[%s210 + $0x34] sm:$0xf]
      %v336 = vld [vmem:[%s210 + $0x38] sm:$0xf]
      %v337 = vld [vmem:[%s210 + $0x3c] sm:$0xf]
      %vm338 = vsmask.f32 3328
      %vm339 = vsmask.f32 7440
      %vm340 = vmor %vm338, %vm339
      %v342 = vshrl.u32 %v223, 16
      %v344 = vrot.slane %v342, 4
      %v345 = vshll.u32 %v223, 16
      %v347 = vrot.slane %v345, 5
      %v348 = vor.u32 %v344, %v347
      %v349 = vrot.slane %v348, 4
      %v351 = vshll.u32 %v224, 16
      %v353 = vrot.slane %v351, 5
      %v354 = vsel %vm340, %v349, %v353
      %v355 = vshrl.u32 %v224, 16
      %v357 = vrot.slane %v355, 4
      %v358 = vor.u32 %v357, %v353
      %v359 = vrot.slane %v358, 4
      %v361 = vshll.u32 %v225, 16
      %v363 = vrot.slane %v361, 5
      %v364 = vsel %vm340, %v359, %v363
      %v366 = vshrl.u32 %v226, 16
      %v368 = vrot.slane %v366, 4
      %v369 = vshll.u32 %v226, 16
      %v371 = vrot.slane %v369, 5
      %v372 = vor.u32 %v368, %v371
      %v373 = vrot.slane %v372, 4
      %v375 = vshll.u32 %v227, 16
      %v377 = vrot.slane %v375, 5
      %v378 = vsel %vm340, %v373, %v377
      %v379 = vshrl.u32 %v227, 16
      %v381 = vrot.slane %v379, 4
      %v382 = vor.u32 %v381, %v377
      %v383 = vrot.slane %v382, 4
      %v385 = vshll.u32 %v228, 16
      %v387 = vrot.slane %v385, 5
      %v388 = vsel %vm340, %v383, %v387
      %v390 = vshrl.u32 %v229, 16
      %v392 = vrot.slane %v390, 4
      %v393 = vshll.u32 %v229, 16
      %v395 = vrot.slane %v393, 5
      %v396 = vor.u32 %v392, %v395
      %v397 = vrot.slane %v396, 4
      %v399 = vshll.u32 %v230, 16
      %v401 = vrot.slane %v399, 5
      %v402 = vsel %vm340, %v397, %v401
      %v403 = vshrl.u32 %v230, 16
      %v405 = vrot.slane %v403, 4
      %v406 = vor.u32 %v405, %v401
      %v407 = vrot.slane %v406, 4
      %v409 = vshll.u32 %v231, 16
      %v411 = vrot.slane %v409, 5
      %v412 = vsel %vm340, %v407, %v411
      %v414 = vshrl.u32 %v232, 16
      %v416 = vrot.slane %v414, 4
      %v417 = vshll.u32 %v232, 16
      %v419 = vrot.slane %v417, 5
      %v420 = vor.u32 %v416, %v419
      %v421 = vrot.slane %v420, 4
      %v423 = vshll.u32 %v233, 16
      %v425 = vrot.slane %v423, 5
      %v426 = vsel %vm340, %v421, %v425
      %v427 = vshrl.u32 %v233, 16
      %v429 = vrot.slane %v427, 4
      %v430 = vor.u32 %v429, %v425
      %v431 = vrot.slane %v430, 4
      %v433 = vshll.u32 %v234, 16
      %v435 = vrot.slane %v433, 5
      %v436 = vsel %vm340, %v431, %v435
      %v438 = vshrl.u32 %v235, 16
      %v440 = vrot.slane %v438, 4
      %v441 = vshll.u32 %v235, 16
      %v443 = vrot.slane %v441, 5
      %v444 = vor.u32 %v440, %v443
      %v445 = vrot.slane %v444, 4
      %v447 = vshll.u32 %v236, 16
      %v449 = vrot.slane %v447, 5
      %v450 = vsel %vm340, %v445, %v449
      %v451 = vshrl.u32 %v236, 16
      %v453 = vrot.slane %v451, 4
      %v454 = vor.u32 %v453, %v449
      %v455 = vrot.slane %v454, 4
      %v457 = vshll.u32 %v237, 16
      %v459 = vrot.slane %v457, 5
      %v460 = vsel %vm340, %v455, %v459
      %v462 = vshrl.u32 %v238, 16
      %v464 = vrot.slane %v462, 4
      %v465 = vshll.u32 %v238, 16
      %v467 = vrot.slane %v465, 5
      %v468 = vor.u32 %v464, %v467
      %v469 = vrot.slane %v468, 4
      %v471 = vshll.u32 %v239, 16
      %v473 = vrot.slane %v471, 5
      %v474 = vsel %vm340, %v469, %v473
      %v475 = vshrl.u32 %v239, 16
      %v477 = vrot.slane %v475, 4
      %v478 = vor.u32 %v477, %v473
      %v479 = vrot.slane %v478, 4
      %v481 = vshll.u32 %v240, 16
      %v483 = vrot.slane %v481, 5
      %v484 = vsel %vm340, %v479, %v483
      %v486 = vshrl.u32 %v241, 16
      %v488 = vrot.slane %v486, 4
      %v489 = vshll.u32 %v241, 16
      %v491 = vrot.slane %v489, 5
      %v492 = vor.u32 %v488, %v491
      %v493 = vrot.slane %v492, 4
      %v495 = vshll.u32 %v242, 16
      %v497 = vrot.slane %v495, 5
      %v498 = vsel %vm340, %v493, %v497
      %v499 = vshrl.u32 %v242, 16
      %v501 = vrot.slane %v499, 4
      %v502 = vor.u32 %v501, %v497
      %v503 = vrot.slane %v502, 4
      %v505 = vshll.u32 %v243, 16
      %v507 = vrot.slane %v505, 5
      %v508 = vsel %vm340, %v503, %v507
      %v510 = vshrl.u32 %v244, 16
      %v512 = vrot.slane %v510, 4
      %v513 = vshll.u32 %v244, 16
      %v515 = vrot.slane %v513, 5
      %v516 = vor.u32 %v512, %v515
      %v517 = vrot.slane %v516, 4
      %v519 = vshll.u32 %v245, 16
      %v521 = vrot.slane %v519, 5
      %v522 = vsel %vm340, %v517, %v521
      %v523 = vshrl.u32 %v245, 16
      %v525 = vrot.slane %v523, 4
      %v526 = vor.u32 %v525, %v521
      %v527 = vrot.slane %v526, 4
      %v529 = vshll.u32 %v246, 16
      %v531 = vrot.slane %v529, 5
      %v532 = vsel %vm340, %v527, %v531
      %v534 = vshrl.u32 %v247, 16
      %v536 = vrot.slane %v534, 4
      %v537 = vshll.u32 %v247, 16
      %v539 = vrot.slane %v537, 5
      %v540 = vor.u32 %v536, %v539
      %v541 = vrot.slane %v540, 4
      %v543 = vshll.u32 %v248, 16
      %v545 = vrot.slane %v543, 5
      %v546 = vsel %vm340, %v541, %v545
      %v547 = vshrl.u32 %v248, 16
      %v549 = vrot.slane %v547, 4
      %v550 = vor.u32 %v549, %v545
      %v551 = vrot.slane %v550, 4
      %v553 = vshll.u32 %v249, 16
      %v555 = vrot.slane %v553, 5
      %v556 = vsel %vm340, %v551, %v555
      %v558 = vshrl.u32 %v250, 16
      %v560 = vrot.slane %v558, 4
      %v561 = vshll.u32 %v250, 16
      %v563 = vrot.slane %v561, 5
      %v564 = vor.u32 %v560, %v563
      %v565 = vrot.slane %v564, 4
      %v567 = vshll.u32 %v251, 16
      %v569 = vrot.slane %v567, 5
      %v570 = vsel %vm340, %v565, %v569
      %v571 = vshrl.u32 %v251, 16
      %v573 = vrot.slane %v571, 4
      %v574 = vor.u32 %v573, %v569
      %v575 = vrot.slane %v574, 4
      %v577 = vshll.u32 %v252, 16
      %v579 = vrot.slane %v577, 5
      %v580 = vsel %vm340, %v575, %v579
      %v582 = vshrl.u32 %v253, 16
      %v584 = vrot.slane %v582, 4
      %v585 = vshll.u32 %v253, 16
      %v587 = vrot.slane %v585, 5
      %v588 = vor.u32 %v584, %v587
      %v589 = vrot.slane %v588, 4
      %v591 = vshll.u32 %v254, 16
      %v593 = vrot.slane %v591, 5
      %v594 = vsel %vm340, %v589, %v593
      %v595 = vshrl.u32 %v254, 16
      %v597 = vrot.slane %v595, 4
      %v598 = vor.u32 %v597, %v593
      %v599 = vrot.slane %v598, 4
      %v601 = vshll.u32 %v255, 16
      %v603 = vrot.slane %v601, 5
      %v604 = vsel %vm340, %v599, %v603
      %v606 = vshrl.u32 %v256, 16
      %v608 = vrot.slane %v606, 4
      %v609 = vshll.u32 %v256, 16
      %v611 = vrot.slane %v609, 5
      %v612 = vor.u32 %v608, %v611
      %v613 = vrot.slane %v612, 4
      %v615 = vshll.u32 %v257, 16
      %v617 = vrot.slane %v615, 5
      %v618 = vsel %vm340, %v613, %v617
      %v619 = vshrl.u32 %v257, 16
      %v621 = vrot.slane %v619, 4
      %v622 = vor.u32 %v621, %v617
      %v623 = vrot.slane %v622, 4
      %v625 = vshll.u32 %v258, 16
      %v627 = vrot.slane %v625, 5
      %v628 = vsel %vm340, %v623, %v627
      %v630 = vshrl.u32 %v259, 16
      %v632 = vrot.slane %v630, 4
      %v633 = vshll.u32 %v259, 16
      %v635 = vrot.slane %v633, 5
      %v636 = vor.u32 %v632, %v635
      %v637 = vrot.slane %v636, 4
      %v639 = vshll.u32 %v260, 16
      %v641 = vrot.slane %v639, 5
      %v642 = vsel %vm340, %v637, %v641
      %v643 = vshrl.u32 %v260, 16
      %v645 = vrot.slane %v643, 4
      %v646 = vor.u32 %v645, %v641
      %v647 = vrot.slane %v646, 4
      %v649 = vshll.u32 %v261, 16
      %v651 = vrot.slane %v649, 5
      %v652 = vsel %vm340, %v647, %v651
      %v654 = vshrl.u32 %v262, 16
      %v656 = vrot.slane %v654, 4
      %v657 = vshll.u32 %v262, 16
      %v659 = vrot.slane %v657, 5
      %v660 = vor.u32 %v656, %v659
      %v661 = vrot.slane %v660, 4
      %v663 = vshll.u32 %v263, 16
      %v665 = vrot.slane %v663, 5
      %v666 = vsel %vm340, %v661, %v665
      %v667 = vshrl.u32 %v263, 16
      %v669 = vrot.slane %v667, 4
      %v670 = vor.u32 %v669, %v665
      %v671 = vrot.slane %v670, 4
      %v673 = vshll.u32 %v264, 16
      %v675 = vrot.slane %v673, 5
      %v676 = vsel %vm340, %v671, %v675
      %v678 = vshrl.u32 %v265, 16
      %v680 = vrot.slane %v678, 4
      %v681 = vshll.u32 %v265, 16
      %v683 = vrot.slane %v681, 5
      %v684 = vor.u32 %v680, %v683
      %v685 = vrot.slane %v684, 4
      %v687 = vshll.u32 %v266, 16
      %v689 = vrot.slane %v687, 5
      %v690 = vsel %vm340, %v685, %v689
      %v691 = vshrl.u32 %v266, 16
      %v693 = vrot.slane %v691, 4
      %v694 = vor.u32 %v693, %v689
      %v695 = vrot.slane %v694, 4
      %v697 = vshll.u32 %v267, 16
      %v699 = vrot.slane %v697, 5
      %v700 = vsel %vm340, %v695, %v699
      %v702 = vshrl.u32 %v268, 16
      %v704 = vrot.slane %v702, 4
      %v705 = vshll.u32 %v268, 16
      %v707 = vrot.slane %v705, 5
      %v708 = vor.u32 %v704, %v707
      %v709 = vrot.slane %v708, 4
      %v711 = vshll.u32 %v269, 16
      %v713 = vrot.slane %v711, 5
      %v714 = vsel %vm340, %v709, %v713
      %v715 = vshrl.u32 %v269, 16
      %v717 = vrot.slane %v715, 4
      %v718 = vor.u32 %v717, %v713
      %v719 = vrot.slane %v718, 4
      %v721 = vshll.u32 %v270, 16
      %v723 = vrot.slane %v721, 5
      %v724 = vsel %vm340, %v719, %v723
      %v725 = vld [vmem:[%s210 + $0x40] sm:$0xf]
      %v726 = vld [vmem:[%s210 + $0x44] sm:$0xf]
      %v727 = vld [vmem:[%s210 + $0x48] sm:$0xf]
      %v728 = vld [vmem:[%s210 + $0x4c] sm:$0xf]
      %v729 = vld [vmem:[%s210 + $0x50] sm:$0xf]
      %v730 = vld [vmem:[%s210 + $0x54] sm:$0xf]
      %v731 = vld [vmem:[%s210 + $0x58] sm:$0xf]
      %v732 = vld [vmem:[%s210 + $0x5c] sm:$0xf]
      %v733 = vunpack.c.l.b16 %v354
      %v734 = vunpack.c.l.b16 %v364
      %v735 = vunpack.c.l.b16 %v378
      %v736 = vunpack.c.l.b16 %v388
      %v737 = vunpack.c.l.b16 %v402
      %v738 = vunpack.c.l.b16 %v412
      %v739 = vunpack.c.l.b16 %v426
      %v740 = vunpack.c.l.b16 %v436
      %v741 = vunpack.c.l.b16 %v450
      %v742 = vunpack.c.l.b16 %v460
      %v743 = vunpack.c.l.b16 %v474
      %v744 = vunpack.c.l.b16 %v484
      %v745 = vunpack.c.l.b16 %v498
      %v746 = vunpack.c.l.b16 %v508
      %v747 = vunpack.c.l.b16 %v522
      %v748 = vunpack.c.l.b16 %v532
      %v749 = vunpack.c.l.b16 %v546
      %v750 = vunpack.c.l.b16 %v556
      %v751 = vunpack.c.l.b16 %v570
      %v752 = vunpack.c.l.b16 %v580
      %v753 = vunpack.c.l.b16 %v594
      %v754 = vunpack.c.l.b16 %v604
      %v755 = vunpack.c.l.b16 %v618
      %v756 = vunpack.c.l.b16 %v628
      %v757 = vunpack.c.l.b16 %v642
      %v758 = vunpack.c.l.b16 %v652
      %v759 = vunpack.c.l.b16 %v666
      %v760 = vunpack.c.l.b16 %v676
      %v761 = vunpack.c.l.b16 %v690
      %v762 = vunpack.c.l.b16 %v700
      %v763 = vunpack.c.l.b16 %v714
      %v764 = vunpack.c.l.b16 %v724
      %v765 = vpack.c.b16 %v734, %v733
      %v766 = vpack.c.b16 %v736, %v735
      %v767 = vpack.c.b16 %v738, %v737
      %v768 = vpack.c.b16 %v740, %v739
      %v769 = vpack.c.b16 %v742, %v741
      %v770 = vpack.c.b16 %v744, %v743
      %v771 = vpack.c.b16 %v746, %v745
      %v772 = vpack.c.b16 %v748, %v747
      %v773 = vpack.c.b16 %v750, %v749
      %v774 = vpack.c.b16 %v752, %v751
      %v775 = vpack.c.b16 %v754, %v753
      %v776 = vpack.c.b16 %v756, %v755
      %v777 = vpack.c.b16 %v758, %v757
      %v778 = vpack.c.b16 %v760, %v759
      %v779 = vpack.c.b16 %v762, %v761
      %v780 = vpack.c.b16 %v764, %v763
      %v789 = vunpack.c.l.b16 %v725
      %v790 = vunpack.c.l.b16 %v726
      %v791 = vunpack.c.l.b16 %v727
      %v792 = vunpack.c.l.b16 %v728
      %v793 = vunpack.c.l.b16 %v729
      %v794 = vunpack.c.l.b16 %v730
      %v795 = vunpack.c.l.b16 %v731
      %v796 = vunpack.c.l.b16 %v732
      %v797 = vpack.c.b16 %v790, %v789
      %v798 = vpack.c.b16 %v792, %v791
      %v799 = vpack.c.b16 %v794, %v793
      %v800 = vpack.c.b16 %v796, %v795
      %vm805 = vcmask 523264
      %v807 = vsel %vm805, %v765, 0
      %v810 = vsel %vm805, %v766, 0
      %v813 = vsel %vm805, %v767, 0
      %v816 = vsel %vm805, %v768, 0
      %v819 = vsel %vm805, %v769, 0
      %v822 = vsel %vm805, %v770, 0
      %v825 = vsel %vm805, %v771, 0
      %v828 = vsel %vm805, %v772, 0
      %v831 = vsel %vm805, %v773, 0
      %v834 = vsel %vm805, %v774, 0
      %v837 = vsel %vm805, %v775, 0
      %v840 = vsel %vm805, %v776, 0
      %v843 = vsel %vm805, %v777, 0
      %v846 = vsel %vm805, %v778, 0
      %v849 = vsel %vm805, %v779, 0
      %v852 = vsel %vm805, %v780, 0
      %854 = vmatprep.subr.bf16.mxu0 0
      %855 = vmatpush1.bf16.msra.mxu0 %v797
      %856 = vmatprep.subr.bf16.mxu0 0
      %857 = vmatpush1.bf16.msra.mxu0 %v798
      %858 = vmatprep.subr.bf16.mxu0 0
      %859 = vmatpush1.bf16.msra.mxu0 %v799
      %860 = vmatprep.subr.bf16.mxu0 0
      %861 = vmatpush1.bf16.msra.mxu0 %v800
      %862 = vmatprep.subr.bf16.mxu0 0
      %863 = vmatpush1.bf16.msra.mxu0 0
      %864 = vmatprep.subr.bf16.mxu0 0
      %865 = vmatpush1.bf16.msra.mxu0 0
      %866 = vmatprep.subr.bf16.mxu0 0
      %867 = vmatpush1.bf16.msra.mxu0 0
      %868 = vmatprep.subr.bf16.mxu0 0
      %869 = vmatpush1.bf16.msra.mxu0 0
      %870 = vmatprep.subr.bf16.mxu0 0
      %871 = vmatpush1.bf16.msra.mxu0 0
      %872 = vmatprep.subr.bf16.mxu0 0
      %873 = vmatpush1.bf16.msra.mxu0 0
      %874 = vmatprep.subr.bf16.mxu0 0
      %875 = vmatpush1.bf16.msra.mxu0 0
      %876 = vmatprep.subr.bf16.mxu0 0
      %877 = vmatpush1.bf16.msra.mxu0 0
      %878 = vmatprep.subr.bf16.mxu0 0
      %879 = vmatpush1.bf16.msra.mxu0 0
      %880 = vmatprep.subr.bf16.mxu0 0
      %881 = vmatpush1.bf16.msra.mxu0 0
      %882 = vmatprep.subr.bf16.mxu0 0
      %883 = vmatpush1.bf16.msra.mxu0 0
      %884 = vmatprep.subr.bf16.mxu0 0
      %885 = vmatpush1.bf16.msra.mxu0 0
      %886 = vmatprep.mubr.bf16.mxu0 0
      %887 = vmatmul.mubr.bf16.gmra.mrb[0].mxu0 %v807
      %v888 = vpop.f32.mrb[0].mxu0
      %v889 = vadd.f32 0.0, %v888
      %v890 = vpop.f32.mrb[0].mxu0
      %v891 = vpop.f32.mrb[0].mxu0
      %v892 = vadd.f32 0.0, %v891
      %v893 = vpop.f32.mrb[0].mxu0
      %894 = vmatprep.mubr.bf16.mxu0 0
      %895 = vmatmul.mubr.bf16.gmra.mrb[0].mxu0 %v810
      %v896 = vpop.f32.mrb[0].mxu0
      %v897 = vadd.f32 0.0, %v896
      %v898 = vpop.f32.mrb[0].mxu0
      %v899 = vpop.f32.mrb[0].mxu0
      %v900 = vadd.f32 0.0, %v899
      %v901 = vpop.f32.mrb[0].mxu0
      %902 = vmatprep.mubr.bf16.mxu0 0
      %903 = vmatmul.mubr.bf16.gmra.mrb[0].mxu0 %v813
      %v904 = vpop.f32.mrb[0].mxu0
      %v905 = vadd.f32 0.0, %v904
      %v906 = vpop.f32.mrb[0].mxu0
      %v907 = vpop.f32.mrb[0].mxu0
      %v908 = vadd.f32 0.0, %v907
      %v909 = vpop.f32.mrb[0].mxu0
      %910 = vmatprep.mubr.bf16.mxu0 0
      %911 = vmatmul.mubr.bf16.gmra.mrb[0].mxu0 %v816
      %v912 = vpop.f32.mrb[0].mxu0
      %v913 = vadd.f32 0.0, %v912
      %v914 = vpop.f32.mrb[0].mxu0
      %v915 = vpop.f32.mrb[0].mxu0
      %v916 = vadd.f32 0.0, %v915
      %v917 = vpop.f32.mrb[0].mxu0
      %918 = vmatprep.mubr.bf16.mxu0 0
      %919 = vmatmul.mubr.bf16.gmra.mrb[0].mxu0 %v819
      %v920 = vpop.f32.mrb[0].mxu0
      %v921 = vadd.f32 0.0, %v920
      %v922 = vpop.f32.mrb[0].mxu0
      %v923 = vpop.f32.mrb[0].mxu0
      %v924 = vadd.f32 0.0, %v923
      %v925 = vpop.f32.mrb[0].mxu0
      %926 = vmatprep.mubr.bf16.mxu0 0
      %927 = vmatmul.mubr.bf16.gmra.mrb[0].mxu0 %v822
      %v928 = vpop.f32.mrb[0].mxu0
      %v929 = vadd.f32 0.0, %v928
      %v930 = vpop.f32.mrb[0].mxu0
      %v931 = vpop.f32.mrb[0].mxu0
      %v932 = vadd.f32 0.0, %v931
      %v933 = vpop.f32.mrb[0].mxu0
      %934 = vmatprep.mubr.bf16.mxu0 0
      %935 = vmatmul.mubr.bf16.gmra.mrb[0].mxu0 %v825
      %v936 = vpop.f32.mrb[0].mxu0
      %v937 = vadd.f32 0.0, %v936
      %v938 = vpop.f32.mrb[0].mxu0
      %v939 = vpop.f32.mrb[0].mxu0
      %v940 = vadd.f32 0.0, %v939
      %v941 = vpop.f32.mrb[0].mxu0
      %942 = vmatprep.mubr.bf16.mxu0 0
      %943 = vmatmul.mubr.bf16.gmra.mrb[0].mxu0 %v828
      %v944 = vpop.f32.mrb[0].mxu0
      %v945 = vadd.f32 0.0, %v944
      %v946 = vpop.f32.mrb[0].mxu0
      %v947 = vpop.f32.mrb[0].mxu0
      %v948 = vadd.f32 0.0, %v947
      %v949 = vpop.f32.mrb[0].mxu0
      %950 = vmatprep.mubr.bf16.mxu0 0
      %951 = vmatmul.mubr.bf16.gmra.mrb[0].mxu0 %v831
      %v952 = vpop.f32.mrb[0].mxu0
      %v953 = vadd.f32 0.0, %v952
      %v954 = vpop.f32.mrb[0].mxu0
      %v955 = vpop.f32.mrb[0].mxu0
      %v956 = vadd.f32 0.0, %v955
      %v957 = vpop.f32.mrb[0].mxu0
      %958 = vmatprep.mubr.bf16.mxu0 0
      %959 = vmatmul.mubr.bf16.gmra.mrb[0].mxu0 %v834
      %v960 = vpop.f32.mrb[0].mxu0
      %v961 = vadd.f32 0.0, %v960
      %v962 = vpop.f32.mrb[0].mxu0
      %v963 = vpop.f32.mrb[0].mxu0
      %v964 = vadd.f32 0.0, %v963
      %v965 = vpop.f32.mrb[0].mxu0
      %966 = vmatprep.mubr.bf16.mxu0 0
      %967 = vmatmul.mubr.bf16.gmra.mrb[0].mxu0 %v837
      %v968 = vpop.f32.mrb[0].mxu0
      %v969 = vadd.f32 0.0, %v968
      %v970 = vpop.f32.mrb[0].mxu0
      %v971 = vpop.f32.mrb[0].mxu0
      %v972 = vadd.f32 0.0, %v971
      %v973 = vpop.f32.mrb[0].mxu0
      %974 = vmatprep.mubr.bf16.mxu0 0
      %975 = vmatmul.mubr.bf16.gmra.mrb[0].mxu0 %v840
      %v976 = vpop.f32.mrb[0].mxu0
      %v977 = vadd.f32 0.0, %v976
      %v978 = vpop.f32.mrb[0].mxu0
      %v979 = vpop.f32.mrb[0].mxu0
      %v980 = vadd.f32 0.0, %v979
      %v981 = vpop.f32.mrb[0].mxu0
      %982 = vmatprep.mubr.bf16.mxu0 0
      %983 = vmatmul.mubr.bf16.gmra.mrb[0].mxu0 %v843
      %v984 = vpop.f32.mrb[0].mxu0
      %v985 = vadd.f32 0.0, %v984
      %v986 = vpop.f32.mrb[0].mxu0
      %v987 = vpop.f32.mrb[0].mxu0
      %v988 = vadd.f32 0.0, %v987
      %v989 = vpop.f32.mrb[0].mxu0
      %990 = vmatprep.mubr.bf16.mxu0 0
      %991 = vmatmul.mubr.bf16.gmra.mrb[0].mxu0 %v846
      %v992 = vpop.f32.mrb[0].mxu0
      %v993 = vadd.f32 0.0, %v992
      %v994 = vpop.f32.mrb[0].mxu0
      %v995 = vpop.f32.mrb[0].mxu0
      %v996 = vadd.f32 0.0, %v995
      %v997 = vpop.f32.mrb[0].mxu0
      %998 = vmatprep.mubr.bf16.mxu0 0
      %999 = vmatmul.mubr.bf16.gmra.mrb[0].mxu0 %v849
      %v1000 = vpop.f32.mrb[0].mxu0
      %v1001 = vadd.f32 0.0, %v1000
      %v1002 = vpop.f32.mrb[0].mxu0
      %v1003 = vpop.f32.mrb[0].mxu0
      %v1004 = vadd.f32 0.0, %v1003
      %v1005 = vpop.f32.mrb[0].mxu0
      %1006 = vmatprep.mubr.bf16.mxu0 0
      %1007 = vmatmul.mubr.bf16.gmra.mrb[0].mxu0 %v852
      %v1008 = vpop.f32.mrb[0].mxu0
      %v1009 = vadd.f32 0.0, %v1008
      %v1010 = vpop.f32.mrb[0].mxu0
      %v1011 = vpop.f32.mrb[0].mxu0
      %v1012 = vadd.f32 0.0, %v1011
      %v1013 = vpop.f32.mrb[0].mxu0
      %1014 = vdwg.mxu0
      %v1047 = vunpack.c.l.b16 %v223
      %v1048 = vunpack.c.l.b16 %v224
      %v1049 = vunpack.c.l.b16 %v226
      %v1050 = vunpack.c.l.b16 %v227
      %v1051 = vunpack.c.l.b16 %v229
      %v1052 = vunpack.c.l.b16 %v230
      %v1053 = vunpack.c.l.b16 %v232
      %v1054 = vunpack.c.l.b16 %v233
      %v1055 = vunpack.c.l.b16 %v235
      %v1056 = vunpack.c.l.b16 %v236
      %v1057 = vunpack.c.l.b16 %v238
      %v1058 = vunpack.c.l.b16 %v239
      %v1059 = vunpack.c.l.b16 %v241
      %v1060 = vunpack.c.l.b16 %v242
      %v1061 = vunpack.c.l.b16 %v244
      %v1062 = vunpack.c.l.b16 %v245
      %v1063 = vunpack.c.l.b16 %v247
      %v1064 = vunpack.c.l.b16 %v248
      %v1065 = vunpack.c.l.b16 %v250
      %v1066 = vunpack.c.l.b16 %v251
      %v1067 = vunpack.c.l.b16 %v253
      %v1068 = vunpack.c.l.b16 %v254
      %v1069 = vunpack.c.l.b16 %v256
      %v1070 = vunpack.c.l.b16 %v257
      %v1071 = vunpack.c.l.b16 %v259
      %v1072 = vunpack.c.l.b16 %v260
      %v1073 = vunpack.c.l.b16 %v262
      %v1074 = vunpack.c.l.b16 %v263
      %v1075 = vunpack.c.l.b16 %v265
      %v1076 = vunpack.c.l.b16 %v266
      %v1077 = vunpack.c.l.b16 %v268
      %v1078 = vunpack.c.l.b16 %v269
      %v1079 = vpack.c.b16 %v1048, %v1047
      %v1080 = vpack.c.b16 %v1050, %v1049
      %v1081 = vpack.c.b16 %v1052, %v1051
      %v1082 = vpack.c.b16 %v1054, %v1053
      %v1083 = vpack.c.b16 %v1056, %v1055
      %v1084 = vpack.c.b16 %v1058, %v1057
      %v1085 = vpack.c.b16 %v1060, %v1059
      %v1086 = vpack.c.b16 %v1062, %v1061
      %v1087 = vpack.c.b16 %v1064, %v1063
      %v1088 = vpack.c.b16 %v1066, %v1065
      %v1089 = vpack.c.b16 %v1068, %v1067
      %v1090 = vpack.c.b16 %v1070, %v1069
      %v1091 = vpack.c.b16 %v1072, %v1071
      %v1092 = vpack.c.b16 %v1074, %v1073
      %v1093 = vpack.c.b16 %v1076, %v1075
      %v1094 = vpack.c.b16 %v1078, %v1077
      %v1127 = vunpack.c.l.b16 %v322
      %v1128 = vunpack.c.l.b16 %v323
      %v1129 = vunpack.c.l.b16 %v324
      %v1130 = vunpack.c.l.b16 %v325
      %v1131 = vunpack.c.l.b16 %v326
      %v1132 = vunpack.c.l.b16 %v327
      %v1133 = vunpack.c.l.b16 %v328
      %v1134 = vunpack.c.l.b16 %v329
      %v1135 = vunpack.c.l.b16 %v330
      %v1136 = vunpack.c.l.b16 %v331
      %v1137 = vunpack.c.l.b16 %v332
      %v1138 = vunpack.c.l.b16 %v333
      %v1139 = vunpack.c.l.b16 %v334
      %v1140 = vunpack.c.l.b16 %v335
      %v1141 = vunpack.c.l.b16 %v336
      %v1142 = vunpack.c.l.b16 %v337
      %v1143 = vpack.c.b16 %v1128, %v1127
      %v1144 = vpack.c.b16 %v1130, %v1129
      %v1145 = vpack.c.b16 %v1132, %v1131
      %v1146 = vpack.c.b16 %v1134, %v1133
      %v1147 = vpack.c.b16 %v1136, %v1135
      %v1148 = vpack.c.b16 %v1138, %v1137
      %v1149 = vpack.c.b16 %v1140, %v1139
      %v1150 = vpack.c.b16 %v1142, %v1141
      %1159 = vmatprep.subr.bf16.mxu0 0
      %1160 = vmatpush1.bf16.msra.mxu0 %v1143
      %1161 = vmatprep.subr.bf16.mxu0 0
      %1162 = vmatpush1.bf16.msra.mxu0 %v1144
      %1163 = vmatprep.subr.bf16.mxu0 0
      %1164 = vmatpush1.bf16.msra.mxu0 %v1145
      %1165 = vmatprep.subr.bf16.mxu0 0
      %1166 = vmatpush1.bf16.msra.mxu0 %v1146
      %1167 = vmatprep.subr.bf16.mxu0 0
      %1168 = vmatpush1.bf16.msra.mxu0 %v1147
      %1169 = vmatprep.subr.bf16.mxu0 0
      %1170 = vmatpush1.bf16.msra.mxu0 %v1148
      %1171 = vmatprep.subr.bf16.mxu0 0
      %1172 = vmatpush1.bf16.msra.mxu0 %v1149
      %1173 = vmatprep.subr.bf16.mxu0 0
      %1174 = vmatpush1.bf16.msra.mxu0 %v1150
      %1175 = vmatprep.subr.bf16.mxu0 0
      %1176 = vmatpush1.bf16.msra.mxu0 0
      %1177 = vmatprep.subr.bf16.mxu0 0
      %1178 = vmatpush1.bf16.msra.mxu0 0
      %1179 = vmatprep.subr.bf16.mxu0 0
      %1180 = vmatpush1.bf16.msra.mxu0 0
      %1181 = vmatprep.subr.bf16.mxu0 0
      %1182 = vmatpush1.bf16.msra.mxu0 0
      %1183 = vmatprep.subr.bf16.mxu0 0
      %1184 = vmatpush1.bf16.msra.mxu0 0
      %1185 = vmatprep.subr.bf16.mxu0 0
      %1186 = vmatpush1.bf16.msra.mxu0 0
      %1187 = vmatprep.subr.bf16.mxu0 0
      %1188 = vmatpush1.bf16.msra.mxu0 0
      %1189 = vmatprep.subr.bf16.mxu0 0
      %1190 = vmatpush1.bf16.msra.mxu0 0
      %1191 = vmatprep.mubr.bf16.mxu0 0
      %1192 = vmatmul.mubr.bf16.gmra.mrb[0].mxu0 %v1079
      %v1193 = vpop.f32.mrb[0].mxu0
      %v1194 = vadd.f32 %v889, %v1193
      %v1195 = vpop.f32.mrb[0].mxu0
      %v1196 = vpop.f32.mrb[0].mxu0
      %v1197 = vadd.f32 %v892, %v1196
      %v1198 = vpop.f32.mrb[0].mxu0
      %1199 = vmatprep.mubr.bf16.mxu0 0
      %1200 = vmatmul.mubr.bf16.gmra.mrb[0].mxu0 %v1080
      %v1201 = vpop.f32.mrb[0].mxu0
      %v1202 = vadd.f32 %v897, %v1201
      %v1203 = vpop.f32.mrb[0].mxu0
      %v1204 = vpop.f32.mrb[0].mxu0
      %v1205 = vadd.f32 %v900, %v1204
      %v1206 = vpop.f32.mrb[0].mxu0
      %1207 = vmatprep.mubr.bf16.mxu0 0
      %1208 = vmatmul.mubr.bf16.gmra.mrb[0].mxu0 %v1081
      %v1209 = vpop.f32.mrb[0].mxu0
      %v1210 = vadd.f32 %v905, %v1209
      %v1211 = vpop.f32.mrb[0].mxu0
      %v1212 = vpop.f32.mrb[0].mxu0
      %v1213 = vadd.f32 %v908, %v1212
      %v1214 = vpop.f32.mrb[0].mxu0
      %1215 = vmatprep.mubr.bf16.mxu0 0
      %1216 = vmatmul.mubr.bf16.gmra.mrb[0].mxu0 %v1082
      %v1217 = vpop.f32.mrb[0].mxu0
      %v1218 = vadd.f32 %v913, %v1217
      %v1219 = vpop.f32.mrb[0].mxu0
      %v1220 = vpop.f32.mrb[0].mxu0
      %v1221 = vadd.f32 %v916, %v1220
      %v1222 = vpop.f32.mrb[0].mxu0
      %1223 = vmatprep.mubr.bf16.mxu0 0
      %1224 = vmatmul.mubr.bf16.gmra.mrb[0].mxu0 %v1083
      %v1225 = vpop.f32.mrb[0].mxu0
      %v1226 = vadd.f32 %v921, %v1225
      %v1227 = vpop.f32.mrb[0].mxu0
      %v1228 = vpop.f32.mrb[0].mxu0
      %v1229 = vadd.f32 %v924, %v1228
      %v1230 = vpop.f32.mrb[0].mxu0
      %1231 = vmatprep.mubr.bf16.mxu0 0
      %1232 = vmatmul.mubr.bf16.gmra.mrb[0].mxu0 %v1084
      %v1233 = vpop.f32.mrb[0].mxu0
      %v1234 = vadd.f32 %v929, %v1233
      %v1235 = vpop.f32.mrb[0].mxu0
      %v1236 = vpop.f32.mrb[0].mxu0
      %v1237 = vadd.f32 %v932, %v1236
      %v1238 = vpop.f32.mrb[0].mxu0
      %1239 = vmatprep.mubr.bf16.mxu0 0
      %1240 = vmatmul.mubr.bf16.gmra.mrb[0].mxu0 %v1085
      %v1241 = vpop.f32.mrb[0].mxu0
      %v1242 = vadd.f32 %v937, %v1241
      %v1243 = vpop.f32.mrb[0].mxu0
      %v1244 = vpop.f32.mrb[0].mxu0
      %v1245 = vadd.f32 %v940, %v1244
      %v1246 = vpop.f32.mrb[0].mxu0
      %1247 = vmatprep.mubr.bf16.mxu0 0
      %1248 = vmatmul.mubr.bf16.gmra.mrb[0].mxu0 %v1086
      %v1249 = vpop.f32.mrb[0].mxu0
      %v1250 = vadd.f32 %v945, %v1249
      %v1251 = vpop.f32.mrb[0].mxu0
      %v1252 = vpop.f32.mrb[0].mxu0
      %v1253 = vadd.f32 %v948, %v1252
      %v1254 = vpop.f32.mrb[0].mxu0
      %1255 = vmatprep.mubr.bf16.mxu0 0
      %1256 = vmatmul.mubr.bf16.gmra.mrb[0].mxu0 %v1087
      %v1257 = vpop.f32.mrb[0].mxu0
      %v1258 = vadd.f32 %v953, %v1257
      %v1259 = vpop.f32.mrb[0].mxu0
      %v1260 = vpop.f32.mrb[0].mxu0
      %v1261 = vadd.f32 %v956, %v1260
      %v1262 = vpop.f32.mrb[0].mxu0
      %1263 = vmatprep.mubr.bf16.mxu0 0
      %1264 = vmatmul.mubr.bf16.gmra.mrb[0].mxu0 %v1088
      %v1265 = vpop.f32.mrb[0].mxu0
      %v1266 = vadd.f32 %v961, %v1265
      %v1267 = vpop.f32.mrb[0].mxu0
      %v1268 = vpop.f32.mrb[0].mxu0
      %v1269 = vadd.f32 %v964, %v1268
      %v1270 = vpop.f32.mrb[0].mxu0
      %1271 = vmatprep.mubr.bf16.mxu0 0
      %1272 = vmatmul.mubr.bf16.gmra.mrb[0].mxu0 %v1089
      %v1273 = vpop.f32.mrb[0].mxu0
      %v1274 = vadd.f32 %v969, %v1273
      %v1275 = vpop.f32.mrb[0].mxu0
      %v1276 = vpop.f32.mrb[0].mxu0
      %v1277 = vadd.f32 %v972, %v1276
      %v1278 = vpop.f32.mrb[0].mxu0
      %1279 = vmatprep.mubr.bf16.mxu0 0
      %1280 = vmatmul.mubr.bf16.gmra.mrb[0].mxu0 %v1090
      %v1281 = vpop.f32.mrb[0].mxu0
      %v1282 = vadd.f32 %v977, %v1281
      %v1283 = vpop.f32.mrb[0].mxu0
      %v1284 = vpop.f32.mrb[0].mxu0
      %v1285 = vadd.f32 %v980, %v1284
      %v1286 = vpop.f32.mrb[0].mxu0
      %1287 = vmatprep.mubr.bf16.mxu0 0
      %1288 = vmatmul.mubr.bf16.gmra.mrb[0].mxu0 %v1091
      %v1289 = vpop.f32.mrb[0].mxu0
      %v1290 = vadd.f32 %v985, %v1289
      %v1291 = vpop.f32.mrb[0].mxu0
      %v1292 = vpop.f32.mrb[0].mxu0
      %v1293 = vadd.f32 %v988, %v1292
      %v1294 = vpop.f32.mrb[0].mxu0
      %1295 = vmatprep.mubr.bf16.mxu0 0
      %1296 = vmatmul.mubr.bf16.gmra.mrb[0].mxu0 %v1092
      %v1297 = vpop.f32.mrb[0].mxu0
      %v1298 = vadd.f32 %v993, %v1297
      %v1299 = vpop.f32.mrb[0].mxu0
      %v1300 = vpop.f32.mrb[0].mxu0
      %v1301 = vadd.f32 %v996, %v1300
      %v1302 = vpop.f32.mrb[0].mxu0
      %1303 = vmatprep.mubr.bf16.mxu0 0
      %1304 = vmatmul.mubr.bf16.gmra.mrb[0].mxu0 %v1093
      %v1305 = vpop.f32.mrb[0].mxu0
      %v1306 = vadd.f32 %v1001, %v1305
      %v1307 = vpop.f32.mrb[0].mxu0
      %v1308 = vpop.f32.mrb[0].mxu0
      %v1309 = vadd.f32 %v1004, %v1308
      %v1310 = vpop.f32.mrb[0].mxu0
      %1311 = vmatprep.mubr.bf16.mxu0 0
      %1312 = vmatmul.mubr.bf16.gmra.mrb[0].mxu0 %v1094
      %v1313 = vpop.f32.mrb[0].mxu0
      %v1314 = vadd.f32 %v1009, %v1313
      %v1315 = vpop.f32.mrb[0].mxu0
      %v1316 = vpop.f32.mrb[0].mxu0
      %v1317 = vadd.f32 %v1012, %v1316
      %v1318 = vpop.f32.mrb[0].mxu0
      %1319 = vdwg.mxu0
      %v1320 = vld [vmem:[%s210 + $0x60] sm:$0xf]
      %v1321 = vld [vmem:[%s210 + $0x64] sm:$0xf]
      %v1322 = vld [vmem:[%s210 + $0x68] sm:$0xf]
      %v1323 = vld [vmem:[%s210 + $0x6c] sm:$0xf]
      %v1324 = vld [vmem:[%s210 + $0x70] sm:$0xf]
      %v1325 = vld [vmem:[%s210 + $0x74] sm:$0xf]
      %v1326 = vld [vmem:[%s210 + $0x78] sm:$0xf]
      %v1327 = vld [vmem:[%s210 + $0x7c] sm:$0xf]
      %v1328 = vld [vmem:[%s210 + $0x80] sm:$0xf]
      %v1329 = vld [vmem:[%s210 + $0x84] sm:$0xf]
      %v1330 = vld [vmem:[%s210 + $0x88] sm:$0xf]
      %v1331 = vld [vmem:[%s210 + $0x8c] sm:$0xf]
      %v1332 = vld [vmem:[%s210 + $0x90] sm:$0xf]
      %v1333 = vld [vmem:[%s210 + $0x94] sm:$0xf]
      %v1334 = vld [vmem:[%s210 + $0x98] sm:$0xf]
      %v1335 = vld [vmem:[%s210 + $0x9c] sm:$0xf]
      %v1368 = vunpack.c.l.b16 %v274
      %v1369 = vunpack.c.l.b16 %v275
      %v1370 = vunpack.c.l.b16 %v277
      %v1371 = vunpack.c.l.b16 %v278
      %v1372 = vunpack.c.l.b16 %v280
      %v1373 = vunpack.c.l.b16 %v281
      %v1374 = vunpack.c.l.b16 %v283
      %v1375 = vunpack.c.l.b16 %v284
      %v1376 = vunpack.c.l.b16 %v286
      %v1377 = vunpack.c.l.b16 %v287
      %v1378 = vunpack.c.l.b16 %v289
      %v1379 = vunpack.c.l.b16 %v290
      %v1380 = vunpack.c.l.b16 %v292
      %v1381 = vunpack.c.l.b16 %v293
      %v1382 = vunpack.c.l.b16 %v295
      %v1383 = vunpack.c.l.b16 %v296
      %v1384 = vunpack.c.l.b16 %v298
      %v1385 = vunpack.c.l.b16 %v299
      %v1386 = vunpack.c.l.b16 %v301
      %v1387 = vunpack.c.l.b16 %v302
      %v1388 = vunpack.c.l.b16 %v304
      %v1389 = vunpack.c.l.b16 %v305
      %v1390 = vunpack.c.l.b16 %v307
      %v1391 = vunpack.c.l.b16 %v308
      %v1392 = vunpack.c.l.b16 %v310
      %v1393 = vunpack.c.l.b16 %v311
      %v1394 = vunpack.c.l.b16 %v313
      %v1395 = vunpack.c.l.b16 %v314
      %v1396 = vunpack.c.l.b16 %v316
      %v1397 = vunpack.c.l.b16 %v317
      %v1398 = vunpack.c.l.b16 %v319
      %v1399 = vunpack.c.l.b16 %v320
      %v1400 = vpack.c.b16 %v1369, %v1368
      %v1401 = vpack.c.b16 %v1371, %v1370
      %v1402 = vpack.c.b16 %v1373, %v1372
      %v1403 = vpack.c.b16 %v1375, %v1374
      %v1404 = vpack.c.b16 %v1377, %v1376
      %v1405 = vpack.c.b16 %v1379, %v1378
      %v1406 = vpack.c.b16 %v1381, %v1380
      %v1407 = vpack.c.b16 %v1383, %v1382
      %v1408 = vpack.c.b16 %v1385, %v1384
      %v1409 = vpack.c.b16 %v1387, %v1386
      %v1410 = vpack.c.b16 %v1389, %v1388
      %v1411 = vpack.c.b16 %v1391, %v1390
      %v1412 = vpack.c.b16 %v1393, %v1392
      %v1413 = vpack.c.b16 %v1395, %v1394
      %v1414 = vpack.c.b16 %v1397, %v1396
      %v1415 = vpack.c.b16 %v1399, %v1398
      %v1448 = vunpack.c.l.b16 %v1320
      %v1449 = vunpack.c.l.b16 %v1321
      %v1450 = vunpack.c.l.b16 %v1322
      %v1451 = vunpack.c.l.b16 %v1323
      %v1452 = vunpack.c.l.b16 %v1324
      %v1453 = vunpack.c.l.b16 %v1325
      %v1454 = vunpack.c.l.b16 %v1326
      %v1455 = vunpack.c.l.b16 %v1327
      %v1456 = vunpack.c.l.b16 %v1328
      %v1457 = vunpack.c.l.b16 %v1329
      %v1458 = vunpack.c.l.b16 %v1330
      %v1459 = vunpack.c.l.b16 %v1331
      %v1460 = vunpack.c.l.b16 %v1332
      %v1461 = vunpack.c.l.b16 %v1333
      %v1462 = vunpack.c.l.b16 %v1334
      %v1463 = vunpack.c.l.b16 %v1335
      %v1464 = vpack.c.b16 %v1449, %v1448
      %v1465 = vpack.c.b16 %v1451, %v1450
      %v1466 = vpack.c.b16 %v1453, %v1452
      %v1467 = vpack.c.b16 %v1455, %v1454
      %v1468 = vpack.c.b16 %v1457, %v1456
      %v1469 = vpack.c.b16 %v1459, %v1458
      %v1470 = vpack.c.b16 %v1461, %v1460
      %v1471 = vpack.c.b16 %v1463, %v1462
      %1480 = vmatprep.subr.bf16.mxu0 0
      %1481 = vmatpush1.bf16.msra.mxu0 %v1464
      %1482 = vmatprep.subr.bf16.mxu0 0
      %1483 = vmatpush1.bf16.msra.mxu0 %v1465
      %1484 = vmatprep.subr.bf16.mxu0 0
      %1485 = vmatpush1.bf16.msra.mxu0 %v1466
      %1486 = vmatprep.subr.bf16.mxu0 0
      %1487 = vmatpush1.bf16.msra.mxu0 %v1467
      %1488 = vmatprep.subr.bf16.mxu0 0
      %1489 = vmatpush1.bf16.msra.mxu0 %v1468
      %1490 = vmatprep.subr.bf16.mxu0 0
      %1491 = vmatpush1.bf16.msra.mxu0 %v1469
      %1492 = vmatprep.subr.bf16.mxu0 0
      %1493 = vmatpush1.bf16.msra.mxu0 %v1470
      %1494 = vmatprep.subr.bf16.mxu0 0
      %1495 = vmatpush1.bf16.msra.mxu0 %v1471
      %1496 = vmatprep.subr.bf16.mxu0 0
      %1497 = vmatpush1.bf16.msra.mxu0 0
      %1498 = vmatprep.subr.bf16.mxu0 0
      %1499 = vmatpush1.bf16.msra.mxu0 0
      %1500 = vmatprep.subr.bf16.mxu0 0
      %1501 = vmatpush1.bf16.msra.mxu0 0
      %1502 = vmatprep.subr.bf16.mxu0 0
      %1503 = vmatpush1.bf16.msra.mxu0 0
      %1504 = vmatprep.subr.bf16.mxu0 0
      %1505 = vmatpush1.bf16.msra.mxu0 0
      %1506 = vmatprep.subr.bf16.mxu0 0
      %1507 = vmatpush1.bf16.msra.mxu0 0
      %1508 = vmatprep.subr.bf16.mxu0 0
      %1509 = vmatpush1.bf16.msra.mxu0 0
      %1510 = vmatprep.subr.bf16.mxu0 0
      %1511 = vmatpush1.bf16.msra.mxu0 0
      %1512 = vmatprep.mubr.bf16.mxu0 0
      %1513 = vmatmul.mubr.bf16.gmra.mrb[0].mxu0 %v1400
      %v1514 = vpop.f32.mrb[0].mxu0
      %v1515 = vadd.f32 0.0, %v1514
      %v1516 = vpop.f32.mrb[0].mxu0
      %v1517 = vpop.f32.mrb[0].mxu0
      %v1518 = vadd.f32 0.0, %v1517
      %v1519 = vpop.f32.mrb[0].mxu0
      %1520 = vmatprep.mubr.bf16.mxu0 0
      %1521 = vmatmul.mubr.bf16.gmra.mrb[0].mxu0 %v1401
      %v1522 = vpop.f32.mrb[0].mxu0
      %v1523 = vadd.f32 0.0, %v1522
      %v1524 = vpop.f32.mrb[0].mxu0
      %v1525 = vpop.f32.mrb[0].mxu0
      %v1526 = vadd.f32 0.0, %v1525
      %v1527 = vpop.f32.mrb[0].mxu0
      %1528 = vmatprep.mubr.bf16.mxu0 0
      %1529 = vmatmul.mubr.bf16.gmra.mrb[0].mxu0 %v1402
      %v1530 = vpop.f32.mrb[0].mxu0
      %v1531 = vadd.f32 0.0, %v1530
      %v1532 = vpop.f32.mrb[0].mxu0
      %v1533 = vpop.f32.mrb[0].mxu0
      %v1534 = vadd.f32 0.0, %v1533
      %v1535 = vpop.f32.mrb[0].mxu0
      %1536 = vmatprep.mubr.bf16.mxu0 0
      %1537 = vmatmul.mubr.bf16.gmra.mrb[0].mxu0 %v1403
      %v1538 = vpop.f32.mrb[0].mxu0
      %v1539 = vadd.f32 0.0, %v1538
      %v1540 = vpop.f32.mrb[0].mxu0
      %v1541 = vpop.f32.mrb[0].mxu0
      %v1542 = vadd.f32 0.0, %v1541
      %v1543 = vpop.f32.mrb[0].mxu0
      %1544 = vmatprep.mubr.bf16.mxu0 0
      %1545 = vmatmul.mubr.bf16.gmra.mrb[0].mxu0 %v1404
      %v1546 = vpop.f32.mrb[0].mxu0
      %v1547 = vadd.f32 0.0, %v1546
      %v1548 = vpop.f32.mrb[0].mxu0
      %v1549 = vpop.f32.mrb[0].mxu0
      %v1550 = vadd.f32 0.0, %v1549
      %v1551 = vpop.f32.mrb[0].mxu0
      %1552 = vmatprep.mubr.bf16.mxu0 0
      %1553 = vmatmul.mubr.bf16.gmra.mrb[0].mxu0 %v1405
      %v1554 = vpop.f32.mrb[0].mxu0
      %v1555 = vadd.f32 0.0, %v1554
      %v1556 = vpop.f32.mrb[0].mxu0
      %v1557 = vpop.f32.mrb[0].mxu0
      %v1558 = vadd.f32 0.0, %v1557
      %v1559 = vpop.f32.mrb[0].mxu0
      %1560 = vmatprep.mubr.bf16.mxu0 0
      %1561 = vmatmul.mubr.bf16.gmra.mrb[0].mxu0 %v1406
      %v1562 = vpop.f32.mrb[0].mxu0
      %v1563 = vadd.f32 0.0, %v1562
      %v1564 = vpop.f32.mrb[0].mxu0
      %v1565 = vpop.f32.mrb[0].mxu0
      %v1566 = vadd.f32 0.0, %v1565
      %v1567 = vpop.f32.mrb[0].mxu0
      %1568 = vmatprep.mubr.bf16.mxu0 0
      %1569 = vmatmul.mubr.bf16.gmra.mrb[0].mxu0 %v1407
      %v1570 = vpop.f32.mrb[0].mxu0
      %v1571 = vadd.f32 0.0, %v1570
      %v1572 = vpop.f32.mrb[0].mxu0
      %v1573 = vpop.f32.mrb[0].mxu0
      %v1574 = vadd.f32 0.0, %v1573
      %v1575 = vpop.f32.mrb[0].mxu0
      %1576 = vmatprep.mubr.bf16.mxu0 0
      %1577 = vmatmul.mubr.bf16.gmra.mrb[0].mxu0 %v1408
      %v1578 = vpop.f32.mrb[0].mxu0
      %v1579 = vadd.f32 0.0, %v1578
      %v1580 = vpop.f32.mrb[0].mxu0
      %v1581 = vpop.f32.mrb[0].mxu0
      %v1582 = vadd.f32 0.0, %v1581
      %v1583 = vpop.f32.mrb[0].mxu0
      %1584 = vmatprep.mubr.bf16.mxu0 0
      %1585 = vmatmul.mubr.bf16.gmra.mrb[0].mxu0 %v1409
      %v1586 = vpop.f32.mrb[0].mxu0
      %v1587 = vadd.f32 0.0, %v1586
      %v1588 = vpop.f32.mrb[0].mxu0
      %v1589 = vpop.f32.mrb[0].mxu0
      %v1590 = vadd.f32 0.0, %v1589
      %v1591 = vpop.f32.mrb[0].mxu0
      %1592 = vmatprep.mubr.bf16.mxu0 0
      %1593 = vmatmul.mubr.bf16.gmra.mrb[0].mxu0 %v1410
      %v1594 = vpop.f32.mrb[0].mxu0
      %v1595 = vadd.f32 0.0, %v1594
      %v1596 = vpop.f32.mrb[0].mxu0
      %v1597 = vpop.f32.mrb[0].mxu0
      %v1598 = vadd.f32 0.0, %v1597
      %v1599 = vpop.f32.mrb[0].mxu0
      %1600 = vmatprep.mubr.bf16.mxu0 0
      %1601 = vmatmul.mubr.bf16.gmra.mrb[0].mxu0 %v1411
      %v1602 = vpop.f32.mrb[0].mxu0
      %v1603 = vadd.f32 0.0, %v1602
      %v1604 = vpop.f32.mrb[0].mxu0
      %v1605 = vpop.f32.mrb[0].mxu0
      %v1606 = vadd.f32 0.0, %v1605
      %v1607 = vpop.f32.mrb[0].mxu0
      %1608 = vmatprep.mubr.bf16.mxu0 0
      %1609 = vmatmul.mubr.bf16.gmra.mrb[0].mxu0 %v1412
      %v1610 = vpop.f32.mrb[0].mxu0
      %v1611 = vadd.f32 0.0, %v1610
      %v1612 = vpop.f32.mrb[0].mxu0
      %v1613 = vpop.f32.mrb[0].mxu0
      %v1614 = vadd.f32 0.0, %v1613
      %v1615 = vpop.f32.mrb[0].mxu0
      %1616 = vmatprep.mubr.bf16.mxu0 0
      %1617 = vmatmul.mubr.bf16.gmra.mrb[0].mxu0 %v1413
      %v1618 = vpop.f32.mrb[0].mxu0
      %v1619 = vadd.f32 0.0, %v1618
      %v1620 = vpop.f32.mrb[0].mxu0
      %v1621 = vpop.f32.mrb[0].mxu0
      %v1622 = vadd.f32 0.0, %v1621
      %v1623 = vpop.f32.mrb[0].mxu0
      %1624 = vmatprep.mubr.bf16.mxu0 0
      %1625 = vmatmul.mubr.bf16.gmra.mrb[0].mxu0 %v1414
      %v1626 = vpop.f32.mrb[0].mxu0
      %v1627 = vadd.f32 0.0, %v1626
      %v1628 = vpop.f32.mrb[0].mxu0
      %v1629 = vpop.f32.mrb[0].mxu0
      %v1630 = vadd.f32 0.0, %v1629
      %v1631 = vpop.f32.mrb[0].mxu0
      %1632 = vmatprep.mubr.bf16.mxu0 0
      %1633 = vmatmul.mubr.bf16.gmra.mrb[0].mxu0 %v1415
      %v1634 = vpop.f32.mrb[0].mxu0
      %v1635 = vadd.f32 0.0, %v1634
      %v1636 = vpop.f32.mrb[0].mxu0
      %v1637 = vpop.f32.mrb[0].mxu0
      %v1638 = vadd.f32 0.0, %v1637
      %v1639 = vpop.f32.mrb[0].mxu0
      %1640 = vdwg.mxu0
      %v1641 = vadd.f32 %v1194, %v1515
      %v1642 = vadd.f32 %v1197, %v1518
      %v1643 = vadd.f32 %v1202, %v1523
      %v1644 = vadd.f32 %v1205, %v1526
      %v1645 = vadd.f32 %v1210, %v1531
      %v1646 = vadd.f32 %v1213, %v1534
      %v1647 = vadd.f32 %v1218, %v1539
      %v1648 = vadd.f32 %v1221, %v1542
      %v1649 = vadd.f32 %v1226, %v1547
      %v1650 = vadd.f32 %v1229, %v1550
      %v1651 = vadd.f32 %v1234, %v1555
      %v1652 = vadd.f32 %v1237, %v1558
      %v1653 = vadd.f32 %v1242, %v1563
      %v1654 = vadd.f32 %v1245, %v1566
      %v1655 = vadd.f32 %v1250, %v1571
      %v1656 = vadd.f32 %v1253, %v1574
      %v1657 = vadd.f32 %v1258, %v1579
      %v1658 = vadd.f32 %v1261, %v1582
      %v1659 = vadd.f32 %v1266, %v1587
      %v1660 = vadd.f32 %v1269, %v1590
      %v1661 = vadd.f32 %v1274, %v1595
      %v1662 = vadd.f32 %v1277, %v1598
      %v1663 = vadd.f32 %v1282, %v1603
      %v1664 = vadd.f32 %v1285, %v1606
      %v1665 = vadd.f32 %v1290, %v1611
      %v1666 = vadd.f32 %v1293, %v1614
      %v1667 = vadd.f32 %v1298, %v1619
      %v1668 = vadd.f32 %v1301, %v1622
      %v1669 = vadd.f32 %v1306, %v1627
      %v1670 = vadd.f32 %v1309, %v1630
      %v1671 = vadd.f32 %v1314, %v1635
      %v1672 = vadd.f32 %v1317, %v1638
      %v1674 = vshrl.u32 %v274, 16
      %v1676 = vrot.slane %v1674, 4
      %v1677 = vshll.u32 %v274, 16
      %v1679 = vrot.slane %v1677, 5
      %v1680 = vor.u32 %v1676, %v1679
      %v1681 = vrot.slane %v1680, 4
      %v1683 = vshll.u32 %v275, 16
      %v1685 = vrot.slane %v1683, 5
      %v1686 = vsel %vm340, %v1681, %v1685
      %v1687 = vshrl.u32 %v275, 16
      %v1689 = vrot.slane %v1687, 4
      %v1690 = vor.u32 %v1689, %v1685
      %v1691 = vrot.slane %v1690, 4
      %v1693 = vshll.u32 %v276, 16
      %v1695 = vrot.slane %v1693, 5
      %v1696 = vsel %vm340, %v1691, %v1695
      %v1698 = vshrl.u32 %v277, 16
      %v1700 = vrot.slane %v1698, 4
      %v1701 = vshll.u32 %v277, 16
      %v1703 = vrot.slane %v1701, 5
      %v1704 = vor.u32 %v1700, %v1703
      %v1705 = vrot.slane %v1704, 4
      %v1707 = vshll.u32 %v278, 16
      %v1709 = vrot.slane %v1707, 5
      %v1710 = vsel %vm340, %v1705, %v1709
      %v1711 = vshrl.u32 %v278, 16
      %v1713 = vrot.slane %v1711, 4
      %v1714 = vor.u32 %v1713, %v1709
      %v1715 = vrot.slane %v1714, 4
      %v1717 = vshll.u32 %v279, 16
      %v1719 = vrot.slane %v1717, 5
      %v1720 = vsel %vm340, %v1715, %v1719
      %v1722 = vshrl.u32 %v280, 16
      %v1724 = vrot.slane %v1722, 4
      %v1725 = vshll.u32 %v280, 16
      %v1727 = vrot.slane %v1725, 5
      %v1728 = vor.u32 %v1724, %v1727
      %v1729 = vrot.slane %v1728, 4
      %v1731 = vshll.u32 %v281, 16
      %v1733 = vrot.slane %v1731, 5
      %v1734 = vsel %vm340, %v1729, %v1733
      %v1735 = vshrl.u32 %v281, 16
      %v1737 = vrot.slane %v1735, 4
      %v1738 = vor.u32 %v1737, %v1733
      %v1739 = vrot.slane %v1738, 4
      %v1741 = vshll.u32 %v282, 16
      %v1743 = vrot.slane %v1741, 5
      %v1744 = vsel %vm340, %v1739, %v1743
      %v1746 = vshrl.u32 %v283, 16
      %v1748 = vrot.slane %v1746, 4
      %v1749 = vshll.u32 %v283, 16
      %v1751 = vrot.slane %v1749, 5
      %v1752 = vor.u32 %v1748, %v1751
      %v1753 = vrot.slane %v1752, 4
      %v1755 = vshll.u32 %v284, 16
      %v1757 = vrot.slane %v1755, 5
      %v1758 = vsel %vm340, %v1753, %v1757
      %v1759 = vshrl.u32 %v284, 16
      %v1761 = vrot.slane %v1759, 4
      %v1762 = vor.u32 %v1761, %v1757
      %v1763 = vrot.slane %v1762, 4
      %v1765 = vshll.u32 %v285, 16
      %v1767 = vrot.slane %v1765, 5
      %v1768 = vsel %vm340, %v1763, %v1767
      %v1770 = vshrl.u32 %v286, 16
      %v1772 = vrot.slane %v1770, 4
      %v1773 = vshll.u32 %v286, 16
      %v1775 = vrot.slane %v1773, 5
      %v1776 = vor.u32 %v1772, %v1775
      %v1777 = vrot.slane %v1776, 4
      %v1779 = vshll.u32 %v287, 16
      %v1781 = vrot.slane %v1779, 5
      %v1782 = vsel %vm340, %v1777, %v1781
      %v1783 = vshrl.u32 %v287, 16
      %v1785 = vrot.slane %v1783, 4
      %v1786 = vor.u32 %v1785, %v1781
      %v1787 = vrot.slane %v1786, 4
      %v1789 = vshll.u32 %v288, 16
      %v1791 = vrot.slane %v1789, 5
      %v1792 = vsel %vm340, %v1787, %v1791
      %v1794 = vshrl.u32 %v289, 16
      %v1796 = vrot.slane %v1794, 4
      %v1797 = vshll.u32 %v289, 16
      %v1799 = vrot.slane %v1797, 5
      %v1800 = vor.u32 %v1796, %v1799
      %v1801 = vrot.slane %v1800, 4
      %v1803 = vshll.u32 %v290, 16
      %v1805 = vrot.slane %v1803, 5
      %v1806 = vsel %vm340, %v1801, %v1805
      %v1807 = vshrl.u32 %v290, 16
      %v1809 = vrot.slane %v1807, 4
      %v1810 = vor.u32 %v1809, %v1805
      %v1811 = vrot.slane %v1810, 4
      %v1813 = vshll.u32 %v291, 16
      %v1815 = vrot.slane %v1813, 5
      %v1816 = vsel %vm340, %v1811, %v1815
      %v1818 = vshrl.u32 %v292, 16
      %v1820 = vrot.slane %v1818, 4
      %v1821 = vshll.u32 %v292, 16
      %v1823 = vrot.slane %v1821, 5
      %v1824 = vor.u32 %v1820, %v1823
      %v1825 = vrot.slane %v1824, 4
      %v1827 = vshll.u32 %v293, 16
      %v1829 = vrot.slane %v1827, 5
      %v1830 = vsel %vm340, %v1825, %v1829
      %v1831 = vshrl.u32 %v293, 16
      %v1833 = vrot.slane %v1831, 4
      %v1834 = vor.u32 %v1833, %v1829
      %v1835 = vrot.slane %v1834, 4
      %v1837 = vshll.u32 %v294, 16
      %v1839 = vrot.slane %v1837, 5
      %v1840 = vsel %vm340, %v1835, %v1839
      %v1842 = vshrl.u32 %v295, 16
      %v1844 = vrot.slane %v1842, 4
      %v1845 = vshll.u32 %v295, 16
      %v1847 = vrot.slane %v1845, 5
      %v1848 = vor.u32 %v1844, %v1847
      %v1849 = vrot.slane %v1848, 4
      %v1851 = vshll.u32 %v296, 16
      %v1853 = vrot.slane %v1851, 5
      %v1854 = vsel %vm340, %v1849, %v1853
      %v1855 = vshrl.u32 %v296, 16
      %v1857 = vrot.slane %v1855, 4
      %v1858 = vor.u32 %v1857, %v1853
      %v1859 = vrot.slane %v1858, 4
      %v1861 = vshll.u32 %v297, 16
      %v1863 = vrot.slane %v1861, 5
      %v1864 = vsel %vm340, %v1859, %v1863
      %v1866 = vshrl.u32 %v298, 16
      %v1868 = vrot.slane %v1866, 4
      %v1869 = vshll.u32 %v298, 16
      %v1871 = vrot.slane %v1869, 5
      %v1872 = vor.u32 %v1868, %v1871
      %v1873 = vrot.slane %v1872, 4
      %v1875 = vshll.u32 %v299, 16
      %v1877 = vrot.slane %v1875, 5
      %v1878 = vsel %vm340, %v1873, %v1877
      %v1879 = vshrl.u32 %v299, 16
      %v1881 = vrot.slane %v1879, 4
      %v1882 = vor.u32 %v1881, %v1877
      %v1883 = vrot.slane %v1882, 4
      %v1885 = vshll.u32 %v300, 16
      %v1887 = vrot.slane %v1885, 5
      %v1888 = vsel %vm340, %v1883, %v1887
      %v1890 = vshrl.u32 %v301, 16
      %v1892 = vrot.slane %v1890, 4
      %v1893 = vshll.u32 %v301, 16
      %v1895 = vrot.slane %v1893, 5
      %v1896 = vor.u32 %v1892, %v1895
      %v1897 = vrot.slane %v1896, 4
      %v1899 = vshll.u32 %v302, 16
      %v1901 = vrot.slane %v1899, 5
      %v1902 = vsel %vm340, %v1897, %v1901
      %v1903 = vshrl.u32 %v302, 16
      %v1905 = vrot.slane %v1903, 4
      %v1906 = vor.u32 %v1905, %v1901
      %v1907 = vrot.slane %v1906, 4
      %v1909 = vshll.u32 %v303, 16
      %v1911 = vrot.slane %v1909, 5
      %v1912 = vsel %vm340, %v1907, %v1911
      %v1914 = vshrl.u32 %v304, 16
      %v1916 = vrot.slane %v1914, 4
      %v1917 = vshll.u32 %v304, 16
      %v1919 = vrot.slane %v1917, 5
      %v1920 = vor.u32 %v1916, %v1919
      %v1921 = vrot.slane %v1920, 4
      %v1923 = vshll.u32 %v305, 16
      %v1925 = vrot.slane %v1923, 5
      %v1926 = vsel %vm340, %v1921, %v1925
      %v1927 = vshrl.u32 %v305, 16
      %v1929 = vrot.slane %v1927, 4
      %v1930 = vor.u32 %v1929, %v1925
      %v1931 = vrot.slane %v1930, 4
      %v1933 = vshll.u32 %v306, 16
      %v1935 = vrot.slane %v1933, 5
      %v1936 = vsel %vm340, %v1931, %v1935
      %v1938 = vshrl.u32 %v307, 16
      %v1940 = vrot.slane %v1938, 4
      %v1941 = vshll.u32 %v307, 16
      %v1943 = vrot.slane %v1941, 5
      %v1944 = vor.u32 %v1940, %v1943
      %v1945 = vrot.slane %v1944, 4
      %v1947 = vshll.u32 %v308, 16
      %v1949 = vrot.slane %v1947, 5
      %v1950 = vsel %vm340, %v1945, %v1949
      %v1951 = vshrl.u32 %v308, 16
      %v1953 = vrot.slane %v1951, 4
      %v1954 = vor.u32 %v1953, %v1949
      %v1955 = vrot.slane %v1954, 4
      %v1957 = vshll.u32 %v309, 16
      %v1959 = vrot.slane %v1957, 5
      %v1960 = vsel %vm340, %v1955, %v1959
      %v1962 = vshrl.u32 %v310, 16
      %v1964 = vrot.slane %v1962, 4
      %v1965 = vshll.u32 %v310, 16
      %v1967 = vrot.slane %v1965, 5
      %v1968 = vor.u32 %v1964, %v1967
      %v1969 = vrot.slane %v1968, 4
      %v1971 = vshll.u32 %v311, 16
      %v1973 = vrot.slane %v1971, 5
      %v1974 = vsel %vm340, %v1969, %v1973
      %v1975 = vshrl.u32 %v311, 16
      %v1977 = vrot.slane %v1975, 4
      %v1978 = vor.u32 %v1977, %v1973
      %v1979 = vrot.slane %v1978, 4
      %v1981 = vshll.u32 %v312, 16
      %v1983 = vrot.slane %v1981, 5
      %v1984 = vsel %vm340, %v1979, %v1983
      %v1986 = vshrl.u32 %v313, 16
      %v1988 = vrot.slane %v1986, 4
      %v1989 = vshll.u32 %v313, 16
      %v1991 = vrot.slane %v1989, 5
      %v1992 = vor.u32 %v1988, %v1991
      %v1993 = vrot.slane %v1992, 4
      %v1995 = vshll.u32 %v314, 16
      %v1997 = vrot.slane %v1995, 5
      %v1998 = vsel %vm340, %v1993, %v1997
      %v1999 = vshrl.u32 %v314, 16
      %v2001 = vrot.slane %v1999, 4
      %v2002 = vor.u32 %v2001, %v1997
      %v2003 = vrot.slane %v2002, 4
      %v2005 = vshll.u32 %v315, 16
      %v2007 = vrot.slane %v2005, 5
      %v2008 = vsel %vm340, %v2003, %v2007
      %v2010 = vshrl.u32 %v316, 16
      %v2012 = vrot.slane %v2010, 4
      %v2013 = vshll.u32 %v316, 16
      %v2015 = vrot.slane %v2013, 5
      %v2016 = vor.u32 %v2012, %v2015
      %v2017 = vrot.slane %v2016, 4
      %v2019 = vshll.u32 %v317, 16
      %v2021 = vrot.slane %v2019, 5
      %v2022 = vsel %vm340, %v2017, %v2021
      %v2023 = vshrl.u32 %v317, 16
      %v2025 = vrot.slane %v2023, 4
      %v2026 = vor.u32 %v2025, %v2021
      %v2027 = vrot.slane %v2026, 4
      %v2029 = vshll.u32 %v318, 16
      %v2031 = vrot.slane %v2029, 5
      %v2032 = vsel %vm340, %v2027, %v2031
      %v2034 = vshrl.u32 %v319, 16
      %v2036 = vrot.slane %v2034, 4
      %v2037 = vshll.u32 %v319, 16
      %v2039 = vrot.slane %v2037, 5
      %v2040 = vor.u32 %v2036, %v2039
      %v2041 = vrot.slane %v2040, 4
      %v2043 = vshll.u32 %v320, 16
      %v2045 = vrot.slane %v2043, 5
      %v2046 = vsel %vm340, %v2041, %v2045
      %v2047 = vshrl.u32 %v320, 16
      %v2049 = vrot.slane %v2047, 4
      %v2050 = vor.u32 %v2049, %v2045
      %v2051 = vrot.slane %v2050, 4
      %v2053 = vshll.u32 %v321, 16
      %v2055 = vrot.slane %v2053, 5
      %v2056 = vsel %vm340, %v2051, %v2055
      %v2057 = vld [vmem:[%s210 + $0xa0] sm:$0xf]
      %v2058 = vld [vmem:[%s210 + $0xa4] sm:$0xf]
      %v2059 = vld [vmem:[%s210 + $0xa8] sm:$0xf]
      %v2060 = vld [vmem:[%s210 + $0xac] sm:$0xf]
      %v2061 = vld [vmem:[%s210 + $0xb0] sm:$0xf]
      %v2062 = vld [vmem:[%s210 + $0xb4] sm:$0xf]
      %v2063 = vld [vmem:[%s210 + $0xb8] sm:$0xf]
      %v2064 = vld [vmem:[%s210 + $0xbc] sm:$0xf]
      %v2065 = vunpack.c.l.b16 %v1686
      %v2066 = vunpack.c.l.b16 %v1696
      %v2067 = vunpack.c.l.b16 %v1710
      %v2068 = vunpack.c.l.b16 %v1720
      %v2069 = vunpack.c.l.b16 %v1734
      %v2070 = vunpack.c.l.b16 %v1744
      %v2071 = vunpack.c.l.b16 %v1758
      %v2072 = vunpack.c.l.b16 %v1768
      %v2073 = vunpack.c.l.b16 %v1782
      %v2074 = vunpack.c.l.b16 %v1792
      %v2075 = vunpack.c.l.b16 %v1806
      %v2076 = vunpack.c.l.b16 %v1816
      %v2077 = vunpack.c.l.b16 %v1830
      %v2078 = vunpack.c.l.b16 %v1840
      %v2079 = vunpack.c.l.b16 %v1854
      %v2080 = vunpack.c.l.b16 %v1864
      %v2081 = vunpack.c.l.b16 %v1878
      %v2082 = vunpack.c.l.b16 %v1888
      %v2083 = vunpack.c.l.b16 %v1902
      %v2084 = vunpack.c.l.b16 %v1912
      %v2085 = vunpack.c.l.b16 %v1926
      %v2086 = vunpack.c.l.b16 %v1936
      %v2087 = vunpack.c.l.b16 %v1950
      %v2088 = vunpack.c.l.b16 %v1960
      %v2089 = vunpack.c.l.b16 %v1974
      %v2090 = vunpack.c.l.b16 %v1984
      %v2091 = vunpack.c.l.b16 %v1998
      %v2092 = vunpack.c.l.b16 %v2008
      %v2093 = vunpack.c.l.b16 %v2022
      %v2094 = vunpack.c.l.b16 %v2032
      %v2095 = vunpack.c.l.b16 %v2046
      %v2096 = vunpack.c.l.b16 %v2056
      %v2097 = vpack.c.b16 %v2066, %v2065
      %v2098 = vpack.c.b16 %v2068, %v2067
      %v2099 = vpack.c.b16 %v2070, %v2069
      %v2100 = vpack.c.b16 %v2072, %v2071
      %v2101 = vpack.c.b16 %v2074, %v2073
      %v2102 = vpack.c.b16 %v2076, %v2075
      %v2103 = vpack.c.b16 %v2078, %v2077
      %v2104 = vpack.c.b16 %v2080, %v2079
      %v2105 = vpack.c.b16 %v2082, %v2081
      %v2106 = vpack.c.b16 %v2084, %v2083
      %v2107 = vpack.c.b16 %v2086, %v2085
      %v2108 = vpack.c.b16 %v2088, %v2087
      %v2109 = vpack.c.b16 %v2090, %v2089
      %v2110 = vpack.c.b16 %v2092, %v2091
      %v2111 = vpack.c.b16 %v2094, %v2093
      %v2112 = vpack.c.b16 %v2096, %v2095
      %v2121 = vunpack.c.l.b16 %v2057
      %v2122 = vunpack.c.l.b16 %v2058
      %v2123 = vunpack.c.l.b16 %v2059
      %v2124 = vunpack.c.l.b16 %v2060
      %v2125 = vunpack.c.l.b16 %v2061
      %v2126 = vunpack.c.l.b16 %v2062
      %v2127 = vunpack.c.l.b16 %v2063
      %v2128 = vunpack.c.l.b16 %v2064
      %v2129 = vpack.c.b16 %v2122, %v2121
      %v2130 = vpack.c.b16 %v2124, %v2123
      %v2131 = vpack.c.b16 %v2126, %v2125
      %v2132 = vpack.c.b16 %v2128, %v2127
      %v2138 = vsel %vm805, %v2097, 0
      %v2141 = vsel %vm805, %v2098, 0
      %v2144 = vsel %vm805, %v2099, 0
      %v2147 = vsel %vm805, %v2100, 0
      %v2150 = vsel %vm805, %v2101, 0
      %v2153 = vsel %vm805, %v2102, 0
      %v2156 = vsel %vm805, %v2103, 0
      %v2159 = vsel %vm805, %v2104, 0
      %v2162 = vsel %vm805, %v2105, 0
      %v2165 = vsel %vm805, %v2106, 0
      %v2168 = vsel %vm805, %v2107, 0
      %v2171 = vsel %vm805, %v2108, 0
      %v2174 = vsel %vm805, %v2109, 0
      %v2177 = vsel %vm805, %v2110, 0
      %v2180 = vsel %vm805, %v2111, 0
      %v2183 = vsel %vm805, %v2112, 0
      %2185 = vmatprep.subr.bf16.mxu0 0
      %2186 = vmatpush1.bf16.msra.mxu0 %v2129
      %2187 = vmatprep.subr.bf16.mxu0 0
      %2188 = vmatpush1.bf16.msra.mxu0 %v2130
      %2189 = vmatprep.subr.bf16.mxu0 0
      %2190 = vmatpush1.bf16.msra.mxu0 %v2131
      %2191 = vmatprep.subr.bf16.mxu0 0
      %2192 = vmatpush1.bf16.msra.mxu0 %v2132
      %2193 = vmatprep.subr.bf16.mxu0 0
      %2194 = vmatpush1.bf16.msra.mxu0 0
      %2195 = vmatprep.subr.bf16.mxu0 0
      %2196 = vmatpush1.bf16.msra.mxu0 0
      %2197 = vmatprep.subr.bf16.mxu0 0
      %2198 = vmatpush1.bf16.msra.mxu0 0
      %2199 = vmatprep.subr.bf16.mxu0 0
      %2200 = vmatpush1.bf16.msra.mxu0 0
      %2201 = vmatprep.subr.bf16.mxu0 0
      %2202 = vmatpush1.bf16.msra.mxu0 0
      %2203 = vmatprep.subr.bf16.mxu0 0
      %2204 = vmatpush1.bf16.msra.mxu0 0
      %2205 = vmatprep.subr.bf16.mxu0 0
      %2206 = vmatpush1.bf16.msra.mxu0 0
      %2207 = vmatprep.subr.bf16.mxu0 0
      %2208 = vmatpush1.bf16.msra.mxu0 0
      %2209 = vmatprep.subr.bf16.mxu0 0
      %2210 = vmatpush1.bf16.msra.mxu0 0
      %2211 = vmatprep.subr.bf16.mxu0 0
      %2212 = vmatpush1.bf16.msra.mxu0 0
      %2213 = vmatprep.subr.bf16.mxu0 0
      %2214 = vmatpush1.bf16.msra.mxu0 0
      %2215 = vmatprep.subr.bf16.mxu0 0
      %2216 = vmatpush1.bf16.msra.mxu0 0
      %2217 = vmatprep.mubr.bf16.mxu0 0
      %2218 = vmatmul.mubr.bf16.gmra.mrb[0].mxu0 %v2138
      %v2219 = vpop.f32.mrb[0].mxu0
      %v2220 = vadd.f32 0.0, %v2219
      %v2221 = vpop.f32.mrb[0].mxu0
      %v2222 = vpop.f32.mrb[0].mxu0
      %v2223 = vadd.f32 0.0, %v2222
      %v2224 = vpop.f32.mrb[0].mxu0
      %2225 = vmatprep.mubr.bf16.mxu0 0
      %2226 = vmatmul.mubr.bf16.gmra.mrb[0].mxu0 %v2141
      %v2227 = vpop.f32.mrb[0].mxu0
      %v2228 = vadd.f32 0.0, %v2227
      %v2229 = vpop.f32.mrb[0].mxu0
      %v2230 = vpop.f32.mrb[0].mxu0
      %v2231 = vadd.f32 0.0, %v2230
      %v2232 = vpop.f32.mrb[0].mxu0
      %2233 = vmatprep.mubr.bf16.mxu0 0
      %2234 = vmatmul.mubr.bf16.gmra.mrb[0].mxu0 %v2144
      %v2235 = vpop.f32.mrb[0].mxu0
      %v2236 = vadd.f32 0.0, %v2235
      %v2237 = vpop.f32.mrb[0].mxu0
      %v2238 = vpop.f32.mrb[0].mxu0
      %v2239 = vadd.f32 0.0, %v2238
      %v2240 = vpop.f32.mrb[0].mxu0
      %2241 = vmatprep.mubr.bf16.mxu0 0
      %2242 = vmatmul.mubr.bf16.gmra.mrb[0].mxu0 %v2147
      %v2243 = vpop.f32.mrb[0].mxu0
      %v2244 = vadd.f32 0.0, %v2243
      %v2245 = vpop.f32.mrb[0].mxu0
      %v2246 = vpop.f32.mrb[0].mxu0
      %v2247 = vadd.f32 0.0, %v2246
      %v2248 = vpop.f32.mrb[0].mxu0
      %2249 = vmatprep.mubr.bf16.mxu0 0
      %2250 = vmatmul.mubr.bf16.gmra.mrb[0].mxu0 %v2150
      %v2251 = vpop.f32.mrb[0].mxu0
      %v2252 = vadd.f32 0.0, %v2251
      %v2253 = vpop.f32.mrb[0].mxu0
      %v2254 = vpop.f32.mrb[0].mxu0
      %v2255 = vadd.f32 0.0, %v2254
      %v2256 = vpop.f32.mrb[0].mxu0
      %2257 = vmatprep.mubr.bf16.mxu0 0
      %2258 = vmatmul.mubr.bf16.gmra.mrb[0].mxu0 %v2153
      %v2259 = vpop.f32.mrb[0].mxu0
      %v2260 = vadd.f32 0.0, %v2259
      %v2261 = vpop.f32.mrb[0].mxu0
      %v2262 = vpop.f32.mrb[0].mxu0
      %v2263 = vadd.f32 0.0, %v2262
      %v2264 = vpop.f32.mrb[0].mxu0
      %2265 = vmatprep.mubr.bf16.mxu0 0
      %2266 = vmatmul.mubr.bf16.gmra.mrb[0].mxu0 %v2156
      %v2267 = vpop.f32.mrb[0].mxu0
      %v2268 = vadd.f32 0.0, %v2267
      %v2269 = vpop.f32.mrb[0].mxu0
      %v2270 = vpop.f32.mrb[0].mxu0
      %v2271 = vadd.f32 0.0, %v2270
      %v2272 = vpop.f32.mrb[0].mxu0
      %2273 = vmatprep.mubr.bf16.mxu0 0
      %2274 = vmatmul.mubr.bf16.gmra.mrb[0].mxu0 %v2159
      %v2275 = vpop.f32.mrb[0].mxu0
      %v2276 = vadd.f32 0.0, %v2275
      %v2277 = vpop.f32.mrb[0].mxu0
      %v2278 = vpop.f32.mrb[0].mxu0
      %v2279 = vadd.f32 0.0, %v2278
      %v2280 = vpop.f32.mrb[0].mxu0
      %2281 = vmatprep.mubr.bf16.mxu0 0
      %2282 = vmatmul.mubr.bf16.gmra.mrb[0].mxu0 %v2162
      %v2283 = vpop.f32.mrb[0].mxu0
      %v2284 = vadd.f32 0.0, %v2283
      %v2285 = vpop.f32.mrb[0].mxu0
      %v2286 = vpop.f32.mrb[0].mxu0
      %v2287 = vadd.f32 0.0, %v2286
      %v2288 = vpop.f32.mrb[0].mxu0
      %2289 = vmatprep.mubr.bf16.mxu0 0
      %2290 = vmatmul.mubr.bf16.gmra.mrb[0].mxu0 %v2165
      %v2291 = vpop.f32.mrb[0].mxu0
      %v2292 = vadd.f32 0.0, %v2291
      %v2293 = vpop.f32.mrb[0].mxu0
      %v2294 = vpop.f32.mrb[0].mxu0
      %v2295 = vadd.f32 0.0, %v2294
      %v2296 = vpop.f32.mrb[0].mxu0
      %2297 = vmatprep.mubr.bf16.mxu0 0
      %2298 = vmatmul.mubr.bf16.gmra.mrb[0].mxu0 %v2168
      %v2299 = vpop.f32.mrb[0].mxu0
      %v2300 = vadd.f32 0.0, %v2299
      %v2301 = vpop.f32.mrb[0].mxu0
      %v2302 = vpop.f32.mrb[0].mxu0
      %v2303 = vadd.f32 0.0, %v2302
      %v2304 = vpop.f32.mrb[0].mxu0
      %2305 = vmatprep.mubr.bf16.mxu0 0
      %2306 = vmatmul.mubr.bf16.gmra.mrb[0].mxu0 %v2171
      %v2307 = vpop.f32.mrb[0].mxu0
      %v2308 = vadd.f32 0.0, %v2307
      %v2309 = vpop.f32.mrb[0].mxu0
      %v2310 = vpop.f32.mrb[0].mxu0
      %v2311 = vadd.f32 0.0, %v2310
      %v2312 = vpop.f32.mrb[0].mxu0
      %2313 = vmatprep.mubr.bf16.mxu0 0
      %2314 = vmatmul.mubr.bf16.gmra.mrb[0].mxu0 %v2174
      %v2315 = vpop.f32.mrb[0].mxu0
      %v2316 = vadd.f32 0.0, %v2315
      %v2317 = vpop.f32.mrb[0].mxu0
      %v2318 = vpop.f32.mrb[0].mxu0
      %v2319 = vadd.f32 0.0, %v2318
      %v2320 = vpop.f32.mrb[0].mxu0
      %2321 = vmatprep.mubr.bf16.mxu0 0
      %2322 = vmatmul.mubr.bf16.gmra.mrb[0].mxu0 %v2177
      %v2323 = vpop.f32.mrb[0].mxu0
      %v2324 = vadd.f32 0.0, %v2323
      %v2325 = vpop.f32.mrb[0].mxu0
      %v2326 = vpop.f32.mrb[0].mxu0
      %v2327 = vadd.f32 0.0, %v2326
      %v2328 = vpop.f32.mrb[0].mxu0
      %2329 = vmatprep.mubr.bf16.mxu0 0
      %2330 = vmatmul.mubr.bf16.gmra.mrb[0].mxu0 %v2180
      %v2331 = vpop.f32.mrb[0].mxu0
      %v2332 = vadd.f32 0.0, %v2331
      %v2333 = vpop.f32.mrb[0].mxu0
      %v2334 = vpop.f32.mrb[0].mxu0
      %v2335 = vadd.f32 0.0, %v2334
      %v2336 = vpop.f32.mrb[0].mxu0
      %2337 = vmatprep.mubr.bf16.mxu0 0
      %2338 = vmatmul.mubr.bf16.gmra.mrb[0].mxu0 %v2183
      %v2339 = vpop.f32.mrb[0].mxu0
      %v2340 = vadd.f32 0.0, %v2339
      %v2341 = vpop.f32.mrb[0].mxu0
      %v2342 = vpop.f32.mrb[0].mxu0
      %v2343 = vadd.f32 0.0, %v2342
      %v2344 = vpop.f32.mrb[0].mxu0
      %2345 = vdwg.mxu0
      %v2346 = vadd.f32 %v1641, %v2220
      %v2347 = vadd.f32 %v1642, %v2223
      %v2348 = vadd.f32 %v1643, %v2228
      %v2349 = vadd.f32 %v1644, %v2231
      %v2350 = vadd.f32 %v1645, %v2236
      %v2351 = vadd.f32 %v1646, %v2239
      %v2352 = vadd.f32 %v1647, %v2244
      %v2353 = vadd.f32 %v1648, %v2247
      %v2354 = vadd.f32 %v1649, %v2252
      %v2355 = vadd.f32 %v1650, %v2255
      %v2356 = vadd.f32 %v1651, %v2260
      %v2357 = vadd.f32 %v1652, %v2263
      %v2358 = vadd.f32 %v1653, %v2268
      %v2359 = vadd.f32 %v1654, %v2271
      %v2360 = vadd.f32 %v1655, %v2276
      %v2361 = vadd.f32 %v1656, %v2279
      %v2362 = vadd.f32 %v1657, %v2284
      %v2363 = vadd.f32 %v1658, %v2287
      %v2364 = vadd.f32 %v1659, %v2292
      %v2365 = vadd.f32 %v1660, %v2295
      %v2366 = vadd.f32 %v1661, %v2300
      %v2367 = vadd.f32 %v1662, %v2303
      %v2368 = vadd.f32 %v1663, %v2308
      %v2369 = vadd.f32 %v1664, %v2311
      %v2370 = vadd.f32 %v1665, %v2316
      %v2371 = vadd.f32 %v1666, %v2319
      %v2372 = vadd.f32 %v1667, %v2324
      %v2373 = vadd.f32 %v1668, %v2327
      %v2374 = vadd.f32 %v1669, %v2332
      %v2375 = vadd.f32 %v1670, %v2335
      %v2376 = vadd.f32 %v1671, %v2340
      %v2377 = vadd.f32 %v1672, %v2343
      %v2378 = vld [vmem:[%s210 + $0xc0] sm:$0xf]
      %v2379 = vld [vmem:[%s210 + $0xc4] sm:$0xf]
      %v2380 = vld [vmem:[%s210 + $0xc8] sm:$0xf]
      %v2381 = vld [vmem:[%s210 + $0xcc] sm:$0xf]
      %v2382 = vld [vmem:[%s210 + $0xd0] sm:$0xf]
      %v2383 = vld [vmem:[%s210 + $0xd4] sm:$0xf]
      %v2384 = vld [vmem:[%s210 + $0xd8] sm:$0xf]
      %v2385 = vld [vmem:[%s210 + $0xdc] sm:$0xf]
      %v2386 = vld [vmem:[%s210 + $0xe0] sm:$0xf]
      %v2387 = vld [vmem:[%s210 + $0xe4] sm:$0xf]
      %v2388 = vld [vmem:[%s210 + $0xe8] sm:$0xf]
      %v2389 = vld [vmem:[%s210 + $0xec] sm:$0xf]
      %v2390 = vld [vmem:[%s210 + $0xf0] sm:$0xf]
      %v2391 = vld [vmem:[%s210 + $0xf4] sm:$0xf]
      %v2392 = vld [vmem:[%s210 + $0xf8] sm:$0xf]
      %v2393 = vld [vmem:[%s210 + $0xfc] sm:$0xf]
      %v2396 = vunpack.c.l.b16 %v271
      %v2397 = vunpack.c.l.b16 %v272
      %v2398 = vpack.c.b16 %v2397, %v2396
      %v2416 = vunpack.c.l.b16 %v2378
      %v2417 = vunpack.c.l.b16 %v2379
      %v2418 = vunpack.c.l.b16 %v2380
      %v2419 = vunpack.c.l.b16 %v2381
      %v2420 = vunpack.c.l.b16 %v2382
      %v2421 = vunpack.c.l.b16 %v2383
      %v2422 = vunpack.c.l.b16 %v2384
      %v2423 = vunpack.c.l.b16 %v2385
      %v2424 = vunpack.c.l.b16 %v2386
      %v2425 = vunpack.c.l.b16 %v2387
      %v2426 = vunpack.c.l.b16 %v2388
      %v2427 = vunpack.c.l.b16 %v2389
      %v2428 = vunpack.c.l.b16 %v2390
      %v2429 = vunpack.c.l.b16 %v2391
      %v2430 = vunpack.c.l.b16 %v2392
      %v2431 = vunpack.c.l.b16 %v2393
      %v2432 = vpack.c.b16 %v2417, %v2416
      %v2433 = vpack.c.b16 %v2419, %v2418
      %v2434 = vpack.c.b16 %v2421, %v2420
      %v2435 = vpack.c.b16 %v2423, %v2422
      %v2436 = vpack.c.b16 %v2425, %v2424
      %v2437 = vpack.c.b16 %v2427, %v2426
      %v2438 = vpack.c.b16 %v2429, %v2428
      %v2439 = vpack.c.b16 %v2431, %v2430
      %2448 = vmatprep.subr.bf16.mxu0 0
      %2449 = vmatpush1.bf16.msra.mxu0 %v2432
      %2450 = vmatprep.subr.bf16.mxu0 0
      %2451 = vmatpush1.bf16.msra.mxu0 %v2433
      %2452 = vmatprep.subr.bf16.mxu0 0
      %2453 = vmatpush1.bf16.msra.mxu0 %v2434
      %2454 = vmatprep.subr.bf16.mxu0 0
      %2455 = vmatpush1.bf16.msra.mxu0 %v2435
      %2456 = vmatprep.subr.bf16.mxu0 0
      %2457 = vmatpush1.bf16.msra.mxu0 %v2436
      %2458 = vmatprep.subr.bf16.mxu0 0
      %2459 = vmatpush1.bf16.msra.mxu0 %v2437
      %2460 = vmatprep.subr.bf16.mxu0 0
      %2461 = vmatpush1.bf16.msra.mxu0 %v2438
      %2462 = vmatprep.subr.bf16.mxu0 0
      %2463 = vmatpush1.bf16.msra.mxu0 %v2439
      %2464 = vmatprep.subr.bf16.mxu0 0
      %2465 = vmatpush1.bf16.msra.mxu0 0
      %2466 = vmatprep.subr.bf16.mxu0 0
      %2467 = vmatpush1.bf16.msra.mxu0 0
      %2468 = vmatprep.subr.bf16.mxu0 0
      %2469 = vmatpush1.bf16.msra.mxu0 0
      %2470 = vmatprep.subr.bf16.mxu0 0
      %2471 = vmatpush1.bf16.msra.mxu0 0
      %2472 = vmatprep.subr.bf16.mxu0 0
      %2473 = vmatpush1.bf16.msra.mxu0 0
      %2474 = vmatprep.subr.bf16.mxu0 0
      %2475 = vmatpush1.bf16.msra.mxu0 0
      %2476 = vmatprep.subr.bf16.mxu0 0
      %2477 = vmatpush1.bf16.msra.mxu0 0
      %2478 = vmatprep.subr.bf16.mxu0 0
      %2479 = vmatpush1.bf16.msra.mxu0 0
      %2480 = vmatprep.mubr.bf16.mxu0 0
      %2481 = vmatmul.mubr.bf16.gmra.mrb[0].mxu0 %v1080
      %v2482 = vpop.f32.mrb[0].mxu0
      %v2483 = vadd.f32 0.0, %v2482
      %v2484 = vpop.f32.mrb[0].mxu0
      %v2485 = vpop.f32.mrb[0].mxu0
      %v2486 = vadd.f32 0.0, %v2485
      %v2487 = vpop.f32.mrb[0].mxu0
      %2488 = vmatprep.mubr.bf16.mxu0 0
      %2489 = vmatmul.mubr.bf16.gmra.mrb[0].mxu0 %v1081
      %v2490 = vpop.f32.mrb[0].mxu0
      %v2491 = vadd.f32 0.0, %v2490
      %v2492 = vpop.f32.mrb[0].mxu0
      %v2493 = vpop.f32.mrb[0].mxu0
      %v2494 = vadd.f32 0.0, %v2493
      %v2495 = vpop.f32.mrb[0].mxu0
      %2496 = vmatprep.mubr.bf16.mxu0 0
      %2497 = vmatmul.mubr.bf16.gmra.mrb[0].mxu0 %v1082
      %v2498 = vpop.f32.mrb[0].mxu0
      %v2499 = vadd.f32 0.0, %v2498
      %v2500 = vpop.f32.mrb[0].mxu0
      %v2501 = vpop.f32.mrb[0].mxu0
      %v2502 = vadd.f32 0.0, %v2501
      %v2503 = vpop.f32.mrb[0].mxu0
      %2504 = vmatprep.mubr.bf16.mxu0 0
      %2505 = vmatmul.mubr.bf16.gmra.mrb[0].mxu0 %v1083
      %v2506 = vpop.f32.mrb[0].mxu0
      %v2507 = vadd.f32 0.0, %v2506
      %v2508 = vpop.f32.mrb[0].mxu0
      %v2509 = vpop.f32.mrb[0].mxu0
      %v2510 = vadd.f32 0.0, %v2509
      %v2511 = vpop.f32.mrb[0].mxu0
      %2512 = vmatprep.mubr.bf16.mxu0 0
      %2513 = vmatmul.mubr.bf16.gmra.mrb[0].mxu0 %v1084
      %v2514 = vpop.f32.mrb[0].mxu0
      %v2515 = vadd.f32 0.0, %v2514
      %v2516 = vpop.f32.mrb[0].mxu0
      %v2517 = vpop.f32.mrb[0].mxu0
      %v2518 = vadd.f32 0.0, %v2517
      %v2519 = vpop.f32.mrb[0].mxu0
      %2520 = vmatprep.mubr.bf16.mxu0 0
      %2521 = vmatmul.mubr.bf16.gmra.mrb[0].mxu0 %v1085
      %v2522 = vpop.f32.mrb[0].mxu0
      %v2523 = vadd.f32 0.0, %v2522
      %v2524 = vpop.f32.mrb[0].mxu0
      %v2525 = vpop.f32.mrb[0].mxu0
      %v2526 = vadd.f32 0.0, %v2525
      %v2527 = vpop.f32.mrb[0].mxu0
      %2528 = vmatprep.mubr.bf16.mxu0 0
      %2529 = vmatmul.mubr.bf16.gmra.mrb[0].mxu0 %v1086
      %v2530 = vpop.f32.mrb[0].mxu0
      %v2531 = vadd.f32 0.0, %v2530
      %v2532 = vpop.f32.mrb[0].mxu0
      %v2533 = vpop.f32.mrb[0].mxu0
      %v2534 = vadd.f32 0.0, %v2533
      %v2535 = vpop.f32.mrb[0].mxu0
      %2536 = vmatprep.mubr.bf16.mxu0 0
      %2537 = vmatmul.mubr.bf16.gmra.mrb[0].mxu0 %v1087
      %v2538 = vpop.f32.mrb[0].mxu0
      %v2539 = vadd.f32 0.0, %v2538
      %v2540 = vpop.f32.mrb[0].mxu0
      %v2541 = vpop.f32.mrb[0].mxu0
      %v2542 = vadd.f32 0.0, %v2541
      %v2543 = vpop.f32.mrb[0].mxu0
      %2544 = vmatprep.mubr.bf16.mxu0 0
      %2545 = vmatmul.mubr.bf16.gmra.mrb[0].mxu0 %v1088
      %v2546 = vpop.f32.mrb[0].mxu0
      %v2547 = vadd.f32 0.0, %v2546
      %v2548 = vpop.f32.mrb[0].mxu0
      %v2549 = vpop.f32.mrb[0].mxu0
      %v2550 = vadd.f32 0.0, %v2549
      %v2551 = vpop.f32.mrb[0].mxu0
      %2552 = vmatprep.mubr.bf16.mxu0 0
      %2553 = vmatmul.mubr.bf16.gmra.mrb[0].mxu0 %v1089
      %v2554 = vpop.f32.mrb[0].mxu0
      %v2555 = vadd.f32 0.0, %v2554
      %v2556 = vpop.f32.mrb[0].mxu0
      %v2557 = vpop.f32.mrb[0].mxu0
      %v2558 = vadd.f32 0.0, %v2557
      %v2559 = vpop.f32.mrb[0].mxu0
      %2560 = vmatprep.mubr.bf16.mxu0 0
      %2561 = vmatmul.mubr.bf16.gmra.mrb[0].mxu0 %v1090
      %v2562 = vpop.f32.mrb[0].mxu0
      %v2563 = vadd.f32 0.0, %v2562
      %v2564 = vpop.f32.mrb[0].mxu0
      %v2565 = vpop.f32.mrb[0].mxu0
      %v2566 = vadd.f32 0.0, %v2565
      %v2567 = vpop.f32.mrb[0].mxu0
      %2568 = vmatprep.mubr.bf16.mxu0 0
      %2569 = vmatmul.mubr.bf16.gmra.mrb[0].mxu0 %v1091
      %v2570 = vpop.f32.mrb[0].mxu0
      %v2571 = vadd.f32 0.0, %v2570
      %v2572 = vpop.f32.mrb[0].mxu0
      %v2573 = vpop.f32.mrb[0].mxu0
      %v2574 = vadd.f32 0.0, %v2573
      %v2575 = vpop.f32.mrb[0].mxu0
      %2576 = vmatprep.mubr.bf16.mxu0 0
      %2577 = vmatmul.mubr.bf16.gmra.mrb[0].mxu0 %v1092
      %v2578 = vpop.f32.mrb[0].mxu0
      %v2579 = vadd.f32 0.0, %v2578
      %v2580 = vpop.f32.mrb[0].mxu0
      %v2581 = vpop.f32.mrb[0].mxu0
      %v2582 = vadd.f32 0.0, %v2581
      %v2583 = vpop.f32.mrb[0].mxu0
      %2584 = vmatprep.mubr.bf16.mxu0 0
      %2585 = vmatmul.mubr.bf16.gmra.mrb[0].mxu0 %v1093
      %v2586 = vpop.f32.mrb[0].mxu0
      %v2587 = vadd.f32 0.0, %v2586
      %v2588 = vpop.f32.mrb[0].mxu0
      %v2589 = vpop.f32.mrb[0].mxu0
      %v2590 = vadd.f32 0.0, %v2589
      %v2591 = vpop.f32.mrb[0].mxu0
      %2592 = vmatprep.mubr.bf16.mxu0 0
      %2593 = vmatmul.mubr.bf16.gmra.mrb[0].mxu0 %v1094
      %v2594 = vpop.f32.mrb[0].mxu0
      %v2595 = vadd.f32 0.0, %v2594
      %v2596 = vpop.f32.mrb[0].mxu0
      %v2597 = vpop.f32.mrb[0].mxu0
      %v2598 = vadd.f32 0.0, %v2597
      %v2599 = vpop.f32.mrb[0].mxu0
      %2600 = vmatprep.mubr.bf16.mxu0 0
      %2601 = vmatmul.mubr.bf16.gmra.mrb[0].mxu0 %v2398
      %v2602 = vpop.f32.mrb[0].mxu0
      %v2603 = vadd.f32 0.0, %v2602
      %v2604 = vpop.f32.mrb[0].mxu0
      %v2605 = vpop.f32.mrb[0].mxu0
      %v2606 = vadd.f32 0.0, %v2605
      %v2607 = vpop.f32.mrb[0].mxu0
      %2608 = vdwg.mxu0
      %v2609 = vadd.f32 %v2346, %v2483
      %v2610 = vadd.f32 %v2347, %v2486
      %v2611 = vadd.f32 %v2348, %v2491
      %v2612 = vadd.f32 %v2349, %v2494
      %v2613 = vadd.f32 %v2350, %v2499
      %v2614 = vadd.f32 %v2351, %v2502
      %v2615 = vadd.f32 %v2352, %v2507
      %v2616 = vadd.f32 %v2353, %v2510
      %v2617 = vadd.f32 %v2354, %v2515
      %v2618 = vadd.f32 %v2355, %v2518
      %v2619 = vadd.f32 %v2356, %v2523
      %v2620 = vadd.f32 %v2357, %v2526
      %v2621 = vadd.f32 %v2358, %v2531
      %v2622 = vadd.f32 %v2359, %v2534
      %v2623 = vadd.f32 %v2360, %v2539
      %v2624 = vadd.f32 %v2361, %v2542
      %v2625 = vadd.f32 %v2362, %v2547
      %v2626 = vadd.f32 %v2363, %v2550
      %v2627 = vadd.f32 %v2364, %v2555
      %v2628 = vadd.f32 %v2365, %v2558
      %v2629 = vadd.f32 %v2366, %v2563
      %v2630 = vadd.f32 %v2367, %v2566
      %v2631 = vadd.f32 %v2368, %v2571
      %v2632 = vadd.f32 %v2369, %v2574
      %v2633 = vadd.f32 %v2370, %v2579
      %v2634 = vadd.f32 %v2371, %v2582
      %v2635 = vadd.f32 %v2372, %v2587
      %v2636 = vadd.f32 %v2373, %v2590
      %v2637 = vadd.f32 %v2374, %v2595
      %v2638 = vadd.f32 %v2375, %v2598
      %v2639 = vadd.f32 %v2376, %v2603
      %v2640 = vadd.f32 %v2377, %v2606
      %v2642 = vshrl.u32 %v271, 16
      %v2644 = vrot.slane %v2642, 4
      %v2645 = vshll.u32 %v271, 16
      %v2647 = vrot.slane %v2645, 5
      %v2648 = vor.u32 %v2644, %v2647
      %v2649 = vrot.slane %v2648, 4
      %v2651 = vshll.u32 %v272, 16
      %v2653 = vrot.slane %v2651, 5
      %v2654 = vsel %vm340, %v2649, %v2653
      %v2655 = vshrl.u32 %v272, 16
      %v2657 = vrot.slane %v2655, 4
      %v2658 = vor.u32 %v2657, %v2653
      %v2659 = vrot.slane %v2658, 4
      %v2661 = vshll.u32 %v273, 16
      %v2663 = vrot.slane %v2661, 5
      %v2664 = vsel %vm340, %v2659, %v2663
      %v2665 = vld [vmem:[%s210 + $0x100] sm:$0xf]
      %v2666 = vld [vmem:[%s210 + $0x104] sm:$0xf]
      %v2667 = vld [vmem:[%s210 + $0x108] sm:$0xf]
      %v2668 = vld [vmem:[%s210 + $0x10c] sm:$0xf]
      %v2669 = vld [vmem:[%s210 + $0x110] sm:$0xf]
      %v2670 = vld [vmem:[%s210 + $0x114] sm:$0xf]
      %v2671 = vld [vmem:[%s210 + $0x118] sm:$0xf]
      %v2672 = vld [vmem:[%s210 + $0x11c] sm:$0xf]
      %v2673 = vunpack.c.l.b16 %v2654
      %v2674 = vunpack.c.l.b16 %v2664
      %v2675 = vpack.c.b16 %v2674, %v2673
      %v2684 = vunpack.c.l.b16 %v2665
      %v2685 = vunpack.c.l.b16 %v2666
      %v2686 = vunpack.c.l.b16 %v2667
      %v2687 = vunpack.c.l.b16 %v2668
      %v2688 = vunpack.c.l.b16 %v2669
      %v2689 = vunpack.c.l.b16 %v2670
      %v2690 = vunpack.c.l.b16 %v2671
      %v2691 = vunpack.c.l.b16 %v2672
      %v2692 = vpack.c.b16 %v2685, %v2684
      %v2693 = vpack.c.b16 %v2687, %v2686
      %v2694 = vpack.c.b16 %v2689, %v2688
      %v2695 = vpack.c.b16 %v2691, %v2690
      %v2701 = vsel %vm805, %v2675, 0
      %2703 = vmatprep.subr.bf16.mxu0 0
      %2704 = vmatpush1.bf16.msra.mxu0 %v2692
      %2705 = vmatprep.subr.bf16.mxu0 0
      %2706 = vmatpush1.bf16.msra.mxu0 %v2693
      %2707 = vmatprep.subr.bf16.mxu0 0
      %2708 = vmatpush1.bf16.msra.mxu0 %v2694
      %2709 = vmatprep.subr.bf16.mxu0 0
      %2710 = vmatpush1.bf16.msra.mxu0 %v2695
      %2711 = vmatprep.subr.bf16.mxu0 0
      %2712 = vmatpush1.bf16.msra.mxu0 0
      %2713 = vmatprep.subr.bf16.mxu0 0
      %2714 = vmatpush1.bf16.msra.mxu0 0
      %2715 = vmatprep.subr.bf16.mxu0 0
      %2716 = vmatpush1.bf16.msra.mxu0 0
      %2717 = vmatprep.subr.bf16.mxu0 0
      %2718 = vmatpush1.bf16.msra.mxu0 0
      %2719 = vmatprep.subr.bf16.mxu0 0
      %2720 = vmatpush1.bf16.msra.mxu0 0
      %2721 = vmatprep.subr.bf16.mxu0 0
      %2722 = vmatpush1.bf16.msra.mxu0 0
      %2723 = vmatprep.subr.bf16.mxu0 0
      %2724 = vmatpush1.bf16.msra.mxu0 0
      %2725 = vmatprep.subr.bf16.mxu0 0
      %2726 = vmatpush1.bf16.msra.mxu0 0
      %2727 = vmatprep.subr.bf16.mxu0 0
      %2728 = vmatpush1.bf16.msra.mxu0 0
      %2729 = vmatprep.subr.bf16.mxu0 0
      %2730 = vmatpush1.bf16.msra.mxu0 0
      %2731 = vmatprep.subr.bf16.mxu0 0
      %2732 = vmatpush1.bf16.msra.mxu0 0
      %2733 = vmatprep.subr.bf16.mxu0 0
      %2734 = vmatpush1.bf16.msra.mxu0 0
      %2735 = vmatprep.mubr.bf16.mxu0 0
      %2736 = vmatmul.mubr.bf16.gmra.mrb[0].mxu0 %v810
      %v2737 = vpop.f32.mrb[0].mxu0
      %v2738 = vadd.f32 0.0, %v2737
      %v2739 = vpop.f32.mrb[0].mxu0
      %v2740 = vpop.f32.mrb[0].mxu0
      %v2741 = vadd.f32 0.0, %v2740
      %v2742 = vpop.f32.mrb[0].mxu0
      %2743 = vmatprep.mubr.bf16.mxu0 0
      %2744 = vmatmul.mubr.bf16.gmra.mrb[0].mxu0 %v813
      %v2745 = vpop.f32.mrb[0].mxu0
      %v2746 = vadd.f32 0.0, %v2745
      %v2747 = vpop.f32.mrb[0].mxu0
      %v2748 = vpop.f32.mrb[0].mxu0
      %v2749 = vadd.f32 0.0, %v2748
      %v2750 = vpop.f32.mrb[0].mxu0
      %2751 = vmatprep.mubr.bf16.mxu0 0
      %2752 = vmatmul.mubr.bf16.gmra.mrb[0].mxu0 %v816
      %v2753 = vpop.f32.mrb[0].mxu0
      %v2754 = vadd.f32 0.0, %v2753
      %v2755 = vpop.f32.mrb[0].mxu0
      %v2756 = vpop.f32.mrb[0].mxu0
      %v2757 = vadd.f32 0.0, %v2756
      %v2758 = vpop.f32.mrb[0].mxu0
      %2759 = vmatprep.mubr.bf16.mxu0 0
      %2760 = vmatmul.mubr.bf16.gmra.mrb[0].mxu0 %v819
      %v2761 = vpop.f32.mrb[0].mxu0
      %v2762 = vadd.f32 0.0, %v2761
      %v2763 = vpop.f32.mrb[0].mxu0
      %v2764 = vpop.f32.mrb[0].mxu0
      %v2765 = vadd.f32 0.0, %v2764
      %v2766 = vpop.f32.mrb[0].mxu0
      %2767 = vmatprep.mubr.bf16.mxu0 0
      %2768 = vmatmul.mubr.bf16.gmra.mrb[0].mxu0 %v822
      %v2769 = vpop.f32.mrb[0].mxu0
      %v2770 = vadd.f32 0.0, %v2769
      %v2771 = vpop.f32.mrb[0].mxu0
      %v2772 = vpop.f32.mrb[0].mxu0
      %v2773 = vadd.f32 0.0, %v2772
      %v2774 = vpop.f32.mrb[0].mxu0
      %2775 = vmatprep.mubr.bf16.mxu0 0
      %2776 = vmatmul.mubr.bf16.gmra.mrb[0].mxu0 %v825
      %v2777 = vpop.f32.mrb[0].mxu0
      %v2778 = vadd.f32 0.0, %v2777
      %v2779 = vpop.f32.mrb[0].mxu0
      %v2780 = vpop.f32.mrb[0].mxu0
      %v2781 = vadd.f32 0.0, %v2780
      %v2782 = vpop.f32.mrb[0].mxu0
      %2783 = vmatprep.mubr.bf16.mxu0 0
      %2784 = vmatmul.mubr.bf16.gmra.mrb[0].mxu0 %v828
      %v2785 = vpop.f32.mrb[0].mxu0
      %v2786 = vadd.f32 0.0, %v2785
      %v2787 = vpop.f32.mrb[0].mxu0
      %v2788 = vpop.f32.mrb[0].mxu0
      %v2789 = vadd.f32 0.0, %v2788
      %v2790 = vpop.f32.mrb[0].mxu0
      %2791 = vmatprep.mubr.bf16.mxu0 0
      %2792 = vmatmul.mubr.bf16.gmra.mrb[0].mxu0 %v831
      %v2793 = vpop.f32.mrb[0].mxu0
      %v2794 = vadd.f32 0.0, %v2793
      %v2795 = vpop.f32.mrb[0].mxu0
      %v2796 = vpop.f32.mrb[0].mxu0
      %v2797 = vadd.f32 0.0, %v2796
      %v2798 = vpop.f32.mrb[0].mxu0
      %2799 = vmatprep.mubr.bf16.mxu0 0
      %2800 = vmatmul.mubr.bf16.gmra.mrb[0].mxu0 %v834
      %v2801 = vpop.f32.mrb[0].mxu0
      %v2802 = vadd.f32 0.0, %v2801
      %v2803 = vpop.f32.mrb[0].mxu0
      %v2804 = vpop.f32.mrb[0].mxu0
      %v2805 = vadd.f32 0.0, %v2804
      %v2806 = vpop.f32.mrb[0].mxu0
      %2807 = vmatprep.mubr.bf16.mxu0 0
      %2808 = vmatmul.mubr.bf16.gmra.mrb[0].mxu0 %v837
      %v2809 = vpop.f32.mrb[0].mxu0
      %v2810 = vadd.f32 0.0, %v2809
      %v2811 = vpop.f32.mrb[0].mxu0
      %v2812 = vpop.f32.mrb[0].mxu0
      %v2813 = vadd.f32 0.0, %v2812
      %v2814 = vpop.f32.mrb[0].mxu0
      %2815 = vmatprep.mubr.bf16.mxu0 0
      %2816 = vmatmul.mubr.bf16.gmra.mrb[0].mxu0 %v840
      %v2817 = vpop.f32.mrb[0].mxu0
      %v2818 = vadd.f32 0.0, %v2817
      %v2819 = vpop.f32.mrb[0].mxu0
      %v2820 = vpop.f32.mrb[0].mxu0
      %v2821 = vadd.f32 0.0, %v2820
      %v2822 = vpop.f32.mrb[0].mxu0
      %2823 = vmatprep.mubr.bf16.mxu0 0
      %2824 = vmatmul.mubr.bf16.gmra.mrb[0].mxu0 %v843
      %v2825 = vpop.f32.mrb[0].mxu0
      %v2826 = vadd.f32 0.0, %v2825
      %v2827 = vpop.f32.mrb[0].mxu0
      %v2828 = vpop.f32.mrb[0].mxu0
      %v2829 = vadd.f32 0.0, %v2828
      %v2830 = vpop.f32.mrb[0].mxu0
      %2831 = vmatprep.mubr.bf16.mxu0 0
      %2832 = vmatmul.mubr.bf16.gmra.mrb[0].mxu0 %v846
      %v2833 = vpop.f32.mrb[0].mxu0
      %v2834 = vadd.f32 0.0, %v2833
      %v2835 = vpop.f32.mrb[0].mxu0
      %v2836 = vpop.f32.mrb[0].mxu0
      %v2837 = vadd.f32 0.0, %v2836
      %v2838 = vpop.f32.mrb[0].mxu0
      %2839 = vmatprep.mubr.bf16.mxu0 0
      %2840 = vmatmul.mubr.bf16.gmra.mrb[0].mxu0 %v849
      %v2841 = vpop.f32.mrb[0].mxu0
      %v2842 = vadd.f32 0.0, %v2841
      %v2843 = vpop.f32.mrb[0].mxu0
      %v2844 = vpop.f32.mrb[0].mxu0
      %v2845 = vadd.f32 0.0, %v2844
      %v2846 = vpop.f32.mrb[0].mxu0
      %2847 = vmatprep.mubr.bf16.mxu0 0
      %2848 = vmatmul.mubr.bf16.gmra.mrb[0].mxu0 %v852
      %v2849 = vpop.f32.mrb[0].mxu0
      %v2850 = vadd.f32 0.0, %v2849
      %v2851 = vpop.f32.mrb[0].mxu0
      %v2852 = vpop.f32.mrb[0].mxu0
      %v2853 = vadd.f32 0.0, %v2852
      %v2854 = vpop.f32.mrb[0].mxu0
      %2855 = vmatprep.mubr.bf16.mxu0 0
      %2856 = vmatmul.mubr.bf16.gmra.mrb[0].mxu0 %v2701
      %v2857 = vpop.f32.mrb[0].mxu0
      %v2858 = vadd.f32 0.0, %v2857
      %v2859 = vpop.f32.mrb[0].mxu0
      %v2860 = vpop.f32.mrb[0].mxu0
      %v2861 = vadd.f32 0.0, %v2860
      %v2862 = vpop.f32.mrb[0].mxu0
      %2863 = vdwg.mxu0
      %v2864 = vadd.f32 %v2609, %v2738
      %v2865 = vadd.f32 %v2610, %v2741
      %v2866 = vadd.f32 %v2611, %v2746
      %v2867 = vadd.f32 %v2612, %v2749
      %v2868 = vadd.f32 %v2613, %v2754
      %v2869 = vadd.f32 %v2614, %v2757
      %v2870 = vadd.f32 %v2615, %v2762
      %v2871 = vadd.f32 %v2616, %v2765
      %v2872 = vadd.f32 %v2617, %v2770
      %v2873 = vadd.f32 %v2618, %v2773
      %v2874 = vadd.f32 %v2619, %v2778
      %v2875 = vadd.f32 %v2620, %v2781
      %v2876 = vadd.f32 %v2621, %v2786
      %v2877 = vadd.f32 %v2622, %v2789
      %v2878 = vadd.f32 %v2623, %v2794
      %v2879 = vadd.f32 %v2624, %v2797
      %v2880 = vadd.f32 %v2625, %v2802
      %v2881 = vadd.f32 %v2626, %v2805
      %v2882 = vadd.f32 %v2627, %v2810
      %v2883 = vadd.f32 %v2628, %v2813
      %v2884 = vadd.f32 %v2629, %v2818
      %v2885 = vadd.f32 %v2630, %v2821
      %v2886 = vadd.f32 %v2631, %v2826
      %v2887 = vadd.f32 %v2632, %v2829
      %v2888 = vadd.f32 %v2633, %v2834
      %v2889 = vadd.f32 %v2634, %v2837
      %v2890 = vadd.f32 %v2635, %v2842
      %v2891 = vadd.f32 %v2636, %v2845
      %v2892 = vadd.f32 %v2637, %v2850
      %v2893 = vadd.f32 %v2638, %v2853
      %v2894 = vadd.f32 %v2639, %v2858
      %v2895 = vadd.f32 %v2640, %v2861
      %v2896 = vld [vmem:[%s213] sm:$0x1]
      %v2898 = vlaneseq
      %v2899 = vshrl.u32 %v2898, 7
      %v2900 = vsub.s32 0, %v2899
      %v2901 = vrot.slane %v2896, %v2900
      %v2903 = vadd.f32 %v2864, %v2901
      %v2904 = vadd.f32 %v2865, %v2901
      %v2905 = vadd.f32 %v2866, %v2901
      %v2906 = vadd.f32 %v2867, %v2901
      %v2907 = vadd.f32 %v2868, %v2901
      %v2908 = vadd.f32 %v2869, %v2901
      %v2909 = vadd.f32 %v2870, %v2901
      %v2910 = vadd.f32 %v2871, %v2901
      %v2911 = vadd.f32 %v2872, %v2901
      %v2912 = vadd.f32 %v2873, %v2901
      %v2913 = vadd.f32 %v2874, %v2901
      %v2914 = vadd.f32 %v2875, %v2901
      %v2915 = vadd.f32 %v2876, %v2901
      %v2916 = vadd.f32 %v2877, %v2901
      %v2917 = vadd.f32 %v2878, %v2901
      %v2918 = vadd.f32 %v2879, %v2901
      %v2919 = vadd.f32 %v2880, %v2901
      %v2920 = vadd.f32 %v2881, %v2901
      %v2921 = vadd.f32 %v2882, %v2901
      %v2922 = vadd.f32 %v2883, %v2901
      %v2923 = vadd.f32 %v2884, %v2901
      %v2924 = vadd.f32 %v2885, %v2901
      %v2925 = vadd.f32 %v2886, %v2901
      %v2926 = vadd.f32 %v2887, %v2901
      %v2927 = vadd.f32 %v2888, %v2901
      %v2928 = vadd.f32 %v2889, %v2901
      %v2929 = vadd.f32 %v2890, %v2901
      %v2930 = vadd.f32 %v2891, %v2901
      %v2931 = vadd.f32 %v2892, %v2901
      %v2932 = vadd.f32 %v2893, %v2901
      %v2933 = vadd.f32 %v2894, %v2901
      %v2934 = vadd.f32 %v2895, %v2901
      %v2935 = vadd.f32 %v2903, %v2904
      %v2936 = vadd.f32 %v2935, %v2905
      %v2937 = vadd.f32 %v2936, %v2906
      %v2938 = vadd.f32 %v2937, %v2907
      %v2939 = vadd.f32 %v2938, %v2908
      %v2940 = vadd.f32 %v2939, %v2909
      %v2941 = vadd.f32 %v2940, %v2910
      %v2942 = vadd.f32 %v2941, %v2911
      %v2943 = vadd.f32 %v2942, %v2912
      %v2944 = vadd.f32 %v2943, %v2913
      %v2945 = vadd.f32 %v2944, %v2914
      %v2946 = vadd.f32 %v2945, %v2915
      %v2947 = vadd.f32 %v2946, %v2916
      %v2948 = vadd.f32 %v2947, %v2917
      %v2949 = vadd.f32 %v2948, %v2918
      %v2950 = vadd.f32 %v2949, %v2919
      %v2951 = vadd.f32 %v2950, %v2920
      %v2952 = vadd.f32 %v2951, %v2921
      %v2953 = vadd.f32 %v2952, %v2922
      %v2954 = vadd.f32 %v2953, %v2923
      %v2955 = vadd.f32 %v2954, %v2924
      %v2956 = vadd.f32 %v2955, %v2925
      %v2957 = vadd.f32 %v2956, %v2926
      %v2958 = vadd.f32 %v2957, %v2927
      %v2959 = vadd.f32 %v2958, %v2928
      %v2960 = vadd.f32 %v2959, %v2929
      %v2961 = vadd.f32 %v2960, %v2930
      %v2962 = vadd.f32 %v2961, %v2931
      %v2963 = vadd.f32 %v2962, %v2932
      %v2964 = vadd.f32 %v2963, %v2933
      %v2965 = vadd.f32 %v2964, %v2934
      %v2966 = vrot.slane %v2965, 4
      %v2967 = vadd.f32 %v2965, %v2966
      %v2968 = vrot.slane %v2967, 2
      %v2969 = vadd.f32 %v2967, %v2968
      %v2970 = vrot.slane %v2969, 1
      %v2971 = vadd.f32 %v2969, %v2970
      %v2972 = vmul.f32 %v2971, 0.00390625
      %v2973 = vsub.f32 %v2903, %v2972
      %v2974 = vsub.f32 %v2904, %v2972
      %v2975 = vsub.f32 %v2905, %v2972
      %v2976 = vsub.f32 %v2906, %v2972
      %v2977 = vsub.f32 %v2907, %v2972
      %v2978 = vsub.f32 %v2908, %v2972
      %v2979 = vsub.f32 %v2909, %v2972
      %v2980 = vsub.f32 %v2910, %v2972
      %v2981 = vsub.f32 %v2911, %v2972
      %v2982 = vsub.f32 %v2912, %v2972
      %v2983 = vsub.f32 %v2913, %v2972
      %v2984 = vsub.f32 %v2914, %v2972
      %v2985 = vsub.f32 %v2915, %v2972
      %v2986 = vsub.f32 %v2916, %v2972
      %v2987 = vsub.f32 %v2917, %v2972
      %v2988 = vsub.f32 %v2918, %v2972
      %v2989 = vsub.f32 %v2919, %v2972
      %v2990 = vsub.f32 %v2920, %v2972
      %v2991 = vsub.f32 %v2921, %v2972
      %v2992 = vsub.f32 %v2922, %v2972
      %v2993 = vsub.f32 %v2923, %v2972
      %v2994 = vsub.f32 %v2924, %v2972
      %v2995 = vsub.f32 %v2925, %v2972
      %v2996 = vsub.f32 %v2926, %v2972
      %v2997 = vsub.f32 %v2927, %v2972
      %v2998 = vsub.f32 %v2928, %v2972
      %v2999 = vsub.f32 %v2929, %v2972
      %v3000 = vsub.f32 %v2930, %v2972
      %v3001 = vsub.f32 %v2931, %v2972
      %v3002 = vsub.f32 %v2932, %v2972
      %v3003 = vsub.f32 %v2933, %v2972
      %v3004 = vsub.f32 %v2934, %v2972
      %v3005 = vmul.f32 %v2973, %v2973
      %v3006 = vmul.f32 %v2974, %v2974
      %v3007 = vmul.f32 %v2975, %v2975
      %v3008 = vmul.f32 %v2976, %v2976
      %v3009 = vmul.f32 %v2977, %v2977
      %v3010 = vmul.f32 %v2978, %v2978
      %v3011 = vmul.f32 %v2979, %v2979
      %v3012 = vmul.f32 %v2980, %v2980
      %v3013 = vmul.f32 %v2981, %v2981
      %v3014 = vmul.f32 %v2982, %v2982
      %v3015 = vmul.f32 %v2983, %v2983
      %v3016 = vmul.f32 %v2984, %v2984
      %v3017 = vmul.f32 %v2985, %v2985
      %v3018 = vmul.f32 %v2986, %v2986
      %v3019 = vmul.f32 %v2987, %v2987
      %v3020 = vmul.f32 %v2988, %v2988
      %v3021 = vmul.f32 %v2989, %v2989
      %v3022 = vmul.f32 %v2990, %v2990
      %v3023 = vmul.f32 %v2991, %v2991
      %v3024 = vmul.f32 %v2992, %v2992
      %v3025 = vmul.f32 %v2993, %v2993
      %v3026 = vmul.f32 %v2994, %v2994
      %v3027 = vmul.f32 %v2995, %v2995
      %v3028 = vmul.f32 %v2996, %v2996
      %v3029 = vmul.f32 %v2997, %v2997
      %v3030 = vmul.f32 %v2998, %v2998
      %v3031 = vmul.f32 %v2999, %v2999
      %v3032 = vmul.f32 %v3000, %v3000
      %v3033 = vmul.f32 %v3001, %v3001
      %v3034 = vmul.f32 %v3002, %v3002
      %v3035 = vmul.f32 %v3003, %v3003
      %v3036 = vmul.f32 %v3004, %v3004
      %v3037 = vadd.f32 %v3005, %v3006
      %v3038 = vadd.f32 %v3037, %v3007
      %v3039 = vadd.f32 %v3038, %v3008
      %v3040 = vadd.f32 %v3039, %v3009
      %v3041 = vadd.f32 %v3040, %v3010
      %v3042 = vadd.f32 %v3041, %v3011
      %v3043 = vadd.f32 %v3042, %v3012
      %v3044 = vadd.f32 %v3043, %v3013
      %v3045 = vadd.f32 %v3044, %v3014
      %v3046 = vadd.f32 %v3045, %v3015
      %v3047 = vadd.f32 %v3046, %v3016
      %v3048 = vadd.f32 %v3047, %v3017
      %v3049 = vadd.f32 %v3048, %v3018
      %v3050 = vadd.f32 %v3049, %v3019
      %v3051 = vadd.f32 %v3050, %v3020
      %v3052 = vadd.f32 %v3051, %v3021
      %v3053 = vadd.f32 %v3052, %v3022
      %v3054 = vadd.f32 %v3053, %v3023
      %v3055 = vadd.f32 %v3054, %v3024
      %v3056 = vadd.f32 %v3055, %v3025
      %v3057 = vadd.f32 %v3056, %v3026
      %v3058 = vadd.f32 %v3057, %v3027
      %v3059 = vadd.f32 %v3058, %v3028
      %v3060 = vadd.f32 %v3059, %v3029
      %v3061 = vadd.f32 %v3060, %v3030
      %v3062 = vadd.f32 %v3061, %v3031
      %v3063 = vadd.f32 %v3062, %v3032
      %v3064 = vadd.f32 %v3063, %v3033
      %v3065 = vadd.f32 %v3064, %v3034
      %v3066 = vadd.f32 %v3065, %v3035
      %v3067 = vadd.f32 %v3066, %v3036
      %v3068 = vrot.slane %v3067, 4
      %v3069 = vadd.f32 %v3067, %v3068
      %v3070 = vrot.slane %v3069, 2
      %v3071 = vadd.f32 %v3069, %v3070
      %v3072 = vrot.slane %v3071, 1
      %v3073 = vadd.f32 %v3071, %v3072
      %v3074 = vmul.f32 %v3073, 0.00390625
      %v3075 = vadd.f32 %v3074, 1e-05
      %v3076 = vrsqrt.pop %v3075
      %v3077 = vmul.f32 %v2973, %v3076
      %v3078 = vmul.f32 %v2974, %v3076
      %v3079 = vmul.f32 %v2975, %v3076
      %v3080 = vmul.f32 %v2976, %v3076
      %v3081 = vmul.f32 %v2977, %v3076
      %v3082 = vmul.f32 %v2978, %v3076
      %v3083 = vmul.f32 %v2979, %v3076
      %v3084 = vmul.f32 %v2980, %v3076
      %v3085 = vmul.f32 %v2981, %v3076
      %v3086 = vmul.f32 %v2982, %v3076
      %v3087 = vmul.f32 %v2983, %v3076
      %v3088 = vmul.f32 %v2984, %v3076
      %v3089 = vmul.f32 %v2985, %v3076
      %v3090 = vmul.f32 %v2986, %v3076
      %v3091 = vmul.f32 %v2987, %v3076
      %v3092 = vmul.f32 %v2988, %v3076
      %v3093 = vmul.f32 %v2989, %v3076
      %v3094 = vmul.f32 %v2990, %v3076
      %v3095 = vmul.f32 %v2991, %v3076
      %v3096 = vmul.f32 %v2992, %v3076
      %v3097 = vmul.f32 %v2993, %v3076
      %v3098 = vmul.f32 %v2994, %v3076
      %v3099 = vmul.f32 %v2995, %v3076
      %v3100 = vmul.f32 %v2996, %v3076
      %v3101 = vmul.f32 %v2997, %v3076
      %v3102 = vmul.f32 %v2998, %v3076
      %v3103 = vmul.f32 %v2999, %v3076
      %v3104 = vmul.f32 %v3000, %v3076
      %v3105 = vmul.f32 %v3001, %v3076
      %v3106 = vmul.f32 %v3002, %v3076
      %v3107 = vmul.f32 %v3003, %v3076
      %v3108 = vmul.f32 %v3004, %v3076
      %v3109 = vmax.f32 %v3077, 0.0
      %v3110 = vmax.f32 %v3078, 0.0
      %v3111 = vmax.f32 %v3079, 0.0
      %v3112 = vmax.f32 %v3080, 0.0
      %v3113 = vmax.f32 %v3081, 0.0
      %v3114 = vmax.f32 %v3082, 0.0
      %v3115 = vmax.f32 %v3083, 0.0
      %v3116 = vmax.f32 %v3084, 0.0
      %v3117 = vmax.f32 %v3085, 0.0
      %v3118 = vmax.f32 %v3086, 0.0
      %v3119 = vmax.f32 %v3087, 0.0
      %v3120 = vmax.f32 %v3088, 0.0
      %v3121 = vmax.f32 %v3089, 0.0
      %v3122 = vmax.f32 %v3090, 0.0
      %v3123 = vmax.f32 %v3091, 0.0
      %v3124 = vmax.f32 %v3092, 0.0
      %v3125 = vmax.f32 %v3093, 0.0
      %v3126 = vmax.f32 %v3094, 0.0
      %v3127 = vmax.f32 %v3095, 0.0
      %v3128 = vmax.f32 %v3096, 0.0
      %v3129 = vmax.f32 %v3097, 0.0
      %v3130 = vmax.f32 %v3098, 0.0
      %v3131 = vmax.f32 %v3099, 0.0
      %v3132 = vmax.f32 %v3100, 0.0
      %v3133 = vmax.f32 %v3101, 0.0
      %v3134 = vmax.f32 %v3102, 0.0
      %v3135 = vmax.f32 %v3103, 0.0
      %v3136 = vmax.f32 %v3104, 0.0
      %v3137 = vmax.f32 %v3105, 0.0
      %v3138 = vmax.f32 %v3106, 0.0
      %v3139 = vmax.f32 %v3107, 0.0
      %v3140 = vmax.f32 %v3108, 0.0
      %v3141 = vpack.c.bf16 %v3110, %v3109
      %v3142 = vpack.c.bf16 %v3112, %v3111
      %v3143 = vpack.c.bf16 %v3114, %v3113
      %v3144 = vpack.c.bf16 %v3116, %v3115
      %v3145 = vpack.c.bf16 %v3118, %v3117
      %v3146 = vpack.c.bf16 %v3120, %v3119
      %v3147 = vpack.c.bf16 %v3122, %v3121
      %v3148 = vpack.c.bf16 %v3124, %v3123
      %v3149 = vpack.c.bf16 %v3126, %v3125
      %v3150 = vpack.c.bf16 %v3128, %v3127
      %v3151 = vpack.c.bf16 %v3130, %v3129
      %v3152 = vpack.c.bf16 %v3132, %v3131
      %v3153 = vpack.c.bf16 %v3134, %v3133
      %v3154 = vpack.c.bf16 %v3136, %v3135
      %v3155 = vpack.c.bf16 %v3138, %v3137
      %v3156 = vpack.c.bf16 %v3140, %v3139
      %v3173 = vunpack.c.l.b16 %v3141
      %v3174 = vunpack.c.h.b16 %v3141
      %v3175 = vunpack.c.l.b16 %v3142
      %v3176 = vunpack.c.h.b16 %v3142
      %v3177 = vunpack.c.l.b16 %v3143
      %v3178 = vunpack.c.h.b16 %v3143
      %v3179 = vunpack.c.l.b16 %v3144
      %v3180 = vunpack.c.h.b16 %v3144
      %v3181 = vunpack.c.l.b16 %v3145
      %v3182 = vunpack.c.h.b16 %v3145
      %v3183 = vunpack.c.l.b16 %v3146
      %v3184 = vunpack.c.h.b16 %v3146
      %v3185 = vunpack.c.l.b16 %v3147
      %v3186 = vunpack.c.h.b16 %v3147
      %v3187 = vunpack.c.l.b16 %v3148
      %v3188 = vunpack.c.h.b16 %v3148
      %v3189 = vunpack.c.l.b16 %v3149
      %v3190 = vunpack.c.h.b16 %v3149
      %v3191 = vunpack.c.l.b16 %v3150
      %v3192 = vunpack.c.h.b16 %v3150
      %v3193 = vunpack.c.l.b16 %v3151
      %v3194 = vunpack.c.h.b16 %v3151
      %v3195 = vunpack.c.l.b16 %v3152
      %v3196 = vunpack.c.h.b16 %v3152
      %v3197 = vunpack.c.l.b16 %v3153
      %v3198 = vunpack.c.h.b16 %v3153
      %v3199 = vunpack.c.l.b16 %v3154
      %v3200 = vunpack.c.h.b16 %v3154
      %v3201 = vunpack.c.l.b16 %v3155
      %v3202 = vunpack.c.h.b16 %v3155
      %v3203 = vunpack.c.l.b16 %v3156
      %v3204 = vunpack.c.h.b16 %v3156
      %v3205 = vpack.c.b16 %v3173, %v3173
      %v3206 = vpack.c.b16 %v3174, %v3174
      %v3207 = vpack.c.b16 %v3175, %v3175
      %v3208 = vpack.c.b16 %v3176, %v3176
      %v3209 = vpack.c.b16 %v3177, %v3177
      %v3210 = vpack.c.b16 %v3178, %v3178
      %v3211 = vpack.c.b16 %v3179, %v3179
      %v3212 = vpack.c.b16 %v3180, %v3180
      %v3213 = vpack.c.b16 %v3181, %v3181
      %v3214 = vpack.c.b16 %v3182, %v3182
      %v3215 = vpack.c.b16 %v3183, %v3183
      %v3216 = vpack.c.b16 %v3184, %v3184
      %v3217 = vpack.c.b16 %v3185, %v3185
      %v3218 = vpack.c.b16 %v3186, %v3186
      %v3219 = vpack.c.b16 %v3187, %v3187
      %v3220 = vpack.c.b16 %v3188, %v3188
      %v3221 = vpack.c.b16 %v3189, %v3189
      %v3222 = vpack.c.b16 %v3190, %v3190
      %v3223 = vpack.c.b16 %v3191, %v3191
      %v3224 = vpack.c.b16 %v3192, %v3192
      %v3225 = vpack.c.b16 %v3193, %v3193
      %v3226 = vpack.c.b16 %v3194, %v3194
      %v3227 = vpack.c.b16 %v3195, %v3195
      %v3228 = vpack.c.b16 %v3196, %v3196
      %v3229 = vpack.c.b16 %v3197, %v3197
      %v3230 = vpack.c.b16 %v3198, %v3198
      %v3231 = vpack.c.b16 %v3199, %v3199
      %v3232 = vpack.c.b16 %v3200, %v3200
      %v3233 = vpack.c.b16 %v3201, %v3201
      %v3234 = vpack.c.b16 %v3202, %v3202
      %v3235 = vpack.c.b16 %v3203, %v3203
      %v3236 = vpack.c.b16 %v3204, %v3204
      %3269 = vst [vmem:[%s221] sm:$0xf] %v3205
      %3270 = vst [vmem:[%s221 + $0x4] sm:$0xf] %v3206
      %3271 = vst [vmem:[%s221 + $0x8] sm:$0xf] %v3207
      %3272 = vst [vmem:[%s221 + $0xc] sm:$0xf] %v3208
      %3273 = vst [vmem:[%s221 + $0x10] sm:$0xf] %v3209
      %3274 = vst [vmem:[%s221 + $0x14] sm:$0xf] %v3210
      %3275 = vst [vmem:[%s221 + $0x18] sm:$0xf] %v3211
      %3276 = vst [vmem:[%s221 + $0x1c] sm:$0xf] %v3212
      %3277 = vst [vmem:[%s221 + $0x20] sm:$0xf] %v3213
      %3278 = vst [vmem:[%s221 + $0x24] sm:$0xf] %v3214
      %3279 = vst [vmem:[%s221 + $0x28] sm:$0xf] %v3215
      %3280 = vst [vmem:[%s221 + $0x2c] sm:$0xf] %v3216
      %3281 = vst [vmem:[%s221 + $0x30] sm:$0xf] %v3217
      %3282 = vst [vmem:[%s221 + $0x34] sm:$0xf] %v3218
      %3283 = vst [vmem:[%s221 + $0x38] sm:$0xf] %v3219
      %3284 = vst [vmem:[%s221 + $0x3c] sm:$0xf] %v3220
      %3285 = vst [vmem:[%s221 + $0x40] sm:$0xf] %v3221
      %3286 = vst [vmem:[%s221 + $0x44] sm:$0xf] %v3222
      %3287 = vst [vmem:[%s221 + $0x48] sm:$0xf] %v3223
      %3288 = vst [vmem:[%s221 + $0x4c] sm:$0xf] %v3224
      %3289 = vst [vmem:[%s221 + $0x50] sm:$0xf] %v3225
      %3290 = vst [vmem:[%s221 + $0x54] sm:$0xf] %v3226
      %3291 = vst [vmem:[%s221 + $0x58] sm:$0xf] %v3227
      %3292 = vst [vmem:[%s221 + $0x5c] sm:$0xf] %v3228
      %3293 = vst [vmem:[%s221 + $0x60] sm:$0xf] %v3229
      %3294 = vst [vmem:[%s221 + $0x64] sm:$0xf] %v3230
      %3295 = vst [vmem:[%s221 + $0x68] sm:$0xf] %v3231
      %3296 = vst [vmem:[%s221 + $0x6c] sm:$0xf] %v3232
      %3297 = vst [vmem:[%s221 + $0x70] sm:$0xf] %v3233
      %3298 = vst [vmem:[%s221 + $0x74] sm:$0xf] %v3234
      %3299 = vst [vmem:[%s221 + $0x78] sm:$0xf] %v3235
      %3300 = vst [vmem:[%s221 + $0x7c] sm:$0xf] %v3236
      %p3301 = scmp.lt.s32.totalorder %s18, 1
      %s3302 = scalar_select %p3301, %s18, 1
      %p3303 = scmp.lt.s32.totalorder %s19, 0
      %s3304 = scalar_select %p3303, %s19, 0
      %s3305 = smul.addr %s3302, 32
      %s3306 = sadd.s32 %s3304, %s3305
      %s3307 = smul.addr %s3306, 4
      %s3308 = scalar_lea.vmem %s3, %s3307
      // Predicated region
      $region33: #{encoder_forward.4} parent=31 // pred_check
        %p3309 = pneg %p124
      $region34: #{encoder_forward.4} parent=31 // pred_check_branch
        %3311 = sbr.rel (%p3309) target = $region36
      $region35: #{encoder_forward.4} parent=31 // pred_region
        _
      $region36: #{encoder_forward.4} parent=31 // pred_fallthru
        _
    $region32: #{encoder_forward.4} parent=5 // pred_fallthru
      _
    %p3312 = scmp.le.s32.totalorder 2, %s9
    // Predicated region
    $region37: #{encoder_forward.4} parent=5 // pred_check
      %p3313 = pneg %p3312
    $region38: #{encoder_forward.4} parent=5 // pred_check_branch
      %3315 = sbr.rel (%p3313) target = $region40
    $region39: #{encoder_forward.4} parent=5 // pred_region
      %s3316 = ssub.s32 %s9, 2
      // Predicated region
      $region41: #{encoder_forward.4} parent=39 // pred_check
        %p3317 = pneg %p130
      $region42: #{encoder_forward.4} parent=39 // pred_check_branch
        %3319 = sbr.rel (%p3317) target = $region44
      $region43: #{encoder_forward.4} parent=39 // pred_region
        %p3320 = scmp.lt.s32.totalorder %s20, 1
        %s3321 = scalar_select %p3320, %s20, 1
        %p3322 = scmp.lt.s32.totalorder %s21, 0
        %s3323 = scalar_select %p3322, %s21, 0
        %s3324 = smul.addr %s3321, 32
        %s3325 = sadd.s32 %s3323, %s3324
        %s3326 = smul.addr %s3325, 4
        %s3327 = scalar_lea.vmem %s3, %s3326
      $region44: #{encoder_forward.4} parent=39 // pred_fallthru
        _
    $region40: #{encoder_forward.4} parent=5 // pred_fallthru
      _
  $region6: #{encoder_forward.4} parent=0 // loop_footer
    %s13 = sadd.s32 1, %s9
  $region7: #{encoder_forward.4} parent=0 // loop_footer_branch
    %8 = sbr.rel target = $region3
  $region8: #{encoder_forward.4} parent=0 // loop_exit
    _

// kernel: encoder_forward.5
$region0: #{encoder_forward.5}
  #allocation0 [shape = 'u32[]', space=smem, size = 0x4, offset = 0x4, fixed_abs, tag = 'smem constant byte address 0x4 - core index']
  #allocation1 [shape = 'u32[144,128]{1,0:T(1,128)}', space=vmem, size = 0x12000, scoped, tag = 'internal scratch']
  %s0 = inlined_call_operand.vmem [shape: bf16[2,2,9,9,256], index: 0, kind: input, shape index: {}]
  %s1 = inlined_call_operand.vmem [shape: bf16[1152,256], index: 1, kind: input, shape index: {}]
  %s2 = inlined_call_operand.vmem [shape: f32[1,256], index: 2, kind: input, shape index: {}]
  %s3 = inlined_call_operand.hbm [shape: f32[2,8,8,256], index: 3, kind: output, shape index: {}]
  %s4 = sld [smem:[#allocation0]]
  $region86: #{encoder_forward.5} parent=0
    _
  %s6 = ssub.s32 1, %s4
  %s7 = scalar_select 0, %s6, %s4
  $region1: #{encoder_forward.5} parent=0
    #allocation2 [shape = 'u8[589824]{0}', space=vmem, size = 0x90000, scoped, tag = 'input window, operand 1']
    #allocation3 [shape = 'u8[65536]{0}', space=vmem, size = 0x10000, scoped, tag = 'output window, operand 0']
    #allocation4 [shape = 's32[2]{0}', space=sflag, size = 0x8, scoped, tag = 'scoped memory for encoder_forward.5']
    %8 = vsyncpa [#allocation4], 0
    %s9 = scalar_lea.sflag [#allocation4], 1
    %10 = vsyncpa %s9, 0
    loop: start=0, step=1, limit=6
    $region2: #{encoder_forward.5} parent=1 // loop_pre_header
      _
    $region3: #{encoder_forward.5} parent=1 // loop_header
      %s12 = sphi 0, %s16
      %p13 = scmp.ge.s32.totalorder %s12, 6
      %s19 = sphi 0, %s31
      %s20 = sphi 0, %s27
      %s21 = sphi 0, %s19
      %s22 = sphi 0, %s20
      %s23 = sphi 0, %s21
      %s24 = sphi 0, %s22
      %s34 = sphi 0, %s36
      %s37 = sphi 0, %s34
      %s38 = sphi 0, %s37
      %s54 = sphi 0, %s38
      %s60 = sphi 0, %s62
      %s63 = sphi 0, %s60
      %s64 = sphi 0, %s63
      %s80 = sphi 0, %s64
      %s86 = sphi 0, %s88
      %s89 = sphi 0, %s86
      %s90 = sphi 0, %s89
      %s106 = sphi 0, %s90
      %s114 = sphi 0, %s116
      %s117 = sphi 0, %s114
      %s118 = sphi 0, %s117
      %s134 = sphi 0, %s118
    $region4: #{encoder_forward.5} parent=1 // loop_header_branch
      %15 = sbr.rel (%p13) target = $region8
    $region5: #{encoder_forward.5} parent=1 // loop_body
      %s17 = ssub.s32 %s12, 1
      %s18 = ssub.s32 %s12, 2
      %s25 = sadd.s32 1, %s20
      %p26 = scmp.ge.s32.totalorder %s25, 2
      %s27 = scalar_select %p26, 0, %s25
      %s28 = sadd.s32 1, %s19
      %s29 = scalar_select %p26, %s28, %s19
      %p30 = scmp.ge.s32.totalorder %s29, 2
      %s31 = scalar_select %p30, 0, %s29
      %s32 = ssub.s32 %s19, %s31
      %p33 = scmp.eq.s32.totalorder %s32, 0
      %s35 = sadd.s32 %s34, 1
      %s36 = scalar_select %p33, %s34, %s35
      %p39 = pneg %p33
      %p40 = scmp.eq.s32.totalorder %s12, 3
      %p41 = por %p39, %p40
      %p42 = scmp.ne.s32.totalorder %s34, %s37
      %p43 = scmp.eq.s32.totalorder %s12, 0
      %p44 = por %p42, %p43
      %p45 = scmp.ne.s32.totalorder %s34, %s37
      %p46 = scmp.eq.s32.totalorder %s17, 3
      %p47 = por %p45, %p46
      %p48 = scmp.ne.s32.totalorder %s37, %s38
      %p49 = scmp.eq.s32.totalorder %s17, 0
      %p50 = por %p48, %p49
      %p51 = scmp.ne.s32.totalorder %s37, %s38
      %p52 = scmp.eq.s32.totalorder %s18, 3
      %p53 = por %p51, %p52
      %p55 = scmp.ne.s32.totalorder %s38, %s54
      %p56 = scmp.eq.s32.totalorder %s18, 0
      %p57 = por %p55, %p56
      %s58 = ssub.s32 %s20, %s27
      %p59 = scmp.eq.s32.totalorder %s58, 0
      %s61 = sadd.s32 %s60, 1
      %s62 = scalar_select %p59, %s60, %s61
      %p65 = pneg %p59
      %p66 = scmp.eq.s32.totalorder %s12, 3
      %p67 = por %p65, %p66
      %p68 = scmp.ne.s32.totalorder %s60, %s63
      %p69 = scmp.eq.s32.totalorder %s12, 0
      %p70 = por %p68, %p69
      %p71 = scmp.ne.s32.totalorder %s60, %s63
      %p72 = scmp.eq.s32.totalorder %s17, 3
      %p73 = por %p71, %p72
      %p74 = scmp.ne.s32.totalorder %s63, %s64
      %p75 = scmp.eq.s32.totalorder %s17, 0
      %p76 = por %p74, %p75
      %p77 = scmp.ne.s32.totalorder %s63, %s64
      %p78 = scmp.eq.s32.totalorder %s18, 3
      %p79 = por %p77, %p78
      %p81 = scmp.ne.s32.totalorder %s64, %s80
      %p82 = scmp.eq.s32.totalorder %s18, 0
      %p83 = por %p81, %p82
      %s84 = ssub.s32 %s20, %s27
      %p85 = scmp.eq.s32.totalorder %s84, 0
      %s87 = sadd.s32 %s86, 1
      %s88 = scalar_select %p85, %s86, %s87
      %p91 = pneg %p85
      %p92 = scmp.eq.s32.totalorder %s12, 3
      %p93 = por %p91, %p92
      %p94 = scmp.ne.s32.totalorder %s86, %s89
      %p95 = scmp.eq.s32.totalorder %s12, 0
      %p96 = por %p94, %p95
      %p97 = scmp.ne.s32.totalorder %s86, %s89
      %p98 = scmp.eq.s32.totalorder %s17, 3
      %p99 = por %p97, %p98
      %p100 = scmp.ne.s32.totalorder %s89, %s90
      %p101 = scmp.eq.s32.totalorder %s17, 0
      %p102 = por %p100, %p101
      %p103 = scmp.ne.s32.totalorder %s89, %s90
      %p104 = scmp.eq.s32.totalorder %s18, 3
      %p105 = por %p103, %p104
      %p107 = scmp.ne.s32.totalorder %s90, %s106
      %p108 = scmp.eq.s32.totalorder %s18, 0
      %p109 = por %p107, %p108
      %s110 = ssub.s32 %s19, %s31
      %s111 = ssub.s32 %s20, %s27
      %s112 = sor.u32 %s110, %s111
      %p113 = scmp.eq.s32.totalorder %s112, 0
      %s115 = sadd.s32 %s114, 1
      %s116 = scalar_select %p113, %s114, %s115
      %p119 = pneg %p113
      %p120 = scmp.eq.s32.totalorder %s12, 3
      %p121 = por %p119, %p120
      %p122 = scmp.ne.s32.totalorder %s114, %s117
      %p123 = scmp.eq.s32.totalorder %s12, 0
      %p124 = por %p122, %p123
      %p125 = scmp.ne.s32.totalorder %s114, %s117
      %p126 = scmp.eq.s32.totalorder %s17, 3
      %p127 = por %p125, %p126
      %p128 = scmp.ne.s32.totalorder %s117, %s118
      %p129 = scmp.eq.s32.totalorder %s17, 0
      %p130 = por %p128, %p129
      %p131 = scmp.ne.s32.totalorder %s117, %s118
      %p132 = scmp.eq.s32.totalorder %s18, 3
      %p133 = por %p131, %p132
      %p135 = scmp.ne.s32.totalorder %s118, %s134
      %p136 = scmp.eq.s32.totalorder %s18, 0
      %p137 = por %p135, %p136
      %p138 = scmp.le.s32.totalorder 1, %s12
      %p139 = scmp.lt.s32.totalorder %s12, 5
      %p140 = pnand %p138, %p139
      %p141 = pneg %p140
      // Predicated region
      $region9: #{encoder_forward.5} parent=5 // pred_check
        _
      $region10: #{encoder_forward.5} parent=5 // pred_check_branch
        %143 = sbr.rel (%p140) target = $region12
      $region11: #{encoder_forward.5} parent=5 // pred_region
        %s144 = ssub.s32 %s12, 1
      $region12: #{encoder_forward.5} parent=5 // pred_fallthru
        _
      %p145 = scmp.lt.s32.totalorder %s12, 4
      // Predicated region
      $region13: #{encoder_forward.5} parent=5 // pred_check
        %p146 = pneg %p145
      $region14: #{encoder_forward.5} parent=5 // pred_check_branch
        %148 = sbr.rel (%p146) target = $region16
      $region15: #{encoder_forward.5} parent=5 // pred_region
        // Predicated region
        $region17: #{encoder_forward.5} parent=15 // pred_check
          %p149 = pneg %p44
        $region18: #{encoder_forward.5} parent=15 // pred_check_branch
          %151 = sbr.rel (%p149) target = $region20
        $region19: #{encoder_forward.5} parent=15 // pred_region
          %p152 = scmp.lt.s32.totalorder %s19, 1
          %s153 = scalar_select %p152, %s19, 1
          %s154 = smul.addr %s153, 72
          %s155 = smul.addr %s154, 4
          %s156 = scalar_lea.vmem %s0, %s155
        $region20: #{encoder_forward.5} parent=15 // pred_fallthru
          _
        // Predicated region
        $region21: #{encoder_forward.5} parent=15 // pred_check
          %p157 = pneg %p70
        $region22: #{encoder_forward.5} parent=15 // pred_check_branch
          %159 = sbr.rel (%p157) target = $region24
        $region23: #{encoder_forward.5} parent=15 // pred_region
          %s160 = sand.u32 %s60, 1
          %s161 = sand.u32 %s60, 1
          %s162 = smul.addr %s161, 576
          %s163 = scalar_lea.vmem [#allocation2], %s162
          %s164 = smul.addr %s20, 4
          %s165 = scalar_lea.vmem %s1, %s164
          // Predicated region
          $region25: #{encoder_forward.5} parent=23 // pred_check
            _
          $region26: #{encoder_forward.5} parent=23 // pred_check_branch
            %167 = sbr.rel (0) target = $region28
          $region27: #{encoder_forward.5} parent=23 // pred_region
            // Predicated region
            $region29: #{encoder_forward.5} parent=27 // pred_check
              _
            $region30: #{encoder_forward.5} parent=27 // pred_check_branch
              %169 = sbr.rel target = $region32
            $region31: #{encoder_forward.5} parent=27 // pred_region
              // Predicated region
              $region44: #{encoder_forward.5} parent=31 // pred_check
                _
              $region45: #{encoder_forward.5} parent=31 // pred_check_branch
                %470 = sbr.rel (0) target = $region47
              $region46: #{encoder_forward.5} parent=31 // pred_region
                loop: start=0, step=1, limit=1
                $region48: #{encoder_forward.5} parent=46 // loop_pre_header
                  _
                $region49: #{encoder_forward.5} parent=46 // loop_header
                  %s472 = sphi 0, %s476
                  %p473 = scmp.ge.s32.totalorder %s472, 1
                  %s477 = sphi %s165, %s165
                  %s478 = sphi %s163, %s163
                $region50: #{encoder_forward.5} parent=46 // loop_header_branch
                  %475 = sbr.rel (%p473) target = $region54
                $region51: #{encoder_forward.5} parent=46 // loop_body
                  _
                $region52: #{encoder_forward.5} parent=46 // loop_footer
                  %s476 = sadd.s32 1, %s472
                $region53: #{encoder_forward.5} parent=46 // loop_footer_branch
                  %471 = sbr.rel target = $region49
                $region54: #{encoder_forward.5} parent=46 // loop_exit
                  _
                loop: start=0, step=1, limit=1
                $region55: #{encoder_forward.5} parent=46 // loop_pre_header
                  _
                $region56: #{encoder_forward.5} parent=46 // loop_header
                  %s481 = sphi 0, %s485
                  %p482 = scmp.ge.s32.totalorder %s481, 1
                  %s486 = sphi %s165, %s165
                  %s487 = sphi %s163, %s163
                $region57: #{encoder_forward.5} parent=46 // loop_header_branch
                  %484 = sbr.rel (%p482) target = $region61
                $region58: #{encoder_forward.5} parent=46 // loop_body
                  %v488 = vld [vmem:[%s486] sm:$0xf]
                  %489 = vst [vmem:[%s487] sm:$0xf] %v488
                  %v490 = vld [vmem:[%s486 + $0x8] sm:$0xf]
                  %491 = vst [vmem:[%s487 + $0x4] sm:$0xf] %v490
                  %v492 = vld [vmem:[%s486 + $0x10] sm:$0xf]
                  %493 = vst [vmem:[%s487 + $0x8] sm:$0xf] %v492
                  %v494 = vld [vmem:[%s486 + $0x18] sm:$0xf]
                  %495 = vst [vmem:[%s487 + $0xc] sm:$0xf] %v494
                  %v496 = vld [vmem:[%s486 + $0x20] sm:$0xf]
                  %497 = vst [vmem:[%s487 + $0x10] sm:$0xf] %v496
                  %v498 = vld [vmem:[%s486 + $0x28] sm:$0xf]
                  %499 = vst [vmem:[%s487 + $0x14] sm:$0xf] %v498
                  %v500 = vld [vmem:[%s486 + $0x30] sm:$0xf]
                  %501 = vst [vmem:[%s487 + $0x18] sm:$0xf] %v500
                  %v502 = vld [vmem:[%s486 + $0x38] sm:$0xf]
                  %503 = vst [vmem:[%s487 + $0x1c] sm:$0xf] %v502
                  %v504 = vld [vmem:[%s486 + $0x40] sm:$0xf]
                  %505 = vst [vmem:[%s487 + $0x20] sm:$0xf] %v504
                  %v506 = vld [vmem:[%s486 + $0x48] sm:$0xf]
                  %507 = vst [vmem:[%s487 + $0x24] sm:$0xf] %v506
                  %v508 = vld [vmem:[%s486 + $0x50] sm:$0xf]
                  %509 = vst [vmem:[%s487 + $0x28] sm:$0xf] %v508
                  %v510 = vld [vmem:[%s486 + $0x58] sm:$0xf]
                  %511 = vst [vmem:[%s487 + $0x2c] sm:$0xf] %v510
                  %v512 = vld [vmem:[%s486 + $0x60] sm:$0xf]
                  %513 = vst [vmem:[%s487 + $0x30] sm:$0xf] %v512
                  %v514 = vld [vmem:[%s486 + $0x68] sm:$0xf]
                  %515 = vst [vmem:[%s487 + $0x34] sm:$0xf] %v514
                  %v516 = vld [vmem:[%s486 + $0x70] sm:$0xf]
                  %517 = vst [vmem:[%s487 + $0x38] sm:$0xf] %v516
                  %v518 = vld [vmem:[%s486 + $0x78] sm:$0xf]
                  %519 = vst [vmem:[%s487 + $0x3c] sm:$0xf] %v518
                  %v520 = vld [vmem:[%s486 + $0x80] sm:$0xf]
                  %521 = vst [vmem:[%s487 + $0x40] sm:$0xf] %v520
                  %v522 = vld [vmem:[%s486 + $0x88] sm:$0xf]
                  %523 = vst [vmem:[%s487 + $0x44] sm:$0xf] %v522
                  %v524 = vld [vmem:[%s486 + $0x90] sm:$0xf]
                  %525 = vst [vmem:[%s487 + $0x48] sm:$0xf] %v524
                  %v526 = vld [vmem:[%s486 + $0x98] sm:$0xf]
                  %527 = vst [vmem:[%s487 + $0x4c] sm:$0xf] %v526
                  %v528 = vld [vmem:[%s486 + $0xa0] sm:$0xf]
                  %529 = vst [vmem:[%s487 + $0x50] sm:$0xf] %v528
                  %v530 = vld [vmem:[%s486 + $0xa8] sm:$0xf]
                  %531 = vst [vmem:[%s487 + $0x54] sm:$0xf] %v530
                  %v532 = vld [vmem:[%s486 + $0xb0] sm:$0xf]
                  %533 = vst [vmem:[%s487 + $0x58] sm:$0xf] %v532
                  %v534 = vld [vmem:[%s486 + $0xb8] sm:$0xf]
                  %535 = vst [vmem:[%s487 + $0x5c] sm:$0xf] %v534
                  %v536 = vld [vmem:[%s486 + $0xc0] sm:$0xf]
                  %537 = vst [vmem:[%s487 + $0x60] sm:$0xf] %v536
                  %v538 = vld [vmem:[%s486 + $0xc8] sm:$0xf]
                  %539 = vst [vmem:[%s487 + $0x64] sm:$0xf] %v538
                  %v540 = vld [vmem:[%s486 + $0xd0] sm:$0xf]
                  %541 = vst [vmem:[%s487 + $0x68] sm:$0xf] %v540
                  %v542 = vld [vmem:[%s486 + $0xd8] sm:$0xf]
                  %543 = vst [vmem:[%s487 + $0x6c] sm:$0xf] %v542
                  %v544 = vld [vmem:[%s486 + $0xe0] sm:$0xf]
                  %545 = vst [vmem:[%s487 + $0x70] sm:$0xf] %v544
                  %v546 = vld [vmem:[%s486 + $0xe8] sm:$0xf]
                  %547 = vst [vmem:[%s487 + $0x74] sm:$0xf] %v546
                  %v548 = vld [vmem:[%s486 + $0xf0] sm:$0xf]
                  %549 = vst [vmem:[%s487 + $0x78] sm:$0xf] %v548
                  %v550 = vld [vmem:[%s486 + $0xf8] sm:$0xf]
                  %551 = vst [vmem:[%s487 + $0x7c] sm:$0xf] %v550
                  %v552 = vld [vmem:[%s486 + $0x100] sm:$0xf]
                  %553 = vst [vmem:[%s487 + $0x80] sm:$0xf] %v552
                  %v554 = vld [vmem:[%s486 + $0x108] sm:$0xf]
                  %555 = vst [vmem:[%s487 + $0x84] sm:$0xf] %v554
                  %v556 = vld [vmem:[%s486 + $0x110] sm:$0xf]
                  %557 = vst [vmem:[%s487 + $0x88] sm:$0xf] %v556
                  %v558 = vld [vmem:[%s486 + $0x118] sm:$0xf]
                  %559 = vst [vmem:[%s487 + $0x8c] sm:$0xf] %v558
                  %v560 = vld [vmem:[%s486 + $0x120] sm:$0xf]
                  %561 = vst [vmem:[%s487 + $0x90] sm:$0xf] %v560
                  %v562 = vld [vmem:[%s486 + $0x128] sm:$0xf]
                  %563 = vst [vmem:[%s487 + $0x94] sm:$0xf] %v562
                  %v564 = vld [vmem:[%s486 + $0x130] sm:$0xf]
                  %565 = vst [vmem:[%s487 + $0x98] sm:$0xf] %v564
                  %v566 = vld [vmem:[%s486 + $0x138] sm:$0xf]
                  %567 = vst [vmem:[%s487 + $0x9c] sm:$0xf] %v566
                  %v568 = vld [vmem:[%s486 + $0x140] sm:$0xf]
                  %569 = vst [vmem:[%s487 + $0xa0] sm:$0xf] %v568
                  %v570 = vld [vmem:[%s486 + $0x148] sm:$0xf]
                  %571 = vst [vmem:[%s487 + $0xa4] sm:$0xf] %v570
                  %v572 = vld [vmem:[%s486 + $0x150] sm:$0xf]
                  %573 = vst [vmem:[%s487 + $0xa8] sm:$0xf] %v572
                  %v574 = vld [vmem:[%s486 + $0x158] sm:$0xf]
                  %575 = vst [vmem:[%s487 + $0xac] sm:$0xf] %v574
                  %v576 = vld [vmem:[%s486 + $0x160] sm:$0xf]
                  %577 = vst [vmem:[%s487 + $0xb0] sm:$0xf] %v576
                  %v578 = vld [vmem:[%s486 + $0x168] sm:$0xf]
                  %579 = vst [vmem:[%s487 + $0xb4] sm:$0xf] %v578
                  %v580 = vld [vmem:[%s486 + $0x170] sm:$0xf]
                  %581 = vst [vmem:[%s487 + $0xb8] sm:$0xf] %v580
                  %v582 = vld [vmem:[%s486 + $0x178] sm:$0xf]
                  %583 = vst [vmem:[%s487 + $0xbc] sm:$0xf] %v582
                  %v584 = vld [vmem:[%s486 + $0x180] sm:$0xf]
                  %585 = vst [vmem:[%s487 + $0xc0] sm:$0xf] %v584
                  %v586 = vld [vmem:[%s486 + $0x188] sm:$0xf]
                  %587 = vst [vmem:[%s487 + $0xc4] sm:$0xf] %v586
                  %v588 = vld [vmem:[%s486 + $0x190] sm:$0xf]
                  %589 = vst [vmem:[%s487 + $0xc8] sm:$0xf] %v588
                  %v590 = vld [vmem:[%s486 + $0x198] sm:$0xf]
                  %591 = vst [vmem:[%s487 + $0xcc] sm:$0xf] %v590
                  %v592 = vld [vmem:[%s486 + $0x1a0] sm:$0xf]
                  %593 = vst [vmem:[%s487 + $0xd0] sm:$0xf] %v592
                  %v594 = vld [vmem:[%s486 + $0x1a8] sm:$0xf]
                  %595 = vst [vmem:[%s487 + $0xd4] sm:$0xf] %v594
                  %v596 = vld [vmem:[%s486 + $0x1b0] sm:$0xf]
                  %597 = vst [vmem:[%s487 + $0xd8] sm:$0xf] %v596
                  %v598 = vld [vmem:[%s486 + $0x1b8] sm:$0xf]
                  %599 = vst [vmem:[%s487 + $0xdc] sm:$0xf] %v598
                  %v600 = vld [vmem:[%s486 + $0x1c0] sm:$0xf]
                  %601 = vst [vmem:[%s487 + $0xe0] sm:$0xf] %v600
                  %v602 = vld [vmem:[%s486 + $0x1c8] sm:$0xf]
                  %603 = vst [vmem:[%s487 + $0xe4] sm:$0xf] %v602
                  %v604 = vld [vmem:[%s486 + $0x1d0] sm:$0xf]
                  %605 = vst [vmem:[%s487 + $0xe8] sm:$0xf] %v604
                  %v606 = vld [vmem:[%s486 + $0x1d8] sm:$0xf]
                  %607 = vst [vmem:[%s487 + $0xec] sm:$0xf] %v606
                  %v608 = vld [vmem:[%s486 + $0x1e0] sm:$0xf]
                  %609 = vst [vmem:[%s487 + $0xf0] sm:$0xf] %v608
                  %v610 = vld [vmem:[%s486 + $0x1e8] sm:$0xf]
                  %611 = vst [vmem:[%s487 + $0xf4] sm:$0xf] %v610
                  %v612 = vld [vmem:[%s486 + $0x1f0] sm:$0xf]
                  %613 = vst [vmem:[%s487 + $0xf8] sm:$0xf] %v612
                  %v614 = vld [vmem:[%s486 + $0x1f8] sm:$0xf]
                  %615 = vst [vmem:[%s487 + $0xfc] sm:$0xf] %v614
                  %v616 = vld [vmem:[%s486 + $0x200] sm:$0xf]
                  %617 = vst [vmem:[%s487 + $0x100] sm:$0xf] %v616
                  %v618 = vld [vmem:[%s486 + $0x208] sm:$0xf]
                  %619 = vst [vmem:[%s487 + $0x104] sm:$0xf] %v618
                  %v620 = vld [vmem:[%s486 + $0x210] sm:$0xf]
                  %621 = vst [vmem:[%s487 + $0x108] sm:$0xf] %v620
                  %v622 = vld [vmem:[%s486 + $0x218] sm:$0xf]
                  %623 = vst [vmem:[%s487 + $0x10c] sm:$0xf] %v622
                  %v624 = vld [vmem:[%s486 + $0x220] sm:$0xf]
                  %625 = vst [vmem:[%s487 + $0x110] sm:$0xf] %v624
                  %v626 = vld [vmem:[%s486 + $0x228] sm:$0xf]
                  %627 = vst [vmem:[%s487 + $0x114] sm:$0xf] %v626
                  %v628 = vld [vmem:[%s486 + $0x230] sm:$0xf]
                  %629 = vst [vmem:[%s487 + $0x118] sm:$0xf] %v628
                  %v630 = vld [vmem:[%s486 + $0x238] sm:$0xf]
                  %631 = vst [vmem:[%s487 + $0x11c] sm:$0xf] %v630
                  %v632 = vld [vmem:[%s486 + $0x240] sm:$0xf]
                  %633 = vst [vmem:[%s487 + $0x120] sm:$0xf] %v632
                  %v634 = vld [vmem:[%s486 + $0x248] sm:$0xf]
                  %635 = vst [vmem:[%s487 + $0x124] sm:$0xf] %v634
                  %v636 = vld [vmem:[%s486 + $0x250] sm:$0xf]
                  %637 = vst [vmem:[%s487 + $0x128] sm:$0xf] %v636
                  %v638 = vld [vmem:[%s486 + $0x258] sm:$0xf]
                  %639 = vst [vmem:[%s487 + $0x12c] sm:$0xf] %v638
                  %v640 = vld [vmem:[%s486 + $0x260] sm:$0xf]
                  %641 = vst [vmem:[%s487 + $0x130] sm:$0xf] %v640
                  %v642 = vld [vmem:[%s486 + $0x268] sm:$0xf]
                  %643 = vst [vmem:[%s487 + $0x134] sm:$0xf] %v642
                  %v644 = vld [vmem:[%s486 + $0x270] sm:$0xf]
                  %645 = vst [vmem:[%s487 + $0x138] sm:$0xf] %v644
                  %v646 = vld [vmem:[%s486 + $0x278] sm:$0xf]
                  %647 = vst [vmem:[%s487 + $0x13c] sm:$0xf] %v646
                  %v648 = vld [vmem:[%s486 + $0x280] sm:$0xf]
                  %649 = vst [vmem:[%s487 + $0x140] sm:$0xf] %v648
                  %v650 = vld [vmem:[%s486 + $0x288] sm:$0xf]
                  %651 = vst [vmem:[%s487 + $0x144] sm:$0xf] %v650
                  %v652 = vld [vmem:[%s486 + $0x290] sm:$0xf]
                  %653 = vst [vmem:[%s487 + $0x148] sm:$0xf] %v652
                  %v654 = vld [vmem:[%s486 + $0x298] sm:$0xf]
                  %655 = vst [vmem:[%s487 + $0x14c] sm:$0xf] %v654
                  %v656 = vld [vmem:[%s486 + $0x2a0] sm:$0xf]
                  %657 = vst [vmem:[%s487 + $0x150] sm:$0xf] %v656
                  %v658 = vld [vmem:[%s486 + $0x2a8] sm:$0xf]
                  %659 = vst [vmem:[%s487 + $0x154] sm:$0xf] %v658
                  %v660 = vld [vmem:[%s486 + $0x2b0] sm:$0xf]
                  %661 = vst [vmem:[%s487 + $0x158] sm:$0xf] %v660
                  %v662 = vld [vmem:[%s486 + $0x2b8] sm:$0xf]
                  %663 = vst [vmem:[%s487 + $0x15c] sm:$0xf] %v662
                  %v664 = vld [vmem:[%s486 + $0x2c0] sm:$0xf]
                  %665 = vst [vmem:[%s487 + $0x160] sm:$0xf] %v664
                  %v666 = vld [vmem:[%s486 + $0x2c8] sm:$0xf]
                  %667 = vst [vmem:[%s487 + $0x164] sm:$0xf] %v666
                  %v668 = vld [vmem:[%s486 + $0x2d0] sm:$0xf]
                  %669 = vst [vmem:[%s487 + $0x168] sm:$0xf] %v668
                  %v670 = vld [vmem:[%s486 + $0x2d8] sm:$0xf]
                  %671 = vst [vmem:[%s487 + $0x16c] sm:$0xf] %v670
                  %v672 = vld [vmem:[%s486 + $0x2e0] sm:$0xf]
                  %673 = vst [vmem:[%s487 + $0x170] sm:$0xf] %v672
                  %v674 = vld [vmem:[%s486 + $0x2e8] sm:$0xf]
                  %675 = vst [vmem:[%s487 + $0x174] sm:$0xf] %v674
                  %v676 = vld [vmem:[%s486 + $0x2f0] sm:$0xf]
                  %677 = vst [vmem:[%s487 + $0x178] sm:$0xf] %v676
                  %v678 = vld [vmem:[%s486 + $0x2f8] sm:$0xf]
                  %679 = vst [vmem:[%s487 + $0x17c] sm:$0xf] %v678
                  %v680 = vld [vmem:[%s486 + $0x300] sm:$0xf]
                  %681 = vst [vmem:[%s487 + $0x180] sm:$0xf] %v680
                  %v682 = vld [vmem:[%s486 + $0x308] sm:$0xf]
                  %683 = vst [vmem:[%s487 + $0x184] sm:$0xf] %v682
                  %v684 = vld [vmem:[%s486 + $0x310] sm:$0xf]
                  %685 = vst [vmem:[%s487 + $0x188] sm:$0xf] %v684
                  %v686 = vld [vmem:[%s486 + $0x318] sm:$0xf]
                  %687 = vst [vmem:[%s487 + $0x18c] sm:$0xf] %v686
                  %v688 = vld [vmem:[%s486 + $0x320] sm:$0xf]
                  %689 = vst [vmem:[%s487 + $0x190] sm:$0xf] %v688
                  %v690 = vld [vmem:[%s486 + $0x328] sm:$0xf]
                  %691 = vst [vmem:[%s487 + $0x194] sm:$0xf] %v690
                  %v692 = vld [vmem:[%s486 + $0x330] sm:$0xf]
                  %693 = vst [vmem:[%s487 + $0x198] sm:$0xf] %v692
                  %v694 = vld [vmem:[%s486 + $0x338] sm:$0xf]
                  %695 = vst [vmem:[%s487 + $0x19c] sm:$0xf] %v694
                  %v696 = vld [vmem:[%s486 + $0x340] sm:$0xf]
                  %697 = vst [vmem:[%s487 + $0x1a0] sm:$0xf] %v696
                  %v698 = vld [vmem:[%s486 + $0x348] sm:$0xf]
                  %699 = vst [vmem:[%s487 + $0x1a4] sm:$0xf] %v698
                  %v700 = vld [vmem:[%s486 + $0x350] sm:$0xf]
                  %701 = vst [vmem:[%s487 + $0x1a8] sm:$0xf] %v700
                  %v702 = vld [vmem:[%s486 + $0x358] sm:$0xf]
                  %703 = vst [vmem:[%s487 + $0x1ac] sm:$0xf] %v702
                  %v704 = vld [vmem:[%s486 + $0x360] sm:$0xf]
                  %705 = vst [vmem:[%s487 + $0x1b0] sm:$0xf] %v704
                  %v706 = vld [vmem:[%s486 + $0x368] sm:$0xf]
                  %707 = vst [vmem:[%s487 + $0x1b4] sm:$0xf] %v706
                  %v708 = vld [vmem:[%s486 + $0x370] sm:$0xf]
                  %709 = vst [vmem:[%s487 + $0x1b8] sm:$0xf] %v708
                  %v710 = vld [vmem:[%s486 + $0x378] sm:$0xf]
                  %711 = vst [vmem:[%s487 + $0x1bc] sm:$0xf] %v710
                  %v712 = vld [vmem:[%s486 + $0x380] sm:$0xf]
                  %713 = vst [vmem:[%s487 + $0x1c0] sm:$0xf] %v712
                  %v714 = vld [vmem:[%s486 + $0x388] sm:$0xf]
                  %715 = vst [vmem:[%s487 + $0x1c4] sm:$0xf] %v714
                  %v716 = vld [vmem:[%s486 + $0x390] sm:$0xf]
                  %717 = vst [vmem:[%s487 + $0x1c8] sm:$0xf] %v716
                  %v718 = vld [vmem:[%s486 + $0x398] sm:$0xf]
                  %719 = vst [vmem:[%s487 + $0x1cc] sm:$0xf] %v718
                  %v720 = vld [vmem:[%s486 + $0x3a0] sm:$0xf]
                  %721 = vst [vmem:[%s487 + $0x1d0] sm:$0xf] %v720
                  %v722 = vld [vmem:[%s486 + $0x3a8] sm:$0xf]
                  %723 = vst [vmem:[%s487 + $0x1d4] sm:$0xf] %v722
                  %v724 = vld [vmem:[%s486 + $0x3b0] sm:$0xf]
                  %725 = vst [vmem:[%s487 + $0x1d8] sm:$0xf] %v724
                  %v726 = vld [vmem:[%s486 + $0x3b8] sm:$0xf]
                  %727 = vst [vmem:[%s487 + $0x1dc] sm:$0xf] %v726
                  %v728 = vld [vmem:[%s486 + $0x3c0] sm:$0xf]
                  %729 = vst [vmem:[%s487 + $0x1e0] sm:$0xf] %v728
                  %v730 = vld [vmem:[%s486 + $0x3c8] sm:$0xf]
                  %731 = vst [vmem:[%s487 + $0x1e4] sm:$0xf] %v730
                  %v732 = vld [vmem:[%s486 + $0x3d0] sm:$0xf]
                  %733 = vst [vmem:[%s487 + $0x1e8] sm:$0xf] %v732
                  %v734 = vld [vmem:[%s486 + $0x3d8] sm:$0xf]
                  %735 = vst [vmem:[%s487 + $0x1ec] sm:$0xf] %v734
                  %v736 = vld [vmem:[%s486 + $0x3e0] sm:$0xf]
                  %737 = vst [vmem:[%s487 + $0x1f0] sm:$0xf] %v736
                  %v738 = vld [vmem:[%s486 + $0x3e8] sm:$0xf]
                  %739 = vst [vmem:[%s487 + $0x1f4] sm:$0xf] %v738
                  %v740 = vld [vmem:[%s486 + $0x3f0] sm:$0xf]
                  %741 = vst [vmem:[%s487 + $0x1f8] sm:$0xf] %v740
                  %v742 = vld [vmem:[%s486 + $0x3f8] sm:$0xf]
                  %743 = vst [vmem:[%s487 + $0x1fc] sm:$0xf] %v742
                  %v744 = vld [vmem:[%s486 + $0x400] sm:$0xf]
                  %745 = vst [vmem:[%s487 + $0x200] sm:$0xf] %v744
                  %v746 = vld [vmem:[%s486 + $0x408] sm:$0xf]
                  %747 = vst [vmem:[%s487 + $0x204] sm:$0xf] %v746
                  %v748 = vld [vmem:[%s486 + $0x410] sm:$0xf]
                  %749 = vst [vmem:[%s487 + $0x208] sm:$0xf] %v748
                  %v750 = vld [vmem:[%s486 + $0x418] sm:$0xf]
                  %751 = vst [vmem:[%s487 + $0x20c] sm:$0xf] %v750
                  %v752 = vld [vmem:[%s486 + $0x420] sm:$0xf]
                  %753 = vst [vmem:[%s487 + $0x210] sm:$0xf] %v752
                  %v754 = vld [vmem:[%s486 + $0x428] sm:$0xf]
                  %755 = vst [vmem:[%s487 + $0x214] sm:$0xf] %v754
                  %v756 = vld [vmem:[%s486 + $0x430] sm:$0xf]
                  %757 = vst [vmem:[%s487 + $0x218] sm:$0xf] %v756
                  %v758 = vld [vmem:[%s486 + $0x438] sm:$0xf]
                  %759 = vst [vmem:[%s487 + $0x21c] sm:$0xf] %v758
                  %v760 = vld [vmem:[%s486 + $0x440] sm:$0xf]
                  %761 = vst [vmem:[%s487 + $0x220] sm:$0xf] %v760
                  %v762 = vld [vmem:[%s486 + $0x448] sm:$0xf]
                  %763 = vst [vmem:[%s487 + $0x224] sm:$0xf] %v762
                  %v764 = vld [vmem:[%s486 + $0x450] sm:$0xf]
                  %765 = vst [vmem:[%s487 + $0x228] sm:$0xf] %v764
                  %v766 = vld [vmem:[%s486 + $0x458] sm:$0xf]
                  %767 = vst [vmem:[%s487 + $0x22c] sm:$0xf] %v766
                  %v768 = vld [vmem:[%s486 + $0x460] sm:$0xf]
                  %769 = vst [vmem:[%s487 + $0x230] sm:$0xf] %v768
                  %v770 = vld [vmem:[%s486 + $0x468] sm:$0xf]
                  %771 = vst [vmem:[%s487 + $0x234] sm:$0xf] %v770
                  %v772 = vld [vmem:[%s486 + $0x470] sm:$0xf]
                  %773 = vst [vmem:[%s487 + $0x238] sm:$0xf] %v772
                  %v774 = vld [vmem:[%s486 + $0x478] sm:$0xf]
                  %775 = vst [vmem:[%s487 + $0x23c] sm:$0xf] %v774
                $region59: #{encoder_forward.5} parent=46 // loop_footer
                  %s485 = sadd.s32 1, %s481
                $region60: #{encoder_forward.5} parent=46 // loop_footer_branch
                  %480 = sbr.rel target = $region56
                $region61: #{encoder_forward.5} parent=46 // loop_exit
                  _
              $region47: #{encoder_forward.5} parent=31 // pred_fallthru
                _
            $region32: #{encoder_forward.5} parent=27 // pred_fallthru
              _
            // Predicated region
            $region33: #{encoder_forward.5} parent=27 // pred_check
              _
            $region34: #{encoder_forward.5} parent=27 // pred_check_branch
              %171 = sbr.rel (0) target = $region36
            $region35: #{encoder_forward.5} parent=27 // pred_region
              loop: start=0, step=1, limit=1
              $region37: #{encoder_forward.5} parent=35 // loop_pre_header
                _
              $region38: #{encoder_forward.5} parent=35 // loop_header
                %s174 = sphi 0, %s178
                %p175 = scmp.ge.s32.totalorder %s174, 1
                %s179 = sphi %s165, %s165
                %s180 = sphi %s163, %s163
              $region39: #{encoder_forward.5} parent=35 // loop_header_branch
                %177 = sbr.rel (%p175) target = $region43
              $region40: #{encoder_forward.5} parent=35 // loop_body
                %v181 = vld [vmem:[%s179] sm:$0xf]
                %182 = vst [vmem:[%s180] sm:$0xf] %v181
                %v183 = vld [vmem:[%s179 + $0x8] sm:$0xf]
                %184 = vst [vmem:[%s180 + $0x4] sm:$0xf] %v183
                %v185 = vld [vmem:[%s179 + $0x10] sm:$0xf]
                %186 = vst [vmem:[%s180 + $0x8] sm:$0xf] %v185
                %v187 = vld [vmem:[%s179 + $0x18] sm:$0xf]
                %188 = vst [vmem:[%s180 + $0xc] sm:$0xf] %v187
                %v189 = vld [vmem:[%s179 + $0x20] sm:$0xf]
                %190 = vst [vmem:[%s180 + $0x10] sm:$0xf] %v189
                %v191 = vld [vmem:[%s179 + $0x28] sm:$0xf]
                %192 = vst [vmem:[%s180 + $0x14] sm:$0xf] %v191
                %v193 = vld [vmem:[%s179 + $0x30] sm:$0xf]
                %194 = vst [vmem:[%s180 + $0x18] sm:$0xf] %v193
                %v195 = vld [vmem:[%s179 + $0x38] sm:$0xf]
                %196 = vst [vmem:[%s180 + $0x1c] sm:$0xf] %v195
                %v197 = vld [vmem:[%s179 + $0x40] sm:$0xf]
                %198 = vst [vmem:[%s180 + $0x20] sm:$0xf] %v197
                %v199 = vld [vmem:[%s179 + $0x48] sm:$0xf]
                %200 = vst [vmem:[%s180 + $0x24] sm:$0xf] %v199
                %v201 = vld [vmem:[%s179 + $0x50] sm:$0xf]
                %202 = vst [vmem:[%s180 + $0x28] sm:$0xf] %v201
                %v203 = vld [vmem:[%s179 + $0x58] sm:$0xf]
                %204 = vst [vmem:[%s180 + $0x2c] sm:$0xf] %v203
                %v205 = vld [vmem:[%s179 + $0x60] sm:$0xf]
                %206 = vst [vmem:[%s180 + $0x30] sm:$0xf] %v205
                %v207 = vld [vmem:[%s179 + $0x68] sm:$0xf]
                %208 = vst [vmem:[%s180 + $0x34] sm:$0xf] %v207
                %v209 = vld [vmem:[%s179 + $0x70] sm:$0xf]
                %210 = vst [vmem:[%s180 + $0x38] sm:$0xf] %v209
                %v211 = vld [vmem:[%s179 + $0x78] sm:$0xf]
                %212 = vst [vmem:[%s180 + $0x3c] sm:$0xf] %v211
                %v213 = vld [vmem:[%s179 + $0x80] sm:$0xf]
                %214 = vst [vmem:[%s180 + $0x40] sm:$0xf] %v213
                %v215 = vld [vmem:[%s179 + $0x88] sm:$0xf]
                %216 = vst [vmem:[%s180 + $0x44] sm:$0xf] %v215
                %v217 = vld [vmem:[%s179 + $0x90] sm:$0xf]
                %218 = vst [vmem:[%s180 + $0x48] sm:$0xf] %v217
                %v219 = vld [vmem:[%s179 + $0x98] sm:$0xf]
                %220 = vst [vmem:[%s180 + $0x4c] sm:$0xf] %v219
                %v221 = vld [vmem:[%s179 + $0xa0] sm:$0xf]
                %222 = vst [vmem:[%s180 + $0x50] sm:$0xf] %v221
                %v223 = vld [vmem:[%s179 + $0xa8] sm:$0xf]
                %224 = vst [vmem:[%s180 + $0x54] sm:$0xf] %v223
                %v225 = vld [vmem:[%s179 + $0xb0] sm:$0xf]
                %226 = vst [vmem:[%s180 + $0x58] sm:$0xf] %v225
                %v227 = vld [vmem:[%s179 + $0xb8] sm:$0xf]
                %228 = vst [vmem:[%s180 + $0x5c] sm:$0xf] %v227
                %v229 = vld [vmem:[%s179 + $0xc0] sm:$0xf]
                %230 = vst [vmem:[%s180 + $0x60] sm:$0xf] %v229
                %v231 = vld [vmem:[%s179 + $0xc8] sm:$0xf]
                %232 = vst [vmem:[%s180 + $0x64] sm:$0xf] %v231
                %v233 = vld [vmem:[%s179 + $0xd0] sm:$0xf]
                %234 = vst [vmem:[%s180 + $0x68] sm:$0xf] %v233
                %v235 = vld [vmem:[%s179 + $0xd8] sm:$0xf]
                %236 = vst [vmem:[%s180 + $0x6c] sm:$0xf] %v235
                %v237 = vld [vmem:[%s179 + $0xe0] sm:$0xf]
                %238 = vst [vmem:[%s180 + $0x70] sm:$0xf] %v237
                %v239 = vld [vmem:[%s179 + $0xe8] sm:$0xf]
                %240 = vst [vmem:[%s180 + $0x74] sm:$0xf] %v239
                %v241 = vld [vmem:[%s179 + $0xf0] sm:$0xf]
                %242 = vst [vmem:[%s180 + $0x78] sm:$0xf] %v241
                %v243 = vld [vmem:[%s179 + $0xf8] sm:$0xf]
                %244 = vst [vmem:[%s180 + $0x7c] sm:$0xf] %v243
                %v245 = vld [vmem:[%s179 + $0x100] sm:$0xf]
                %246 = vst [vmem:[%s180 + $0x80] sm:$0xf] %v245
                %v247 = vld [vmem:[%s179 + $0x108] sm:$0xf]
                %248 = vst [vmem:[%s180 + $0x84] sm:$0xf] %v247
                %v249 = vld [vmem:[%s179 + $0x110] sm:$0xf]
                %250 = vst [vmem:[%s180 + $0x88] sm:$0xf] %v249
                %v251 = vld [vmem:[%s179 + $0x118] sm:$0xf]
                %252 = vst [vmem:[%s180 + $0x8c] sm:$0xf] %v251
                %v253 = vld [vmem:[%s179 + $0x120] sm:$0xf]
                %254 = vst [vmem:[%s180 + $0x90] sm:$0xf] %v253
                %v255 = vld [vmem:[%s179 + $0x128] sm:$0xf]
                %256 = vst [vmem:[%s180 + $0x94] sm:$0xf] %v255
                %v257 = vld [vmem:[%s179 + $0x130] sm:$0xf]
                %258 = vst [vmem:[%s180 + $0x98] sm:$0xf] %v257
                %v259 = vld [vmem:[%s179 + $0x138] sm:$0xf]
                %260 = vst [vmem:[%s180 + $0x9c] sm:$0xf] %v259
                %v261 = vld [vmem:[%s179 + $0x140] sm:$0xf]
                %262 = vst [vmem:[%s180 + $0xa0] sm:$0xf] %v261
                %v263 = vld [vmem:[%s179 + $0x148] sm:$0xf]
                %264 = vst [vmem:[%s180 + $0xa4] sm:$0xf] %v263
                %v265 = vld [vmem:[%s179 + $0x150] sm:$0xf]
                %266 = vst [vmem:[%s180 + $0xa8] sm:$0xf] %v265
                %v267 = vld [vmem:[%s179 + $0x158] sm:$0xf]
                %268 = vst [vmem:[%s180 + $0xac] sm:$0xf] %v267
                %v269 = vld [vmem:[%s179 + $0x160] sm:$0xf]
                %270 = vst [vmem:[%s180 + $0xb0] sm:$0xf] %v269
                %v271 = vld [vmem:[%s179 + $0x168] sm:$0xf]
                %272 = vst [vmem:[%s180 + $0xb4] sm:$0xf] %v271
                %v273 = vld [vmem:[%s179 + $0x170] sm:$0xf]
                %274 = vst [vmem:[%s180 + $0xb8] sm:$0xf] %v273
                %v275 = vld [vmem:[%s179 + $0x178] sm:$0xf]
                %276 = vst [vmem:[%s180 + $0xbc] sm:$0xf] %v275
                %v277 = vld [vmem:[%s179 + $0x180] sm:$0xf]
                %278 = vst [vmem:[%s180 + $0xc0] sm:$0xf] %v277
                %v279 = vld [vmem:[%s179 + $0x188] sm:$0xf]
                %280 = vst [vmem:[%s180 + $0xc4] sm:$0xf] %v279
                %v281 = vld [vmem:[%s179 + $0x190] sm:$0xf]
                %282 = vst [vmem:[%s180 + $0xc8] sm:$0xf] %v281
                %v283 = vld [vmem:[%s179 + $0x198] sm:$0xf]
                %284 = vst [vmem:[%s180 + $0xcc] sm:$0xf] %v283
                %v285 = vld [vmem:[%s179 + $0x1a0] sm:$0xf]
                %286 = vst [vmem:[%s180 + $0xd0] sm:$0xf] %v285
                %v287 = vld [vmem:[%s179 + $0x1a8] sm:$0xf]
                %288 = vst [vmem:[%s180 + $0xd4] sm:$0xf] %v287
                %v289 = vld [vmem:[%s179 + $0x1b0] sm:$0xf]
                %290 = vst [vmem:[%s180 + $0xd8] sm:$0xf] %v289
                %v291 = vld [vmem:[%s179 + $0x1b8] sm:$0xf]
                %292 = vst [vmem:[%s180 + $0xdc] sm:$0xf] %v291
                %v293 = vld [vmem:[%s179 + $0x1c0] sm:$0xf]
                %294 = vst [vmem:[%s180 + $0xe0] sm:$0xf] %v293
                %v295 = vld [vmem:[%s179 + $0x1c8] sm:$0xf]
                %296 = vst [vmem:[%s180 + $0xe4] sm:$0xf] %v295
                %v297 = vld [vmem:[%s179 + $0x1d0] sm:$0xf]
                %298 = vst [vmem:[%s180 + $0xe8] sm:$0xf] %v297
                %v299 = vld [vmem:[%s179 + $0x1d8] sm:$0xf]
                %300 = vst [vmem:[%s180 + $0xec] sm:$0xf] %v299
                %v301 = vld [vmem:[%s179 + $0x1e0] sm:$0xf]
                %302 = vst [vmem:[%s180 + $0xf0] sm:$0xf] %v301
                %v303 = vld [vmem:[%s179 + $0x1e8] sm:$0xf]
                %304 = vst [vmem:[%s180 + $0xf4] sm:$0xf] %v303
                %v305 = vld [vmem:[%s179 + $0x1f0] sm:$0xf]
                %306 = vst [vmem:[%s180 + $0xf8] sm:$0xf] %v305
                %v307 = vld [vmem:[%s179 + $0x1f8] sm:$0xf]
                %308 = vst [vmem:[%s180 + $0xfc] sm:$0xf] %v307
                %v309 = vld [vmem:[%s179 + $0x200] sm:$0xf]
                %310 = vst [vmem:[%s180 + $0x100] sm:$0xf] %v309
                %v311 = vld [vmem:[%s179 + $0x208] sm:$0xf]
                %312 = vst [vmem:[%s180 + $0x104] sm:$0xf] %v311
                %v313 = vld [vmem:[%s179 + $0x210] sm:$0xf]
                %314 = vst [vmem:[%s180 + $0x108] sm:$0xf] %v313
                %v315 = vld [vmem:[%s179 + $0x218] sm:$0xf]
                %316 = vst [vmem:[%s180 + $0x10c] sm:$0xf] %v315
                %v317 = vld [vmem:[%s179 + $0x220] sm:$0xf]
                %318 = vst [vmem:[%s180 + $0x110] sm:$0xf] %v317
                %v319 = vld [vmem:[%s179 + $0x228] sm:$0xf]
                %320 = vst [vmem:[%s180 + $0x114] sm:$0xf] %v319
                %v321 = vld [vmem:[%s179 + $0x230] sm:$0xf]
                %322 = vst [vmem:[%s180 + $0x118] sm:$0xf] %v321
                %v323 = vld [vmem:[%s179 + $0x238] sm:$0xf]
                %324 = vst [vmem:[%s180 + $0x11c] sm:$0xf] %v323
                %v325 = vld [vmem:[%s179 + $0x240] sm:$0xf]
                %326 = vst [vmem:[%s180 + $0x120] sm:$0xf] %v325
                %v327 = vld [vmem:[%s179 + $0x248] sm:$0xf]
                %328 = vst [vmem:[%s180 + $0x124] sm:$0xf] %v327
                %v329 = vld [vmem:[%s179 + $0x250] sm:$0xf]
                %330 = vst [vmem:[%s180 + $0x128] sm:$0xf] %v329
                %v331 = vld [vmem:[%s179 + $0x258] sm:$0xf]
                %332 = vst [vmem:[%s180 + $0x12c] sm:$0xf] %v331
                %v333 = vld [vmem:[%s179 + $0x260] sm:$0xf]
                %334 = vst [vmem:[%s180 + $0x130] sm:$0xf] %v333
                %v335 = vld [vmem:[%s179 + $0x268] sm:$0xf]
                %336 = vst [vmem:[%s180 + $0x134] sm:$0xf] %v335
                %v337 = vld [vmem:[%s179 + $0x270] sm:$0xf]
                %338 = vst [vmem:[%s180 + $0x138] sm:$0xf] %v337
                %v339 = vld [vmem:[%s179 + $0x278] sm:$0xf]
                %340 = vst [vmem:[%s180 + $0x13c] sm:$0xf] %v339
                %v341 = vld [vmem:[%s179 + $0x280] sm:$0xf]
                %342 = vst [vmem:[%s180 + $0x140] sm:$0xf] %v341
                %v343 = vld [vmem:[%s179 + $0x288] sm:$0xf]
                %344 = vst [vmem:[%s180 + $0x144] sm:$0xf] %v343
                %v345 = vld [vmem:[%s179 + $0x290] sm:$0xf]
                %346 = vst [vmem:[%s180 + $0x148] sm:$0xf] %v345
                %v347 = vld [vmem:[%s179 + $0x298] sm:$0xf]
                %348 = vst [vmem:[%s180 + $0x14c] sm:$0xf] %v347
                %v349 = vld [vmem:[%s179 + $0x2a0] sm:$0xf]
                %350 = vst [vmem:[%s180 + $0x150] sm:$0xf] %v349
                %v351 = vld [vmem:[%s179 + $0x2a8] sm:$0xf]
                %352 = vst [vmem:[%s180 + $0x154] sm:$0xf] %v351
                %v353 = vld [vmem:[%s179 + $0x2b0] sm:$0xf]
                %354 = vst [vmem:[%s180 + $0x158] sm:$0xf] %v353
                %v355 = vld [vmem:[%s179 + $0x2b8] sm:$0xf]
                %356 = vst [vmem:[%s180 + $0x15c] sm:$0xf] %v355
                %v357 = vld [vmem:[%s179 + $0x2c0] sm:$0xf]
                %358 = vst [vmem:[%s180 + $0x160] sm:$0xf] %v357
                %v359 = vld [vmem:[%s179 + $0x2c8] sm:$0xf]
                %360 = vst [vmem:[%s180 + $0x164] sm:$0xf] %v359
                %v361 = vld [vmem:[%s179 + $0x2d0] sm:$0xf]
                %362 = vst [vmem:[%s180 + $0x168] sm:$0xf] %v361
                %v363 = vld [vmem:[%s179 + $0x2d8] sm:$0xf]
                %364 = vst [vmem:[%s180 + $0x16c] sm:$0xf] %v363
                %v365 = vld [vmem:[%s179 + $0x2e0] sm:$0xf]
                %366 = vst [vmem:[%s180 + $0x170] sm:$0xf] %v365
                %v367 = vld [vmem:[%s179 + $0x2e8] sm:$0xf]
                %368 = vst [vmem:[%s180 + $0x174] sm:$0xf] %v367
                %v369 = vld [vmem:[%s179 + $0x2f0] sm:$0xf]
                %370 = vst [vmem:[%s180 + $0x178] sm:$0xf] %v369
                %v371 = vld [vmem:[%s179 + $0x2f8] sm:$0xf]
                %372 = vst [vmem:[%s180 + $0x17c] sm:$0xf] %v371
                %v373 = vld [vmem:[%s179 + $0x300] sm:$0xf]
                %374 = vst [vmem:[%s180 + $0x180] sm:$0xf] %v373
                %v375 = vld [vmem:[%s179 + $0x308] sm:$0xf]
                %376 = vst [vmem:[%s180 + $0x184] sm:$0xf] %v375
                %v377 = vld [vmem:[%s179 + $0x310] sm:$0xf]
                %378 = vst [vmem:[%s180 + $0x188] sm:$0xf] %v377
                %v379 = vld [vmem:[%s179 + $0x318] sm:$0xf]
                %380 = vst [vmem:[%s180 + $0x18c] sm:$0xf] %v379
                %v381 = vld [vmem:[%s179 + $0x320] sm:$0xf]
                %382 = vst [vmem:[%s180 + $0x190] sm:$0xf] %v381
                %v383 = vld [vmem:[%s179 + $0x328] sm:$0xf]
                %384 = vst [vmem:[%s180 + $0x194] sm:$0xf] %v383
                %v385 = vld [vmem:[%s179 + $0x330] sm:$0xf]
                %386 = vst [vmem:[%s180 + $0x198] sm:$0xf] %v385
                %v387 = vld [vmem:[%s179 + $0x338] sm:$0xf]
                %388 = vst [vmem:[%s180 + $0x19c] sm:$0xf] %v387
                %v389 = vld [vmem:[%s179 + $0x340] sm:$0xf]
                %390 = vst [vmem:[%s180 + $0x1a0] sm:$0xf] %v389
                %v391 = vld [vmem:[%s179 + $0x348] sm:$0xf]
                %392 = vst [vmem:[%s180 + $0x1a4] sm:$0xf] %v391
                %v393 = vld [vmem:[%s179 + $0x350] sm:$0xf]
                %394 = vst [vmem:[%s180 + $0x1a8] sm:$0xf] %v393
                %v395 = vld [vmem:[%s179 + $0x358] sm:$0xf]
                %396 = vst [vmem:[%s180 + $0x1ac] sm:$0xf] %v395
                %v397 = vld [vmem:[%s179 + $0x360] sm:$0xf]
                %398 = vst [vmem:[%s180 + $0x1b0] sm:$0xf] %v397
                %v399 = vld [vmem:[%s179 + $0x368] sm:$0xf]
                %400 = vst [vmem:[%s180 + $0x1b4] sm:$0xf] %v399
                %v401 = vld [vmem:[%s179 + $0x370] sm:$0xf]
                %402 = vst [vmem:[%s180 + $0x1b8] sm:$0xf] %v401
                %v403 = vld [vmem:[%s179 + $0x378] sm:$0xf]
                %404 = vst [vmem:[%s180 + $0x1bc] sm:$0xf] %v403
                %v405 = vld [vmem:[%s179 + $0x380] sm:$0xf]
                %406 = vst [vmem:[%s180 + $0x1c0] sm:$0xf] %v405
                %v407 = vld [vmem:[%s179 + $0x388] sm:$0xf]
                %408 = vst [vmem:[%s180 + $0x1c4] sm:$0xf] %v407
                %v409 = vld [vmem:[%s179 + $0x390] sm:$0xf]
                %410 = vst [vmem:[%s180 + $0x1c8] sm:$0xf] %v409
                %v411 = vld [vmem:[%s179 + $0x398] sm:$0xf]
                %412 = vst [vmem:[%s180 + $0x1cc] sm:$0xf] %v411
                %v413 = vld [vmem:[%s179 + $0x3a0] sm:$0xf]
                %414 = vst [vmem:[%s180 + $0x1d0] sm:$0xf] %v413
                %v415 = vld [vmem:[%s179 + $0x3a8] sm:$0xf]
                %416 = vst [vmem:[%s180 + $0x1d4] sm:$0xf] %v415
                %v417 = vld [vmem:[%s179 + $0x3b0] sm:$0xf]
                %418 = vst [vmem:[%s180 + $0x1d8] sm:$0xf] %v417
                %v419 = vld [vmem:[%s179 + $0x3b8] sm:$0xf]
                %420 = vst [vmem:[%s180 + $0x1dc] sm:$0xf] %v419
                %v421 = vld [vmem:[%s179 + $0x3c0] sm:$0xf]
                %422 = vst [vmem:[%s180 + $0x1e0] sm:$0xf] %v421
                %v423 = vld [vmem:[%s179 + $0x3c8] sm:$0xf]
                %424 = vst [vmem:[%s180 + $0x1e4] sm:$0xf] %v423
                %v425 = vld [vmem:[%s179 + $0x3d0] sm:$0xf]
                %426 = vst [vmem:[%s180 + $0x1e8] sm:$0xf] %v425
                %v427 = vld [vmem:[%s179 + $0x3d8] sm:$0xf]
                %428 = vst [vmem:[%s180 + $0x1ec] sm:$0xf] %v427
                %v429 = vld [vmem:[%s179 + $0x3e0] sm:$0xf]
                %430 = vst [vmem:[%s180 + $0x1f0] sm:$0xf] %v429
                %v431 = vld [vmem:[%s179 + $0x3e8] sm:$0xf]
                %432 = vst [vmem:[%s180 + $0x1f4] sm:$0xf] %v431
                %v433 = vld [vmem:[%s179 + $0x3f0] sm:$0xf]
                %434 = vst [vmem:[%s180 + $0x1f8] sm:$0xf] %v433
                %v435 = vld [vmem:[%s179 + $0x3f8] sm:$0xf]
                %436 = vst [vmem:[%s180 + $0x1fc] sm:$0xf] %v435
                %v437 = vld [vmem:[%s179 + $0x400] sm:$0xf]
                %438 = vst [vmem:[%s180 + $0x200] sm:$0xf] %v437
                %v439 = vld [vmem:[%s179 + $0x408] sm:$0xf]
                %440 = vst [vmem:[%s180 + $0x204] sm:$0xf] %v439
                %v441 = vld [vmem:[%s179 + $0x410] sm:$0xf]
                %442 = vst [vmem:[%s180 + $0x208] sm:$0xf] %v441
                %v443 = vld [vmem:[%s179 + $0x418] sm:$0xf]
                %444 = vst [vmem:[%s180 + $0x20c] sm:$0xf] %v443
                %v445 = vld [vmem:[%s179 + $0x420] sm:$0xf]
                %446 = vst [vmem:[%s180 + $0x210] sm:$0xf] %v445
                %v447 = vld [vmem:[%s179 + $0x428] sm:$0xf]
                %448 = vst [vmem:[%s180 + $0x214] sm:$0xf] %v447
                %v449 = vld [vmem:[%s179 + $0x430] sm:$0xf]
                %450 = vst [vmem:[%s180 + $0x218] sm:$0xf] %v449
                %v451 = vld [vmem:[%s179 + $0x438] sm:$0xf]
                %452 = vst [vmem:[%s180 + $0x21c] sm:$0xf] %v451
                %v453 = vld [vmem:[%s179 + $0x440] sm:$0xf]
                %454 = vst [vmem:[%s180 + $0x220] sm:$0xf] %v453
                %v455 = vld [vmem:[%s179 + $0x448] sm:$0xf]
                %456 = vst [vmem:[%s180 + $0x224] sm:$0xf] %v455
                %v457 = vld [vmem:[%s179 + $0x450] sm:$0xf]
                %458 = vst [vmem:[%s180 + $0x228] sm:$0xf] %v457
                %v459 = vld [vmem:[%s179 + $0x458] sm:$0xf]
                %460 = vst [vmem:[%s180 + $0x22c] sm:$0xf] %v459
                %v461 = vld [vmem:[%s179 + $0x460] sm:$0xf]
                %462 = vst [vmem:[%s180 + $0x230] sm:$0xf] %v461
                %v463 = vld [vmem:[%s179 + $0x468] sm:$0xf]
                %464 = vst [vmem:[%s180 + $0x234] sm:$0xf] %v463
                %v465 = vld [vmem:[%s179 + $0x470] sm:$0xf]
                %466 = vst [vmem:[%s180 + $0x238] sm:$0xf] %v465
                %v467 = vld [vmem:[%s179 + $0x478] sm:$0xf]
                %468 = vst [vmem:[%s180 + $0x23c] sm:$0xf] %v467
              $region41: #{encoder_forward.5} parent=35 // loop_footer
                %s178 = sadd.s32 1, %s174
              $region42: #{encoder_forward.5} parent=35 // loop_footer_branch
                %173 = sbr.rel target = $region38
              $region43: #{encoder_forward.5} parent=35 // loop_exit
                _
            $region36: #{encoder_forward.5} parent=27 // pred_fallthru
              _
          $region28: #{encoder_forward.5} parent=23 // pred_fallthru
            _
          %776 = vnop
        $region24: #{encoder_forward.5} parent=15 // pred_fallthru
          _
        // Predicated region
        $region62: #{encoder_forward.5} parent=15 // pred_check
          %p777 = pneg %p96
        $region63: #{encoder_forward.5} parent=15 // pred_check_branch
          %779 = sbr.rel (%p777) target = $region65
        $region64: #{encoder_forward.5} parent=15 // pred_region
          %p780 = scmp.lt.s32.totalorder %s20, 1
          %s781 = scalar_select %p780, %s20, 1
          %s782 = scalar_lea.vmem %s2, %s781
        $region65: #{encoder_forward.5} parent=15 // pred_fallthru
          _
      $region16: #{encoder_forward.5} parent=5 // pred_fallthru
        _
      %p783 = scmp.le.s32.totalorder 1, %s12
      %p784 = scmp.lt.s32.totalorder %s12, 5
      %p785 = pnand %p783, %p784
      %p786 = pneg %p785
      // Predicated region
      $region66: #{encoder_forward.5} parent=5 // pred_check
        _
      $region67: #{encoder_forward.5} parent=5 // pred_check_branch
        %788 = sbr.rel (%p785) target = $region69
      $region68: #{encoder_forward.5} parent=5 // pred_region
        %s789 = ssub.s32 %s12, 1
        %s790 = sand.u32 %s63, 1
        %s791 = sand.u32 %s63, 1
        %s792 = smul.addr %s791, 576
        %s793 = scalar_lea.vmem [#allocation2], %s792
        // Predicated region
        $region70: #{encoder_forward.5} parent=68 // pred_check
          %p794 = pneg %p76
        $region71: #{encoder_forward.5} parent=68 // pred_check_branch
          %796 = sbr.rel (%p794) target = $region73
        $region72: #{encoder_forward.5} parent=68 // pred_region
          _
        $region73: #{encoder_forward.5} parent=68 // pred_fallthru
          _
        %p797 = scmp.lt.s32.totalorder %s21, 1
        %s798 = scalar_select %p797, %s21, 1
        %s799 = smul.addr %s798, 72
        %s800 = smul.addr %s799, 4
        %s801 = scalar_lea.vmem %s0, %s800
        %p802 = pneg %p50
        %p803 = pneg %p47
        %s804 = sand.u32 %s63, 1
        %s805 = sand.u32 %s63, 1
        %s806 = smul.addr %s805, 576
        %s807 = scalar_lea.vmem [#allocation2], %s806
        %p808 = pneg %p76
        %p809 = pneg %p73
        %p810 = scmp.lt.s32.totalorder %s22, 1
        %s811 = scalar_select %p810, %s22, 1
        %s812 = scalar_lea.vmem %s2, %s811
        %p813 = pneg %p102
        %p814 = pneg %p99
        %p815 = pneg %p130
        %p816 = pneg %p127
        %s817 = sand.u32 %s117, 1
        %s818 = scalar_lea.sflag [#allocation4], %s817
        %s819 = sand.u32 %s117, 1
        %s820 = smul.addr %s819, 64
        %s821 = scalar_lea.vmem [#allocation3], %s820
        %p822 = scmp.lt.s32.totalorder %s21, 1
        %s823 = scalar_select %p822, %s21, 1
        %s824 = smul.addr %s823, 72
        %s825 = smul.addr %s824, 4
        %s826 = scalar_lea.vmem %s0, %s825
        %p827 = scmp.lt.s32.totalorder %s22, 1
        %s828 = scalar_select %p827, %s22, 1
        %s829 = scalar_lea.vmem %s2, %s828
        %v831 = vld [vmem:[%s826] sm:$0xff]
        %v832 = vld [vmem:[%s826 + $0x8] sm:$0x11]
        %v833 = vld [vmem:[%s826 + $0x10] sm:$0xff]
        %v834 = vld [vmem:[%s826 + $0x18] sm:$0x11]
        %v835 = vld [vmem:[%s826 + $0x20] sm:$0xff]
        %v836 = vld [vmem:[%s826 + $0x28] sm:$0x11]
        %v837 = vld [vmem:[%s826 + $0x30] sm:$0xff]
        %v838 = vld [vmem:[%s826 + $0x38] sm:$0x11]
        %v839 = vld [vmem:[%s826 + $0x40] sm:$0xff]
        %v840 = vld [vmem:[%s826 + $0x48] sm:$0x11]
        %v841 = vld [vmem:[%s826 + $0x50] sm:$0xff]
        %v842 = vld [vmem:[%s826 + $0x58] sm:$0x11]
        %v843 = vld [vmem:[%s826 + $0x60] sm:$0xff]
        %v844 = vld [vmem:[%s826 + $0x68] sm:$0x11]
        %v845 = vld [vmem:[%s826 + $0x70] sm:$0xff]
        %v846 = vld [vmem:[%s826 + $0x78] sm:$0x11]
        %v847 = vld [vmem:[%s826 + $0x80] sm:$0xff]
        %v848 = vld [vmem:[%s826 + $0x88] sm:$0x11]
        %v849 = vld [vmem:[%s826 + $0x90] sm:$0xff]
        %v850 = vld [vmem:[%s826 + $0x98] sm:$0x11]
        %v851 = vld [vmem:[%s826 + $0xa0] sm:$0xff]
        %v852 = vld [vmem:[%s826 + $0xa8] sm:$0x11]
        %v853 = vld [vmem:[%s826 + $0xb0] sm:$0xff]
        %v854 = vld [vmem:[%s826 + $0xb8] sm:$0x11]
        %v855 = vld [vmem:[%s826 + $0xc0] sm:$0xff]
        %v856 = vld [vmem:[%s826 + $0xc8] sm:$0x11]
        %v857 = vld [vmem:[%s826 + $0xd0] sm:$0xff]
        %v858 = vld [vmem:[%s826 + $0xd8] sm:$0x11]
        %v859 = vld [vmem:[%s826 + $0xe0] sm:$0xff]
        %v860 = vld [vmem:[%s826 + $0xe8] sm:$0x11]
        %v861 = vld [vmem:[%s826 + $0xf0] sm:$0xff]
        %v862 = vld [vmem:[%s826 + $0xf8] sm:$0x11]
        %v863 = vld [vmem:[%s826 + $0x100] sm:$0xff]
        %v864 = vld [vmem:[%s826 + $0x108] sm:$0x11]
        %v865 = vld [vmem:[%s793] sm:$0xf]
        %v866 = vld [vmem:[%s793 + $0x4] sm:$0xf]
        %v867 = vld [vmem:[%s793 + $0x8] sm:$0xf]
        %v868 = vld [vmem:[%s793 + $0xc] sm:$0xf]
        %v869 = vld [vmem:[%s793 + $0x10] sm:$0xf]
        %v870 = vld [vmem:[%s793 + $0x14] sm:$0xf]
        %v871 = vld [vmem:[%s793 + $0x18] sm:$0xf]
        %v872 = vld [vmem:[%s793 + $0x1c] sm:$0xf]
        %v873 = vld [vmem:[%s793 + $0x20] sm:$0xf]
        %v874 = vld [vmem:[%s793 + $0x24] sm:$0xf]
        %v875 = vld [vmem:[%s793 + $0x28] sm:$0xf]
        %v876 = vld [vmem:[%s793 + $0x2c] sm:$0xf]
        %v877 = vld [vmem:[%s793 + $0x30] sm:$0xf]
        %v878 = vld [vmem:[%s793 + $0x34] sm:$0xf]
        %v879 = vld [vmem:[%s793 + $0x38] sm:$0xf]
        %v880 = vld [vmem:[%s793 + $0x3c] sm:$0xf]
        %v881 = vld [vmem:[%s793 + $0x40] sm:$0xf]
        %v882 = vld [vmem:[%s793 + $0x44] sm:$0xf]
        %v883 = vld [vmem:[%s793 + $0x48] sm:$0xf]
        %v884 = vld [vmem:[%s793 + $0x4c] sm:$0xf]
        %v885 = vld [vmem:[%s793 + $0x50] sm:$0xf]
        %v886 = vld [vmem:[%s793 + $0x54] sm:$0xf]
        %v887 = vld [vmem:[%s793 + $0x58] sm:$0xf]
        %v888 = vld [vmem:[%s793 + $0x5c] sm:$0xf]
        %v889 = vld [vmem:[%s793 + $0x60] sm:$0xf]
        %v890 = vld [vmem:[%s793 + $0x64] sm:$0xf]
        %v891 = vld [vmem:[%s793 + $0x68] sm:$0xf]
        %v892 = vld [vmem:[%s793 + $0x6c] sm:$0xf]
        %v893 = vld [vmem:[%s793 + $0x70] sm:$0xf]
        %v894 = vld [vmem:[%s793 + $0x74] sm:$0xf]
        %v895 = vld [vmem:[%s793 + $0x78] sm:$0xf]
        %v896 = vld [vmem:[%s793 + $0x7c] sm:$0xf]
        %vm897 = vsmask.f32 3328
        %vm898 = vsmask.f32 7440
        %vm899 = vmor %vm897, %vm898
        %v901 = vshrl.u32 %v831, 16
        %v903 = vrot.slane %v901, 4
        %v904 = vshll.u32 %v831, 16
        %v906 = vrot.slane %v904, 5
        %v907 = vor.u32 %v903, %v906
        %v908 = vrot.slane %v907, 4
        %v910 = vshll.u32 %v832, 16
        %v912 = vrot.slane %v910, 5
        %v913 = vsel %vm899, %v908, %v912
        %v915 = vshrl.u32 %v833, 16
        %v917 = vrot.slane %v915, 4
        %v918 = vshll.u32 %v833, 16
        %v920 = vrot.slane %v918, 5
        %v921 = vor.u32 %v917, %v920
        %v922 = vrot.slane %v921, 4
        %v924 = vshll.u32 %v834, 16
        %v926 = vrot.slane %v924, 5
        %v927 = vsel %vm899, %v922, %v926
        %v929 = vshrl.u32 %v835, 16
        %v931 = vrot.slane %v929, 4
        %v932 = vshll.u32 %v835, 16
        %v934 = vrot.slane %v932, 5
        %v935 = vor.u32 %v931, %v934
        %v936 = vrot.slane %v935, 4
        %v938 = vshll.u32 %v836, 16
        %v940 = vrot.slane %v938, 5
        %v941 = vsel %vm899, %v936, %v940
        %v943 = vshrl.u32 %v837, 16
        %v945 = vrot.slane %v943, 4
        %v946 = vshll.u32 %v837, 16
        %v948 = vrot.slane %v946, 5
        %v949 = vor.u32 %v945, %v948
        %v950 = vrot.slane %v949, 4
        %v952 = vshll.u32 %v838, 16
        %v954 = vrot.slane %v952, 5
        %v955 = vsel %vm899, %v950, %v954
        %v957 = vshrl.u32 %v839, 16
        %v959 = vrot.slane %v957, 4
        %v960 = vshll.u32 %v839, 16
        %v962 = vrot.slane %v960, 5
        %v963 = vor.u32 %v959, %v962
        %v964 = vrot.slane %v963, 4
        %v966 = vshll.u32 %v840, 16
        %v968 = vrot.slane %v966, 5
        %v969 = vsel %vm899, %v964, %v968
        %v971 = vshrl.u32 %v841, 16
        %v973 = vrot.slane %v971, 4
        %v974 = vshll.u32 %v841, 16
        %v976 = vrot.slane %v974, 5
        %v977 = vor.u32 %v973, %v976
        %v978 = vrot.slane %v977, 4
        %v980 = vshll.u32 %v842, 16
        %v982 = vrot.slane %v980, 5
        %v983 = vsel %vm899, %v978, %v982
        %v985 = vshrl.u32 %v843, 16
        %v987 = vrot.slane %v985, 4
        %v988 = vshll.u32 %v843, 16
        %v990 = vrot.slane %v988, 5
        %v991 = vor.u32 %v987, %v990
        %v992 = vrot.slane %v991, 4
        %v994 = vshll.u32 %v844, 16
        %v996 = vrot.slane %v994, 5
        %v997 = vsel %vm899, %v992, %v996
        %v999 = vshrl.u32 %v845, 16
        %v1001 = vrot.slane %v999, 4
        %v1002 = vshll.u32 %v845, 16
        %v1004 = vrot.slane %v1002, 5
        %v1005 = vor.u32 %v1001, %v1004
        %v1006 = vrot.slane %v1005, 4
        %v1008 = vshll.u32 %v846, 16
        %v1010 = vrot.slane %v1008, 5
        %v1011 = vsel %vm899, %v1006, %v1010
        %v1012 = vld [vmem:[%s793 + $0x80] sm:$0xf]
        %v1013 = vld [vmem:[%s793 + $0x84] sm:$0xf]
        %v1014 = vld [vmem:[%s793 + $0x88] sm:$0xf]
        %v1015 = vld [vmem:[%s793 + $0x8c] sm:$0xf]
        %v1016 = vld [vmem:[%s793 + $0x90] sm:$0xf]
        %v1017 = vld [vmem:[%s793 + $0x94] sm:$0xf]
        %v1018 = vld [vmem:[%s793 + $0x98] sm:$0xf]
        %v1019 = vld [vmem:[%s793 + $0x9c] sm:$0xf]
        %v1020 = vld [vmem:[%s793 + $0xa0] sm:$0xf]
        %v1021 = vld [vmem:[%s793 + $0xa4] sm:$0xf]
        %v1022 = vld [vmem:[%s793 + $0xa8] sm:$0xf]
        %v1023 = vld [vmem:[%s793 + $0xac] sm:$0xf]
        %v1024 = vld [vmem:[%s793 + $0xb0] sm:$0xf]
        %v1025 = vld [vmem:[%s793 + $0xb4] sm:$0xf]
        %v1026 = vld [vmem:[%s793 + $0xb8] sm:$0xf]
        %v1027 = vld [vmem:[%s793 + $0xbc] sm:$0xf]
        %v1028 = vunpack.c.l.b16 %v913
        %v1029 = vunpack.c.l.b16 %v927
        %v1030 = vunpack.c.l.b16 %v941
        %v1031 = vunpack.c.l.b16 %v955
        %v1032 = vunpack.c.l.b16 %v969
        %v1033 = vunpack.c.l.b16 %v983
        %v1034 = vunpack.c.l.b16 %v997
        %v1035 = vunpack.c.l.b16 %v1011
        %v1036 = vpack.c.b16 %v1029, %v1028
        %v1037 = vpack.c.b16 %v1031, %v1030
        %v1038 = vpack.c.b16 %v1033, %v1032
        %v1039 = vpack.c.b16 %v1035, %v1034
        %v1060 = vunpack.c.l.b16 %v1012
        %v1061 = vunpack.c.l.b16 %v1013
        %v1062 = vunpack.c.l.b16 %v1014
        %v1063 = vunpack.c.l.b16 %v1015
        %v1064 = vunpack.c.l.b16 %v1016
        %v1065 = vunpack.c.l.b16 %v1017
        %v1066 = vunpack.c.l.b16 %v1018
        %v1067 = vunpack.c.l.b16 %v1019
        %v1068 = vunpack.c.l.b16 %v1020
        %v1069 = vunpack.c.l.b16 %v1021
        %v1070 = vunpack.c.l.b16 %v1022
        %v1071 = vunpack.c.l.b16 %v1023
        %v1072 = vunpack.c.l.b16 %v1024
        %v1073 = vunpack.c.l.b16 %v1025
        %v1074 = vunpack.c.l.b16 %v1026
        %v1075 = vunpack.c.l.b16 %v1027
        %v1076 = vpack.c.b16 %v1061, %v1060
        %v1077 = vpack.c.b16 %v1063, %v1062
        %v1078 = vpack.c.b16 %v1065, %v1064
        %v1079 = vpack.c.b16 %v1067, %v1066
        %v1080 = vpack.c.b16 %v1069, %v1068
        %v1081 = vpack.c.b16 %v1071, %v1070
        %v1082 = vpack.c.b16 %v1073, %v1072
        %v1083 = vpack.c.b16 %v1075, %v1074
        %1092 = vmatprep.subr.bf16.mxu0 0
        %1093 = vmatpush1.bf16.msra.mxu0 %v1076
        %1094 = vmatprep.subr.bf16.mxu0 0
        %1095 = vmatpush1.bf16.msra.mxu0 %v1077
        %1096 = vmatprep.subr.bf16.mxu0 0
        %1097 = vmatpush1.bf16.msra.mxu0 %v1078
        %1098 = vmatprep.subr.bf16.mxu0 0
        %1099 = vmatpush1.bf16.msra.mxu0 %v1079
        %1100 = vmatprep.subr.bf16.mxu0 0
        %1101 = vmatpush1.bf16.msra.mxu0 %v1080
        %1102 = vmatprep.subr.bf16.mxu0 0
        %1103 = vmatpush1.bf16.msra.mxu0 %v1081
        %1104 = vmatprep.subr.bf16.mxu0 0
        %1105 = vmatpush1.bf16.msra.mxu0 %v1082
        %1106 = vmatprep.subr.bf16.mxu0 0
        %1107 = vmatpush1.bf16.msra.mxu0 %v1083
        %1108 = vmatprep.subr.bf16.mxu0 0
        %1109 = vmatpush1.bf16.msra.mxu0 0
        %1110 = vmatprep.subr.bf16.mxu0 0
        %1111 = vmatpush1.bf16.msra.mxu0 0
        %1112 = vmatprep.subr.bf16.mxu0 0
        %1113 = vmatpush1.bf16.msra.mxu0 0
        %1114 = vmatprep.subr.bf16.mxu0 0
        %1115 = vmatpush1.bf16.msra.mxu0 0
        %1116 = vmatprep.subr.bf16.mxu0 0
        %1117 = vmatpush1.bf16.msra.mxu0 0
        %1118 = vmatprep.subr.bf16.mxu0 0
        %1119 = vmatpush1.bf16.msra.mxu0 0
        %1120 = vmatprep.subr.bf16.mxu0 0
        %1121 = vmatpush1.bf16.msra.mxu0 0
        %1122 = vmatprep.subr.bf16.mxu0 0
        %1123 = vmatpush1.bf16.msra.mxu0 0
        %1124 = vmatprep.mubr.bf16.mxu0 0
        %1125 = vmatmul.mubr.bf16.gmra.mrb[0].mxu0 %v1036
        %v1126 = vpop.f32.mrb[0].mxu0
        %v1127 = vadd.f32 0.0, %v1126
        %v1128 = vpop.f32.mrb[0].mxu0
        %v1129 = vpop.f32.mrb[0].mxu0
        %v1130 = vadd.f32 0.0, %v1129
        %v1131 = vpop.f32.mrb[0].mxu0
        %1132 = vmatprep.mubr.bf16.mxu0 0
        %1133 = vmatmul.mubr.bf16.gmra.mrb[0].mxu0 %v1037
        %v1134 = vpop.f32.mrb[0].mxu0
        %v1135 = vadd.f32 0.0, %v1134
        %v1136 = vpop.f32.mrb[0].mxu0
        %v1137 = vpop.f32.mrb[0].mxu0
        %v1138 = vadd.f32 0.0, %v1137
        %v1139 = vpop.f32.mrb[0].mxu0
        %1140 = vmatprep.mubr.bf16.mxu0 0
        %1141 = vmatmul.mubr.bf16.gmra.mrb[0].mxu0 %v1038
        %v1142 = vpop.f32.mrb[0].mxu0
        %v1143 = vadd.f32 0.0, %v1142
        %v1144 = vpop.f32.mrb[0].mxu0
        %v1145 = vpop.f32.mrb[0].mxu0
        %v1146 = vadd.f32 0.0, %v1145
        %v1147 = vpop.f32.mrb[0].mxu0
        %1148 = vmatprep.mubr.bf16.mxu0 0
        %1149 = vmatmul.mubr.bf16.gmra.mrb[0].mxu0 %v1039
        %v1150 = vpop.f32.mrb[0].mxu0
        %v1151 = vadd.f32 0.0, %v1150
        %v1152 = vpop.f32.mrb[0].mxu0
        %v1153 = vpop.f32.mrb[0].mxu0
        %v1154 = vadd.f32 0.0, %v1153
        %v1155 = vpop.f32.mrb[0].mxu0
        %1156 = vdwg.mxu0
        %v1165 = vunpack.c.l.b16 %v831
        %v1166 = vunpack.c.h.b16 %v831
        %v1167 = vunpack.c.l.b16 %v833
        %v1168 = vunpack.c.h.b16 %v833
        %v1169 = vunpack.c.l.b16 %v835
        %v1170 = vunpack.c.h.b16 %v835
        %v1171 = vunpack.c.l.b16 %v837
        %v1172 = vunpack.c.h.b16 %v837
        %v1173 = vunpack.c.l.b16 %v839
        %v1174 = vunpack.c.h.b16 %v839
        %v1175 = vunpack.c.l.b16 %v841
        %v1176 = vunpack.c.h.b16 %v841
        %v1177 = vunpack.c.l.b16 %v843
        %v1178 = vunpack.c.h.b16 %v843
        %v1179 = vunpack.c.l.b16 %v845
        %v1180 = vunpack.c.h.b16 %v845
        %v1181 = vpack.c.b16 %v1167, %v1165
        %v1182 = vpack.c.b16 %v1168, %v1166
        %v1183 = vpack.c.b16 %v1171, %v1169
        %v1184 = vpack.c.b16 %v1172, %v1170
        %v1185 = vpack.c.b16 %v1175, %v1173
        %v1186 = vpack.c.b16 %v1176, %v1174
        %v1187 = vpack.c.b16 %v1179, %v1177
        %v1188 = vpack.c.b16 %v1180, %v1178
        %v1229 = vunpack.c.l.b16 %v865
        %v1230 = vunpack.c.l.b16 %v866
        %v1231 = vunpack.c.l.b16 %v867
        %v1232 = vunpack.c.l.b16 %v868
        %v1233 = vunpack.c.l.b16 %v869
        %v1234 = vunpack.c.l.b16 %v870
        %v1235 = vunpack.c.l.b16 %v871
        %v1236 = vunpack.c.l.b16 %v872
        %v1237 = vunpack.c.l.b16 %v873
        %v1238 = vunpack.c.l.b16 %v874
        %v1239 = vunpack.c.l.b16 %v875
        %v1240 = vunpack.c.l.b16 %v876
        %v1241 = vunpack.c.l.b16 %v877
        %v1242 = vunpack.c.l.b16 %v878
        %v1243 = vunpack.c.l.b16 %v879
        %v1244 = vunpack.c.l.b16 %v880
        %v1245 = vunpack.c.l.b16 %v881
        %v1246 = vunpack.c.l.b16 %v882
        %v1247 = vunpack.c.l.b16 %v883
        %v1248 = vunpack.c.l.b16 %v884
        %v1249 = vunpack.c.l.b16 %v885
        %v1250 = vunpack.c.l.b16 %v886
        %v1251 = vunpack.c.l.b16 %v887
        %v1252 = vunpack.c.l.b16 %v888
        %v1253 = vunpack.c.l.b16 %v889
        %v1254 = vunpack.c.l.b16 %v890
        %v1255 = vunpack.c.l.b16 %v891
        %v1256 = vunpack.c.l.b16 %v892
        %v1257 = vunpack.c.l.b16 %v893
        %v1258 = vunpack.c.l.b16 %v894
        %v1259 = vunpack.c.l.b16 %v895
        %v1260 = vunpack.c.l.b16 %v896
        %v1261 = vpack.c.b16 %v1230, %v1229
        %v1262 = vpack.c.b16 %v1232, %v1231
        %v1263 = vpack.c.b16 %v1234, %v1233
        %v1264 = vpack.c.b16 %v1236, %v1235
        %v1265 = vpack.c.b16 %v1238, %v1237
        %v1266 = vpack.c.b16 %v1240, %v1239
        %v1267 = vpack.c.b16 %v1242, %v1241
        %v1268 = vpack.c.b16 %v1244, %v1243
        %v1269 = vpack.c.b16 %v1246, %v1245
        %v1270 = vpack.c.b16 %v1248, %v1247
        %v1271 = vpack.c.b16 %v1250, %v1249
        %v1272 = vpack.c.b16 %v1252, %v1251
        %v1273 = vpack.c.b16 %v1254, %v1253
        %v1274 = vpack.c.b16 %v1256, %v1255
        %v1275 = vpack.c.b16 %v1258, %v1257
        %v1276 = vpack.c.b16 %v1260, %v1259
        %1293 = vmatprep.subr.bf16.mxu0 0
        %1294 = vmatpush1.bf16.msra.mxu0 %v1261
        %1295 = vmatprep.subr.bf16.mxu0 0
        %1296 = vmatpush1.bf16.msra.mxu0 %v1262
        %1297 = vmatprep.subr.bf16.mxu0 0
        %1298 = vmatpush1.bf16.msra.mxu0 %v1263
        %1299 = vmatprep.subr.bf16.mxu0 0
        %1300 = vmatpush1.bf16.msra.mxu0 %v1264
        %1301 = vmatprep.subr.bf16.mxu0 0
        %1302 = vmatpush1.bf16.msra.mxu0 %v1265
        %1303 = vmatprep.subr.bf16.mxu0 0
        %1304 = vmatpush1.bf16.msra.mxu0 %v1266
        %1305 = vmatprep.subr.bf16.mxu0 0
        %1306 = vmatpush1.bf16.msra.mxu0 %v1267
        %1307 = vmatprep.subr.bf16.mxu0 0
        %1308 = vmatpush1.bf16.msra.mxu0 %v1268
        %1309 = vmatprep.subr.bf16.mxu0 0
        %1310 = vmatpush1.bf16.msra.mxu0 %v1269
        %1311 = vmatprep.subr.bf16.mxu0 0
        %1312 = vmatpush1.bf16.msra.mxu0 %v1270
        %1313 = vmatprep.subr.bf16.mxu0 0
        %1314 = vmatpush1.bf16.msra.mxu0 %v1271
        %1315 = vmatprep.subr.bf16.mxu0 0
        %1316 = vmatpush1.bf16.msra.mxu0 %v1272
        %1317 = vmatprep.subr.bf16.mxu0 0
        %1318 = vmatpush1.bf16.msra.mxu0 %v1273
        %1319 = vmatprep.subr.bf16.mxu0 0
        %1320 = vmatpush1.bf16.msra.mxu0 %v1274
        %1321 = vmatprep.subr.bf16.mxu0 0
        %1322 = vmatpush1.bf16.msra.mxu0 %v1275
        %1323 = vmatprep.subr.bf16.mxu0 0
        %1324 = vmatpush1.bf16.msra.mxu0 %v1276
        %1325 = vmatprep.mubr.bf16.mxu0 %v1182
        %1326 = vmatmul.mubr.bf16.gmra.mrb[0].mxu0 %v1181
        %v1327 = vpop.f32.mrb[0].mxu0
        %v1328 = vadd.f32 %v1127, %v1327
        %v1329 = vpop.f32.mrb[0].mxu0
        %v1330 = vpop.f32.mrb[0].mxu0
        %v1331 = vadd.f32 %v1130, %v1330
        %v1332 = vpop.f32.mrb[0].mxu0
        %1333 = vmatprep.mubr.bf16.mxu0 %v1184
        %1334 = vmatmul.mubr.bf16.gmra.mrb[0].mxu0 %v1183
        %v1335 = vpop.f32.mrb[0].mxu0
        %v1336 = vadd.f32 %v1135, %v1335
        %v1337 = vpop.f32.mrb[0].mxu0
        %v1338 = vpop.f32.mrb[0].mxu0
        %v1339 = vadd.f32 %v1138, %v1338
        %v1340 = vpop.f32.mrb[0].mxu0
        %1341 = vmatprep.mubr.bf16.mxu0 %v1186
        %1342 = vmatmul.mubr.bf16.gmra.mrb[0].mxu0 %v1185
        %v1343 = vpop.f32.mrb[0].mxu0
        %v1344 = vadd.f32 %v1143, %v1343
        %v1345 = vpop.f32.mrb[0].mxu0
        %v1346 = vpop.f32.mrb[0].mxu0
        %v1347 = vadd.f32 %v1146, %v1346
        %v1348 = vpop.f32.mrb[0].mxu0
        %1349 = vmatprep.mubr.bf16.mxu0 %v1188
        %1350 = vmatmul.mubr.bf16.gmra.mrb[0].mxu0 %v1187
        %v1351 = vpop.f32.mrb[0].mxu0
        %v1352 = vadd.f32 %v1151, %v1351
        %v1353 = vpop.f32.mrb[0].mxu0
        %v1354 = vpop.f32.mrb[0].mxu0
        %v1355 = vadd.f32 %v1154, %v1354
        %v1356 = vpop.f32.mrb[0].mxu0
        %1357 = vdwg.mxu0
        %v1358 = vld [vmem:[%s793 + $0xc0] sm:$0xf]
        %v1359 = vld [vmem:[%s793 + $0xc4] sm:$0xf]
        %v1360 = vld [vmem:[%s793 + $0xc8] sm:$0xf]
        %v1361 = vld [vmem:[%s793 + $0xcc] sm:$0xf]
        %v1362 = vld [vmem:[%s793 + $0xd0] sm:$0xf]
        %v1363 = vld [vmem:[%s793 + $0xd4] sm:$0xf]
        %v1364 = vld [vmem:[%s793 + $0xd8] sm:$0xf]
        %v1365 = vld [vmem:[%s793 + $0xdc] sm:$0xf]
        %v1366 = vld [vmem:[%s793 + $0xe0] sm:$0xf]
        %v1367 = vld [vmem:[%s793 + $0xe4] sm:$0xf]
        %v1368 = vld [vmem:[%s793 + $0xe8] sm:$0xf]
        %v1369 = vld [vmem:[%s793 + $0xec] sm:$0xf]
        %v1370 = vld [vmem:[%s793 + $0xf0] sm:$0xf]
        %v1371 = vld [vmem:[%s793 + $0xf4] sm:$0xf]
        %v1372 = vld [vmem:[%s793 + $0xf8] sm:$0xf]
        %v1373 = vld [vmem:[%s793 + $0xfc] sm:$0xf]
        %v1374 = vld [vmem:[%s793 + $0x100] sm:$0xf]
        %v1375 = vld [vmem:[%s793 + $0x104] sm:$0xf]
        %v1376 = vld [vmem:[%s793 + $0x108] sm:$0xf]
        %v1377 = vld [vmem:[%s793 + $0x10c] sm:$0xf]
        %v1378 = vld [vmem:[%s793 + $0x110] sm:$0xf]
        %v1379 = vld [vmem:[%s793 + $0x114] sm:$0xf]
        %v1380 = vld [vmem:[%s793 + $0x118] sm:$0xf]
        %v1381 = vld [vmem:[%s793 + $0x11c] sm:$0xf]
        %v1382 = vld [vmem:[%s793 + $0x120] sm:$0xf]
        %v1383 = vld [vmem:[%s793 + $0x124] sm:$0xf]
        %v1384 = vld [vmem:[%s793 + $0x128] sm:$0xf]
        %v1385 = vld [vmem:[%s793 + $0x12c] sm:$0xf]
        %v1386 = vld [vmem:[%s793 + $0x130] sm:$0xf]
        %v1387 = vld [vmem:[%s793 + $0x134] sm:$0xf]
        %v1388 = vld [vmem:[%s793 + $0x138] sm:$0xf]
        %v1389 = vld [vmem:[%s793 + $0x13c] sm:$0xf]
        %v1398 = vunpack.c.l.b16 %v849
        %v1399 = vunpack.c.h.b16 %v849
        %v1400 = vunpack.c.l.b16 %v851
        %v1401 = vunpack.c.h.b16 %v851
        %v1402 = vunpack.c.l.b16 %v853
        %v1403 = vunpack.c.h.b16 %v853
        %v1404 = vunpack.c.l.b16 %v855
        %v1405 = vunpack.c.h.b16 %v855
        %v1406 = vunpack.c.l.b16 %v857
        %v1407 = vunpack.c.h.b16 %v857
        %v1408 = vunpack.c.l.b16 %v859
        %v1409 = vunpack.c.h.b16 %v859
        %v1410 = vunpack.c.l.b16 %v861
        %v1411 = vunpack.c.h.b16 %v861
        %v1412 = vunpack.c.l.b16 %v863
        %v1413 = vunpack.c.h.b16 %v863
        %v1414 = vpack.c.b16 %v1400, %v1398
        %v1415 = vpack.c.b16 %v1401, %v1399
        %v1416 = vpack.c.b16 %v1404, %v1402
        %v1417 = vpack.c.b16 %v1405, %v1403
        %v1418 = vpack.c.b16 %v1408, %v1406
        %v1419 = vpack.c.b16 %v1409, %v1407
        %v1420 = vpack.c.b16 %v1412, %v1410
        %v1421 = vpack.c.b16 %v1413, %v1411
        %v1462 = vunpack.c.l.b16 %v1358
        %v1463 = vunpack.c.l.b16 %v1359
        %v1464 = vunpack.c.l.b16 %v1360
        %v1465 = vunpack.c.l.b16 %v1361
        %v1466 = vunpack.c.l.b16 %v1362
        %v1467 = vunpack.c.l.b16 %v1363
        %v1468 = vunpack.c.l.b16 %v1364
        %v1469 = vunpack.c.l.b16 %v1365
        %v1470 = vunpack.c.l.b16 %v1366
        %v1471 = vunpack.c.l.b16 %v1367
        %v1472 = vunpack.c.l.b16 %v1368
        %v1473 = vunpack.c.l.b16 %v1369
        %v1474 = vunpack.c.l.b16 %v1370
        %v1475 = vunpack.c.l.b16 %v1371
        %v1476 = vunpack.c.l.b16 %v1372
        %v1477 = vunpack.c.l.b16 %v1373
        %v1478 = vunpack.c.l.b16 %v1374
        %v1479 = vunpack.c.l.b16 %v1375
        %v1480 = vunpack.c.l.b16 %v1376
        %v1481 = vunpack.c.l.b16 %v1377
        %v1482 = vunpack.c.l.b16 %v1378
        %v1483 = vunpack.c.l.b16 %v1379
        %v1484 = vunpack.c.l.b16 %v1380
        %v1485 = vunpack.c.l.b16 %v1381
        %v1486 = vunpack.c.l.b16 %v1382
        %v1487 = vunpack.c.l.b16 %v1383
        %v1488 = vunpack.c.l.b16 %v1384
        %v1489 = vunpack.c.l.b16 %v1385
        %v1490 = vunpack.c.l.b16 %v1386
        %v1491 = vunpack.c.l.b16 %v1387
        %v1492 = vunpack.c.l.b16 %v1388
        %v1493 = vunpack.c.l.b16 %v1389
        %v1494 = vpack.c.b16 %v1463, %v1462
        %v1495 = vpack.c.b16 %v1465, %v1464
        %v1496 = vpack.c.b16 %v1467, %v1466
        %v1497 = vpack.c.b16 %v1469, %v1468
        %v1498 = vpack.c.b16 %v1471, %v1470
        %v1499 = vpack.c.b16 %v1473, %v1472
        %v1500 = vpack.c.b16 %v1475, %v1474
        %v1501 = vpack.c.b16 %v1477, %v1476
        %v1502 = vpack.c.b16 %v1479, %v1478
        %v1503 = vpack.c.b16 %v1481, %v1480
        %v1504 = vpack.c.b16 %v1483, %v1482
        %v1505 = vpack.c.b16 %v1485, %v1484
        %v1506 = vpack.c.b16 %v1487, %v1486
        %v1507 = vpack.c.b16 %v1489, %v1488
        %v1508 = vpack.c.b16 %v1491, %v1490
        %v1509 = vpack.c.b16 %v1493, %v1492
        %1526 = vmatprep.subr.bf16.mxu0 0
        %1527 = vmatpush1.bf16.msra.mxu0 %v1494
        %1528 = vmatprep.subr.bf16.mxu0 0
        %1529 = vmatpush1.bf16.msra.mxu0 %v1495
        %1530 = vmatprep.subr.bf16.mxu0 0
        %1531 = vmatpush1.bf16.msra.mxu0 %v1496
        %1532 = vmatprep.subr.bf16.mxu0 0
        %1533 = vmatpush1.bf16.msra.mxu0 %v1497
        %1534 = vmatprep.subr.bf16.mxu0 0
        %1535 = vmatpush1.bf16.msra.mxu0 %v1498
        %1536 = vmatprep.subr.bf16.mxu0 0
        %1537 = vmatpush1.bf16.msra.mxu0 %v1499
        %1538 = vmatprep.subr.bf16.mxu0 0
        %1539 = vmatpush1.bf16.msra.mxu0 %v1500
        %1540 = vmatprep.subr.bf16.mxu0 0
        %1541 = vmatpush1.bf16.msra.mxu0 %v1501
        %1542 = vmatprep.subr.bf16.mxu0 0
        %1543 = vmatpush1.bf16.msra.mxu0 %v1502
        %1544 = vmatprep.subr.bf16.mxu0 0
        %1545 = vmatpush1.bf16.msra.mxu0 %v1503
        %1546 = vmatprep.subr.bf16.mxu0 0
        %1547 = vmatpush1.bf16.msra.mxu0 %v1504
        %1548 = vmatprep.subr.bf16.mxu0 0
        %1549 = vmatpush1.bf16.msra.mxu0 %v1505
        %1550 = vmatprep.subr.bf16.mxu0 0
        %1551 = vmatpush1.bf16.msra.mxu0 %v1506
        %1552 = vmatprep.subr.bf16.mxu0 0
        %1553 = vmatpush1.bf16.msra.mxu0 %v1507
        %1554 = vmatprep.subr.bf16.mxu0 0
        %1555 = vmatpush1.bf16.msra.mxu0 %v1508
        %1556 = vmatprep.subr.bf16.mxu0 0
        %1557 = vmatpush1.bf16.msra.mxu0 %v1509
        %1558 = vmatprep.mubr.bf16.mxu0 %v1415
        %1559 = vmatmul.mubr.bf16.gmra.mrb[0].mxu0 %v1414
        %v1560 = vpop.f32.mrb[0].mxu0
        %v1561 = vadd.f32 0.0, %v1560
        %v1562 = vpop.f32.mrb[0].mxu0
        %v1563 = vpop.f32.mrb[0].mxu0
        %v1564 = vadd.f32 0.0, %v1563
        %v1565 = vpop.f32.mrb[0].mxu0
        %1566 = vmatprep.mubr.bf16.mxu0 %v1417
        %1567 = vmatmul.mubr.bf16.gmra.mrb[0].mxu0 %v1416
        %v1568 = vpop.f32.mrb[0].mxu0
        %v1569 = vadd.f32 0.0, %v1568
        %v1570 = vpop.f32.mrb[0].mxu0
        %v1571 = vpop.f32.mrb[0].mxu0
        %v1572 = vadd.f32 0.0, %v1571
        %v1573 = vpop.f32.mrb[0].mxu0
        %1574 = vmatprep.mubr.bf16.mxu0 %v1419
        %1575 = vmatmul.mubr.bf16.gmra.mrb[0].mxu0 %v1418
        %v1576 = vpop.f32.mrb[0].mxu0
        %v1577 = vadd.f32 0.0, %v1576
        %v1578 = vpop.f32.mrb[0].mxu0
        %v1579 = vpop.f32.mrb[0].mxu0
        %v1580 = vadd.f32 0.0, %v1579
        %v1581 = vpop.f32.mrb[0].mxu0
        %1582 = vmatprep.mubr.bf16.mxu0 %v1421
        %1583 = vmatmul.mubr.bf16.gmra.mrb[0].mxu0 %v1420
        %v1584 = vpop.f32.mrb[0].mxu0
        %v1585 = vadd.f32 0.0, %v1584
        %v1586 = vpop.f32.mrb[0].mxu0
        %v1587 = vpop.f32.mrb[0].mxu0
        %v1588 = vadd.f32 0.0, %v1587
        %v1589 = vpop.f32.mrb[0].mxu0
        %1590 = vdwg.mxu0
        %v1591 = vadd.f32 %v1328, %v1561
        %v1592 = vadd.f32 %v1331, %v1564
        %v1593 = vadd.f32 %v1336, %v1569
        %v1594 = vadd.f32 %v1339, %v1572
        %v1595 = vadd.f32 %v1344, %v1577
        %v1596 = vadd.f32 %v1347, %v1580
        %v1597 = vadd.f32 %v1352, %v1585
        %v1598 = vadd.f32 %v1355, %v1588
        %v1600 = vshrl.u32 %v849, 16
        %v1602 = vrot.slane %v1600, 4
        %v1603 = vshll.u32 %v849, 16
        %v1605 = vrot.slane %v1603, 5
        %v1606 = vor.u32 %v1602, %v1605
        %v1607 = vrot.slane %v1606, 4
        %v1609 = vshll.u32 %v850, 16
        %v1611 = vrot.slane %v1609, 5
        %v1612 = vsel %vm899, %v1607, %v1611
        %v1614 = vshrl.u32 %v851, 16
        %v1616 = vrot.slane %v1614, 4
        %v1617 = vshll.u32 %v851, 16
        %v1619 = vrot.slane %v1617, 5
        %v1620 = vor.u32 %v1616, %v1619
        %v1621 = vrot.slane %v1620, 4
        %v1623 = vshll.u32 %v852, 16
        %v1625 = vrot.slane %v1623, 5
        %v1626 = vsel %vm899, %v1621, %v1625
        %v1628 = vshrl.u32 %v853, 16
        %v1630 = vrot.slane %v1628, 4
        %v1631 = vshll.u32 %v853, 16
        %v1633 = vrot.slane %v1631, 5
        %v1634 = vor.u32 %v1630, %v1633
        %v1635 = vrot.slane %v1634, 4
        %v1637 = vshll.u32 %v854, 16
        %v1639 = vrot.slane %v1637, 5
        %v1640 = vsel %vm899, %v1635, %v1639
        %v1642 = vshrl.u32 %v855, 16
        %v1644 = vrot.slane %v1642, 4
        %v1645 = vshll.u32 %v855, 16
        %v1647 = vrot.slane %v1645, 5
        %v1648 = vor.u32 %v1644, %v1647
        %v1649 = vrot.slane %v1648, 4
        %v1651 = vshll.u32 %v856, 16
        %v1653 = vrot.slane %v1651, 5
        %v1654 = vsel %vm899, %v1649, %v1653
        %v1656 = vshrl.u32 %v857, 16
        %v1658 = vrot.slane %v1656, 4
        %v1659 = vshll.u32 %v857, 16
        %v1661 = vrot.slane %v1659, 5
        %v1662 = vor.u32 %v1658, %v1661
        %v1663 = vrot.slane %v1662, 4
        %v1665 = vshll.u32 %v858, 16
        %v1667 = vrot.slane %v1665, 5
        %v1668 = vsel %vm899, %v1663, %v1667
        %v1670 = vshrl.u32 %v859, 16
        %v1672 = vrot.slane %v1670, 4
        %v1673 = vshll.u32 %v859, 16
        %v1675 = vrot.slane %v1673, 5
        %v1676 = vor.u32 %v1672, %v1675
        %v1677 = vrot.slane %v1676, 4
        %v1679 = vshll.u32 %v860, 16
        %v1681 = vrot.slane %v1679, 5
        %v1682 = vsel %vm899, %v1677, %v1681
        %v1684 = vshrl.u32 %v861, 16
        %v1686 = vrot.slane %v1684, 4
        %v1687 = vshll.u32 %v861, 16
        %v1689 = vrot.slane %v1687, 5
        %v1690 = vor.u32 %v1686, %v1689
        %v1691 = vrot.slane %v1690, 4
        %v1693 = vshll.u32 %v862, 16
        %v1695 = vrot.slane %v1693, 5
        %v1696 = vsel %vm899, %v1691, %v1695
        %v1698 = vshrl.u32 %v863, 16
        %v1700 = vrot.slane %v1698, 4
        %v1701 = vshll.u32 %v863, 16
        %v1703 = vrot.slane %v1701, 5
        %v1704 = vor.u32 %v1700, %v1703
        %v1705 = vrot.slane %v1704, 4
        %v1707 = vshll.u32 %v864, 16
        %v1709 = vrot.slane %v1707, 5
        %v1710 = vsel %vm899, %v1705, %v1709
        %v1711 = vld [vmem:[%s793 + $0x140] sm:$0xf]
        %v1712 = vld [vmem:[%s793 + $0x144] sm:$0xf]
        %v1713 = vld [vmem:[%s793 + $0x148] sm:$0xf]
        %v1714 = vld [vmem:[%s793 + $0x14c] sm:$0xf]
        %v1715 = vld [vmem:[%s793 + $0x150] sm:$0xf]
        %v1716 = vld [vmem:[%s793 + $0x154] sm:$0xf]
        %v1717 = vld [vmem:[%s793 + $0x158] sm:$0xf]
        %v1718 = vld [vmem:[%s793 + $0x15c] sm:$0xf]
        %v1719 = vld [vmem:[%s793 + $0x160] sm:$0xf]
        %v1720 = vld [vmem:[%s793 + $0x164] sm:$0xf]
        %v1721 = vld [vmem:[%s793 + $0x168] sm:$0xf]
        %v1722 = vld [vmem:[%s793 + $0x16c] sm:$0xf]
        %v1723 = vld [vmem:[%s793 + $0x170] sm:$0xf]
        %v1724 = vld [vmem:[%s793 + $0x174] sm:$0xf]
        %v1725 = vld [vmem:[%s793 + $0x178] sm:$0xf]
        %v1726 = vld [vmem:[%s793 + $0x17c] sm:$0xf]
        %v1727 = vunpack.c.l.b16 %v1612
        %v1728 = vunpack.c.l.b16 %v1626
        %v1729 = vunpack.c.l.b16 %v1640
        %v1730 = vunpack.c.l.b16 %v1654
        %v1731 = vunpack.c.l.b16 %v1668
        %v1732 = vunpack.c.l.b16 %v1682
        %v1733 = vunpack.c.l.b16 %v1696
        %v1734 = vunpack.c.l.b16 %v1710
        %v1735 = vpack.c.b16 %v1728, %v1727
        %v1736 = vpack.c.b16 %v1730, %v1729
        %v1737 = vpack.c.b16 %v1732, %v1731
        %v1738 = vpack.c.b16 %v1734, %v1733
        %v1759 = vunpack.c.l.b16 %v1711
        %v1760 = vunpack.c.l.b16 %v1712
        %v1761 = vunpack.c.l.b16 %v1713
        %v1762 = vunpack.c.l.b16 %v1714
        %v1763 = vunpack.c.l.b16 %v1715
        %v1764 = vunpack.c.l.b16 %v1716
        %v1765 = vunpack.c.l.b16 %v1717
        %v1766 = vunpack.c.l.b16 %v1718
        %v1767 = vunpack.c.l.b16 %v1719
        %v1768 = vunpack.c.l.b16 %v1720
        %v1769 = vunpack.c.l.b16 %v1721
        %v1770 = vunpack.c.l.b16 %v1722
        %v1771 = vunpack.c.l.b16 %v1723
        %v1772 = vunpack.c.l.b16 %v1724
        %v1773 = vunpack.c.l.b16 %v1725
        %v1774 = vunpack.c.l.b16 %v1726
        %v1775 = vpack.c.b16 %v1760, %v1759
        %v1776 = vpack.c.b16 %v1762, %v1761
        %v1777 = vpack.c.b16 %v1764, %v1763
        %v1778 = vpack.c.b16 %v1766, %v1765
        %v1779 = vpack.c.b16 %v1768, %v1767
        %v1780 = vpack.c.b16 %v1770, %v1769
        %v1781 = vpack.c.b16 %v1772, %v1771
        %v1782 = vpack.c.b16 %v1774, %v1773
        %1791 = vmatprep.subr.bf16.mxu0 0
        %1792 = vmatpush1.bf16.msra.mxu0 %v1775
        %1793 = vmatprep.subr.bf16.mxu0 0
        %1794 = vmatpush1.bf16.msra.mxu0 %v1776
        %1795 = vmatprep.subr.bf16.mxu0 0
        %1796 = vmatpush1.bf16.msra.mxu0 %v1777
        %1797 = vmatprep.subr.bf16.mxu0 0
        %1798 = vmatpush1.bf16.msra.mxu0 %v1778
        %1799 = vmatprep.subr.bf16.mxu0 0
        %1800 = vmatpush1.bf16.msra.mxu0 %v1779
        %1801 = vmatprep.subr.bf16.mxu0 0
        %1802 = vmatpush1.bf16.msra.mxu0 %v1780
        %1803 = vmatprep.subr.bf16.mxu0 0
        %1804 = vmatpush1.bf16.msra.mxu0 %v1781
        %1805 = vmatprep.subr.bf16.mxu0 0
        %1806 = vmatpush1.bf16.msra.mxu0 %v1782
        %1807 = vmatprep.subr.bf16.mxu0 0
        %1808 = vmatpush1.bf16.msra.mxu0 0
        %1809 = vmatprep.subr.bf16.mxu0 0
        %1810 = vmatpush1.bf16.msra.mxu0 0
        %1811 = vmatprep.subr.bf16.mxu0 0
        %1812 = vmatpush1.bf16.msra.mxu0 0
        %1813 = vmatprep.subr.bf16.mxu0 0
        %1814 = vmatpush1.bf16.msra.mxu0 0
        %1815 = vmatprep.subr.bf16.mxu0 0
        %1816 = vmatpush1.bf16.msra.mxu0 0
        %1817 = vmatprep.subr.bf16.mxu0 0
        %1818 = vmatpush1.bf16.msra.mxu0 0
        %1819 = vmatprep.subr.bf16.mxu0 0
        %1820 = vmatpush1.bf16.msra.mxu0 0
        %1821 = vmatprep.subr.bf16.mxu0 0
        %1822 = vmatpush1.bf16.msra.mxu0 0
        %1823 = vmatprep.mubr.bf16.mxu0 0
        %1824 = vmatmul.mubr.bf16.gmra.mrb[0].mxu0 %v1735
        %v1825 = vpop.f32.mrb[0].mxu0
        %v1826 = vadd.f32 0.0, %v1825
        %v1827 = vpop.f32.mrb[0].mxu0
        %v1828 = vpop.f32.mrb[0].mxu0
        %v1829 = vadd.f32 0.0, %v1828
        %v1830 = vpop.f32.mrb[0].mxu0
        %1831 = vmatprep.mubr.bf16.mxu0 0
        %1832 = vmatmul.mubr.bf16.gmra.mrb[0].mxu0 %v1736
        %v1833 = vpop.f32.mrb[0].mxu0
        %v1834 = vadd.f32 0.0, %v1833
        %v1835 = vpop.f32.mrb[0].mxu0
        %v1836 = vpop.f32.mrb[0].mxu0
        %v1837 = vadd.f32 0.0, %v1836
        %v1838 = vpop.f32.mrb[0].mxu0
        %1839 = vmatprep.mubr.bf16.mxu0 0
        %1840 = vmatmul.mubr.bf16.gmra.mrb[0].mxu0 %v1737
        %v1841 = vpop.f32.mrb[0].mxu0
        %v1842 = vadd.f32 0.0, %v1841
        %v1843 = vpop.f32.mrb[0].mxu0
        %v1844 = vpop.f32.mrb[0].mxu0
        %v1845 = vadd.f32 0.0, %v1844
        %v1846 = vpop.f32.mrb[0].mxu0
        %1847 = vmatprep.mubr.bf16.mxu0 0
        %1848 = vmatmul.mubr.bf16.gmra.mrb[0].mxu0 %v1738
        %v1849 = vpop.f32.mrb[0].mxu0
        %v1850 = vadd.f32 0.0, %v1849
        %v1851 = vpop.f32.mrb[0].mxu0
        %v1852 = vpop.f32.mrb[0].mxu0
        %v1853 = vadd.f32 0.0, %v1852
        %v1854 = vpop.f32.mrb[0].mxu0
        %1855 = vdwg.mxu0
        %v1856 = vadd.f32 %v1591, %v1826
        %v1857 = vadd.f32 %v1592, %v1829
        %v1858 = vadd.f32 %v1593, %v1834
        %v1859 = vadd.f32 %v1594, %v1837
        %v1860 = vadd.f32 %v1595, %v1842
        %v1861 = vadd.f32 %v1596, %v1845
        %v1862 = vadd.f32 %v1597, %v1850
        %v1863 = vadd.f32 %v1598, %v1853
        %v1864 = vld [vmem:[%s793 + $0x180] sm:$0xf]
        %v1865 = vld [vmem:[%s793 + $0x184] sm:$0xf]
        %v1866 = vld [vmem:[%s793 + $0x188] sm:$0xf]
        %v1867 = vld [vmem:[%s793 + $0x18c] sm:$0xf]
        %v1868 = vld [vmem:[%s793 + $0x190] sm:$0xf]
        %v1869 = vld [vmem:[%s793 + $0x194] sm:$0xf]
        %v1870 = vld [vmem:[%s793 + $0x198] sm:$0xf]
        %v1871 = vld [vmem:[%s793 + $0x19c] sm:$0xf]
        %v1872 = vld [vmem:[%s793 + $0x1a0] sm:$0xf]
        %v1873 = vld [vmem:[%s793 + $0x1a4] sm:$0xf]
        %v1874 = vld [vmem:[%s793 + $0x1a8] sm:$0xf]
        %v1875 = vld [vmem:[%s793 + $0x1ac] sm:$0xf]
        %v1876 = vld [vmem:[%s793 + $0x1b0] sm:$0xf]
        %v1877 = vld [vmem:[%s793 + $0x1b4] sm:$0xf]
        %v1878 = vld [vmem:[%s793 + $0x1b8] sm:$0xf]
        %v1879 = vld [vmem:[%s793 + $0x1bc] sm:$0xf]
        %v1880 = vld [vmem:[%s793 + $0x1c0] sm:$0xf]
        %v1881 = vld [vmem:[%s793 + $0x1c4] sm:$0xf]
        %v1882 = vld [vmem:[%s793 + $0x1c8] sm:$0xf]
        %v1883 = vld [vmem:[%s793 + $0x1cc] sm:$0xf]
        %v1884 = vld [vmem:[%s793 + $0x1d0] sm:$0xf]
        %v1885 = vld [vmem:[%s793 + $0x1d4] sm:$0xf]
        %v1886 = vld [vmem:[%s793 + $0x1d8] sm:$0xf]
        %v1887 = vld [vmem:[%s793 + $0x1dc] sm:$0xf]
        %v1888 = vld [vmem:[%s793 + $0x1e0] sm:$0xf]
        %v1889 = vld [vmem:[%s793 + $0x1e4] sm:$0xf]
        %v1890 = vld [vmem:[%s793 + $0x1e8] sm:$0xf]
        %v1891 = vld [vmem:[%s793 + $0x1ec] sm:$0xf]
        %v1892 = vld [vmem:[%s793 + $0x1f0] sm:$0xf]
        %v1893 = vld [vmem:[%s793 + $0x1f4] sm:$0xf]
        %v1894 = vld [vmem:[%s793 + $0x1f8] sm:$0xf]
        %v1895 = vld [vmem:[%s793 + $0x1fc] sm:$0xf]
        %v1897 = vunpack.c.l.b16 %v847
        %v1898 = vunpack.c.h.b16 %v847
        %v1899 = vpack.c.b16 %v1169, %v1167
        %v1900 = vpack.c.b16 %v1170, %v1168
        %v1901 = vpack.c.b16 %v1173, %v1171
        %v1902 = vpack.c.b16 %v1174, %v1172
        %v1903 = vpack.c.b16 %v1177, %v1175
        %v1904 = vpack.c.b16 %v1178, %v1176
        %v1905 = vpack.c.b16 %v1897, %v1179
        %v1906 = vpack.c.b16 %v1898, %v1180
        %v1947 = vunpack.c.l.b16 %v1864
        %v1948 = vunpack.c.l.b16 %v1865
        %v1949 = vunpack.c.l.b16 %v1866
        %v1950 = vunpack.c.l.b16 %v1867
        %v1951 = vunpack.c.l.b16 %v1868
        %v1952 = vunpack.c.l.b16 %v1869
        %v1953 = vunpack.c.l.b16 %v1870
        %v1954 = vunpack.c.l.b16 %v1871
        %v1955 = vunpack.c.l.b16 %v1872
        %v1956 = vunpack.c.l.b16 %v1873
        %v1957 = vunpack.c.l.b16 %v1874
        %v1958 = vunpack.c.l.b16 %v1875
        %v1959 = vunpack.c.l.b16 %v1876
        %v1960 = vunpack.c.l.b16 %v1877
        %v1961 = vunpack.c.l.b16 %v1878
        %v1962 = vunpack.c.l.b16 %v1879
        %v1963 = vunpack.c.l.b16 %v1880
        %v1964 = vunpack.c.l.b16 %v1881
        %v1965 = vunpack.c.l.b16 %v1882
        %v1966 = vunpack.c.l.b16 %v1883
        %v1967 = vunpack.c.l.b16 %v1884
        %v1968 = vunpack.c.l.b16 %v1885
        %v1969 = vunpack.c.l.b16 %v1886
        %v1970 = vunpack.c.l.b16 %v1887
        %v1971 = vunpack.c.l.b16 %v1888
        %v1972 = vunpack.c.l.b16 %v1889
        %v1973 = vunpack.c.l.b16 %v1890
        %v1974 = vunpack.c.l.b16 %v1891
        %v1975 = vunpack.c.l.b16 %v1892
        %v1976 = vunpack.c.l.b16 %v1893
        %v1977 = vunpack.c.l.b16 %v1894
        %v1978 = vunpack.c.l.b16 %v1895
        %v1979 = vpack.c.b16 %v1948, %v1947
        %v1980 = vpack.c.b16 %v1950, %v1949
        %v1981 = vpack.c.b16 %v1952, %v1951
        %v1982 = vpack.c.b16 %v1954, %v1953
        %v1983 = vpack.c.b16 %v1956, %v1955
        %v1984 = vpack.c.b16 %v1958, %v1957
        %v1985 = vpack.c.b16 %v1960, %v1959
        %v1986 = vpack.c.b16 %v1962, %v1961
        %v1987 = vpack.c.b16 %v1964, %v1963
        %v1988 = vpack.c.b16 %v1966, %v1965
        %v1989 = vpack.c.b16 %v1968, %v1967
        %v1990 = vpack.c.b16 %v1970, %v1969
        %v1991 = vpack.c.b16 %v1972, %v1971
        %v1992 = vpack.c.b16 %v1974, %v1973
        %v1993 = vpack.c.b16 %v1976, %v1975
        %v1994 = vpack.c.b16 %v1978, %v1977
        %2011 = vmatprep.subr.bf16.mxu0 0
        %2012 = vmatpush1.bf16.msra.mxu0 %v1979
        %2013 = vmatprep.subr.bf16.mxu0 0
        %2014 = vmatpush1.bf16.msra.mxu0 %v1980
        %2015 = vmatprep.subr.bf16.mxu0 0
        %2016 = vmatpush1.bf16.msra.mxu0 %v1981
        %2017 = vmatprep.subr.bf16.mxu0 0
        %2018 = vmatpush1.bf16.msra.mxu0 %v1982
        %2019 = vmatprep.subr.bf16.mxu0 0
        %2020 = vmatpush1.bf16.msra.mxu0 %v1983
        %2021 = vmatprep.subr.bf16.mxu0 0
        %2022 = vmatpush1.bf16.msra.mxu0 %v1984
        %2023 = vmatprep.subr.bf16.mxu0 0
        %2024 = vmatpush1.bf16.msra.mxu0 %v1985
        %2025 = vmatprep.subr.bf16.mxu0 0
        %2026 = vmatpush1.bf16.msra.mxu0 %v1986
        %2027 = vmatprep.subr.bf16.mxu0 0
        %2028 = vmatpush1.bf16.msra.mxu0 %v1987
        %2029 = vmatprep.subr.bf16.mxu0 0
        %2030 = vmatpush1.bf16.msra.mxu0 %v1988
        %2031 = vmatprep.subr.bf16.mxu0 0
        %2032 = vmatpush1.bf16.msra.mxu0 %v1989
        %2033 = vmatprep.subr.bf16.mxu0 0
        %2034 = vmatpush1.bf16.msra.mxu0 %v1990
        %2035 = vmatprep.subr.bf16.mxu0 0
        %2036 = vmatpush1.bf16.msra.mxu0 %v1991
        %2037 = vmatprep.subr.bf16.mxu0 0
        %2038 = vmatpush1.bf16.msra.mxu0 %v1992
        %2039 = vmatprep.subr.bf16.mxu0 0
        %2040 = vmatpush1.bf16.msra.mxu0 %v1993
        %2041 = vmatprep.subr.bf16.mxu0 0
        %2042 = vmatpush1.bf16.msra.mxu0 %v1994
        %2043 = vmatprep.mubr.bf16.mxu0 %v1900
        %2044 = vmatmul.mubr.bf16.gmra.mrb[0].mxu0 %v1899
        %v2045 = vpop.f32.mrb[0].mxu0
        %v2046 = vadd.f32 0.0, %v2045
        %v2047 = vpop.f32.mrb[0].mxu0
        %v2048 = vpop.f32.mrb[0].mxu0
        %v2049 = vadd.f32 0.0, %v2048
        %v2050 = vpop.f32.mrb[0].mxu0
        %2051 = vmatprep.mubr.bf16.mxu0 %v1902
        %2052 = vmatmul.mubr.bf16.gmra.mrb[0].mxu0 %v1901
        %v2053 = vpop.f32.mrb[0].mxu0
        %v2054 = vadd.f32 0.0, %v2053
        %v2055 = vpop.f32.mrb[0].mxu0
        %v2056 = vpop.f32.mrb[0].mxu0
        %v2057 = vadd.f32 0.0, %v2056
        %v2058 = vpop.f32.mrb[0].mxu0
        %2059 = vmatprep.mubr.bf16.mxu0 %v1904
        %2060 = vmatmul.mubr.bf16.gmra.mrb[0].mxu0 %v1903
        %v2061 = vpop.f32.mrb[0].mxu0
        %v2062 = vadd.f32 0.0, %v2061
        %v2063 = vpop.f32.mrb[0].mxu0
        %v2064 = vpop.f32.mrb[0].mxu0
        %v2065 = vadd.f32 0.0, %v2064
        %v2066 = vpop.f32.mrb[0].mxu0
        %2067 = vmatprep.mubr.bf16.mxu0 %v1906
        %2068 = vmatmul.mubr.bf16.gmra.mrb[0].mxu0 %v1905
        %v2069 = vpop.f32.mrb[0].mxu0
        %v2070 = vadd.f32 0.0, %v2069
        %v2071 = vpop.f32.mrb[0].mxu0
        %v2072 = vpop.f32.mrb[0].mxu0
        %v2073 = vadd.f32 0.0, %v2072
        %v2074 = vpop.f32.mrb[0].mxu0
        %2075 = vdwg.mxu0
        %v2076 = vadd.f32 %v1856, %v2046
        %v2077 = vadd.f32 %v1857, %v2049
        %v2078 = vadd.f32 %v1858, %v2054
        %v2079 = vadd.f32 %v1859, %v2057
        %v2080 = vadd.f32 %v1860, %v2062
        %v2081 = vadd.f32 %v1861, %v2065
        %v2082 = vadd.f32 %v1862, %v2070
        %v2083 = vadd.f32 %v1863, %v2073
        %v2085 = vshrl.u32 %v847, 16
        %v2087 = vrot.slane %v2085, 4
        %v2088 = vshll.u32 %v847, 16
        %v2090 = vrot.slane %v2088, 5
        %v2091 = vor.u32 %v2087, %v2090
        %v2092 = vrot.slane %v2091, 4
        %v2094 = vshll.u32 %v848, 16
        %v2096 = vrot.slane %v2094, 5
        %v2097 = vsel %vm899, %v2092, %v2096
        %v2098 = vld [vmem:[%s793 + $0x200] sm:$0xf]
        %v2099 = vld [vmem:[%s793 + $0x204] sm:$0xf]
        %v2100 = vld [vmem:[%s793 + $0x208] sm:$0xf]
        %v2101 = vld [vmem:[%s793 + $0x20c] sm:$0xf]
        %v2102 = vld [vmem:[%s793 + $0x210] sm:$0xf]
        %v2103 = vld [vmem:[%s793 + $0x214] sm:$0xf]
        %v2104 = vld [vmem:[%s793 + $0x218] sm:$0xf]
        %v2105 = vld [vmem:[%s793 + $0x21c] sm:$0xf]
        %v2106 = vld [vmem:[%s793 + $0x220] sm:$0xf]
        %v2107 = vld [vmem:[%s793 + $0x224] sm:$0xf]
        %v2108 = vld [vmem:[%s793 + $0x228] sm:$0xf]
        %v2109 = vld [vmem:[%s793 + $0x22c] sm:$0xf]
        %v2110 = vld [vmem:[%s793 + $0x230] sm:$0xf]
        %v2111 = vld [vmem:[%s793 + $0x234] sm:$0xf]
        %v2112 = vld [vmem:[%s793 + $0x238] sm:$0xf]
        %v2113 = vld [vmem:[%s793 + $0x23c] sm:$0xf]
        %v2114 = vunpack.c.l.b16 %v2097
        %v2115 = vpack.c.b16 %v1030, %v1029
        %v2116 = vpack.c.b16 %v1032, %v1031
        %v2117 = vpack.c.b16 %v1034, %v1033
        %v2118 = vpack.c.b16 %v2114, %v1035
        %v2139 = vunpack.c.l.b16 %v2098
        %v2140 = vunpack.c.l.b16 %v2099
        %v2141 = vunpack.c.l.b16 %v2100
        %v2142 = vunpack.c.l.b16 %v2101
        %v2143 = vunpack.c.l.b16 %v2102
        %v2144 = vunpack.c.l.b16 %v2103
        %v2145 = vunpack.c.l.b16 %v2104
        %v2146 = vunpack.c.l.b16 %v2105
        %v2147 = vunpack.c.l.b16 %v2106
        %v2148 = vunpack.c.l.b16 %v2107
        %v2149 = vunpack.c.l.b16 %v2108
        %v2150 = vunpack.c.l.b16 %v2109
        %v2151 = vunpack.c.l.b16 %v2110
        %v2152 = vunpack.c.l.b16 %v2111
        %v2153 = vunpack.c.l.b16 %v2112
        %v2154 = vunpack.c.l.b16 %v2113
        %v2155 = vpack.c.b16 %v2140, %v2139
        %v2156 = vpack.c.b16 %v2142, %v2141
        %v2157 = vpack.c.b16 %v2144, %v2143
        %v2158 = vpack.c.b16 %v2146, %v2145
        %v2159 = vpack.c.b16 %v2148, %v2147
        %v2160 = vpack.c.b16 %v2150, %v2149
        %v2161 = vpack.c.b16 %v2152, %v2151
        %v2162 = vpack.c.b16 %v2154, %v2153
        %2171 = vmatprep.subr.bf16.mxu0 0
        %2172 = vmatpush1.bf16.msra.mxu0 %v2155
        %2173 = vmatprep.subr.bf16.mxu0 0
        %2174 = vmatpush1.bf16.msra.mxu0 %v2156
        %2175 = vmatprep.subr.bf16.mxu0 0
        %2176 = vmatpush1.bf16.msra.mxu0 %v2157
        %2177 = vmatprep.subr.bf16.mxu0 0
        %2178 = vmatpush1.bf16.msra.mxu0 %v2158
        %2179 = vmatprep.subr.bf16.mxu0 0
        %2180 = vmatpush1.bf16.msra.mxu0 %v2159
        %2181 = vmatprep.subr.bf16.mxu0 0
        %2182 = vmatpush1.bf16.msra.mxu0 %v2160
        %2183 = vmatprep.subr.bf16.mxu0 0
        %2184 = vmatpush1.bf16.msra.mxu0 %v2161
        %2185 = vmatprep.subr.bf16.mxu0 0
        %2186 = vmatpush1.bf16.msra.mxu0 %v2162
        %2187 = vmatprep.subr.bf16.mxu0 0
        %2188 = vmatpush1.bf16.msra.mxu0 0
        %2189 = vmatprep.subr.bf16.mxu0 0
        %2190 = vmatpush1.bf16.msra.mxu0 0
        %2191 = vmatprep.subr.bf16.mxu0 0
        %2192 = vmatpush1.bf16.msra.mxu0 0
        %2193 = vmatprep.subr.bf16.mxu0 0
        %2194 = vmatpush1.bf16.msra.mxu0 0
        %2195 = vmatprep.subr.bf16.mxu0 0
        %2196 = vmatpush1.bf16.msra.mxu0 0
        %2197 = vmatprep.subr.bf16.mxu0 0
        %2198 = vmatpush1.bf16.msra.mxu0 0
        %2199 = vmatprep.subr.bf16.mxu0 0
        %2200 = vmatpush1.bf16.msra.mxu0 0
        %2201 = vmatprep.subr.bf16.mxu0 0
        %2202 = vmatpush1.bf16.msra.mxu0 0
        %2203 = vmatprep.mubr.bf16.mxu0 0
        %2204 = vmatmul.mubr.bf16.gmra.mrb[0].mxu0 %v2115
        %v2205 = vpop.f32.mrb[0].mxu0
        %v2206 = vadd.f32 0.0, %v2205
        %v2207 = vpop.f32.mrb[0].mxu0
        %v2208 = vpop.f32.mrb[0].mxu0
        %v2209 = vadd.f32 0.0, %v2208
        %v2210 = vpop.f32.mrb[0].mxu0
        %2211 = vmatprep.mubr.bf16.mxu0 0
        %2212 = vmatmul.mubr.bf16.gmra.mrb[0].mxu0 %v2116
        %v2213 = vpop.f32.mrb[0].mxu0
        %v2214 = vadd.f32 0.0, %v2213
        %v2215 = vpop.f32.mrb[0].mxu0
        %v2216 = vpop.f32.mrb[0].mxu0
        %v2217 = vadd.f32 0.0, %v2216
        %v2218 = vpop.f32.mrb[0].mxu0
        %2219 = vmatprep.mubr.bf16.mxu0 0
        %2220 = vmatmul.mubr.bf16.gmra.mrb[0].mxu0 %v2117
        %v2221 = vpop.f32.mrb[0].mxu0
        %v2222 = vadd.f32 0.0, %v2221
        %v2223 = vpop.f32.mrb[0].mxu0
        %v2224 = vpop.f32.mrb[0].mxu0
        %v2225 = vadd.f32 0.0, %v2224
        %v2226 = vpop.f32.mrb[0].mxu0
        %2227 = vmatprep.mubr.bf16.mxu0 0
        %2228 = vmatmul.mubr.bf16.gmra.mrb[0].mxu0 %v2118
        %v2229 = vpop.f32.mrb[0].mxu0
        %v2230 = vadd.f32 0.0, %v2229
        %v2231 = vpop.f32.mrb[0].mxu0
        %v2232 = vpop.f32.mrb[0].mxu0
        %v2233 = vadd.f32 0.0, %v2232
        %v2234 = vpop.f32.mrb[0].mxu0
        %2235 = vdwg.mxu0
        %v2236 = vadd.f32 %v2076, %v2206
        %v2237 = vadd.f32 %v2077, %v2209
        %v2238 = vadd.f32 %v2078, %v2214
        %v2239 = vadd.f32 %v2079, %v2217
        %v2240 = vadd.f32 %v2080, %v2222
        %v2241 = vadd.f32 %v2081, %v2225
        %v2242 = vadd.f32 %v2082, %v2230
        %v2243 = vadd.f32 %v2083, %v2233
        %v2244 = vld [vmem:[%s829] sm:$0x1]
        %v2246 = vlaneseq
        %v2247 = vshrl.u32 %v2246, 7
        %v2248 = vsub.s32 0, %v2247
        %v2249 = vrot.slane %v2244, %v2248
        %v2251 = vadd.f32 %v2236, %v2249
        %v2252 = vadd.f32 %v2237, %v2249
        %v2253 = vadd.f32 %v2238, %v2249
        %v2254 = vadd.f32 %v2239, %v2249
        %v2255 = vadd.f32 %v2240, %v2249
        %v2256 = vadd.f32 %v2241, %v2249
        %v2257 = vadd.f32 %v2242, %v2249
        %v2258 = vadd.f32 %v2243, %v2249
        %v2259 = vadd.f32 %v2251, %v2252
        %v2260 = vadd.f32 %v2259, %v2253
        %v2261 = vadd.f32 %v2260, %v2254
        %v2262 = vadd.f32 %v2261, %v2255
        %v2263 = vadd.f32 %v2262, %v2256
        %v2264 = vadd.f32 %v2263, %v2257
        %v2265 = vadd.f32 %v2264, %v2258
        %v2266 = vrot.slane %v2265, 4
        %v2267 = vadd.f32 %v2265, %v2266
        %v2268 = vrot.slane %v2267, 2
        %v2269 = vadd.f32 %v2267, %v2268
        %v2270 = vrot.slane %v2269, 1
        %v2271 = vadd.f32 %v2269, %v2270
        %v2272 = vmul.f32 %v2271, 0.015625
        %v2273 = vsub.f32 %v2251, %v2272
        %v2274 = vsub.f32 %v2252, %v2272
        %v2275 = vsub.f32 %v2253, %v2272
        %v2276 = vsub.f32 %v2254, %v2272
        %v2277 = vsub.f32 %v2255, %v2272
        %v2278 = vsub.f32 %v2256, %v2272
        %v2279 = vsub.f32 %v2257, %v2272
        %v2280 = vsub.f32 %v2258, %v2272
        %v2281 = vmul.f32 %v2273, %v2273
        %v2282 = vmul.f32 %v2274, %v2274
        %v2283 = vmul.f32 %v2275, %v2275
        %v2284 = vmul.f32 %v2276, %v2276
        %v2285 = vmul.f32 %v2277, %v2277
        %v2286 = vmul.f32 %v2278, %v2278
        %v2287 = vmul.f32 %v2279, %v2279
        %v2288 = vmul.f32 %v2280, %v2280
        %v2289 = vadd.f32 %v2281, %v2282
        %v2290 = vadd.f32 %v2289, %v2283
        %v2291 = vadd.f32 %v2290, %v2284
        %v2292 = vadd.f32 %v2291, %v2285
        %v2293 = vadd.f32 %v2292, %v2286
        %v2294 = vadd.f32 %v2293, %v2287
        %v2295 = vadd.f32 %v2294, %v2288
        %v2296 = vrot.slane %v2295, 4
        %v2297 = vadd.f32 %v2295, %v2296
        %v2298 = vrot.slane %v2297, 2
        %v2299 = vadd.f32 %v2297, %v2298
        %v2300 = vrot.slane %v2299, 1
        %v2301 = vadd.f32 %v2299, %v2300
        %v2302 = vmul.f32 %v2301, 0.015625
        %v2303 = vadd.f32 %v2302, 1e-05
        %v2304 = vrsqrt.pop %v2303
        %v2305 = vmul.f32 %v2273, %v2304
        %v2306 = vmul.f32 %v2274, %v2304
        %v2307 = vmul.f32 %v2275, %v2304
        %v2308 = vmul.f32 %v2276, %v2304
        %v2309 = vmul.f32 %v2277, %v2304
        %v2310 = vmul.f32 %v2278, %v2304
        %v2311 = vmul.f32 %v2279, %v2304
        %v2312 = vmul.f32 %v2280, %v2304
        %v2313 = vmax.f32 %v2305, 0.0
        %v2314 = vmax.f32 %v2306, 0.0
        %v2315 = vmax.f32 %v2307, 0.0
        %v2316 = vmax.f32 %v2308, 0.0
        %v2317 = vmax.f32 %v2309, 0.0
        %v2318 = vmax.f32 %v2310, 0.0
        %v2319 = vmax.f32 %v2311, 0.0
        %v2320 = vmax.f32 %v2312, 0.0
        %2321 = vst [vmem:[%s821] sm:$0xff] %v2313
        %2322 = vst [vmem:[%s821 + $0x8] sm:$0xff] %v2314
        %2323 = vst [vmem:[%s821 + $0x10] sm:$0xff] %v2315
        %2324 = vst [vmem:[%s821 + $0x18] sm:$0xff] %v2316
        %2325 = vst [vmem:[%s821 + $0x20] sm:$0xff] %v2317
        %2326 = vst [vmem:[%s821 + $0x28] sm:$0xff] %v2318
        %2327 = vst [vmem:[%s821 + $0x30] sm:$0xff] %v2319
        %2328 = vst [vmem:[%s821 + $0x38] sm:$0xff] %v2320
        %s2329 = sand.u32 %s117, 1
        %s2330 = scalar_lea.sflag [#allocation4], %s2329
        %s2331 = sand.u32 %s117, 1
        %s2332 = smul.addr %s2331, 64
        %s2333 = scalar_lea.vmem [#allocation3], %s2332
        // Predicated region
        $region74: #{encoder_forward.5} parent=68 // pred_check
          %p2334 = pneg %p127
        $region75: #{encoder_forward.5} parent=68 // pred_check_branch
          %2336 = sbr.rel (%p2334) target = $region77
        $region76: #{encoder_forward.5} parent=68 // pred_region
          %s2338 = ssub.s32 1024, 1024
          %2339 = vsyncadd %s2330, %s2338
          %s2340 = smul.addr %s21, 16
          %s2341 = sadd.s32 %s22, %s2340
          %s2342 = smul.addr %s2341, 128
          %s2343 = scalar_lea.hbm %s3, %s2342
          %s2344 = sshll.u32 %s2333, 4
          %s2345 = int_to_ptr.vmem [resolvable:$true] %s2344
          %2350 = dma.vmem_to_hbm [thread:$0]  %s2345, 1024, %s2343, %s2330, 128, 256, 8
        $region77: #{encoder_forward.5} parent=68 // pred_fallthru
          _
      $region69: #{encoder_forward.5} parent=5 // pred_fallthru
        _
      %p2351 = scmp.le.s32.totalorder 2, %s12
      // Predicated region
      $region78: #{encoder_forward.5} parent=5 // pred_check
        %p2352 = pneg %p2351
      $region79: #{encoder_forward.5} parent=5 // pred_check_branch
        %2354 = sbr.rel (%p2352) target = $region81
      $region80: #{encoder_forward.5} parent=5 // pred_region
        %s2355 = ssub.s32 %s12, 2
        // Predicated region
        $region82: #{encoder_forward.5} parent=80 // pred_check
          %p2356 = pneg %p133
        $region83: #{encoder_forward.5} parent=80 // pred_check_branch
          %2358 = sbr.rel (%p2356) target = $region85
        $region84: #{encoder_forward.5} parent=80 // pred_region
          %s2359 = sand.u32 %s118, 1
          %s2360 = scalar_lea.sflag [#allocation4], %s2359
          %s2361 = sand.u32 %s118, 1
          %s2362 = smul.addr %s2361, 64
          %s2363 = scalar_lea.vmem [#allocation3], %s2362
          %2364 = dma.done %s2360, 1024
        $region85: #{encoder_forward.5} parent=80 // pred_fallthru
          _
      $region81: #{encoder_forward.5} parent=5 // pred_fallthru
        _
    $region6: #{encoder_forward.5} parent=1 // loop_footer
      %s16 = sadd.s32 1, %s12
    $region7: #{encoder_forward.5} parent=1 // loop_footer_branch
      %11 = sbr.rel target = $region3
    $region8: #{encoder_forward.5} parent=1 // loop_exit
      _
    %2365 = vsyncpa [#allocation4], 1
    %s2366 = scalar_lea.sflag [#allocation4], 1
    %2367 = vsyncpa %s2366, 1

</llo_original>
